<compile_context>
chip_gen: v6e
topology: v6e:2x2x1
jax: 0.10.0
libtpu: 0.0.40
codegen_flags: <defaults>
</compile_context>

<pallas_src>
import functools

import jax
import jax.numpy as jnp
from jax.experimental import pallas as pl
from jax.experimental.pallas import tpu as pltpu

# ---------------------------------------------------------------------------
# Model dimensions (defaults of the PyTorch module)
# ---------------------------------------------------------------------------
NUM_ENC_XYZ = 6
NUM_ENC_DIR = 4
DIM_XYZ = 3 + 2 * 3 * NUM_ENC_XYZ          # 39
DIM_DIR = 3 + 2 * 3 * NUM_ENC_DIR          # 27
DIM_EXPR = 76
HIDDEN = 128
HALF_HIDDEN = HIDDEN // 2                  # 64
OUT_W = 4                                  # rgb (3) + alpha (1)


def _relu(x):
    return jnp.maximum(x, 0.0)


def _round_up(v, m):
    return ((v + m - 1) // m) * m


def _choose_tile(n, tm):
    # Keep >= 2 grid steps when n allows it (v7x shards the "parallel" axis
    # across its 2 TensorCores); rows a multiple of 512 (amortizes per-step cost).
    return min(tm, max(512, _round_up((n + 1) // 2, 512)))


# ---------------------------------------------------------------------------
# Pallas kernel: full MLP forward for one tile of TM rows.
# ---------------------------------------------------------------------------
def nerf_kernel(
    xyz_ref,             # (TM, 39)  bf16
    view_ref,            # (TM, 27)  bf16
    w1_ref, b1_ref,      # (39,128) bf16, (1,128) f32  (expr folded into b1)
    wx0_ref, bx0_ref,    # (128,128) bf16, (1,128) f32
    wx1_ref, bx1_ref,
    wx2_ref, bx2_ref,
    wfeat_ref, bfeat_ref,   # (128,128) bf16, (1,128) f32
    wdf_ref, wdv_ref, bdir_ref,   # (128,64) bf16, (27,64) bf16, (1,64) f32
    wout_h_ref, wout_d_ref, bout_ref,  # (128,4) bf16 (alpha col 3), (64,4) bf16 (rgb cols 0:3), (1,4) f32
    out_ref,             # (TM, 4) f32
):
    def mm(a, b):
        # bf16 operands, f32 accumulation on the MXU.
        return jnp.dot(a.astype(jnp.bfloat16), b, preferred_element_type=jnp.float32)

    xyz = xyz_ref[...]
    view = view_ref[...]

    # layer1 (no activation, per reference); expression contribution is in b1_ref.
    h = mm(xyz, w1_ref[...]) + b1_ref[...]                         # (TM, 128)

    # layers_xyz: 3 x Linear(128,128) + ReLU (skip branch dead for num_layers=4)
    h = _relu(mm(h, wx0_ref[...]) + bx0_ref[...])
    h = _relu(mm(h, wx1_ref[...]) + bx1_ref[...])
    h = _relu(mm(h, wx2_ref[...]) + bx2_ref[...])
    h16 = h.astype(jnp.bfloat16)                                   # reused by feat & alpha

    # fc_feat (ReLU)
    feat = _relu(mm(h16, wfeat_ref[...]) + bfeat_ref[...])         # (TM, 128)

    # view-direction layer, concat-free split matmul
    hd = _relu(mm(feat, wdf_ref[...]) + mm(view, wdv_ref[...]) + bdir_ref[...])  # (TM, 64)

    # epilogue: rgb (cols 0:3) and alpha (col 3) accumulated straight into the
    # output tile -> no wide intermediate, no concatenate.
    out_ref[...] = mm(hd, wout_d_ref[...]) + mm(h16, wout_h_ref[...]) + bout_ref[...]


# ---------------------------------------------------------------------------
# One-time weight preparation (expr-independent): bf16 casts, splits and
# output-weight folds. Cache the result across calls.
# ---------------------------------------------------------------------------
def prepare_weights(params):
    f32, bf16 = jnp.float32, jnp.bfloat16

    w1 = params["w1"].astype(f32)                              # (115, 128)
    w_rgb = params["w_rgb"].astype(f32)                        # (64, 3)
    w_alpha = params["w_alpha"].astype(f32)                    # (128, 1)

    # fold fc_rgb / fc_alpha into two narrow (., 4) output weights
    wout_d = jnp.concatenate([w_rgb, jnp.zeros((HALF_HIDDEN, 1), f32)], axis=1).astype(bf16)
    wout_h = jnp.concatenate([jnp.zeros((HIDDEN, 3), f32), w_alpha], axis=1).astype(bf16)
    bout = jnp.concatenate([params["b_rgb"].astype(f32),
                            params["b_alpha"].astype(f32)], axis=1)          # (1, 4)

    return {
        "w1_xyz": w1[:DIM_XYZ].astype(bf16),                   # (39, 128)
        "w1_expr": w1[DIM_XYZ:],                               # (76, 128) f32, kept for b1_eff
        "b1": params["b1"].astype(f32),                        # (1, 128)
        "wx0": params["w_x0"].astype(bf16), "bx0": params["b_x0"].astype(f32),
        "wx1": params["w_x1"].astype(bf16), "bx1": params["b_x1"].astype(f32),
        "wx2": params["w_x2"].astype(bf16), "bx2": params["b_x2"].astype(f32),
        "wfeat": params["w_feat"].astype(bf16), "bfeat": params["b_feat"].astype(f32),
        "wdf": params["w_dir"][:HIDDEN].astype(bf16),          # (128, 64) feat rows
        "wdv": params["w_dir"][HIDDEN:].astype(bf16),          # (27, 64)  view rows
        "bdir": params["b_dir"].astype(f32),
        "wout_h": wout_h, "wout_d": wout_d, "bout": bout,
    }


# ---------------------------------------------------------------------------
# Forward wrapper: per-call expr fold + input prep (fused cast/slice/pad under
# jit) + pallas_call.
# ---------------------------------------------------------------------------
def nerf_forward(x, expr, prepped, *, tm=4096):
    """x: (N, 66) f32; expr: (1, 76) f32; prepped: output of prepare_weights."""
    n = x.shape[0]
    # Contract: a single expression vector shared by all rows (it is folded
    # into the effective layer1 bias).
    assert expr.shape == (1, DIM_EXPR), f"expr must be (1, {DIM_EXPR}), got {expr.shape}"

    tm_eff = _choose_tile(n, tm)
    n_pad = _round_up(n, tm_eff)
    pad = n_pad - n

    # single fused pass over x inside the jit: cast -> slice -> pad, bf16 tiles
    xb = x.astype(jnp.bfloat16)
    xyz = jnp.pad(xb[:, :DIM_XYZ], ((0, pad), (0, 0)))
    view = jnp.pad(xb[:, DIM_XYZ:], ((0, pad), (0, 0)))

    # effective layer1 bias: (expr/3) @ W1[39:115] + b1   (exact f32, once per call)
    b1_eff = (expr.astype(jnp.float32) * (1.0 / 3.0)) @ prepped["w1_expr"] + prepped["b1"]

    weights = [
        prepped["w1_xyz"], b1_eff,
        prepped["wx0"], prepped["bx0"],
        prepped["wx1"], prepped["bx1"],
        prepped["wx2"], prepped["bx2"],
        prepped["wfeat"], prepped["bfeat"],
        prepped["wdf"], prepped["wdv"], prepped["bdir"],
        prepped["wout_h"], prepped["wout_d"], prepped["bout"],
    ]

    def row_spec(width):
        return pl.BlockSpec((tm_eff, width), lambda i: (i, 0))

    def const_spec(a):
        nd = a.ndim
        return pl.BlockSpec(a.shape, lambda i, _nd=nd: (0,) * _nd)

    in_specs = [row_spec(DIM_XYZ), row_spec(DIM_DIR)] + [const_spec(w) for w in weights]
    out_spec = pl.BlockSpec((tm_eff, OUT_W), lambda i: (i, 0))

    out = pl.pallas_call(
        nerf_kernel,
        out_shape=jax.ShapeDtypeStruct((n_pad, OUT_W), jnp.float32),
        grid_spec=pltpu.PrefetchScalarGridSpec(
            num_scalar_prefetch=0,
            grid=(n_pad // tm_eff,),
            in_specs=in_specs,
            out_specs=out_spec,
        ),
        compiler_params=pltpu.CompilerParams(
            dimension_semantics=("parallel",),        # independent row tiles (v7x: 2 TCs)
            vmem_limit_bytes=48 * 1024 * 1024,        # v5e default scoped VMEM is 16 MiB
        ),
    )(xyz, view, *weights)

    return out[:n]


# ---------------------------------------------------------------------------
# Deterministic synthetic parameters; weights stored as (in, out) so the
# kernel computes x @ W + b (equivalent to PyTorch's x @ W_pt.T + b).
# ---------------------------------------------------------------------------
def init_params(key):
    dims = {
        "w1": (DIM_XYZ + DIM_EXPR, HIDDEN), "b1": (1, HIDDEN),
        "w_x0": (HIDDEN, HIDDEN), "b_x0": (1, HIDDEN),
        "w_x1": (HIDDEN, HIDDEN), "b_x1": (1, HIDDEN),
        "w_x2": (HIDDEN, HIDDEN), "b_x2": (1, HIDDEN),
        "w_feat": (HIDDEN, HIDDEN), "b_feat": (1, HIDDEN),
        "w_alpha": (HIDDEN, 1), "b_alpha": (1, 1),
        "w_dir": (HIDDEN + DIM_DIR, HALF_HIDDEN), "b_dir": (1, HALF_HIDDEN),
        "w_rgb": (HALF_HIDDEN, 3), "b_rgb": (1, 3),
    }
    params = {}
    keys = jax.random.split(key, len(dims))
    for k, (name, shape) in zip(keys, dims.items()):
        params[name] = (0.05 * jax.random.normal(k, shape)).astype(jnp.float32)
    return params


# ---------------------------------------------------------------------------
# Pure-JAX f32 reference (mirrors the PyTorch forward) as correctness oracle.
# ---------------------------------------------------------------------------
def nerf_forward_ref(x, expr, p):
    n = x.shape[0]
    xyz, view = x[:, :DIM_XYZ], x[:, DIM_XYZ:]
    expr_enc = jnp.broadcast_to(expr * (1.0 / 3.0), (n, DIM_EXPR))
    h = jnp.concatenate([xyz, expr_enc], axis=-1) @ p["w1"] + p["b1"]     # no ReLU
    for wk, bk in (("w_x0", "b_x0"), ("w_x1", "b_x1"), ("w_x2", "b_x2")):
        h = jax.nn.relu(h @ p[wk] + p[bk])
    feat = jax.nn.relu(h @ p["w_feat"] + p["b_feat"])
    alpha = h @ p["w_alpha"] + p["b_alpha"]
    hd = jax.nn.relu(jnp.concatenate([feat, view], axis=-1) @ p["w_dir"] + p["b_dir"])
    rgb = hd @ p["w_rgb"] + p["b_rgb"]
    return jnp.concatenate([rgb, alpha], axis=-1)


if __name__ == "__main__":
    key = jax.random.PRNGKey(0)
    k_p, k_x, k_e = jax.random.split(key, 3)

    N = 2000   # exercises the pad-to-tile path; tile chooser -> tm=1024, 2 grid steps
    params = init_params(k_p)
    x = jax.random.normal(k_x, (N, DIM_XYZ + DIM_DIR), dtype=jnp.float32)
    expr = jax.random.normal(k_e, (1, DIM_EXPR), dtype=jnp.float32)

    # Expr-independent weight prep is done ONCE and reused across calls.
    prepped = prepare_weights(params)

    fwd = jax.jit(functools.partial(nerf_forward, tm=4096))
    out = jax.block_until_ready(fwd(x, expr, prepped))

    ref = nerf_forward_ref(x, expr, params)
    assert out.shape == (N, 4)
    # bf16 matmul operands with f32 accumulation -> compare to f32 oracle loosely
    assert jnp.allclose(out, ref, atol=1e-2, rtol=1e-2), \
        f"mismatch vs JAX reference, max abs err = {float(jnp.max(jnp.abs(out - ref)))}"

    print("KERNEL_OK")
</pallas_src>

<mosaic_0001>
module attributes {stable_mosaic.version = 11 : i64} {
  func.func @nerf_kernel(%arg0: i32, %arg1: memref<1024x39xbf16, #tpu.memory_space<vmem>>, %arg2: memref<1024x27xbf16, #tpu.memory_space<vmem>>, %arg3: memref<39x128xbf16, #tpu.memory_space<vmem>>, %arg4: memref<1x128xf32, #tpu.memory_space<vmem>>, %arg5: memref<128x128xbf16, #tpu.memory_space<vmem>>, %arg6: memref<1x128xf32, #tpu.memory_space<vmem>>, %arg7: memref<128x128xbf16, #tpu.memory_space<vmem>>, %arg8: memref<1x128xf32, #tpu.memory_space<vmem>>, %arg9: memref<128x128xbf16, #tpu.memory_space<vmem>>, %arg10: memref<1x128xf32, #tpu.memory_space<vmem>>, %arg11: memref<128x128xbf16, #tpu.memory_space<vmem>>, %arg12: memref<1x128xf32, #tpu.memory_space<vmem>>, %arg13: memref<128x64xbf16, #tpu.memory_space<vmem>>, %arg14: memref<27x64xbf16, #tpu.memory_space<vmem>>, %arg15: memref<1x64xf32, #tpu.memory_space<vmem>>, %arg16: memref<128x4xbf16, #tpu.memory_space<vmem>>, %arg17: memref<64x4xbf16, #tpu.memory_space<vmem>>, %arg18: memref<1x4xf32, #tpu.memory_space<vmem>>, %arg19: memref<1024x4xf32, #tpu.memory_space<vmem>>) attributes {dimension_semantics = [#tpu.dimension_semantics<parallel>], iteration_bounds = array<i64: 2>, scalar_prefetch = 0 : i64, scratch_operands = 0 : i64, tpu.core_type = #tpu.core_type<tc>, window_params = [{transform_indices = @transform_0, window_bounds = array<i64: 1024, 39>}, {transform_indices = @transform_1, window_bounds = array<i64: 1024, 27>}, {pipeline_mode = #tpu.pipeline_mode<synchronous>, transform_indices = @transform_2, window_bounds = array<i64: 39, 128>}, {pipeline_mode = #tpu.pipeline_mode<synchronous>, transform_indices = @transform_3, window_bounds = array<i64: 1, 128>}, {pipeline_mode = #tpu.pipeline_mode<synchronous>, transform_indices = @transform_4, window_bounds = array<i64: 128, 128>}, {pipeline_mode = #tpu.pipeline_mode<synchronous>, transform_indices = @transform_5, window_bounds = array<i64: 1, 128>}, {pipeline_mode = #tpu.pipeline_mode<synchronous>, transform_indices = @transform_6, window_bounds = array<i64: 128, 128>}, {pipeline_mode = #tpu.pipeline_mode<synchronous>, transform_indices = @transform_7, window_bounds = array<i64: 1, 128>}, {pipeline_mode = #tpu.pipeline_mode<synchronous>, transform_indices = @transform_8, window_bounds = array<i64: 128, 128>}, {pipeline_mode = #tpu.pipeline_mode<synchronous>, transform_indices = @transform_9, window_bounds = array<i64: 1, 128>}, {pipeline_mode = #tpu.pipeline_mode<synchronous>, transform_indices = @transform_10, window_bounds = array<i64: 128, 128>}, {pipeline_mode = #tpu.pipeline_mode<synchronous>, transform_indices = @transform_11, window_bounds = array<i64: 1, 128>}, {pipeline_mode = #tpu.pipeline_mode<synchronous>, transform_indices = @transform_12, window_bounds = array<i64: 128, 64>}, {pipeline_mode = #tpu.pipeline_mode<synchronous>, transform_indices = @transform_13, window_bounds = array<i64: 27, 64>}, {pipeline_mode = #tpu.pipeline_mode<synchronous>, transform_indices = @transform_14, window_bounds = array<i64: 1, 64>}, {pipeline_mode = #tpu.pipeline_mode<synchronous>, transform_indices = @transform_15, window_bounds = array<i64: 128, 4>}, {pipeline_mode = #tpu.pipeline_mode<synchronous>, transform_indices = @transform_16, window_bounds = array<i64: 64, 4>}, {pipeline_mode = #tpu.pipeline_mode<synchronous>, transform_indices = @transform_17, window_bounds = array<i64: 1, 4>}, {transform_indices = @transform_18, window_bounds = array<i64: 1024, 4>}]} {
    %c0 = arith.constant 0 : index
    %c0_0 = arith.constant 0 : index
    %0 = vector.load %arg1[%c0, %c0_0] : memref<1024x39xbf16, #tpu.memory_space<vmem>>, vector<1024x39xbf16>
    %c0_1 = arith.constant 0 : index
    %c0_2 = arith.constant 0 : index
    %1 = vector.load %arg2[%c0_1, %c0_2] : memref<1024x27xbf16, #tpu.memory_space<vmem>>, vector<1024x27xbf16>
    %c0_3 = arith.constant 0 : index
    %c0_4 = arith.constant 0 : index
    %2 = vector.load %arg3[%c0_3, %c0_4] : memref<39x128xbf16, #tpu.memory_space<vmem>>, vector<39x128xbf16>
    %cst = arith.constant dense<0.000000e+00> : vector<1024x128xf32>
    %3 = tpu.matmul %0, %2, %cst {dimension_numbers = #tpu.dot_dimension_numbers<[1], [0], [0], [1], [0, 0, 1, 1], [], []>} : vector<1024x39xbf16>, vector<39x128xbf16>, vector<1024x128xf32> -> vector<1024x128xf32>
    %c0_5 = arith.constant 0 : index
    %c0_6 = arith.constant 0 : index
    %4 = vector.load %arg4[%c0_5, %c0_6] : memref<1x128xf32, #tpu.memory_space<vmem>>, vector<1x128xf32>
    %5 = vector.broadcast %4 : vector<1x128xf32> to vector<1024x128xf32>
    %6 = arith.addf %3, %5 : vector<1024x128xf32>
    %c0_7 = arith.constant 0 : index
    %c0_8 = arith.constant 0 : index
    %7 = vector.load %arg5[%c0_7, %c0_8] : memref<128x128xbf16, #tpu.memory_space<vmem>>, vector<128x128xbf16>
    %8 = arith.truncf %6 : vector<1024x128xf32> to vector<1024x128xbf16>
    %cst_9 = arith.constant dense<0.000000e+00> : vector<1024x128xf32>
    %9 = tpu.matmul %8, %7, %cst_9 {dimension_numbers = #tpu.dot_dimension_numbers<[1], [0], [0], [1], [0, 0, 1, 1], [], []>} : vector<1024x128xbf16>, vector<128x128xbf16>, vector<1024x128xf32> -> vector<1024x128xf32>
    %c0_10 = arith.constant 0 : index
    %c0_11 = arith.constant 0 : index
    %10 = vector.load %arg6[%c0_10, %c0_11] : memref<1x128xf32, #tpu.memory_space<vmem>>, vector<1x128xf32>
    %11 = vector.broadcast %10 : vector<1x128xf32> to vector<1024x128xf32>
    %12 = arith.addf %9, %11 : vector<1024x128xf32>
    %cst_12 = arith.constant 0.000000e+00 : f32
    %13 = vector.broadcast %cst_12 : f32 to vector<1024x128xf32>
    %14 = arith.maximumf %12, %13 : vector<1024x128xf32>
    %c0_13 = arith.constant 0 : index
    %c0_14 = arith.constant 0 : index
    %15 = vector.load %arg7[%c0_13, %c0_14] : memref<128x128xbf16, #tpu.memory_space<vmem>>, vector<128x128xbf16>
    %16 = arith.truncf %14 : vector<1024x128xf32> to vector<1024x128xbf16>
    %cst_15 = arith.constant dense<0.000000e+00> : vector<1024x128xf32>
    %17 = tpu.matmul %16, %15, %cst_15 {dimension_numbers = #tpu.dot_dimension_numbers<[1], [0], [0], [1], [0, 0, 1, 1], [], []>} : vector<1024x128xbf16>, vector<128x128xbf16>, vector<1024x128xf32> -> vector<1024x128xf32>
    %c0_16 = arith.constant 0 : index
    %c0_17 = arith.constant 0 : index
    %18 = vector.load %arg8[%c0_16, %c0_17] : memref<1x128xf32, #tpu.memory_space<vmem>>, vector<1x128xf32>
    %19 = vector.broadcast %18 : vector<1x128xf32> to vector<1024x128xf32>
    %20 = arith.addf %17, %19 : vector<1024x128xf32>
    %cst_18 = arith.constant 0.000000e+00 : f32
    %21 = vector.broadcast %cst_18 : f32 to vector<1024x128xf32>
    %22 = arith.maximumf %20, %21 : vector<1024x128xf32>
    %c0_19 = arith.constant 0 : index
    %c0_20 = arith.constant 0 : index
    %23 = vector.load %arg9[%c0_19, %c0_20] : memref<128x128xbf16, #tpu.memory_space<vmem>>, vector<128x128xbf16>
    %24 = arith.truncf %22 : vector<1024x128xf32> to vector<1024x128xbf16>
    %cst_21 = arith.constant dense<0.000000e+00> : vector<1024x128xf32>
    %25 = tpu.matmul %24, %23, %cst_21 {dimension_numbers = #tpu.dot_dimension_numbers<[1], [0], [0], [1], [0, 0, 1, 1], [], []>} : vector<1024x128xbf16>, vector<128x128xbf16>, vector<1024x128xf32> -> vector<1024x128xf32>
    %c0_22 = arith.constant 0 : index
    %c0_23 = arith.constant 0 : index
    %26 = vector.load %arg10[%c0_22, %c0_23] : memref<1x128xf32, #tpu.memory_space<vmem>>, vector<1x128xf32>
    %27 = vector.broadcast %26 : vector<1x128xf32> to vector<1024x128xf32>
    %28 = arith.addf %25, %27 : vector<1024x128xf32>
    %cst_24 = arith.constant 0.000000e+00 : f32
    %29 = vector.broadcast %cst_24 : f32 to vector<1024x128xf32>
    %30 = arith.maximumf %28, %29 : vector<1024x128xf32>
    %31 = arith.truncf %30 : vector<1024x128xf32> to vector<1024x128xbf16>
    %c0_25 = arith.constant 0 : index
    %c0_26 = arith.constant 0 : index
    %32 = vector.load %arg11[%c0_25, %c0_26] : memref<128x128xbf16, #tpu.memory_space<vmem>>, vector<128x128xbf16>
    %cst_27 = arith.constant dense<0.000000e+00> : vector<1024x128xf32>
    %33 = tpu.matmul %31, %32, %cst_27 {dimension_numbers = #tpu.dot_dimension_numbers<[1], [0], [0], [1], [0, 0, 1, 1], [], []>} : vector<1024x128xbf16>, vector<128x128xbf16>, vector<1024x128xf32> -> vector<1024x128xf32>
    %c0_28 = arith.constant 0 : index
    %c0_29 = arith.constant 0 : index
    %34 = vector.load %arg12[%c0_28, %c0_29] : memref<1x128xf32, #tpu.memory_space<vmem>>, vector<1x128xf32>
    %35 = vector.broadcast %34 : vector<1x128xf32> to vector<1024x128xf32>
    %36 = arith.addf %33, %35 : vector<1024x128xf32>
    %cst_30 = arith.constant 0.000000e+00 : f32
    %37 = vector.broadcast %cst_30 : f32 to vector<1024x128xf32>
    %38 = arith.maximumf %36, %37 : vector<1024x128xf32>
    %c0_31 = arith.constant 0 : index
    %c0_32 = arith.constant 0 : index
    %39 = vector.load %arg13[%c0_31, %c0_32] : memref<128x64xbf16, #tpu.memory_space<vmem>>, vector<128x64xbf16>
    %40 = arith.truncf %38 : vector<1024x128xf32> to vector<1024x128xbf16>
    %cst_33 = arith.constant dense<0.000000e+00> : vector<1024x64xf32>
    %41 = tpu.matmul %40, %39, %cst_33 {dimension_numbers = #tpu.dot_dimension_numbers<[1], [0], [0], [1], [0, 0, 1, 1], [], []>} : vector<1024x128xbf16>, vector<128x64xbf16>, vector<1024x64xf32> -> vector<1024x64xf32>
    %c0_34 = arith.constant 0 : index
    %c0_35 = arith.constant 0 : index
    %42 = vector.load %arg14[%c0_34, %c0_35] : memref<27x64xbf16, #tpu.memory_space<vmem>>, vector<27x64xbf16>
    %cst_36 = arith.constant dense<0.000000e+00> : vector<1024x64xf32>
    %43 = tpu.matmul %1, %42, %cst_36 {dimension_numbers = #tpu.dot_dimension_numbers<[1], [0], [0], [1], [0, 0, 1, 1], [], []>} : vector<1024x27xbf16>, vector<27x64xbf16>, vector<1024x64xf32> -> vector<1024x64xf32>
    %44 = arith.addf %41, %43 : vector<1024x64xf32>
    %c0_37 = arith.constant 0 : index
    %c0_38 = arith.constant 0 : index
    %45 = vector.load %arg15[%c0_37, %c0_38] : memref<1x64xf32, #tpu.memory_space<vmem>>, vector<1x64xf32>
    %46 = vector.broadcast %45 : vector<1x64xf32> to vector<1024x64xf32>
    %47 = arith.addf %44, %46 : vector<1024x64xf32>
    %cst_39 = arith.constant 0.000000e+00 : f32
    %48 = vector.broadcast %cst_39 : f32 to vector<1024x64xf32>
    %49 = arith.maximumf %47, %48 : vector<1024x64xf32>
    %c0_40 = arith.constant 0 : index
    %c0_41 = arith.constant 0 : index
    %50 = vector.load %arg17[%c0_40, %c0_41] : memref<64x4xbf16, #tpu.memory_space<vmem>>, vector<64x4xbf16>
    %51 = arith.truncf %49 : vector<1024x64xf32> to vector<1024x64xbf16>
    %cst_42 = arith.constant dense<0.000000e+00> : vector<1024x4xf32>
    %52 = tpu.matmul %51, %50, %cst_42 {dimension_numbers = #tpu.dot_dimension_numbers<[1], [0], [0], [1], [0, 0, 1, 1], [], []>} : vector<1024x64xbf16>, vector<64x4xbf16>, vector<1024x4xf32> -> vector<1024x4xf32>
    %c0_43 = arith.constant 0 : index
    %c0_44 = arith.constant 0 : index
    %53 = vector.load %arg16[%c0_43, %c0_44] : memref<128x4xbf16, #tpu.memory_space<vmem>>, vector<128x4xbf16>
    %cst_45 = arith.constant dense<0.000000e+00> : vector<1024x4xf32>
    %54 = tpu.matmul %31, %53, %cst_45 {dimension_numbers = #tpu.dot_dimension_numbers<[1], [0], [0], [1], [0, 0, 1, 1], [], []>} : vector<1024x128xbf16>, vector<128x4xbf16>, vector<1024x4xf32> -> vector<1024x4xf32>
    %55 = arith.addf %52, %54 : vector<1024x4xf32>
    %c0_46 = arith.constant 0 : index
    %c0_47 = arith.constant 0 : index
    %56 = vector.load %arg18[%c0_46, %c0_47] : memref<1x4xf32, #tpu.memory_space<vmem>>, vector<1x4xf32>
    %57 = vector.broadcast %56 : vector<1x4xf32> to vector<1024x4xf32>
    %58 = arith.addf %55, %57 : vector<1024x4xf32>
    %c0_48 = arith.constant 0 : index
    %c0_49 = arith.constant 0 : index
    %59 = vector.load %arg19[%c0_48, %c0_49] : memref<1024x4xf32, #tpu.memory_space<vmem>>, vector<1024x4xf32>
    tpu.vector_store %arg19[%c0_48, %c0_49], %58 {strides = array<i32>} : memref<1024x4xf32, #tpu.memory_space<vmem>>, vector<1024x4xf32>,
    return
  }
  func.func @transform_0(%arg0: i32) -> (i32, i32) {
    %c0_i32 = arith.constant 0 : i32
    %c0_i32_0 = arith.constant 0 : i32
    return %arg0, %c0_i32 : i32, i32
  }
  func.func @transform_1(%arg0: i32) -> (i32, i32) {
    %c0_i32 = arith.constant 0 : i32
    %c0_i32_0 = arith.constant 0 : i32
    return %arg0, %c0_i32 : i32, i32
  }
  func.func @transform_2(%arg0: i32) -> (i32, i32) {
    %c0_i32 = arith.constant 0 : i32
    %c0_i32_0 = arith.constant 0 : i32
    %c0_i32_1 = arith.constant 0 : i32
    return %c0_i32, %c0_i32_0 : i32, i32
  }
  func.func @transform_3(%arg0: i32) -> (i32, i32) {
    %c0_i32 = arith.constant 0 : i32
    %c0_i32_0 = arith.constant 0 : i32
    %c0_i32_1 = arith.constant 0 : i32
    return %c0_i32, %c0_i32_0 : i32, i32
  }
  func.func @transform_4(%arg0: i32) -> (i32, i32) {
    %c0_i32 = arith.constant 0 : i32
    %c0_i32_0 = arith.constant 0 : i32
    %c0_i32_1 = arith.constant 0 : i32
    return %c0_i32, %c0_i32_0 : i32, i32
  }
  func.func @transform_5(%arg0: i32) -> (i32, i32) {
    %c0_i32 = arith.constant 0 : i32
    %c0_i32_0 = arith.constant 0 : i32
    %c0_i32_1 = arith.constant 0 : i32
    return %c0_i32, %c0_i32_0 : i32, i32
  }
  func.func @transform_6(%arg0: i32) -> (i32, i32) {
    %c0_i32 = arith.constant 0 : i32
    %c0_i32_0 = arith.constant 0 : i32
    %c0_i32_1 = arith.constant 0 : i32
    return %c0_i32, %c0_i32_0 : i32, i32
  }
  func.func @transform_7(%arg0: i32) -> (i32, i32) {
    %c0_i32 = arith.constant 0 : i32
    %c0_i32_0 = arith.constant 0 : i32
    %c0_i32_1 = arith.constant 0 : i32
    return %c0_i32, %c0_i32_0 : i32, i32
  }
  func.func @transform_8(%arg0: i32) -> (i32, i32) {
    %c0_i32 = arith.constant 0 : i32
    %c0_i32_0 = arith.constant 0 : i32
    %c0_i32_1 = arith.constant 0 : i32
    return %c0_i32, %c0_i32_0 : i32, i32
  }
  func.func @transform_9(%arg0: i32) -> (i32, i32) {
    %c0_i32 = arith.constant 0 : i32
    %c0_i32_0 = arith.constant 0 : i32
    %c0_i32_1 = arith.constant 0 : i32
    return %c0_i32, %c0_i32_0 : i32, i32
  }
  func.func @transform_10(%arg0: i32) -> (i32, i32) {
    %c0_i32 = arith.constant 0 : i32
    %c0_i32_0 = arith.constant 0 : i32
    %c0_i32_1 = arith.constant 0 : i32
    return %c0_i32, %c0_i32_0 : i32, i32
  }
  func.func @transform_11(%arg0: i32) -> (i32, i32) {
    %c0_i32 = arith.constant 0 : i32
    %c0_i32_0 = arith.constant 0 : i32
    %c0_i32_1 = arith.constant 0 : i32
    return %c0_i32, %c0_i32_0 : i32, i32
  }
  func.func @transform_12(%arg0: i32) -> (i32, i32) {
    %c0_i32 = arith.constant 0 : i32
    %c0_i32_0 = arith.constant 0 : i32
    %c0_i32_1 = arith.constant 0 : i32
    return %c0_i32, %c0_i32_0 : i32, i32
  }
  func.func @transform_13(%arg0: i32) -> (i32, i32) {
    %c0_i32 = arith.constant 0 : i32
    %c0_i32_0 = arith.constant 0 : i32
    %c0_i32_1 = arith.constant 0 : i32
    return %c0_i32, %c0_i32_0 : i32, i32
  }
  func.func @transform_14(%arg0: i32) -> (i32, i32) {
    %c0_i32 = arith.constant 0 : i32
    %c0_i32_0 = arith.constant 0 : i32
    %c0_i32_1 = arith.constant 0 : i32
    return %c0_i32, %c0_i32_0 : i32, i32
  }
  func.func @transform_15(%arg0: i32) -> (i32, i32) {
    %c0_i32 = arith.constant 0 : i32
    %c0_i32_0 = arith.constant 0 : i32
    %c0_i32_1 = arith.constant 0 : i32
    return %c0_i32, %c0_i32_0 : i32, i32
  }
  func.func @transform_16(%arg0: i32) -> (i32, i32) {
    %c0_i32 = arith.constant 0 : i32
    %c0_i32_0 = arith.constant 0 : i32
    %c0_i32_1 = arith.constant 0 : i32
    return %c0_i32, %c0_i32_0 : i32, i32
  }
  func.func @transform_17(%arg0: i32) -> (i32, i32) {
    %c0_i32 = arith.constant 0 : i32
    %c0_i32_0 = arith.constant 0 : i32
    %c0_i32_1 = arith.constant 0 : i32
    return %c0_i32, %c0_i32_0 : i32, i32
  }
  func.func @transform_18(%arg0: i32) -> (i32, i32) {
    %c0_i32 = arith.constant 0 : i32
    %c0_i32_0 = arith.constant 0 : i32
    return %arg0, %c0_i32 : i32, i32
  }
}

</mosaic_0001>

<llo_original>
// kernel: nerf_forward.1
$region0: #{nerf_forward.1}
  #allocation0 [shape = 'u32[]', space=smem, size = 0x4, offset = 0x4, fixed_abs, tag = 'smem constant byte address 0x4 - core index']
  #allocation1 [shape = 'u32[144,128]{1,0:T(1,128)}', space=vmem, size = 0x12000, scoped, tag = 'internal scratch']
  %s0 = inlined_call_operand.vmem [shape: bf16[2048,39], index: 0, kind: input, shape index: {}]
  %s1 = inlined_call_operand.vmem [shape: bf16[2048,27], index: 1, kind: input, shape index: {}]
  %s2 = inlined_call_operand.vmem [shape: bf16[39,128], index: 2, kind: input, shape index: {}]
  %s3 = inlined_call_operand.vmem [shape: f32[1,128], index: 3, kind: input, shape index: {}]
  %s4 = inlined_call_operand.vmem [shape: bf16[128,128], index: 4, kind: input, shape index: {}]
  %s5 = inlined_call_operand.vmem [shape: f32[1,128], index: 5, kind: input, shape index: {}]
  %s6 = inlined_call_operand.vmem [shape: bf16[128,128], index: 6, kind: input, shape index: {}]
  %s7 = inlined_call_operand.vmem [shape: f32[1,128], index: 7, kind: input, shape index: {}]
  %s8 = inlined_call_operand.vmem [shape: bf16[128,128], index: 8, kind: input, shape index: {}]
  %s9 = inlined_call_operand.vmem [shape: f32[1,128], index: 9, kind: input, shape index: {}]
  %s10 = inlined_call_operand.vmem [shape: bf16[128,128], index: 10, kind: input, shape index: {}]
  %s11 = inlined_call_operand.vmem [shape: f32[1,128], index: 11, kind: input, shape index: {}]
  %s12 = inlined_call_operand.vmem [shape: bf16[128,64], index: 12, kind: input, shape index: {}]
  %s13 = inlined_call_operand.vmem [shape: bf16[27,64], index: 13, kind: input, shape index: {}]
  %s14 = inlined_call_operand.vmem [shape: f32[1,64], index: 14, kind: input, shape index: {}]
  %s15 = inlined_call_operand.vmem [shape: bf16[128,4], index: 15, kind: input, shape index: {}]
  %s16 = inlined_call_operand.vmem [shape: bf16[64,4], index: 16, kind: input, shape index: {}]
  %s17 = inlined_call_operand.vmem [shape: f32[1,4], index: 17, kind: input, shape index: {}]
  %s18 = inlined_call_operand.vmem [shape: f32[2048,4], index: 18, kind: output, shape index: {}]
  %s19 = sld [smem:[#allocation0]]
  $region105: #{nerf_forward.1} parent=0
    _
  %s21 = ssub.s32 1, %s19
  %s22 = scalar_select 0, %s21, %s19
  loop: start=0, step=1, limit=4
  $region2: #{nerf_forward.1} parent=0 // loop_pre_header
    _
  $region3: #{nerf_forward.1} parent=0 // loop_header
    %s24 = sphi 0, %s28
    %p25 = scmp.ge.s32.totalorder %s24, 4
    %s34 = sphi 0, %s36
    %s37 = sphi 0, %s34
    %s38 = sphi 0, %s37
    %s54 = sphi 0, %s38
    %s60 = sphi 0, %s62
    %s63 = sphi 0, %s60
    %s64 = sphi 0, %s63
    %s80 = sphi 0, %s64
    %s84 = sphi 0, %s84
    %s86 = sphi 0, %s84
    %s87 = sphi 0, %s86
    %s101 = sphi 0, %s87
    %s105 = sphi 0, %s105
    %s107 = sphi 0, %s105
    %s108 = sphi 0, %s107
    %s122 = sphi 0, %s108
    %s126 = sphi 0, %s126
    %s128 = sphi 0, %s126
    %s129 = sphi 0, %s128
    %s143 = sphi 0, %s129
    %s147 = sphi 0, %s147
    %s149 = sphi 0, %s147
    %s150 = sphi 0, %s149
    %s164 = sphi 0, %s150
    %s168 = sphi 0, %s168
    %s170 = sphi 0, %s168
    %s171 = sphi 0, %s170
    %s185 = sphi 0, %s171
    %s189 = sphi 0, %s189
    %s191 = sphi 0, %s189
    %s192 = sphi 0, %s191
    %s206 = sphi 0, %s192
    %s210 = sphi 0, %s210
    %s212 = sphi 0, %s210
    %s213 = sphi 0, %s212
    %s227 = sphi 0, %s213
    %s231 = sphi 0, %s231
    %s233 = sphi 0, %s231
    %s234 = sphi 0, %s233
    %s248 = sphi 0, %s234
    %s252 = sphi 0, %s252
    %s254 = sphi 0, %s252
    %s255 = sphi 0, %s254
    %s269 = sphi 0, %s255
    %s273 = sphi 0, %s273
    %s275 = sphi 0, %s273
    %s276 = sphi 0, %s275
    %s290 = sphi 0, %s276
    %s294 = sphi 0, %s294
    %s296 = sphi 0, %s294
    %s297 = sphi 0, %s296
    %s311 = sphi 0, %s297
    %s315 = sphi 0, %s315
    %s317 = sphi 0, %s315
    %s318 = sphi 0, %s317
    %s332 = sphi 0, %s318
    %s336 = sphi 0, %s336
    %s338 = sphi 0, %s336
    %s339 = sphi 0, %s338
    %s353 = sphi 0, %s339
    %s357 = sphi 0, %s357
    %s359 = sphi 0, %s357
    %s360 = sphi 0, %s359
    %s374 = sphi 0, %s360
    %s378 = sphi 0, %s378
    %s380 = sphi 0, %s378
    %s381 = sphi 0, %s380
    %s395 = sphi 0, %s381
    %s399 = sphi 0, %s399
    %s401 = sphi 0, %s399
    %s402 = sphi 0, %s401
    %s416 = sphi 0, %s402
    %s422 = sphi 0, %s424
    %s425 = sphi 0, %s422
    %s426 = sphi 0, %s425
    %s442 = sphi 0, %s426
  $region4: #{nerf_forward.1} parent=0 // loop_header_branch
    %27 = sbr.rel (%p25) target = $region8
  $region5: #{nerf_forward.1} parent=0 // loop_body
    %s29 = ssub.s32 %s24, 1
    %s30 = ssub.s32 %s24, 2
    %s31 = sadd.s32 %s24, 1
    %s32 = ssub.s32 %s24, %s31
    %p33 = scmp.eq.s32.totalorder %s32, 0
    %s35 = sadd.s32 %s34, 1
    %s36 = scalar_select %p33, %s34, %s35
    %p39 = pneg %p33
    %p40 = scmp.eq.s32.totalorder %s24, 1
    %p41 = por %p39, %p40
    %p42 = scmp.ne.s32.totalorder %s34, %s37
    %p43 = scmp.eq.s32.totalorder %s24, 0
    %p44 = por %p42, %p43
    %p45 = scmp.ne.s32.totalorder %s34, %s37
    %p46 = scmp.eq.s32.totalorder %s29, 1
    %p47 = por %p45, %p46
    %p48 = scmp.ne.s32.totalorder %s37, %s38
    %p49 = scmp.eq.s32.totalorder %s29, 0
    %p50 = por %p48, %p49
    %p51 = scmp.ne.s32.totalorder %s37, %s38
    %p52 = scmp.eq.s32.totalorder %s30, 1
    %p53 = por %p51, %p52
    %p55 = scmp.ne.s32.totalorder %s38, %s54
    %p56 = scmp.eq.s32.totalorder %s30, 0
    %p57 = por %p55, %p56
    %s58 = ssub.s32 %s24, %s31
    %p59 = scmp.eq.s32.totalorder %s58, 0
    %s61 = sadd.s32 %s60, 1
    %s62 = scalar_select %p59, %s60, %s61
    %p65 = pneg %p59
    %p66 = scmp.eq.s32.totalorder %s24, 1
    %p67 = por %p65, %p66
    %p68 = scmp.ne.s32.totalorder %s60, %s63
    %p69 = scmp.eq.s32.totalorder %s24, 0
    %p70 = por %p68, %p69
    %p71 = scmp.ne.s32.totalorder %s60, %s63
    %p72 = scmp.eq.s32.totalorder %s29, 1
    %p73 = por %p71, %p72
    %p74 = scmp.ne.s32.totalorder %s63, %s64
    %p75 = scmp.eq.s32.totalorder %s29, 0
    %p76 = por %p74, %p75
    %p77 = scmp.ne.s32.totalorder %s63, %s64
    %p78 = scmp.eq.s32.totalorder %s30, 1
    %p79 = por %p77, %p78
    %p81 = scmp.ne.s32.totalorder %s64, %s80
    %p82 = scmp.eq.s32.totalorder %s30, 0
    %p83 = por %p81, %p82
    %s85 = sadd.s32 %s84, 1
    %p88 = scmp.eq.s32.totalorder %s24, 1
    %p89 = scmp.ne.s32.totalorder %s84, %s86
    %p90 = scmp.eq.s32.totalorder %s24, 0
    %p91 = por %p89, %p90
    %p92 = scmp.ne.s32.totalorder %s84, %s86
    %p93 = scmp.eq.s32.totalorder %s29, 1
    %p94 = por %p92, %p93
    %p95 = scmp.ne.s32.totalorder %s86, %s87
    %p96 = scmp.eq.s32.totalorder %s29, 0
    %p97 = por %p95, %p96
    %p98 = scmp.ne.s32.totalorder %s86, %s87
    %p99 = scmp.eq.s32.totalorder %s30, 1
    %p100 = por %p98, %p99
    %p102 = scmp.ne.s32.totalorder %s87, %s101
    %p103 = scmp.eq.s32.totalorder %s30, 0
    %p104 = por %p102, %p103
    %s106 = sadd.s32 %s105, 1
    %p109 = scmp.eq.s32.totalorder %s24, 1
    %p110 = scmp.ne.s32.totalorder %s105, %s107
    %p111 = scmp.eq.s32.totalorder %s24, 0
    %p112 = por %p110, %p111
    %p113 = scmp.ne.s32.totalorder %s105, %s107
    %p114 = scmp.eq.s32.totalorder %s29, 1
    %p115 = por %p113, %p114
    %p116 = scmp.ne.s32.totalorder %s107, %s108
    %p117 = scmp.eq.s32.totalorder %s29, 0
    %p118 = por %p116, %p117
    %p119 = scmp.ne.s32.totalorder %s107, %s108
    %p120 = scmp.eq.s32.totalorder %s30, 1
    %p121 = por %p119, %p120
    %p123 = scmp.ne.s32.totalorder %s108, %s122
    %p124 = scmp.eq.s32.totalorder %s30, 0
    %p125 = por %p123, %p124
    %s127 = sadd.s32 %s126, 1
    %p130 = scmp.eq.s32.totalorder %s24, 1
    %p131 = scmp.ne.s32.totalorder %s126, %s128
    %p132 = scmp.eq.s32.totalorder %s24, 0
    %p133 = por %p131, %p132
    %p134 = scmp.ne.s32.totalorder %s126, %s128
    %p135 = scmp.eq.s32.totalorder %s29, 1
    %p136 = por %p134, %p135
    %p137 = scmp.ne.s32.totalorder %s128, %s129
    %p138 = scmp.eq.s32.totalorder %s29, 0
    %p139 = por %p137, %p138
    %p140 = scmp.ne.s32.totalorder %s128, %s129
    %p141 = scmp.eq.s32.totalorder %s30, 1
    %p142 = por %p140, %p141
    %p144 = scmp.ne.s32.totalorder %s129, %s143
    %p145 = scmp.eq.s32.totalorder %s30, 0
    %p146 = por %p144, %p145
    %s148 = sadd.s32 %s147, 1
    %p151 = scmp.eq.s32.totalorder %s24, 1
    %p152 = scmp.ne.s32.totalorder %s147, %s149
    %p153 = scmp.eq.s32.totalorder %s24, 0
    %p154 = por %p152, %p153
    %p155 = scmp.ne.s32.totalorder %s147, %s149
    %p156 = scmp.eq.s32.totalorder %s29, 1
    %p157 = por %p155, %p156
    %p158 = scmp.ne.s32.totalorder %s149, %s150
    %p159 = scmp.eq.s32.totalorder %s29, 0
    %p160 = por %p158, %p159
    %p161 = scmp.ne.s32.totalorder %s149, %s150
    %p162 = scmp.eq.s32.totalorder %s30, 1
    %p163 = por %p161, %p162
    %p165 = scmp.ne.s32.totalorder %s150, %s164
    %p166 = scmp.eq.s32.totalorder %s30, 0
    %p167 = por %p165, %p166
    %s169 = sadd.s32 %s168, 1
    %p172 = scmp.eq.s32.totalorder %s24, 1
    %p173 = scmp.ne.s32.totalorder %s168, %s170
    %p174 = scmp.eq.s32.totalorder %s24, 0
    %p175 = por %p173, %p174
    %p176 = scmp.ne.s32.totalorder %s168, %s170
    %p177 = scmp.eq.s32.totalorder %s29, 1
    %p178 = por %p176, %p177
    %p179 = scmp.ne.s32.totalorder %s170, %s171
    %p180 = scmp.eq.s32.totalorder %s29, 0
    %p181 = por %p179, %p180
    %p182 = scmp.ne.s32.totalorder %s170, %s171
    %p183 = scmp.eq.s32.totalorder %s30, 1
    %p184 = por %p182, %p183
    %p186 = scmp.ne.s32.totalorder %s171, %s185
    %p187 = scmp.eq.s32.totalorder %s30, 0
    %p188 = por %p186, %p187
    %s190 = sadd.s32 %s189, 1
    %p193 = scmp.eq.s32.totalorder %s24, 1
    %p194 = scmp.ne.s32.totalorder %s189, %s191
    %p195 = scmp.eq.s32.totalorder %s24, 0
    %p196 = por %p194, %p195
    %p197 = scmp.ne.s32.totalorder %s189, %s191
    %p198 = scmp.eq.s32.totalorder %s29, 1
    %p199 = por %p197, %p198
    %p200 = scmp.ne.s32.totalorder %s191, %s192
    %p201 = scmp.eq.s32.totalorder %s29, 0
    %p202 = por %p200, %p201
    %p203 = scmp.ne.s32.totalorder %s191, %s192
    %p204 = scmp.eq.s32.totalorder %s30, 1
    %p205 = por %p203, %p204
    %p207 = scmp.ne.s32.totalorder %s192, %s206
    %p208 = scmp.eq.s32.totalorder %s30, 0
    %p209 = por %p207, %p208
    %s211 = sadd.s32 %s210, 1
    %p214 = scmp.eq.s32.totalorder %s24, 1
    %p215 = scmp.ne.s32.totalorder %s210, %s212
    %p216 = scmp.eq.s32.totalorder %s24, 0
    %p217 = por %p215, %p216
    %p218 = scmp.ne.s32.totalorder %s210, %s212
    %p219 = scmp.eq.s32.totalorder %s29, 1
    %p220 = por %p218, %p219
    %p221 = scmp.ne.s32.totalorder %s212, %s213
    %p222 = scmp.eq.s32.totalorder %s29, 0
    %p223 = por %p221, %p222
    %p224 = scmp.ne.s32.totalorder %s212, %s213
    %p225 = scmp.eq.s32.totalorder %s30, 1
    %p226 = por %p224, %p225
    %p228 = scmp.ne.s32.totalorder %s213, %s227
    %p229 = scmp.eq.s32.totalorder %s30, 0
    %p230 = por %p228, %p229
    %s232 = sadd.s32 %s231, 1
    %p235 = scmp.eq.s32.totalorder %s24, 1
    %p236 = scmp.ne.s32.totalorder %s231, %s233
    %p237 = scmp.eq.s32.totalorder %s24, 0
    %p238 = por %p236, %p237
    %p239 = scmp.ne.s32.totalorder %s231, %s233
    %p240 = scmp.eq.s32.totalorder %s29, 1
    %p241 = por %p239, %p240
    %p242 = scmp.ne.s32.totalorder %s233, %s234
    %p243 = scmp.eq.s32.totalorder %s29, 0
    %p244 = por %p242, %p243
    %p245 = scmp.ne.s32.totalorder %s233, %s234
    %p246 = scmp.eq.s32.totalorder %s30, 1
    %p247 = por %p245, %p246
    %p249 = scmp.ne.s32.totalorder %s234, %s248
    %p250 = scmp.eq.s32.totalorder %s30, 0
    %p251 = por %p249, %p250
    %s253 = sadd.s32 %s252, 1
    %p256 = scmp.eq.s32.totalorder %s24, 1
    %p257 = scmp.ne.s32.totalorder %s252, %s254
    %p258 = scmp.eq.s32.totalorder %s24, 0
    %p259 = por %p257, %p258
    %p260 = scmp.ne.s32.totalorder %s252, %s254
    %p261 = scmp.eq.s32.totalorder %s29, 1
    %p262 = por %p260, %p261
    %p263 = scmp.ne.s32.totalorder %s254, %s255
    %p264 = scmp.eq.s32.totalorder %s29, 0
    %p265 = por %p263, %p264
    %p266 = scmp.ne.s32.totalorder %s254, %s255
    %p267 = scmp.eq.s32.totalorder %s30, 1
    %p268 = por %p266, %p267
    %p270 = scmp.ne.s32.totalorder %s255, %s269
    %p271 = scmp.eq.s32.totalorder %s30, 0
    %p272 = por %p270, %p271
    %s274 = sadd.s32 %s273, 1
    %p277 = scmp.eq.s32.totalorder %s24, 1
    %p278 = scmp.ne.s32.totalorder %s273, %s275
    %p279 = scmp.eq.s32.totalorder %s24, 0
    %p280 = por %p278, %p279
    %p281 = scmp.ne.s32.totalorder %s273, %s275
    %p282 = scmp.eq.s32.totalorder %s29, 1
    %p283 = por %p281, %p282
    %p284 = scmp.ne.s32.totalorder %s275, %s276
    %p285 = scmp.eq.s32.totalorder %s29, 0
    %p286 = por %p284, %p285
    %p287 = scmp.ne.s32.totalorder %s275, %s276
    %p288 = scmp.eq.s32.totalorder %s30, 1
    %p289 = por %p287, %p288
    %p291 = scmp.ne.s32.totalorder %s276, %s290
    %p292 = scmp.eq.s32.totalorder %s30, 0
    %p293 = por %p291, %p292
    %s295 = sadd.s32 %s294, 1
    %p298 = scmp.eq.s32.totalorder %s24, 1
    %p299 = scmp.ne.s32.totalorder %s294, %s296
    %p300 = scmp.eq.s32.totalorder %s24, 0
    %p301 = por %p299, %p300
    %p302 = scmp.ne.s32.totalorder %s294, %s296
    %p303 = scmp.eq.s32.totalorder %s29, 1
    %p304 = por %p302, %p303
    %p305 = scmp.ne.s32.totalorder %s296, %s297
    %p306 = scmp.eq.s32.totalorder %s29, 0
    %p307 = por %p305, %p306
    %p308 = scmp.ne.s32.totalorder %s296, %s297
    %p309 = scmp.eq.s32.totalorder %s30, 1
    %p310 = por %p308, %p309
    %p312 = scmp.ne.s32.totalorder %s297, %s311
    %p313 = scmp.eq.s32.totalorder %s30, 0
    %p314 = por %p312, %p313
    %s316 = sadd.s32 %s315, 1
    %p319 = scmp.eq.s32.totalorder %s24, 1
    %p320 = scmp.ne.s32.totalorder %s315, %s317
    %p321 = scmp.eq.s32.totalorder %s24, 0
    %p322 = por %p320, %p321
    %p323 = scmp.ne.s32.totalorder %s315, %s317
    %p324 = scmp.eq.s32.totalorder %s29, 1
    %p325 = por %p323, %p324
    %p326 = scmp.ne.s32.totalorder %s317, %s318
    %p327 = scmp.eq.s32.totalorder %s29, 0
    %p328 = por %p326, %p327
    %p329 = scmp.ne.s32.totalorder %s317, %s318
    %p330 = scmp.eq.s32.totalorder %s30, 1
    %p331 = por %p329, %p330
    %p333 = scmp.ne.s32.totalorder %s318, %s332
    %p334 = scmp.eq.s32.totalorder %s30, 0
    %p335 = por %p333, %p334
    %s337 = sadd.s32 %s336, 1
    %p340 = scmp.eq.s32.totalorder %s24, 1
    %p341 = scmp.ne.s32.totalorder %s336, %s338
    %p342 = scmp.eq.s32.totalorder %s24, 0
    %p343 = por %p341, %p342
    %p344 = scmp.ne.s32.totalorder %s336, %s338
    %p345 = scmp.eq.s32.totalorder %s29, 1
    %p346 = por %p344, %p345
    %p347 = scmp.ne.s32.totalorder %s338, %s339
    %p348 = scmp.eq.s32.totalorder %s29, 0
    %p349 = por %p347, %p348
    %p350 = scmp.ne.s32.totalorder %s338, %s339
    %p351 = scmp.eq.s32.totalorder %s30, 1
    %p352 = por %p350, %p351
    %p354 = scmp.ne.s32.totalorder %s339, %s353
    %p355 = scmp.eq.s32.totalorder %s30, 0
    %p356 = por %p354, %p355
    %s358 = sadd.s32 %s357, 1
    %p361 = scmp.eq.s32.totalorder %s24, 1
    %p362 = scmp.ne.s32.totalorder %s357, %s359
    %p363 = scmp.eq.s32.totalorder %s24, 0
    %p364 = por %p362, %p363
    %p365 = scmp.ne.s32.totalorder %s357, %s359
    %p366 = scmp.eq.s32.totalorder %s29, 1
    %p367 = por %p365, %p366
    %p368 = scmp.ne.s32.totalorder %s359, %s360
    %p369 = scmp.eq.s32.totalorder %s29, 0
    %p370 = por %p368, %p369
    %p371 = scmp.ne.s32.totalorder %s359, %s360
    %p372 = scmp.eq.s32.totalorder %s30, 1
    %p373 = por %p371, %p372
    %p375 = scmp.ne.s32.totalorder %s360, %s374
    %p376 = scmp.eq.s32.totalorder %s30, 0
    %p377 = por %p375, %p376
    %s379 = sadd.s32 %s378, 1
    %p382 = scmp.eq.s32.totalorder %s24, 1
    %p383 = scmp.ne.s32.totalorder %s378, %s380
    %p384 = scmp.eq.s32.totalorder %s24, 0
    %p385 = por %p383, %p384
    %p386 = scmp.ne.s32.totalorder %s378, %s380
    %p387 = scmp.eq.s32.totalorder %s29, 1
    %p388 = por %p386, %p387
    %p389 = scmp.ne.s32.totalorder %s380, %s381
    %p390 = scmp.eq.s32.totalorder %s29, 0
    %p391 = por %p389, %p390
    %p392 = scmp.ne.s32.totalorder %s380, %s381
    %p393 = scmp.eq.s32.totalorder %s30, 1
    %p394 = por %p392, %p393
    %p396 = scmp.ne.s32.totalorder %s381, %s395
    %p397 = scmp.eq.s32.totalorder %s30, 0
    %p398 = por %p396, %p397
    %s400 = sadd.s32 %s399, 1
    %p403 = scmp.eq.s32.totalorder %s24, 1
    %p404 = scmp.ne.s32.totalorder %s399, %s401
    %p405 = scmp.eq.s32.totalorder %s24, 0
    %p406 = por %p404, %p405
    %p407 = scmp.ne.s32.totalorder %s399, %s401
    %p408 = scmp.eq.s32.totalorder %s29, 1
    %p409 = por %p407, %p408
    %p410 = scmp.ne.s32.totalorder %s401, %s402
    %p411 = scmp.eq.s32.totalorder %s29, 0
    %p412 = por %p410, %p411
    %p413 = scmp.ne.s32.totalorder %s401, %s402
    %p414 = scmp.eq.s32.totalorder %s30, 1
    %p415 = por %p413, %p414
    %p417 = scmp.ne.s32.totalorder %s402, %s416
    %p418 = scmp.eq.s32.totalorder %s30, 0
    %p419 = por %p417, %p418
    %s420 = ssub.s32 %s24, %s31
    %p421 = scmp.eq.s32.totalorder %s420, 0
    %s423 = sadd.s32 %s422, 1
    %s424 = scalar_select %p421, %s422, %s423
    %p427 = pneg %p421
    %p428 = scmp.eq.s32.totalorder %s24, 1
    %p429 = por %p427, %p428
    %p430 = scmp.ne.s32.totalorder %s422, %s425
    %p431 = scmp.eq.s32.totalorder %s24, 0
    %p432 = por %p430, %p431
    %p433 = scmp.ne.s32.totalorder %s422, %s425
    %p434 = scmp.eq.s32.totalorder %s29, 1
    %p435 = por %p433, %p434
    %p436 = scmp.ne.s32.totalorder %s425, %s426
    %p437 = scmp.eq.s32.totalorder %s29, 0
    %p438 = por %p436, %p437
    %p439 = scmp.ne.s32.totalorder %s425, %s426
    %p440 = scmp.eq.s32.totalorder %s30, 1
    %p441 = por %p439, %p440
    %p443 = scmp.ne.s32.totalorder %s426, %s442
    %p444 = scmp.eq.s32.totalorder %s30, 0
    %p445 = por %p443, %p444
    %p446 = scmp.le.s32.totalorder 1, %s24
    %p447 = scmp.lt.s32.totalorder %s24, 3
    %p448 = pnand %p446, %p447
    %p449 = pneg %p448
    // Predicated region
    $region9: #{nerf_forward.1} parent=5 // pred_check
      _
    $region10: #{nerf_forward.1} parent=5 // pred_check_branch
      %451 = sbr.rel (%p448) target = $region12
    $region11: #{nerf_forward.1} parent=5 // pred_region
      %s452 = ssub.s32 %s24, 1
      // Predicated region
      $region13: #{nerf_forward.1} parent=11 // pred_check
        %p453 = pneg %p97
      $region14: #{nerf_forward.1} parent=11 // pred_check_branch
        %455 = sbr.rel (%p453) target = $region16
      $region15: #{nerf_forward.1} parent=11 // pred_region
        _
      $region16: #{nerf_forward.1} parent=11 // pred_fallthru
        _
      // Predicated region
      $region17: #{nerf_forward.1} parent=11 // pred_check
        %p456 = pneg %p118
      $region18: #{nerf_forward.1} parent=11 // pred_check_branch
        %458 = sbr.rel (%p456) target = $region20
      $region19: #{nerf_forward.1} parent=11 // pred_region
        _
      $region20: #{nerf_forward.1} parent=11 // pred_fallthru
        _
      // Predicated region
      $region21: #{nerf_forward.1} parent=11 // pred_check
        %p459 = pneg %p139
      $region22: #{nerf_forward.1} parent=11 // pred_check_branch
        %461 = sbr.rel (%p459) target = $region24
      $region23: #{nerf_forward.1} parent=11 // pred_region
        _
      $region24: #{nerf_forward.1} parent=11 // pred_fallthru
        _
      // Predicated region
      $region25: #{nerf_forward.1} parent=11 // pred_check
        %p462 = pneg %p160
      $region26: #{nerf_forward.1} parent=11 // pred_check_branch
        %464 = sbr.rel (%p462) target = $region28
      $region27: #{nerf_forward.1} parent=11 // pred_region
        _
      $region28: #{nerf_forward.1} parent=11 // pred_fallthru
        _
      // Predicated region
      $region29: #{nerf_forward.1} parent=11 // pred_check
        %p465 = pneg %p181
      $region30: #{nerf_forward.1} parent=11 // pred_check_branch
        %467 = sbr.rel (%p465) target = $region32
      $region31: #{nerf_forward.1} parent=11 // pred_region
        _
      $region32: #{nerf_forward.1} parent=11 // pred_fallthru
        _
      // Predicated region
      $region33: #{nerf_forward.1} parent=11 // pred_check
        %p468 = pneg %p202
      $region34: #{nerf_forward.1} parent=11 // pred_check_branch
        %470 = sbr.rel (%p468) target = $region36
      $region35: #{nerf_forward.1} parent=11 // pred_region
        _
      $region36: #{nerf_forward.1} parent=11 // pred_fallthru
        _
      // Predicated region
      $region37: #{nerf_forward.1} parent=11 // pred_check
        %p471 = pneg %p223
      $region38: #{nerf_forward.1} parent=11 // pred_check_branch
        %473 = sbr.rel (%p471) target = $region40
      $region39: #{nerf_forward.1} parent=11 // pred_region
        _
      $region40: #{nerf_forward.1} parent=11 // pred_fallthru
        _
      // Predicated region
      $region41: #{nerf_forward.1} parent=11 // pred_check
        %p474 = pneg %p244
      $region42: #{nerf_forward.1} parent=11 // pred_check_branch
        %476 = sbr.rel (%p474) target = $region44
      $region43: #{nerf_forward.1} parent=11 // pred_region
        _
      $region44: #{nerf_forward.1} parent=11 // pred_fallthru
        _
      // Predicated region
      $region45: #{nerf_forward.1} parent=11 // pred_check
        %p477 = pneg %p265
      $region46: #{nerf_forward.1} parent=11 // pred_check_branch
        %479 = sbr.rel (%p477) target = $region48
      $region47: #{nerf_forward.1} parent=11 // pred_region
        _
      $region48: #{nerf_forward.1} parent=11 // pred_fallthru
        _
      // Predicated region
      $region49: #{nerf_forward.1} parent=11 // pred_check
        %p480 = pneg %p286
      $region50: #{nerf_forward.1} parent=11 // pred_check_branch
        %482 = sbr.rel (%p480) target = $region52
      $region51: #{nerf_forward.1} parent=11 // pred_region
        _
      $region52: #{nerf_forward.1} parent=11 // pred_fallthru
        _
      // Predicated region
      $region53: #{nerf_forward.1} parent=11 // pred_check
        %p483 = pneg %p307
      $region54: #{nerf_forward.1} parent=11 // pred_check_branch
        %485 = sbr.rel (%p483) target = $region56
      $region55: #{nerf_forward.1} parent=11 // pred_region
        _
      $region56: #{nerf_forward.1} parent=11 // pred_fallthru
        _
      // Predicated region
      $region57: #{nerf_forward.1} parent=11 // pred_check
        %p486 = pneg %p328
      $region58: #{nerf_forward.1} parent=11 // pred_check_branch
        %488 = sbr.rel (%p486) target = $region60
      $region59: #{nerf_forward.1} parent=11 // pred_region
        _
      $region60: #{nerf_forward.1} parent=11 // pred_fallthru
        _
      // Predicated region
      $region61: #{nerf_forward.1} parent=11 // pred_check
        %p489 = pneg %p349
      $region62: #{nerf_forward.1} parent=11 // pred_check_branch
        %491 = sbr.rel (%p489) target = $region64
      $region63: #{nerf_forward.1} parent=11 // pred_region
        _
      $region64: #{nerf_forward.1} parent=11 // pred_fallthru
        _
      // Predicated region
      $region65: #{nerf_forward.1} parent=11 // pred_check
        %p492 = pneg %p370
      $region66: #{nerf_forward.1} parent=11 // pred_check_branch
        %494 = sbr.rel (%p492) target = $region68
      $region67: #{nerf_forward.1} parent=11 // pred_region
        _
      $region68: #{nerf_forward.1} parent=11 // pred_fallthru
        _
      // Predicated region
      $region69: #{nerf_forward.1} parent=11 // pred_check
        %p495 = pneg %p391
      $region70: #{nerf_forward.1} parent=11 // pred_check_branch
        %497 = sbr.rel (%p495) target = $region72
      $region71: #{nerf_forward.1} parent=11 // pred_region
        _
      $region72: #{nerf_forward.1} parent=11 // pred_fallthru
        _
      // Predicated region
      $region73: #{nerf_forward.1} parent=11 // pred_check
        %p498 = pneg %p412
      $region74: #{nerf_forward.1} parent=11 // pred_check_branch
        %500 = sbr.rel (%p498) target = $region76
      $region75: #{nerf_forward.1} parent=11 // pred_region
        _
      $region76: #{nerf_forward.1} parent=11 // pred_fallthru
        _
    $region12: #{nerf_forward.1} parent=5 // pred_fallthru
      _
    %p501 = scmp.lt.s32.totalorder %s24, 2
    // Predicated region
    $region77: #{nerf_forward.1} parent=5 // pred_check
      %p502 = pneg %p501
    $region78: #{nerf_forward.1} parent=5 // pred_check_branch
      %504 = sbr.rel (%p502) target = $region80
    $region79: #{nerf_forward.1} parent=5 // pred_region
      // Predicated region
      $region81: #{nerf_forward.1} parent=79 // pred_check
        %p505 = pneg %p44
      $region82: #{nerf_forward.1} parent=79 // pred_check_branch
        %507 = sbr.rel (%p505) target = $region84
      $region83: #{nerf_forward.1} parent=79 // pred_region
        %s508 = smul.u32 128, %s24
        %p509 = scmp.lt.s32.totalorder %s508, 255
        %s510 = scalar_select %p509, %s508, 255
        %s511 = smul.addr %s510, 4
        %s512 = scalar_lea.vmem %s0, %s511
        %s513 = smul.u32 128, %s24
      $region84: #{nerf_forward.1} parent=79 // pred_fallthru
        _
      // Predicated region
      $region85: #{nerf_forward.1} parent=79 // pred_check
        %p514 = pneg %p70
      $region86: #{nerf_forward.1} parent=79 // pred_check_branch
        %516 = sbr.rel (%p514) target = $region88
      $region87: #{nerf_forward.1} parent=79 // pred_region
        %s517 = smul.u32 128, %s24
        %p518 = scmp.lt.s32.totalorder %s517, 255
        %s519 = scalar_select %p518, %s517, 255
        %s520 = smul.addr %s519, 4
        %s521 = scalar_lea.vmem %s1, %s520
        %s522 = smul.u32 128, %s24
      $region88: #{nerf_forward.1} parent=79 // pred_fallthru
        _
    $region80: #{nerf_forward.1} parent=5 // pred_fallthru
      _
    %p523 = scmp.le.s32.totalorder 1, %s24
    %p524 = scmp.lt.s32.totalorder %s24, 3
    %p525 = pnand %p523, %p524
    %p526 = pneg %p525
    // Predicated region
    $region89: #{nerf_forward.1} parent=5 // pred_check
      _
    $region90: #{nerf_forward.1} parent=5 // pred_check_branch
      %528 = sbr.rel (%p525) target = $region92
    $region91: #{nerf_forward.1} parent=5 // pred_region
      %s529 = ssub.s32 %s24, 1
      %s530 = smul.u32 128, %s29
      %p531 = scmp.lt.s32.totalorder %s530, 255
      %s532 = scalar_select %p531, %s530, 255
      %s533 = smul.addr %s532, 4
      %s534 = scalar_lea.vmem %s0, %s533
      %p535 = pneg %p50
      %p536 = pneg %p47
      %s537 = smul.u32 128, %s29
      %p538 = scmp.lt.s32.totalorder %s537, 255
      %s539 = scalar_select %p538, %s537, 255
      %s540 = smul.addr %s539, 4
      %s541 = scalar_lea.vmem %s1, %s540
      %p542 = pneg %p76
      %p543 = pneg %p73
      %p544 = pneg %p97
      %p545 = pneg %p94
      %p546 = pneg %p118
      %p547 = pneg %p115
      %p548 = pneg %p139
      %p549 = pneg %p136
      %p550 = pneg %p160
      %p551 = pneg %p157
      %p552 = pneg %p181
      %p553 = pneg %p178
      %p554 = pneg %p202
      %p555 = pneg %p199
      %p556 = pneg %p223
      %p557 = pneg %p220
      %p558 = pneg %p244
      %p559 = pneg %p241
      %p560 = pneg %p265
      %p561 = pneg %p262
      %p562 = pneg %p286
      %p563 = pneg %p283
      %p564 = pneg %p307
      %p565 = pneg %p304
      %p566 = pneg %p328
      %p567 = pneg %p325
      %p568 = pneg %p349
      %p569 = pneg %p346
      %p570 = pneg %p370
      %p571 = pneg %p367
      %p572 = pneg %p391
      %p573 = pneg %p388
      %p574 = pneg %p412
      %p575 = pneg %p409
      %p576 = pneg %p438
      %p577 = pneg %p435
      %s578 = smul.u32 128, %s29
      %p579 = scmp.lt.s32.totalorder %s578, 255
      %s580 = scalar_select %p579, %s578, 255
      %s581 = smul.addr %s580, 8
      %s582 = scalar_lea.vmem %s18, %s581
      %s583 = smul.u32 128, %s29
      %p584 = scmp.lt.s32.totalorder %s583, 255
      %s585 = scalar_select %p584, %s583, 255
      %s586 = smul.addr %s585, 4
      %s587 = scalar_lea.vmem %s0, %s586
      %s588 = smul.u32 128, %s29
      %s589 = smul.u32 128, %s29
      %p590 = scmp.lt.s32.totalorder %s589, 255
      %s591 = scalar_select %p590, %s589, 255
      %s592 = smul.addr %s591, 4
      %s593 = scalar_lea.vmem %s1, %s592
      %s594 = smul.u32 128, %s29
      %s595 = smul.u32 128, %s29
      %p596 = scmp.lt.s32.totalorder %s595, 255
      %s597 = scalar_select %p596, %s595, 255
      %s598 = smul.addr %s597, 8
      %s599 = scalar_lea.vmem %s18, %s598
      %s600 = smul.u32 128, %s29
      %v602 = vld [vmem:[%s587] sm:$0xf]
      %v603 = vld [vmem:[%s587 + $0x4] sm:$0xf]
      %v604 = vld [vmem:[%s587 + $0x8] sm:$0xf]
      %v605 = vld [vmem:[%s587 + $0xc] sm:$0xf]
      %v606 = vld [vmem:[%s587 + $0x10] sm:$0xf]
      %v607 = vld [vmem:[%s587 + $0x14] sm:$0xf]
      %v608 = vld [vmem:[%s587 + $0x18] sm:$0xf]
      %v609 = vld [vmem:[%s587 + $0x1c] sm:$0xf]
      %v610 = vld [vmem:[%s587 + $0x20] sm:$0xf]
      %v611 = vld [vmem:[%s587 + $0x24] sm:$0xf]
      %v612 = vld [vmem:[%s587 + $0x28] sm:$0xf]
      %v613 = vld [vmem:[%s587 + $0x2c] sm:$0xf]
      %v614 = vld [vmem:[%s587 + $0x30] sm:$0xf]
      %v615 = vld [vmem:[%s587 + $0x34] sm:$0xf]
      %v616 = vld [vmem:[%s587 + $0x38] sm:$0xf]
      %v617 = vld [vmem:[%s587 + $0x3c] sm:$0xf]
      %v618 = vld [vmem:[%s587 + $0x40] sm:$0xf]
      %v619 = vld [vmem:[%s587 + $0x44] sm:$0xf]
      %v620 = vld [vmem:[%s587 + $0x48] sm:$0xf]
      %v621 = vld [vmem:[%s587 + $0x4c] sm:$0xf]
      %v622 = vld [vmem:[%s587 + $0x50] sm:$0xf]
      %v623 = vld [vmem:[%s587 + $0x54] sm:$0xf]
      %v624 = vld [vmem:[%s587 + $0x58] sm:$0xf]
      %v625 = vld [vmem:[%s587 + $0x5c] sm:$0xf]
      %v626 = vld [vmem:[%s587 + $0x60] sm:$0xf]
      %v627 = vld [vmem:[%s587 + $0x64] sm:$0xf]
      %v628 = vld [vmem:[%s587 + $0x68] sm:$0xf]
      %v629 = vld [vmem:[%s587 + $0x6c] sm:$0xf]
      %v630 = vld [vmem:[%s587 + $0x70] sm:$0xf]
      %v631 = vld [vmem:[%s587 + $0x74] sm:$0xf]
      %v632 = vld [vmem:[%s587 + $0x78] sm:$0xf]
      %v633 = vld [vmem:[%s587 + $0x7c] sm:$0xf]
      %v634 = vld [vmem:[%s587 + $0x80] sm:$0xf]
      %v635 = vld [vmem:[%s587 + $0x84] sm:$0xf]
      %v636 = vld [vmem:[%s587 + $0x88] sm:$0xf]
      %v637 = vld [vmem:[%s587 + $0x8c] sm:$0xf]
      %v638 = vld [vmem:[%s587 + $0x90] sm:$0xf]
      %v639 = vld [vmem:[%s587 + $0x94] sm:$0xf]
      %v640 = vld [vmem:[%s587 + $0x98] sm:$0xf]
      %v641 = vld [vmem:[%s587 + $0x9c] sm:$0xf]
      %v642 = vld [vmem:[%s587 + $0xa0] sm:$0xf]
      %v643 = vld [vmem:[%s587 + $0xa4] sm:$0xf]
      %v644 = vld [vmem:[%s587 + $0xa8] sm:$0xf]
      %v645 = vld [vmem:[%s587 + $0xac] sm:$0xf]
      %v646 = vld [vmem:[%s587 + $0xb0] sm:$0xf]
      %v647 = vld [vmem:[%s587 + $0xb4] sm:$0xf]
      %v648 = vld [vmem:[%s587 + $0xb8] sm:$0xf]
      %v649 = vld [vmem:[%s587 + $0xbc] sm:$0xf]
      %v650 = vld [vmem:[%s587 + $0xc0] sm:$0xf]
      %v651 = vld [vmem:[%s587 + $0xc4] sm:$0xf]
      %v652 = vld [vmem:[%s587 + $0xc8] sm:$0xf]
      %v653 = vld [vmem:[%s587 + $0xcc] sm:$0xf]
      %v654 = vld [vmem:[%s587 + $0xd0] sm:$0xf]
      %v655 = vld [vmem:[%s587 + $0xd4] sm:$0xf]
      %v656 = vld [vmem:[%s587 + $0xd8] sm:$0xf]
      %v657 = vld [vmem:[%s587 + $0xdc] sm:$0xf]
      %v658 = vld [vmem:[%s587 + $0xe0] sm:$0xf]
      %v659 = vld [vmem:[%s587 + $0xe4] sm:$0xf]
      %v660 = vld [vmem:[%s587 + $0xe8] sm:$0xf]
      %v661 = vld [vmem:[%s587 + $0xec] sm:$0xf]
      %v662 = vld [vmem:[%s587 + $0xf0] sm:$0xf]
      %v663 = vld [vmem:[%s587 + $0xf4] sm:$0xf]
      %v664 = vld [vmem:[%s587 + $0xf8] sm:$0xf]
      %v665 = vld [vmem:[%s587 + $0xfc] sm:$0xf]
      %v666 = vld [vmem:[%s587 + $0x100] sm:$0xf]
      %v667 = vld [vmem:[%s587 + $0x104] sm:$0xf]
      %v668 = vld [vmem:[%s587 + $0x108] sm:$0xf]
      %v669 = vld [vmem:[%s587 + $0x10c] sm:$0xf]
      %v670 = vld [vmem:[%s587 + $0x110] sm:$0xf]
      %v671 = vld [vmem:[%s587 + $0x114] sm:$0xf]
      %v672 = vld [vmem:[%s587 + $0x118] sm:$0xf]
      %v673 = vld [vmem:[%s587 + $0x11c] sm:$0xf]
      %v674 = vld [vmem:[%s587 + $0x120] sm:$0xf]
      %v675 = vld [vmem:[%s587 + $0x124] sm:$0xf]
      %v676 = vld [vmem:[%s587 + $0x128] sm:$0xf]
      %v677 = vld [vmem:[%s587 + $0x12c] sm:$0xf]
      %v678 = vld [vmem:[%s587 + $0x130] sm:$0xf]
      %v679 = vld [vmem:[%s587 + $0x134] sm:$0xf]
      %v680 = vld [vmem:[%s587 + $0x138] sm:$0xf]
      %v681 = vld [vmem:[%s587 + $0x13c] sm:$0xf]
      %v682 = vld [vmem:[%s587 + $0x140] sm:$0xf]
      %v683 = vld [vmem:[%s587 + $0x144] sm:$0xf]
      %v684 = vld [vmem:[%s587 + $0x148] sm:$0xf]
      %v685 = vld [vmem:[%s587 + $0x14c] sm:$0xf]
      %v686 = vld [vmem:[%s587 + $0x150] sm:$0xf]
      %v687 = vld [vmem:[%s587 + $0x154] sm:$0xf]
      %v688 = vld [vmem:[%s587 + $0x158] sm:$0xf]
      %v689 = vld [vmem:[%s587 + $0x15c] sm:$0xf]
      %v690 = vld [vmem:[%s587 + $0x160] sm:$0xf]
      %v691 = vld [vmem:[%s587 + $0x164] sm:$0xf]
      %v692 = vld [vmem:[%s587 + $0x168] sm:$0xf]
      %v693 = vld [vmem:[%s587 + $0x16c] sm:$0xf]
      %v694 = vld [vmem:[%s587 + $0x170] sm:$0xf]
      %v695 = vld [vmem:[%s587 + $0x174] sm:$0xf]
      %v696 = vld [vmem:[%s587 + $0x178] sm:$0xf]
      %v697 = vld [vmem:[%s587 + $0x17c] sm:$0xf]
      %v698 = vld [vmem:[%s587 + $0x180] sm:$0xf]
      %v699 = vld [vmem:[%s587 + $0x184] sm:$0xf]
      %v700 = vld [vmem:[%s587 + $0x188] sm:$0xf]
      %v701 = vld [vmem:[%s587 + $0x18c] sm:$0xf]
      %v702 = vld [vmem:[%s587 + $0x190] sm:$0xf]
      %v703 = vld [vmem:[%s587 + $0x194] sm:$0xf]
      %v704 = vld [vmem:[%s587 + $0x198] sm:$0xf]
      %v705 = vld [vmem:[%s587 + $0x19c] sm:$0xf]
      %v706 = vld [vmem:[%s587 + $0x1a0] sm:$0xf]
      %v707 = vld [vmem:[%s587 + $0x1a4] sm:$0xf]
      %v708 = vld [vmem:[%s587 + $0x1a8] sm:$0xf]
      %v709 = vld [vmem:[%s587 + $0x1ac] sm:$0xf]
      %v710 = vld [vmem:[%s587 + $0x1b0] sm:$0xf]
      %v711 = vld [vmem:[%s587 + $0x1b4] sm:$0xf]
      %v712 = vld [vmem:[%s587 + $0x1b8] sm:$0xf]
      %v713 = vld [vmem:[%s587 + $0x1bc] sm:$0xf]
      %v714 = vld [vmem:[%s587 + $0x1c0] sm:$0xf]
      %v715 = vld [vmem:[%s587 + $0x1c4] sm:$0xf]
      %v716 = vld [vmem:[%s587 + $0x1c8] sm:$0xf]
      %v717 = vld [vmem:[%s587 + $0x1cc] sm:$0xf]
      %v718 = vld [vmem:[%s587 + $0x1d0] sm:$0xf]
      %v719 = vld [vmem:[%s587 + $0x1d4] sm:$0xf]
      %v720 = vld [vmem:[%s587 + $0x1d8] sm:$0xf]
      %v721 = vld [vmem:[%s587 + $0x1dc] sm:$0xf]
      %v722 = vld [vmem:[%s587 + $0x1e0] sm:$0xf]
      %v723 = vld [vmem:[%s587 + $0x1e4] sm:$0xf]
      %v724 = vld [vmem:[%s587 + $0x1e8] sm:$0xf]
      %v725 = vld [vmem:[%s587 + $0x1ec] sm:$0xf]
      %v726 = vld [vmem:[%s587 + $0x1f0] sm:$0xf]
      %v727 = vld [vmem:[%s587 + $0x1f4] sm:$0xf]
      %v728 = vld [vmem:[%s587 + $0x1f8] sm:$0xf]
      %v729 = vld [vmem:[%s587 + $0x1fc] sm:$0xf]
      %v730 = vld [vmem:[%s593] sm:$0xf]
      %v731 = vld [vmem:[%s593 + $0x4] sm:$0xf]
      %v732 = vld [vmem:[%s593 + $0x8] sm:$0xf]
      %v733 = vld [vmem:[%s593 + $0xc] sm:$0xf]
      %v734 = vld [vmem:[%s593 + $0x10] sm:$0xf]
      %v735 = vld [vmem:[%s593 + $0x14] sm:$0xf]
      %v736 = vld [vmem:[%s593 + $0x18] sm:$0xf]
      %v737 = vld [vmem:[%s593 + $0x1c] sm:$0xf]
      %v738 = vld [vmem:[%s593 + $0x20] sm:$0xf]
      %v739 = vld [vmem:[%s593 + $0x24] sm:$0xf]
      %v740 = vld [vmem:[%s593 + $0x28] sm:$0xf]
      %v741 = vld [vmem:[%s593 + $0x2c] sm:$0xf]
      %v742 = vld [vmem:[%s593 + $0x30] sm:$0xf]
      %v743 = vld [vmem:[%s593 + $0x34] sm:$0xf]
      %v744 = vld [vmem:[%s593 + $0x38] sm:$0xf]
      %v745 = vld [vmem:[%s593 + $0x3c] sm:$0xf]
      %v746 = vld [vmem:[%s593 + $0x40] sm:$0xf]
      %v747 = vld [vmem:[%s593 + $0x44] sm:$0xf]
      %v748 = vld [vmem:[%s593 + $0x48] sm:$0xf]
      %v749 = vld [vmem:[%s593 + $0x4c] sm:$0xf]
      %v750 = vld [vmem:[%s593 + $0x50] sm:$0xf]
      %v751 = vld [vmem:[%s593 + $0x54] sm:$0xf]
      %v752 = vld [vmem:[%s593 + $0x58] sm:$0xf]
      %v753 = vld [vmem:[%s593 + $0x5c] sm:$0xf]
      %v754 = vld [vmem:[%s593 + $0x60] sm:$0xf]
      %v755 = vld [vmem:[%s593 + $0x64] sm:$0xf]
      %v756 = vld [vmem:[%s593 + $0x68] sm:$0xf]
      %v757 = vld [vmem:[%s593 + $0x6c] sm:$0xf]
      %v758 = vld [vmem:[%s593 + $0x70] sm:$0xf]
      %v759 = vld [vmem:[%s593 + $0x74] sm:$0xf]
      %v760 = vld [vmem:[%s593 + $0x78] sm:$0xf]
      %v761 = vld [vmem:[%s593 + $0x7c] sm:$0xf]
      %v762 = vld [vmem:[%s593 + $0x80] sm:$0xf]
      %v763 = vld [vmem:[%s593 + $0x84] sm:$0xf]
      %v764 = vld [vmem:[%s593 + $0x88] sm:$0xf]
      %v765 = vld [vmem:[%s593 + $0x8c] sm:$0xf]
      %v766 = vld [vmem:[%s593 + $0x90] sm:$0xf]
      %v767 = vld [vmem:[%s593 + $0x94] sm:$0xf]
      %v768 = vld [vmem:[%s593 + $0x98] sm:$0xf]
      %v769 = vld [vmem:[%s593 + $0x9c] sm:$0xf]
      %v770 = vld [vmem:[%s593 + $0xa0] sm:$0xf]
      %v771 = vld [vmem:[%s593 + $0xa4] sm:$0xf]
      %v772 = vld [vmem:[%s593 + $0xa8] sm:$0xf]
      %v773 = vld [vmem:[%s593 + $0xac] sm:$0xf]
      %v774 = vld [vmem:[%s593 + $0xb0] sm:$0xf]
      %v775 = vld [vmem:[%s593 + $0xb4] sm:$0xf]
      %v776 = vld [vmem:[%s593 + $0xb8] sm:$0xf]
      %v777 = vld [vmem:[%s593 + $0xbc] sm:$0xf]
      %v778 = vld [vmem:[%s593 + $0xc0] sm:$0xf]
      %v779 = vld [vmem:[%s593 + $0xc4] sm:$0xf]
      %v780 = vld [vmem:[%s593 + $0xc8] sm:$0xf]
      %v781 = vld [vmem:[%s593 + $0xcc] sm:$0xf]
      %v782 = vld [vmem:[%s593 + $0xd0] sm:$0xf]
      %v783 = vld [vmem:[%s593 + $0xd4] sm:$0xf]
      %v784 = vld [vmem:[%s593 + $0xd8] sm:$0xf]
      %v785 = vld [vmem:[%s593 + $0xdc] sm:$0xf]
      %v786 = vld [vmem:[%s593 + $0xe0] sm:$0xf]
      %v787 = vld [vmem:[%s593 + $0xe4] sm:$0xf]
      %v788 = vld [vmem:[%s593 + $0xe8] sm:$0xf]
      %v789 = vld [vmem:[%s593 + $0xec] sm:$0xf]
      %v790 = vld [vmem:[%s593 + $0xf0] sm:$0xf]
      %v791 = vld [vmem:[%s593 + $0xf4] sm:$0xf]
      %v792 = vld [vmem:[%s593 + $0xf8] sm:$0xf]
      %v793 = vld [vmem:[%s593 + $0xfc] sm:$0xf]
      %v794 = vld [vmem:[%s593 + $0x100] sm:$0xf]
      %v795 = vld [vmem:[%s593 + $0x104] sm:$0xf]
      %v796 = vld [vmem:[%s593 + $0x108] sm:$0xf]
      %v797 = vld [vmem:[%s593 + $0x10c] sm:$0xf]
      %v798 = vld [vmem:[%s593 + $0x110] sm:$0xf]
      %v799 = vld [vmem:[%s593 + $0x114] sm:$0xf]
      %v800 = vld [vmem:[%s593 + $0x118] sm:$0xf]
      %v801 = vld [vmem:[%s593 + $0x11c] sm:$0xf]
      %v802 = vld [vmem:[%s593 + $0x120] sm:$0xf]
      %v803 = vld [vmem:[%s593 + $0x124] sm:$0xf]
      %v804 = vld [vmem:[%s593 + $0x128] sm:$0xf]
      %v805 = vld [vmem:[%s593 + $0x12c] sm:$0xf]
      %v806 = vld [vmem:[%s593 + $0x130] sm:$0xf]
      %v807 = vld [vmem:[%s593 + $0x134] sm:$0xf]
      %v808 = vld [vmem:[%s593 + $0x138] sm:$0xf]
      %v809 = vld [vmem:[%s593 + $0x13c] sm:$0xf]
      %v810 = vld [vmem:[%s593 + $0x140] sm:$0xf]
      %v811 = vld [vmem:[%s593 + $0x144] sm:$0xf]
      %v812 = vld [vmem:[%s593 + $0x148] sm:$0xf]
      %v813 = vld [vmem:[%s593 + $0x14c] sm:$0xf]
      %v814 = vld [vmem:[%s593 + $0x150] sm:$0xf]
      %v815 = vld [vmem:[%s593 + $0x154] sm:$0xf]
      %v816 = vld [vmem:[%s593 + $0x158] sm:$0xf]
      %v817 = vld [vmem:[%s593 + $0x15c] sm:$0xf]
      %v818 = vld [vmem:[%s593 + $0x160] sm:$0xf]
      %v819 = vld [vmem:[%s593 + $0x164] sm:$0xf]
      %v820 = vld [vmem:[%s593 + $0x168] sm:$0xf]
      %v821 = vld [vmem:[%s593 + $0x16c] sm:$0xf]
      %v822 = vld [vmem:[%s593 + $0x170] sm:$0xf]
      %v823 = vld [vmem:[%s593 + $0x174] sm:$0xf]
      %v824 = vld [vmem:[%s593 + $0x178] sm:$0xf]
      %v825 = vld [vmem:[%s593 + $0x17c] sm:$0xf]
      %v826 = vld [vmem:[%s593 + $0x180] sm:$0xf]
      %v827 = vld [vmem:[%s593 + $0x184] sm:$0xf]
      %v828 = vld [vmem:[%s593 + $0x188] sm:$0xf]
      %v829 = vld [vmem:[%s593 + $0x18c] sm:$0xf]
      %v830 = vld [vmem:[%s593 + $0x190] sm:$0xf]
      %v831 = vld [vmem:[%s593 + $0x194] sm:$0xf]
      %v832 = vld [vmem:[%s593 + $0x198] sm:$0xf]
      %v833 = vld [vmem:[%s593 + $0x19c] sm:$0xf]
      %v834 = vld [vmem:[%s593 + $0x1a0] sm:$0xf]
      %v835 = vld [vmem:[%s593 + $0x1a4] sm:$0xf]
      %v836 = vld [vmem:[%s593 + $0x1a8] sm:$0xf]
      %v837 = vld [vmem:[%s593 + $0x1ac] sm:$0xf]
      %v838 = vld [vmem:[%s593 + $0x1b0] sm:$0xf]
      %v839 = vld [vmem:[%s593 + $0x1b4] sm:$0xf]
      %v840 = vld [vmem:[%s593 + $0x1b8] sm:$0xf]
      %v841 = vld [vmem:[%s593 + $0x1bc] sm:$0xf]
      %v842 = vld [vmem:[%s593 + $0x1c0] sm:$0xf]
      %v843 = vld [vmem:[%s593 + $0x1c4] sm:$0xf]
      %v844 = vld [vmem:[%s593 + $0x1c8] sm:$0xf]
      %v845 = vld [vmem:[%s593 + $0x1cc] sm:$0xf]
      %v846 = vld [vmem:[%s593 + $0x1d0] sm:$0xf]
      %v847 = vld [vmem:[%s593 + $0x1d4] sm:$0xf]
      %v848 = vld [vmem:[%s593 + $0x1d8] sm:$0xf]
      %v849 = vld [vmem:[%s593 + $0x1dc] sm:$0xf]
      %v850 = vld [vmem:[%s593 + $0x1e0] sm:$0xf]
      %v851 = vld [vmem:[%s593 + $0x1e4] sm:$0xf]
      %v852 = vld [vmem:[%s593 + $0x1e8] sm:$0xf]
      %v853 = vld [vmem:[%s593 + $0x1ec] sm:$0xf]
      %v854 = vld [vmem:[%s593 + $0x1f0] sm:$0xf]
      %v855 = vld [vmem:[%s593 + $0x1f4] sm:$0xf]
      %v856 = vld [vmem:[%s593 + $0x1f8] sm:$0xf]
      %v857 = vld [vmem:[%s593 + $0x1fc] sm:$0xf]
      %v858 = vld [vmem:[%s2] sm:$0xf]
      %v859 = vld [vmem:[%s2 + $0x4] sm:$0xf]
      %v860 = vld [vmem:[%s2 + $0x8] sm:$0xf]
      %v861 = vld [vmem:[%s2 + $0xc] sm:$0xf]
      %v862 = vld [vmem:[%s2 + $0x10] sm:$0xf]
      %v863 = vld [vmem:[%s3] sm:$0x1]
      %v865 = vlaneseq
      %v866 = vshrl.u32 %v865, 7
      %v867 = vsub.s32 0, %v866
      %v868 = vrot.slane %v863, %v867
      %v998 = vunpack.c.l.b16 %v602
      %v999 = vunpack.c.l.b16 %v603
      %v1000 = vunpack.c.l.b16 %v604
      %v1001 = vunpack.c.l.b16 %v605
      %v1002 = vunpack.c.l.b16 %v606
      %v1003 = vunpack.c.l.b16 %v607
      %v1004 = vunpack.c.l.b16 %v608
      %v1005 = vunpack.c.l.b16 %v609
      %v1006 = vunpack.c.l.b16 %v610
      %v1007 = vunpack.c.l.b16 %v611
      %v1008 = vunpack.c.l.b16 %v612
      %v1009 = vunpack.c.l.b16 %v613
      %v1010 = vunpack.c.l.b16 %v614
      %v1011 = vunpack.c.l.b16 %v615
      %v1012 = vunpack.c.l.b16 %v616
      %v1013 = vunpack.c.l.b16 %v617
      %v1014 = vunpack.c.l.b16 %v618
      %v1015 = vunpack.c.l.b16 %v619
      %v1016 = vunpack.c.l.b16 %v620
      %v1017 = vunpack.c.l.b16 %v621
      %v1018 = vunpack.c.l.b16 %v622
      %v1019 = vunpack.c.l.b16 %v623
      %v1020 = vunpack.c.l.b16 %v624
      %v1021 = vunpack.c.l.b16 %v625
      %v1022 = vunpack.c.l.b16 %v626
      %v1023 = vunpack.c.l.b16 %v627
      %v1024 = vunpack.c.l.b16 %v628
      %v1025 = vunpack.c.l.b16 %v629
      %v1026 = vunpack.c.l.b16 %v630
      %v1027 = vunpack.c.l.b16 %v631
      %v1028 = vunpack.c.l.b16 %v632
      %v1029 = vunpack.c.l.b16 %v633
      %v1030 = vunpack.c.l.b16 %v634
      %v1031 = vunpack.c.l.b16 %v635
      %v1032 = vunpack.c.l.b16 %v636
      %v1033 = vunpack.c.l.b16 %v637
      %v1034 = vunpack.c.l.b16 %v638
      %v1035 = vunpack.c.l.b16 %v639
      %v1036 = vunpack.c.l.b16 %v640
      %v1037 = vunpack.c.l.b16 %v641
      %v1038 = vunpack.c.l.b16 %v642
      %v1039 = vunpack.c.l.b16 %v643
      %v1040 = vunpack.c.l.b16 %v644
      %v1041 = vunpack.c.l.b16 %v645
      %v1042 = vunpack.c.l.b16 %v646
      %v1043 = vunpack.c.l.b16 %v647
      %v1044 = vunpack.c.l.b16 %v648
      %v1045 = vunpack.c.l.b16 %v649
      %v1046 = vunpack.c.l.b16 %v650
      %v1047 = vunpack.c.l.b16 %v651
      %v1048 = vunpack.c.l.b16 %v652
      %v1049 = vunpack.c.l.b16 %v653
      %v1050 = vunpack.c.l.b16 %v654
      %v1051 = vunpack.c.l.b16 %v655
      %v1052 = vunpack.c.l.b16 %v656
      %v1053 = vunpack.c.l.b16 %v657
      %v1054 = vunpack.c.l.b16 %v658
      %v1055 = vunpack.c.l.b16 %v659
      %v1056 = vunpack.c.l.b16 %v660
      %v1057 = vunpack.c.l.b16 %v661
      %v1058 = vunpack.c.l.b16 %v662
      %v1059 = vunpack.c.l.b16 %v663
      %v1060 = vunpack.c.l.b16 %v664
      %v1061 = vunpack.c.l.b16 %v665
      %v1062 = vunpack.c.l.b16 %v666
      %v1063 = vunpack.c.l.b16 %v667
      %v1064 = vunpack.c.l.b16 %v668
      %v1065 = vunpack.c.l.b16 %v669
      %v1066 = vunpack.c.l.b16 %v670
      %v1067 = vunpack.c.l.b16 %v671
      %v1068 = vunpack.c.l.b16 %v672
      %v1069 = vunpack.c.l.b16 %v673
      %v1070 = vunpack.c.l.b16 %v674
      %v1071 = vunpack.c.l.b16 %v675
      %v1072 = vunpack.c.l.b16 %v676
      %v1073 = vunpack.c.l.b16 %v677
      %v1074 = vunpack.c.l.b16 %v678
      %v1075 = vunpack.c.l.b16 %v679
      %v1076 = vunpack.c.l.b16 %v680
      %v1077 = vunpack.c.l.b16 %v681
      %v1078 = vunpack.c.l.b16 %v682
      %v1079 = vunpack.c.l.b16 %v683
      %v1080 = vunpack.c.l.b16 %v684
      %v1081 = vunpack.c.l.b16 %v685
      %v1082 = vunpack.c.l.b16 %v686
      %v1083 = vunpack.c.l.b16 %v687
      %v1084 = vunpack.c.l.b16 %v688
      %v1085 = vunpack.c.l.b16 %v689
      %v1086 = vunpack.c.l.b16 %v690
      %v1087 = vunpack.c.l.b16 %v691
      %v1088 = vunpack.c.l.b16 %v692
      %v1089 = vunpack.c.l.b16 %v693
      %v1090 = vunpack.c.l.b16 %v694
      %v1091 = vunpack.c.l.b16 %v695
      %v1092 = vunpack.c.l.b16 %v696
      %v1093 = vunpack.c.l.b16 %v697
      %v1094 = vunpack.c.l.b16 %v698
      %v1095 = vunpack.c.l.b16 %v699
      %v1096 = vunpack.c.l.b16 %v700
      %v1097 = vunpack.c.l.b16 %v701
      %v1098 = vunpack.c.l.b16 %v702
      %v1099 = vunpack.c.l.b16 %v703
      %v1100 = vunpack.c.l.b16 %v704
      %v1101 = vunpack.c.l.b16 %v705
      %v1102 = vunpack.c.l.b16 %v706
      %v1103 = vunpack.c.l.b16 %v707
      %v1104 = vunpack.c.l.b16 %v708
      %v1105 = vunpack.c.l.b16 %v709
      %v1106 = vunpack.c.l.b16 %v710
      %v1107 = vunpack.c.l.b16 %v711
      %v1108 = vunpack.c.l.b16 %v712
      %v1109 = vunpack.c.l.b16 %v713
      %v1110 = vunpack.c.l.b16 %v714
      %v1111 = vunpack.c.l.b16 %v715
      %v1112 = vunpack.c.l.b16 %v716
      %v1113 = vunpack.c.l.b16 %v717
      %v1114 = vunpack.c.l.b16 %v718
      %v1115 = vunpack.c.l.b16 %v719
      %v1116 = vunpack.c.l.b16 %v720
      %v1117 = vunpack.c.l.b16 %v721
      %v1118 = vunpack.c.l.b16 %v722
      %v1119 = vunpack.c.l.b16 %v723
      %v1120 = vunpack.c.l.b16 %v724
      %v1121 = vunpack.c.l.b16 %v725
      %v1122 = vunpack.c.l.b16 %v726
      %v1123 = vunpack.c.l.b16 %v727
      %v1124 = vunpack.c.l.b16 %v728
      %v1125 = vunpack.c.l.b16 %v729
      %v1126 = vpack.c.b16 %v999, %v998
      %v1127 = vpack.c.b16 %v1001, %v1000
      %v1128 = vpack.c.b16 %v1003, %v1002
      %v1129 = vpack.c.b16 %v1005, %v1004
      %v1130 = vpack.c.b16 %v1007, %v1006
      %v1131 = vpack.c.b16 %v1009, %v1008
      %v1132 = vpack.c.b16 %v1011, %v1010
      %v1133 = vpack.c.b16 %v1013, %v1012
      %v1134 = vpack.c.b16 %v1015, %v1014
      %v1135 = vpack.c.b16 %v1017, %v1016
      %v1136 = vpack.c.b16 %v1019, %v1018
      %v1137 = vpack.c.b16 %v1021, %v1020
      %v1138 = vpack.c.b16 %v1023, %v1022
      %v1139 = vpack.c.b16 %v1025, %v1024
      %v1140 = vpack.c.b16 %v1027, %v1026
      %v1141 = vpack.c.b16 %v1029, %v1028
      %v1142 = vpack.c.b16 %v1031, %v1030
      %v1143 = vpack.c.b16 %v1033, %v1032
      %v1144 = vpack.c.b16 %v1035, %v1034
      %v1145 = vpack.c.b16 %v1037, %v1036
      %v1146 = vpack.c.b16 %v1039, %v1038
      %v1147 = vpack.c.b16 %v1041, %v1040
      %v1148 = vpack.c.b16 %v1043, %v1042
      %v1149 = vpack.c.b16 %v1045, %v1044
      %v1150 = vpack.c.b16 %v1047, %v1046
      %v1151 = vpack.c.b16 %v1049, %v1048
      %v1152 = vpack.c.b16 %v1051, %v1050
      %v1153 = vpack.c.b16 %v1053, %v1052
      %v1154 = vpack.c.b16 %v1055, %v1054
      %v1155 = vpack.c.b16 %v1057, %v1056
      %v1156 = vpack.c.b16 %v1059, %v1058
      %v1157 = vpack.c.b16 %v1061, %v1060
      %v1158 = vpack.c.b16 %v1063, %v1062
      %v1159 = vpack.c.b16 %v1065, %v1064
      %v1160 = vpack.c.b16 %v1067, %v1066
      %v1161 = vpack.c.b16 %v1069, %v1068
      %v1162 = vpack.c.b16 %v1071, %v1070
      %v1163 = vpack.c.b16 %v1073, %v1072
      %v1164 = vpack.c.b16 %v1075, %v1074
      %v1165 = vpack.c.b16 %v1077, %v1076
      %v1166 = vpack.c.b16 %v1079, %v1078
      %v1167 = vpack.c.b16 %v1081, %v1080
      %v1168 = vpack.c.b16 %v1083, %v1082
      %v1169 = vpack.c.b16 %v1085, %v1084
      %v1170 = vpack.c.b16 %v1087, %v1086
      %v1171 = vpack.c.b16 %v1089, %v1088
      %v1172 = vpack.c.b16 %v1091, %v1090
      %v1173 = vpack.c.b16 %v1093, %v1092
      %v1174 = vpack.c.b16 %v1095, %v1094
      %v1175 = vpack.c.b16 %v1097, %v1096
      %v1176 = vpack.c.b16 %v1099, %v1098
      %v1177 = vpack.c.b16 %v1101, %v1100
      %v1178 = vpack.c.b16 %v1103, %v1102
      %v1179 = vpack.c.b16 %v1105, %v1104
      %v1180 = vpack.c.b16 %v1107, %v1106
      %v1181 = vpack.c.b16 %v1109, %v1108
      %v1182 = vpack.c.b16 %v1111, %v1110
      %v1183 = vpack.c.b16 %v1113, %v1112
      %v1184 = vpack.c.b16 %v1115, %v1114
      %v1185 = vpack.c.b16 %v1117, %v1116
      %v1186 = vpack.c.b16 %v1119, %v1118
      %v1187 = vpack.c.b16 %v1121, %v1120
      %v1188 = vpack.c.b16 %v1123, %v1122
      %v1189 = vpack.c.b16 %v1125, %v1124
      %v1195 = vunpack.c.l.b16 %v858
      %v1196 = vunpack.c.l.b16 %v859
      %v1197 = vunpack.c.l.b16 %v860
      %v1198 = vunpack.c.l.b16 %v861
      %v1199 = vunpack.c.l.b16 %v862
      %v1200 = vpack.c.b16 %v1196, %v1195
      %v1201 = vpack.c.b16 %v1198, %v1197
      %v1202 = vpack.c.b16 %v1199, %v1199
      %vm1205 = vcmask 318464
      %v1207 = vsel %vm1205, %v1126, 0
      %v1210 = vsel %vm1205, %v1127, 0
      %v1213 = vsel %vm1205, %v1128, 0
      %v1216 = vsel %vm1205, %v1129, 0
      %v1219 = vsel %vm1205, %v1130, 0
      %v1222 = vsel %vm1205, %v1131, 0
      %v1225 = vsel %vm1205, %v1132, 0
      %v1228 = vsel %vm1205, %v1133, 0
      %v1231 = vsel %vm1205, %v1134, 0
      %v1234 = vsel %vm1205, %v1135, 0
      %v1237 = vsel %vm1205, %v1136, 0
      %v1240 = vsel %vm1205, %v1137, 0
      %v1243 = vsel %vm1205, %v1138, 0
      %v1246 = vsel %vm1205, %v1139, 0
      %v1249 = vsel %vm1205, %v1140, 0
      %v1252 = vsel %vm1205, %v1141, 0
      %v1255 = vsel %vm1205, %v1142, 0
      %v1258 = vsel %vm1205, %v1143, 0
      %v1261 = vsel %vm1205, %v1144, 0
      %v1264 = vsel %vm1205, %v1145, 0
      %v1267 = vsel %vm1205, %v1146, 0
      %v1270 = vsel %vm1205, %v1147, 0
      %v1273 = vsel %vm1205, %v1148, 0
      %v1276 = vsel %vm1205, %v1149, 0
      %v1279 = vsel %vm1205, %v1150, 0
      %v1282 = vsel %vm1205, %v1151, 0
      %v1285 = vsel %vm1205, %v1152, 0
      %v1288 = vsel %vm1205, %v1153, 0
      %v1291 = vsel %vm1205, %v1154, 0
      %v1294 = vsel %vm1205, %v1155, 0
      %v1297 = vsel %vm1205, %v1156, 0
      %v1300 = vsel %vm1205, %v1157, 0
      %v1303 = vsel %vm1205, %v1158, 0
      %v1306 = vsel %vm1205, %v1159, 0
      %v1309 = vsel %vm1205, %v1160, 0
      %v1312 = vsel %vm1205, %v1161, 0
      %v1315 = vsel %vm1205, %v1162, 0
      %v1318 = vsel %vm1205, %v1163, 0
      %v1321 = vsel %vm1205, %v1164, 0
      %v1324 = vsel %vm1205, %v1165, 0
      %v1327 = vsel %vm1205, %v1166, 0
      %v1330 = vsel %vm1205, %v1167, 0
      %v1333 = vsel %vm1205, %v1168, 0
      %v1336 = vsel %vm1205, %v1169, 0
      %v1339 = vsel %vm1205, %v1170, 0
      %v1342 = vsel %vm1205, %v1171, 0
      %v1345 = vsel %vm1205, %v1172, 0
      %v1348 = vsel %vm1205, %v1173, 0
      %v1351 = vsel %vm1205, %v1174, 0
      %v1354 = vsel %vm1205, %v1175, 0
      %v1357 = vsel %vm1205, %v1176, 0
      %v1360 = vsel %vm1205, %v1177, 0
      %v1363 = vsel %vm1205, %v1178, 0
      %v1366 = vsel %vm1205, %v1179, 0
      %v1369 = vsel %vm1205, %v1180, 0
      %v1372 = vsel %vm1205, %v1181, 0
      %v1375 = vsel %vm1205, %v1182, 0
      %v1378 = vsel %vm1205, %v1183, 0
      %v1381 = vsel %vm1205, %v1184, 0
      %v1384 = vsel %vm1205, %v1185, 0
      %v1387 = vsel %vm1205, %v1186, 0
      %v1390 = vsel %vm1205, %v1187, 0
      %v1393 = vsel %vm1205, %v1188, 0
      %v1396 = vsel %vm1205, %v1189, 0
      %vm1398 = vcmask 1042432
      %vm1399 = vcmask 1043456
      %v1400 = vsel %vm1398, 4294967295, 65535
      %v1401 = vsel %vm1399, %v1400, 0
      %v1403 = vand.u32 %v1202, %v1401
      %1405 = vmatprep.subr.bf16.mxu0 0
      %1406 = vmatpush1.bf16.msra.mxu0 0
      %1407 = vmatprep.subr.bf16.mxu0 0
      %1408 = vmatpush1.bf16.msra.mxu0 0
      %1409 = vmatprep.subr.bf16.mxu0 0
      %1410 = vmatpush1.bf16.msra.mxu0 0
      %1411 = vmatprep.subr.bf16.mxu0 0
      %1412 = vmatpush1.bf16.msra.mxu0 0
      %1413 = vmatprep.subr.bf16.mxu0 0
      %1414 = vmatpush1.bf16.msra.mxu0 0
      %1415 = vmatprep.subr.bf16.mxu0 0
      %1416 = vmatpush1.bf16.msra.mxu0 %v1403
      %1417 = vmatprep.subr.bf16.mxu0 0
      %1418 = vmatpush1.bf16.msra.mxu0 %v1201
      %1419 = vmatprep.subr.bf16.mxu0 0
      %1420 = vmatpush1.bf16.msra.mxu0 %v1200
      %1421 = vmatprep.subr.bf16.mxu0 0
      %1422 = vmatpush2.bf16.msra.mxu0 0
      %1423 = vmatprep.subr.bf16.mxu0 0
      %1424 = vmatpush2.bf16.msra.mxu0 0
      %1425 = vmatprep.subr.bf16.mxu0 0
      %1426 = vmatpush2.bf16.msra.mxu0 0
      %1427 = vmatprep.subr.bf16.mxu0 0
      %1428 = vmatpush2.bf16.msra.mxu0 0
      %1429 = vmatprep.subr.bf16.mxu0 0
      %1430 = vmatpush2.bf16.msra.mxu0 0
      %1431 = vmatprep.subr.bf16.mxu0 0
      %1432 = vmatpush2.bf16.msra.mxu0 0
      %1433 = vmatprep.subr.bf16.mxu0 0
      %1434 = vmatpush2.bf16.msra.mxu0 0
      %1435 = vmatprep.subr.bf16.mxu0 0
      %1436 = vmatpush2.bf16.msra.mxu0 0
      %1437 = vmatprep.mubr.bf16.mxu0 0
      %1438 = vmatmul.mubr.bf16.gmra.mxu0 %v1207
      %v1439 = vpop.f32.mrf.mxu0
      %v1440 = vadd.f32 %v868, %v1439
      %v1441 = vpop.f32.mrf.mxu0
      %v1442 = vpop.f32.mrf.mxu0
      %v1443 = vadd.f32 %v868, %v1442
      %v1444 = vpop.f32.mrf.mxu0
      %1445 = vmatprep.mubr.bf16.mxu0 0
      %1446 = vmatmul.mubr.bf16.gmra.mxu0 %v1210
      %v1447 = vpop.f32.mrf.mxu0
      %v1448 = vadd.f32 %v868, %v1447
      %v1449 = vpop.f32.mrf.mxu0
      %v1450 = vpop.f32.mrf.mxu0
      %v1451 = vadd.f32 %v868, %v1450
      %v1452 = vpop.f32.mrf.mxu0
      %1453 = vmatprep.mubr.bf16.mxu0 0
      %1454 = vmatmul.mubr.bf16.gmra.mxu0 %v1213
      %v1455 = vpop.f32.mrf.mxu0
      %v1456 = vadd.f32 %v868, %v1455
      %v1457 = vpop.f32.mrf.mxu0
      %v1458 = vpop.f32.mrf.mxu0
      %v1459 = vadd.f32 %v868, %v1458
      %v1460 = vpop.f32.mrf.mxu0
      %1461 = vmatprep.mubr.bf16.mxu0 0
      %1462 = vmatmul.mubr.bf16.gmra.mxu0 %v1216
      %v1463 = vpop.f32.mrf.mxu0
      %v1464 = vadd.f32 %v868, %v1463
      %v1465 = vpop.f32.mrf.mxu0
      %v1466 = vpop.f32.mrf.mxu0
      %v1467 = vadd.f32 %v868, %v1466
      %v1468 = vpop.f32.mrf.mxu0
      %1469 = vmatprep.mubr.bf16.mxu0 0
      %1470 = vmatmul.mubr.bf16.gmra.mxu0 %v1219
      %v1471 = vpop.f32.mrf.mxu0
      %v1472 = vadd.f32 %v868, %v1471
      %v1473 = vpop.f32.mrf.mxu0
      %v1474 = vpop.f32.mrf.mxu0
      %v1475 = vadd.f32 %v868, %v1474
      %v1476 = vpop.f32.mrf.mxu0
      %1477 = vmatprep.mubr.bf16.mxu0 0
      %1478 = vmatmul.mubr.bf16.gmra.mxu0 %v1222
      %v1479 = vpop.f32.mrf.mxu0
      %v1480 = vadd.f32 %v868, %v1479
      %v1481 = vpop.f32.mrf.mxu0
      %v1482 = vpop.f32.mrf.mxu0
      %v1483 = vadd.f32 %v868, %v1482
      %v1484 = vpop.f32.mrf.mxu0
      %1485 = vmatprep.mubr.bf16.mxu0 0
      %1486 = vmatmul.mubr.bf16.gmra.mxu0 %v1225
      %v1487 = vpop.f32.mrf.mxu0
      %v1488 = vadd.f32 %v868, %v1487
      %v1489 = vpop.f32.mrf.mxu0
      %v1490 = vpop.f32.mrf.mxu0
      %v1491 = vadd.f32 %v868, %v1490
      %v1492 = vpop.f32.mrf.mxu0
      %1493 = vmatprep.mubr.bf16.mxu0 0
      %1494 = vmatmul.mubr.bf16.gmra.mxu0 %v1228
      %v1495 = vpop.f32.mrf.mxu0
      %v1496 = vadd.f32 %v868, %v1495
      %v1497 = vpop.f32.mrf.mxu0
      %v1498 = vpop.f32.mrf.mxu0
      %v1499 = vadd.f32 %v868, %v1498
      %v1500 = vpop.f32.mrf.mxu0
      %1501 = vmatprep.mubr.bf16.mxu0 0
      %1502 = vmatmul.mubr.bf16.gmra.mxu0 %v1231
      %v1503 = vpop.f32.mrf.mxu0
      %v1504 = vadd.f32 %v868, %v1503
      %v1505 = vpop.f32.mrf.mxu0
      %v1506 = vpop.f32.mrf.mxu0
      %v1507 = vadd.f32 %v868, %v1506
      %v1508 = vpop.f32.mrf.mxu0
      %1509 = vmatprep.mubr.bf16.mxu0 0
      %1510 = vmatmul.mubr.bf16.gmra.mxu0 %v1234
      %v1511 = vpop.f32.mrf.mxu0
      %v1512 = vadd.f32 %v868, %v1511
      %v1513 = vpop.f32.mrf.mxu0
      %v1514 = vpop.f32.mrf.mxu0
      %v1515 = vadd.f32 %v868, %v1514
      %v1516 = vpop.f32.mrf.mxu0
      %1517 = vmatprep.mubr.bf16.mxu0 0
      %1518 = vmatmul.mubr.bf16.gmra.mxu0 %v1237
      %v1519 = vpop.f32.mrf.mxu0
      %v1520 = vadd.f32 %v868, %v1519
      %v1521 = vpop.f32.mrf.mxu0
      %v1522 = vpop.f32.mrf.mxu0
      %v1523 = vadd.f32 %v868, %v1522
      %v1524 = vpop.f32.mrf.mxu0
      %1525 = vmatprep.mubr.bf16.mxu0 0
      %1526 = vmatmul.mubr.bf16.gmra.mxu0 %v1240
      %v1527 = vpop.f32.mrf.mxu0
      %v1528 = vadd.f32 %v868, %v1527
      %v1529 = vpop.f32.mrf.mxu0
      %v1530 = vpop.f32.mrf.mxu0
      %v1531 = vadd.f32 %v868, %v1530
      %v1532 = vpop.f32.mrf.mxu0
      %1533 = vmatprep.mubr.bf16.mxu0 0
      %1534 = vmatmul.mubr.bf16.gmra.mxu0 %v1243
      %v1535 = vpop.f32.mrf.mxu0
      %v1536 = vadd.f32 %v868, %v1535
      %v1537 = vpop.f32.mrf.mxu0
      %v1538 = vpop.f32.mrf.mxu0
      %v1539 = vadd.f32 %v868, %v1538
      %v1540 = vpop.f32.mrf.mxu0
      %1541 = vmatprep.mubr.bf16.mxu0 0
      %1542 = vmatmul.mubr.bf16.gmra.mxu0 %v1246
      %v1543 = vpop.f32.mrf.mxu0
      %v1544 = vadd.f32 %v868, %v1543
      %v1545 = vpop.f32.mrf.mxu0
      %v1546 = vpop.f32.mrf.mxu0
      %v1547 = vadd.f32 %v868, %v1546
      %v1548 = vpop.f32.mrf.mxu0
      %1549 = vmatprep.mubr.bf16.mxu0 0
      %1550 = vmatmul.mubr.bf16.gmra.mxu0 %v1249
      %v1551 = vpop.f32.mrf.mxu0
      %v1552 = vadd.f32 %v868, %v1551
      %v1553 = vpop.f32.mrf.mxu0
      %v1554 = vpop.f32.mrf.mxu0
      %v1555 = vadd.f32 %v868, %v1554
      %v1556 = vpop.f32.mrf.mxu0
      %1557 = vmatprep.mubr.bf16.mxu0 0
      %1558 = vmatmul.mubr.bf16.gmra.mxu0 %v1252
      %v1559 = vpop.f32.mrf.mxu0
      %v1560 = vadd.f32 %v868, %v1559
      %v1561 = vpop.f32.mrf.mxu0
      %v1562 = vpop.f32.mrf.mxu0
      %v1563 = vadd.f32 %v868, %v1562
      %v1564 = vpop.f32.mrf.mxu0
      %1565 = vmatprep.mubr.bf16.mxu0 0
      %1566 = vmatmul.mubr.bf16.gmra.mxu0 %v1255
      %v1567 = vpop.f32.mrf.mxu0
      %v1568 = vadd.f32 %v868, %v1567
      %v1569 = vpop.f32.mrf.mxu0
      %v1570 = vpop.f32.mrf.mxu0
      %v1571 = vadd.f32 %v868, %v1570
      %v1572 = vpop.f32.mrf.mxu0
      %1573 = vmatprep.mubr.bf16.mxu0 0
      %1574 = vmatmul.mubr.bf16.gmra.mxu0 %v1258
      %v1575 = vpop.f32.mrf.mxu0
      %v1576 = vadd.f32 %v868, %v1575
      %v1577 = vpop.f32.mrf.mxu0
      %v1578 = vpop.f32.mrf.mxu0
      %v1579 = vadd.f32 %v868, %v1578
      %v1580 = vpop.f32.mrf.mxu0
      %1581 = vmatprep.mubr.bf16.mxu0 0
      %1582 = vmatmul.mubr.bf16.gmra.mxu0 %v1261
      %v1583 = vpop.f32.mrf.mxu0
      %v1584 = vadd.f32 %v868, %v1583
      %v1585 = vpop.f32.mrf.mxu0
      %v1586 = vpop.f32.mrf.mxu0
      %v1587 = vadd.f32 %v868, %v1586
      %v1588 = vpop.f32.mrf.mxu0
      %1589 = vmatprep.mubr.bf16.mxu0 0
      %1590 = vmatmul.mubr.bf16.gmra.mxu0 %v1264
      %v1591 = vpop.f32.mrf.mxu0
      %v1592 = vadd.f32 %v868, %v1591
      %v1593 = vpop.f32.mrf.mxu0
      %v1594 = vpop.f32.mrf.mxu0
      %v1595 = vadd.f32 %v868, %v1594
      %v1596 = vpop.f32.mrf.mxu0
      %1597 = vmatprep.mubr.bf16.mxu0 0
      %1598 = vmatmul.mubr.bf16.gmra.mxu0 %v1267
      %v1599 = vpop.f32.mrf.mxu0
      %v1600 = vadd.f32 %v868, %v1599
      %v1601 = vpop.f32.mrf.mxu0
      %v1602 = vpop.f32.mrf.mxu0
      %v1603 = vadd.f32 %v868, %v1602
      %v1604 = vpop.f32.mrf.mxu0
      %1605 = vmatprep.mubr.bf16.mxu0 0
      %1606 = vmatmul.mubr.bf16.gmra.mxu0 %v1270
      %v1607 = vpop.f32.mrf.mxu0
      %v1608 = vadd.f32 %v868, %v1607
      %v1609 = vpop.f32.mrf.mxu0
      %v1610 = vpop.f32.mrf.mxu0
      %v1611 = vadd.f32 %v868, %v1610
      %v1612 = vpop.f32.mrf.mxu0
      %1613 = vmatprep.mubr.bf16.mxu0 0
      %1614 = vmatmul.mubr.bf16.gmra.mxu0 %v1273
      %v1615 = vpop.f32.mrf.mxu0
      %v1616 = vadd.f32 %v868, %v1615
      %v1617 = vpop.f32.mrf.mxu0
      %v1618 = vpop.f32.mrf.mxu0
      %v1619 = vadd.f32 %v868, %v1618
      %v1620 = vpop.f32.mrf.mxu0
      %1621 = vmatprep.mubr.bf16.mxu0 0
      %1622 = vmatmul.mubr.bf16.gmra.mxu0 %v1276
      %v1623 = vpop.f32.mrf.mxu0
      %v1624 = vadd.f32 %v868, %v1623
      %v1625 = vpop.f32.mrf.mxu0
      %v1626 = vpop.f32.mrf.mxu0
      %v1627 = vadd.f32 %v868, %v1626
      %v1628 = vpop.f32.mrf.mxu0
      %1629 = vmatprep.mubr.bf16.mxu0 0
      %1630 = vmatmul.mubr.bf16.gmra.mxu0 %v1279
      %v1631 = vpop.f32.mrf.mxu0
      %v1632 = vadd.f32 %v868, %v1631
      %v1633 = vpop.f32.mrf.mxu0
      %v1634 = vpop.f32.mrf.mxu0
      %v1635 = vadd.f32 %v868, %v1634
      %v1636 = vpop.f32.mrf.mxu0
      %1637 = vmatprep.mubr.bf16.mxu0 0
      %1638 = vmatmul.mubr.bf16.gmra.mxu0 %v1282
      %v1639 = vpop.f32.mrf.mxu0
      %v1640 = vadd.f32 %v868, %v1639
      %v1641 = vpop.f32.mrf.mxu0
      %v1642 = vpop.f32.mrf.mxu0
      %v1643 = vadd.f32 %v868, %v1642
      %v1644 = vpop.f32.mrf.mxu0
      %1645 = vmatprep.mubr.bf16.mxu0 0
      %1646 = vmatmul.mubr.bf16.gmra.mxu0 %v1285
      %v1647 = vpop.f32.mrf.mxu0
      %v1648 = vadd.f32 %v868, %v1647
      %v1649 = vpop.f32.mrf.mxu0
      %v1650 = vpop.f32.mrf.mxu0
      %v1651 = vadd.f32 %v868, %v1650
      %v1652 = vpop.f32.mrf.mxu0
      %1653 = vmatprep.mubr.bf16.mxu0 0
      %1654 = vmatmul.mubr.bf16.gmra.mxu0 %v1288
      %v1655 = vpop.f32.mrf.mxu0
      %v1656 = vadd.f32 %v868, %v1655
      %v1657 = vpop.f32.mrf.mxu0
      %v1658 = vpop.f32.mrf.mxu0
      %v1659 = vadd.f32 %v868, %v1658
      %v1660 = vpop.f32.mrf.mxu0
      %1661 = vmatprep.mubr.bf16.mxu0 0
      %1662 = vmatmul.mubr.bf16.gmra.mxu0 %v1291
      %v1663 = vpop.f32.mrf.mxu0
      %v1664 = vadd.f32 %v868, %v1663
      %v1665 = vpop.f32.mrf.mxu0
      %v1666 = vpop.f32.mrf.mxu0
      %v1667 = vadd.f32 %v868, %v1666
      %v1668 = vpop.f32.mrf.mxu0
      %1669 = vmatprep.mubr.bf16.mxu0 0
      %1670 = vmatmul.mubr.bf16.gmra.mxu0 %v1294
      %v1671 = vpop.f32.mrf.mxu0
      %v1672 = vadd.f32 %v868, %v1671
      %v1673 = vpop.f32.mrf.mxu0
      %v1674 = vpop.f32.mrf.mxu0
      %v1675 = vadd.f32 %v868, %v1674
      %v1676 = vpop.f32.mrf.mxu0
      %1677 = vmatprep.mubr.bf16.mxu0 0
      %1678 = vmatmul.mubr.bf16.gmra.mxu0 %v1297
      %v1679 = vpop.f32.mrf.mxu0
      %v1680 = vadd.f32 %v868, %v1679
      %v1681 = vpop.f32.mrf.mxu0
      %v1682 = vpop.f32.mrf.mxu0
      %v1683 = vadd.f32 %v868, %v1682
      %v1684 = vpop.f32.mrf.mxu0
      %1685 = vmatprep.mubr.bf16.mxu0 0
      %1686 = vmatmul.mubr.bf16.gmra.mxu0 %v1300
      %v1687 = vpop.f32.mrf.mxu0
      %v1688 = vadd.f32 %v868, %v1687
      %v1689 = vpop.f32.mrf.mxu0
      %v1690 = vpop.f32.mrf.mxu0
      %v1691 = vadd.f32 %v868, %v1690
      %v1692 = vpop.f32.mrf.mxu0
      %1693 = vmatprep.mubr.bf16.mxu0 0
      %1694 = vmatmul.mubr.bf16.gmra.mxu0 %v1303
      %v1695 = vpop.f32.mrf.mxu0
      %v1696 = vadd.f32 %v868, %v1695
      %v1697 = vpop.f32.mrf.mxu0
      %v1698 = vpop.f32.mrf.mxu0
      %v1699 = vadd.f32 %v868, %v1698
      %v1700 = vpop.f32.mrf.mxu0
      %1701 = vmatprep.mubr.bf16.mxu0 0
      %1702 = vmatmul.mubr.bf16.gmra.mxu0 %v1306
      %v1703 = vpop.f32.mrf.mxu0
      %v1704 = vadd.f32 %v868, %v1703
      %v1705 = vpop.f32.mrf.mxu0
      %v1706 = vpop.f32.mrf.mxu0
      %v1707 = vadd.f32 %v868, %v1706
      %v1708 = vpop.f32.mrf.mxu0
      %1709 = vmatprep.mubr.bf16.mxu0 0
      %1710 = vmatmul.mubr.bf16.gmra.mxu0 %v1309
      %v1711 = vpop.f32.mrf.mxu0
      %v1712 = vadd.f32 %v868, %v1711
      %v1713 = vpop.f32.mrf.mxu0
      %v1714 = vpop.f32.mrf.mxu0
      %v1715 = vadd.f32 %v868, %v1714
      %v1716 = vpop.f32.mrf.mxu0
      %1717 = vmatprep.mubr.bf16.mxu0 0
      %1718 = vmatmul.mubr.bf16.gmra.mxu0 %v1312
      %v1719 = vpop.f32.mrf.mxu0
      %v1720 = vadd.f32 %v868, %v1719
      %v1721 = vpop.f32.mrf.mxu0
      %v1722 = vpop.f32.mrf.mxu0
      %v1723 = vadd.f32 %v868, %v1722
      %v1724 = vpop.f32.mrf.mxu0
      %1725 = vmatprep.mubr.bf16.mxu0 0
      %1726 = vmatmul.mubr.bf16.gmra.mxu0 %v1315
      %v1727 = vpop.f32.mrf.mxu0
      %v1728 = vadd.f32 %v868, %v1727
      %v1729 = vpop.f32.mrf.mxu0
      %v1730 = vpop.f32.mrf.mxu0
      %v1731 = vadd.f32 %v868, %v1730
      %v1732 = vpop.f32.mrf.mxu0
      %1733 = vmatprep.mubr.bf16.mxu0 0
      %1734 = vmatmul.mubr.bf16.gmra.mxu0 %v1318
      %v1735 = vpop.f32.mrf.mxu0
      %v1736 = vadd.f32 %v868, %v1735
      %v1737 = vpop.f32.mrf.mxu0
      %v1738 = vpop.f32.mrf.mxu0
      %v1739 = vadd.f32 %v868, %v1738
      %v1740 = vpop.f32.mrf.mxu0
      %1741 = vmatprep.mubr.bf16.mxu0 0
      %1742 = vmatmul.mubr.bf16.gmra.mxu0 %v1321
      %v1743 = vpop.f32.mrf.mxu0
      %v1744 = vadd.f32 %v868, %v1743
      %v1745 = vpop.f32.mrf.mxu0
      %v1746 = vpop.f32.mrf.mxu0
      %v1747 = vadd.f32 %v868, %v1746
      %v1748 = vpop.f32.mrf.mxu0
      %1749 = vmatprep.mubr.bf16.mxu0 0
      %1750 = vmatmul.mubr.bf16.gmra.mxu0 %v1324
      %v1751 = vpop.f32.mrf.mxu0
      %v1752 = vadd.f32 %v868, %v1751
      %v1753 = vpop.f32.mrf.mxu0
      %v1754 = vpop.f32.mrf.mxu0
      %v1755 = vadd.f32 %v868, %v1754
      %v1756 = vpop.f32.mrf.mxu0
      %1757 = vmatprep.mubr.bf16.mxu0 0
      %1758 = vmatmul.mubr.bf16.gmra.mxu0 %v1327
      %v1759 = vpop.f32.mrf.mxu0
      %v1760 = vadd.f32 %v868, %v1759
      %v1761 = vpop.f32.mrf.mxu0
      %v1762 = vpop.f32.mrf.mxu0
      %v1763 = vadd.f32 %v868, %v1762
      %v1764 = vpop.f32.mrf.mxu0
      %1765 = vmatprep.mubr.bf16.mxu0 0
      %1766 = vmatmul.mubr.bf16.gmra.mxu0 %v1330
      %v1767 = vpop.f32.mrf.mxu0
      %v1768 = vadd.f32 %v868, %v1767
      %v1769 = vpop.f32.mrf.mxu0
      %v1770 = vpop.f32.mrf.mxu0
      %v1771 = vadd.f32 %v868, %v1770
      %v1772 = vpop.f32.mrf.mxu0
      %1773 = vmatprep.mubr.bf16.mxu0 0
      %1774 = vmatmul.mubr.bf16.gmra.mxu0 %v1333
      %v1775 = vpop.f32.mrf.mxu0
      %v1776 = vadd.f32 %v868, %v1775
      %v1777 = vpop.f32.mrf.mxu0
      %v1778 = vpop.f32.mrf.mxu0
      %v1779 = vadd.f32 %v868, %v1778
      %v1780 = vpop.f32.mrf.mxu0
      %1781 = vmatprep.mubr.bf16.mxu0 0
      %1782 = vmatmul.mubr.bf16.gmra.mxu0 %v1336
      %v1783 = vpop.f32.mrf.mxu0
      %v1784 = vadd.f32 %v868, %v1783
      %v1785 = vpop.f32.mrf.mxu0
      %v1786 = vpop.f32.mrf.mxu0
      %v1787 = vadd.f32 %v868, %v1786
      %v1788 = vpop.f32.mrf.mxu0
      %1789 = vmatprep.mubr.bf16.mxu0 0
      %1790 = vmatmul.mubr.bf16.gmra.mxu0 %v1339
      %v1791 = vpop.f32.mrf.mxu0
      %v1792 = vadd.f32 %v868, %v1791
      %v1793 = vpop.f32.mrf.mxu0
      %v1794 = vpop.f32.mrf.mxu0
      %v1795 = vadd.f32 %v868, %v1794
      %v1796 = vpop.f32.mrf.mxu0
      %1797 = vmatprep.mubr.bf16.mxu0 0
      %1798 = vmatmul.mubr.bf16.gmra.mxu0 %v1342
      %v1799 = vpop.f32.mrf.mxu0
      %v1800 = vadd.f32 %v868, %v1799
      %v1801 = vpop.f32.mrf.mxu0
      %v1802 = vpop.f32.mrf.mxu0
      %v1803 = vadd.f32 %v868, %v1802
      %v1804 = vpop.f32.mrf.mxu0
      %1805 = vmatprep.mubr.bf16.mxu0 0
      %1806 = vmatmul.mubr.bf16.gmra.mxu0 %v1345
      %v1807 = vpop.f32.mrf.mxu0
      %v1808 = vadd.f32 %v868, %v1807
      %v1809 = vpop.f32.mrf.mxu0
      %v1810 = vpop.f32.mrf.mxu0
      %v1811 = vadd.f32 %v868, %v1810
      %v1812 = vpop.f32.mrf.mxu0
      %1813 = vmatprep.mubr.bf16.mxu0 0
      %1814 = vmatmul.mubr.bf16.gmra.mxu0 %v1348
      %v1815 = vpop.f32.mrf.mxu0
      %v1816 = vadd.f32 %v868, %v1815
      %v1817 = vpop.f32.mrf.mxu0
      %v1818 = vpop.f32.mrf.mxu0
      %v1819 = vadd.f32 %v868, %v1818
      %v1820 = vpop.f32.mrf.mxu0
      %1821 = vmatprep.mubr.bf16.mxu0 0
      %1822 = vmatmul.mubr.bf16.gmra.mxu0 %v1351
      %v1823 = vpop.f32.mrf.mxu0
      %v1824 = vadd.f32 %v868, %v1823
      %v1825 = vpop.f32.mrf.mxu0
      %v1826 = vpop.f32.mrf.mxu0
      %v1827 = vadd.f32 %v868, %v1826
      %v1828 = vpop.f32.mrf.mxu0
      %1829 = vmatprep.mubr.bf16.mxu0 0
      %1830 = vmatmul.mubr.bf16.gmra.mxu0 %v1354
      %v1831 = vpop.f32.mrf.mxu0
      %v1832 = vadd.f32 %v868, %v1831
      %v1833 = vpop.f32.mrf.mxu0
      %v1834 = vpop.f32.mrf.mxu0
      %v1835 = vadd.f32 %v868, %v1834
      %v1836 = vpop.f32.mrf.mxu0
      %1837 = vmatprep.mubr.bf16.mxu0 0
      %1838 = vmatmul.mubr.bf16.gmra.mxu0 %v1357
      %v1839 = vpop.f32.mrf.mxu0
      %v1840 = vadd.f32 %v868, %v1839
      %v1841 = vpop.f32.mrf.mxu0
      %v1842 = vpop.f32.mrf.mxu0
      %v1843 = vadd.f32 %v868, %v1842
      %v1844 = vpop.f32.mrf.mxu0
      %1845 = vmatprep.mubr.bf16.mxu0 0
      %1846 = vmatmul.mubr.bf16.gmra.mxu0 %v1360
      %v1847 = vpop.f32.mrf.mxu0
      %v1848 = vadd.f32 %v868, %v1847
      %v1849 = vpop.f32.mrf.mxu0
      %v1850 = vpop.f32.mrf.mxu0
      %v1851 = vadd.f32 %v868, %v1850
      %v1852 = vpop.f32.mrf.mxu0
      %1853 = vmatprep.mubr.bf16.mxu0 0
      %1854 = vmatmul.mubr.bf16.gmra.mxu0 %v1363
      %v1855 = vpop.f32.mrf.mxu0
      %v1856 = vadd.f32 %v868, %v1855
      %v1857 = vpop.f32.mrf.mxu0
      %v1858 = vpop.f32.mrf.mxu0
      %v1859 = vadd.f32 %v868, %v1858
      %v1860 = vpop.f32.mrf.mxu0
      %1861 = vmatprep.mubr.bf16.mxu0 0
      %1862 = vmatmul.mubr.bf16.gmra.mxu0 %v1366
      %v1863 = vpop.f32.mrf.mxu0
      %v1864 = vadd.f32 %v868, %v1863
      %v1865 = vpop.f32.mrf.mxu0
      %v1866 = vpop.f32.mrf.mxu0
      %v1867 = vadd.f32 %v868, %v1866
      %v1868 = vpop.f32.mrf.mxu0
      %1869 = vmatprep.mubr.bf16.mxu0 0
      %1870 = vmatmul.mubr.bf16.gmra.mxu0 %v1369
      %v1871 = vpop.f32.mrf.mxu0
      %v1872 = vadd.f32 %v868, %v1871
      %v1873 = vpop.f32.mrf.mxu0
      %v1874 = vpop.f32.mrf.mxu0
      %v1875 = vadd.f32 %v868, %v1874
      %v1876 = vpop.f32.mrf.mxu0
      %1877 = vmatprep.mubr.bf16.mxu0 0
      %1878 = vmatmul.mubr.bf16.gmra.mxu0 %v1372
      %v1879 = vpop.f32.mrf.mxu0
      %v1880 = vadd.f32 %v868, %v1879
      %v1881 = vpop.f32.mrf.mxu0
      %v1882 = vpop.f32.mrf.mxu0
      %v1883 = vadd.f32 %v868, %v1882
      %v1884 = vpop.f32.mrf.mxu0
      %1885 = vmatprep.mubr.bf16.mxu0 0
      %1886 = vmatmul.mubr.bf16.gmra.mxu0 %v1375
      %v1887 = vpop.f32.mrf.mxu0
      %v1888 = vadd.f32 %v868, %v1887
      %v1889 = vpop.f32.mrf.mxu0
      %v1890 = vpop.f32.mrf.mxu0
      %v1891 = vadd.f32 %v868, %v1890
      %v1892 = vpop.f32.mrf.mxu0
      %1893 = vmatprep.mubr.bf16.mxu0 0
      %1894 = vmatmul.mubr.bf16.gmra.mxu0 %v1378
      %v1895 = vpop.f32.mrf.mxu0
      %v1896 = vadd.f32 %v868, %v1895
      %v1897 = vpop.f32.mrf.mxu0
      %v1898 = vpop.f32.mrf.mxu0
      %v1899 = vadd.f32 %v868, %v1898
      %v1900 = vpop.f32.mrf.mxu0
      %1901 = vmatprep.mubr.bf16.mxu0 0
      %1902 = vmatmul.mubr.bf16.gmra.mxu0 %v1381
      %v1903 = vpop.f32.mrf.mxu0
      %v1904 = vadd.f32 %v868, %v1903
      %v1905 = vpop.f32.mrf.mxu0
      %v1906 = vpop.f32.mrf.mxu0
      %v1907 = vadd.f32 %v868, %v1906
      %v1908 = vpop.f32.mrf.mxu0
      %1909 = vmatprep.mubr.bf16.mxu0 0
      %1910 = vmatmul.mubr.bf16.gmra.mxu0 %v1384
      %v1911 = vpop.f32.mrf.mxu0
      %v1912 = vadd.f32 %v868, %v1911
      %v1913 = vpop.f32.mrf.mxu0
      %v1914 = vpop.f32.mrf.mxu0
      %v1915 = vadd.f32 %v868, %v1914
      %v1916 = vpop.f32.mrf.mxu0
      %1917 = vmatprep.mubr.bf16.mxu0 0
      %1918 = vmatmul.mubr.bf16.gmra.mxu0 %v1387
      %v1919 = vpop.f32.mrf.mxu0
      %v1920 = vadd.f32 %v868, %v1919
      %v1921 = vpop.f32.mrf.mxu0
      %v1922 = vpop.f32.mrf.mxu0
      %v1923 = vadd.f32 %v868, %v1922
      %v1924 = vpop.f32.mrf.mxu0
      %1925 = vmatprep.mubr.bf16.mxu0 0
      %1926 = vmatmul.mubr.bf16.gmra.mxu0 %v1390
      %v1927 = vpop.f32.mrf.mxu0
      %v1928 = vadd.f32 %v868, %v1927
      %v1929 = vpop.f32.mrf.mxu0
      %v1930 = vpop.f32.mrf.mxu0
      %v1931 = vadd.f32 %v868, %v1930
      %v1932 = vpop.f32.mrf.mxu0
      %1933 = vmatprep.mubr.bf16.mxu0 0
      %1934 = vmatmul.mubr.bf16.gmra.mxu0 %v1393
      %v1935 = vpop.f32.mrf.mxu0
      %v1936 = vadd.f32 %v868, %v1935
      %v1937 = vpop.f32.mrf.mxu0
      %v1938 = vpop.f32.mrf.mxu0
      %v1939 = vadd.f32 %v868, %v1938
      %v1940 = vpop.f32.mrf.mxu0
      %1941 = vmatprep.mubr.bf16.mxu0 0
      %1942 = vmatmul.mubr.bf16.gmra.mxu0 %v1396
      %v1943 = vpop.f32.mrf.mxu0
      %v1944 = vadd.f32 %v868, %v1943
      %v1945 = vpop.f32.mrf.mxu0
      %v1946 = vpop.f32.mrf.mxu0
      %v1947 = vadd.f32 %v868, %v1946
      %v1948 = vpop.f32.mrf.mxu0
      %1949 = vdwg.mxu0
      %v1950 = vld [vmem:[%s4] sm:$0xf]
      %v1951 = vld [vmem:[%s4 + $0x4] sm:$0xf]
      %v1952 = vld [vmem:[%s4 + $0x8] sm:$0xf]
      %v1953 = vld [vmem:[%s4 + $0xc] sm:$0xf]
      %v1954 = vld [vmem:[%s4 + $0x10] sm:$0xf]
      %v1955 = vld [vmem:[%s4 + $0x14] sm:$0xf]
      %v1956 = vld [vmem:[%s4 + $0x18] sm:$0xf]
      %v1957 = vld [vmem:[%s4 + $0x1c] sm:$0xf]
      %v1958 = vld [vmem:[%s4 + $0x20] sm:$0xf]
      %v1959 = vld [vmem:[%s4 + $0x24] sm:$0xf]
      %v1960 = vld [vmem:[%s4 + $0x28] sm:$0xf]
      %v1961 = vld [vmem:[%s4 + $0x2c] sm:$0xf]
      %v1962 = vld [vmem:[%s4 + $0x30] sm:$0xf]
      %v1963 = vld [vmem:[%s4 + $0x34] sm:$0xf]
      %v1964 = vld [vmem:[%s4 + $0x38] sm:$0xf]
      %v1965 = vld [vmem:[%s4 + $0x3c] sm:$0xf]
      %v1966 = vpack.c.bf16 %v1443, %v1440
      %v1967 = vpack.c.bf16 %v1451, %v1448
      %v1968 = vpack.c.bf16 %v1459, %v1456
      %v1969 = vpack.c.bf16 %v1467, %v1464
      %v1970 = vpack.c.bf16 %v1475, %v1472
      %v1971 = vpack.c.bf16 %v1483, %v1480
      %v1972 = vpack.c.bf16 %v1491, %v1488
      %v1973 = vpack.c.bf16 %v1499, %v1496
      %v1974 = vpack.c.bf16 %v1507, %v1504
      %v1975 = vpack.c.bf16 %v1515, %v1512
      %v1976 = vpack.c.bf16 %v1523, %v1520
      %v1977 = vpack.c.bf16 %v1531, %v1528
      %v1978 = vpack.c.bf16 %v1539, %v1536
      %v1979 = vpack.c.bf16 %v1547, %v1544
      %v1980 = vpack.c.bf16 %v1555, %v1552
      %v1981 = vpack.c.bf16 %v1563, %v1560
      %v1982 = vpack.c.bf16 %v1571, %v1568
      %v1983 = vpack.c.bf16 %v1579, %v1576
      %v1984 = vpack.c.bf16 %v1587, %v1584
      %v1985 = vpack.c.bf16 %v1595, %v1592
      %v1986 = vpack.c.bf16 %v1603, %v1600
      %v1987 = vpack.c.bf16 %v1611, %v1608
      %v1988 = vpack.c.bf16 %v1619, %v1616
      %v1989 = vpack.c.bf16 %v1627, %v1624
      %v1990 = vpack.c.bf16 %v1635, %v1632
      %v1991 = vpack.c.bf16 %v1643, %v1640
      %v1992 = vpack.c.bf16 %v1651, %v1648
      %v1993 = vpack.c.bf16 %v1659, %v1656
      %v1994 = vpack.c.bf16 %v1667, %v1664
      %v1995 = vpack.c.bf16 %v1675, %v1672
      %v1996 = vpack.c.bf16 %v1683, %v1680
      %v1997 = vpack.c.bf16 %v1691, %v1688
      %v1998 = vpack.c.bf16 %v1699, %v1696
      %v1999 = vpack.c.bf16 %v1707, %v1704
      %v2000 = vpack.c.bf16 %v1715, %v1712
      %v2001 = vpack.c.bf16 %v1723, %v1720
      %v2002 = vpack.c.bf16 %v1731, %v1728
      %v2003 = vpack.c.bf16 %v1739, %v1736
      %v2004 = vpack.c.bf16 %v1747, %v1744
      %v2005 = vpack.c.bf16 %v1755, %v1752
      %v2006 = vpack.c.bf16 %v1763, %v1760
      %v2007 = vpack.c.bf16 %v1771, %v1768
      %v2008 = vpack.c.bf16 %v1779, %v1776
      %v2009 = vpack.c.bf16 %v1787, %v1784
      %v2010 = vpack.c.bf16 %v1795, %v1792
      %v2011 = vpack.c.bf16 %v1803, %v1800
      %v2012 = vpack.c.bf16 %v1811, %v1808
      %v2013 = vpack.c.bf16 %v1819, %v1816
      %v2014 = vpack.c.bf16 %v1827, %v1824
      %v2015 = vpack.c.bf16 %v1835, %v1832
      %v2016 = vpack.c.bf16 %v1843, %v1840
      %v2017 = vpack.c.bf16 %v1851, %v1848
      %v2018 = vpack.c.bf16 %v1859, %v1856
      %v2019 = vpack.c.bf16 %v1867, %v1864
      %v2020 = vpack.c.bf16 %v1875, %v1872
      %v2021 = vpack.c.bf16 %v1883, %v1880
      %v2022 = vpack.c.bf16 %v1891, %v1888
      %v2023 = vpack.c.bf16 %v1899, %v1896
      %v2024 = vpack.c.bf16 %v1907, %v1904
      %v2025 = vpack.c.bf16 %v1915, %v1912
      %v2026 = vpack.c.bf16 %v1923, %v1920
      %v2027 = vpack.c.bf16 %v1931, %v1928
      %v2028 = vpack.c.bf16 %v1939, %v1936
      %v2029 = vpack.c.bf16 %v1947, %v1944
      %v2030 = vld [vmem:[%s5] sm:$0x1]
      %v2032 = vlaneseq
      %v2033 = vshrl.u32 %v2032, 7
      %v2034 = vsub.s32 0, %v2033
      %v2035 = vrot.slane %v2030, %v2034
      %v2053 = vunpack.c.l.b16 %v1950
      %v2054 = vunpack.c.l.b16 %v1951
      %v2055 = vunpack.c.l.b16 %v1952
      %v2056 = vunpack.c.l.b16 %v1953
      %v2057 = vunpack.c.l.b16 %v1954
      %v2058 = vunpack.c.l.b16 %v1955
      %v2059 = vunpack.c.l.b16 %v1956
      %v2060 = vunpack.c.l.b16 %v1957
      %v2061 = vunpack.c.l.b16 %v1958
      %v2062 = vunpack.c.l.b16 %v1959
      %v2063 = vunpack.c.l.b16 %v1960
      %v2064 = vunpack.c.l.b16 %v1961
      %v2065 = vunpack.c.l.b16 %v1962
      %v2066 = vunpack.c.l.b16 %v1963
      %v2067 = vunpack.c.l.b16 %v1964
      %v2068 = vunpack.c.l.b16 %v1965
      %v2069 = vpack.c.b16 %v2054, %v2053
      %v2070 = vpack.c.b16 %v2056, %v2055
      %v2071 = vpack.c.b16 %v2058, %v2057
      %v2072 = vpack.c.b16 %v2060, %v2059
      %v2073 = vpack.c.b16 %v2062, %v2061
      %v2074 = vpack.c.b16 %v2064, %v2063
      %v2075 = vpack.c.b16 %v2066, %v2065
      %v2076 = vpack.c.b16 %v2068, %v2067
      %2085 = vmatprep.subr.bf16.mxu0 0
      %2086 = vmatpush1.bf16.msra.mxu0 %v2076
      %2087 = vmatprep.subr.bf16.mxu0 0
      %2088 = vmatpush1.bf16.msra.mxu0 %v2075
      %2089 = vmatprep.subr.bf16.mxu0 0
      %2090 = vmatpush1.bf16.msra.mxu0 %v2074
      %2091 = vmatprep.subr.bf16.mxu0 0
      %2092 = vmatpush1.bf16.msra.mxu0 %v2073
      %2093 = vmatprep.subr.bf16.mxu0 0
      %2094 = vmatpush1.bf16.msra.mxu0 %v2072
      %2095 = vmatprep.subr.bf16.mxu0 0
      %2096 = vmatpush1.bf16.msra.mxu0 %v2071
      %2097 = vmatprep.subr.bf16.mxu0 0
      %2098 = vmatpush1.bf16.msra.mxu0 %v2070
      %2099 = vmatprep.subr.bf16.mxu0 0
      %2100 = vmatpush1.bf16.msra.mxu0 %v2069
      %2101 = vmatprep.subr.bf16.mxu0 0
      %2102 = vmatpush2.bf16.msra.mxu0 0
      %2103 = vmatprep.subr.bf16.mxu0 0
      %2104 = vmatpush2.bf16.msra.mxu0 0
      %2105 = vmatprep.subr.bf16.mxu0 0
      %2106 = vmatpush2.bf16.msra.mxu0 0
      %2107 = vmatprep.subr.bf16.mxu0 0
      %2108 = vmatpush2.bf16.msra.mxu0 0
      %2109 = vmatprep.subr.bf16.mxu0 0
      %2110 = vmatpush2.bf16.msra.mxu0 0
      %2111 = vmatprep.subr.bf16.mxu0 0
      %2112 = vmatpush2.bf16.msra.mxu0 0
      %2113 = vmatprep.subr.bf16.mxu0 0
      %2114 = vmatpush2.bf16.msra.mxu0 0
      %2115 = vmatprep.subr.bf16.mxu0 0
      %2116 = vmatpush2.bf16.msra.mxu0 0
      %2117 = vmatprep.mubr.bf16.mxu0 0
      %2118 = vmatmul.mubr.bf16.gmra.mxu0 %v1966
      %v2119 = vpop.f32.mrf.mxu0
      %v2120 = vadd.f32 %v2035, %v2119
      %v2121 = vpop.f32.mrf.mxu0
      %v2122 = vpop.f32.mrf.mxu0
      %v2123 = vadd.f32 %v2035, %v2122
      %v2124 = vpop.f32.mrf.mxu0
      %2125 = vmatprep.mubr.bf16.mxu0 0
      %2126 = vmatmul.mubr.bf16.gmra.mxu0 %v1967
      %v2127 = vpop.f32.mrf.mxu0
      %v2128 = vadd.f32 %v2035, %v2127
      %v2129 = vpop.f32.mrf.mxu0
      %v2130 = vpop.f32.mrf.mxu0
      %v2131 = vadd.f32 %v2035, %v2130
      %v2132 = vpop.f32.mrf.mxu0
      %2133 = vmatprep.mubr.bf16.mxu0 0
      %2134 = vmatmul.mubr.bf16.gmra.mxu0 %v1968
      %v2135 = vpop.f32.mrf.mxu0
      %v2136 = vadd.f32 %v2035, %v2135
      %v2137 = vpop.f32.mrf.mxu0
      %v2138 = vpop.f32.mrf.mxu0
      %v2139 = vadd.f32 %v2035, %v2138
      %v2140 = vpop.f32.mrf.mxu0
      %2141 = vmatprep.mubr.bf16.mxu0 0
      %2142 = vmatmul.mubr.bf16.gmra.mxu0 %v1969
      %v2143 = vpop.f32.mrf.mxu0
      %v2144 = vadd.f32 %v2035, %v2143
      %v2145 = vpop.f32.mrf.mxu0
      %v2146 = vpop.f32.mrf.mxu0
      %v2147 = vadd.f32 %v2035, %v2146
      %v2148 = vpop.f32.mrf.mxu0
      %2149 = vmatprep.mubr.bf16.mxu0 0
      %2150 = vmatmul.mubr.bf16.gmra.mxu0 %v1970
      %v2151 = vpop.f32.mrf.mxu0
      %v2152 = vadd.f32 %v2035, %v2151
      %v2153 = vpop.f32.mrf.mxu0
      %v2154 = vpop.f32.mrf.mxu0
      %v2155 = vadd.f32 %v2035, %v2154
      %v2156 = vpop.f32.mrf.mxu0
      %2157 = vmatprep.mubr.bf16.mxu0 0
      %2158 = vmatmul.mubr.bf16.gmra.mxu0 %v1971
      %v2159 = vpop.f32.mrf.mxu0
      %v2160 = vadd.f32 %v2035, %v2159
      %v2161 = vpop.f32.mrf.mxu0
      %v2162 = vpop.f32.mrf.mxu0
      %v2163 = vadd.f32 %v2035, %v2162
      %v2164 = vpop.f32.mrf.mxu0
      %2165 = vmatprep.mubr.bf16.mxu0 0
      %2166 = vmatmul.mubr.bf16.gmra.mxu0 %v1972
      %v2167 = vpop.f32.mrf.mxu0
      %v2168 = vadd.f32 %v2035, %v2167
      %v2169 = vpop.f32.mrf.mxu0
      %v2170 = vpop.f32.mrf.mxu0
      %v2171 = vadd.f32 %v2035, %v2170
      %v2172 = vpop.f32.mrf.mxu0
      %2173 = vmatprep.mubr.bf16.mxu0 0
      %2174 = vmatmul.mubr.bf16.gmra.mxu0 %v1973
      %v2175 = vpop.f32.mrf.mxu0
      %v2176 = vadd.f32 %v2035, %v2175
      %v2177 = vpop.f32.mrf.mxu0
      %v2178 = vpop.f32.mrf.mxu0
      %v2179 = vadd.f32 %v2035, %v2178
      %v2180 = vpop.f32.mrf.mxu0
      %2181 = vmatprep.mubr.bf16.mxu0 0
      %2182 = vmatmul.mubr.bf16.gmra.mxu0 %v1974
      %v2183 = vpop.f32.mrf.mxu0
      %v2184 = vadd.f32 %v2035, %v2183
      %v2185 = vpop.f32.mrf.mxu0
      %v2186 = vpop.f32.mrf.mxu0
      %v2187 = vadd.f32 %v2035, %v2186
      %v2188 = vpop.f32.mrf.mxu0
      %2189 = vmatprep.mubr.bf16.mxu0 0
      %2190 = vmatmul.mubr.bf16.gmra.mxu0 %v1975
      %v2191 = vpop.f32.mrf.mxu0
      %v2192 = vadd.f32 %v2035, %v2191
      %v2193 = vpop.f32.mrf.mxu0
      %v2194 = vpop.f32.mrf.mxu0
      %v2195 = vadd.f32 %v2035, %v2194
      %v2196 = vpop.f32.mrf.mxu0
      %2197 = vmatprep.mubr.bf16.mxu0 0
      %2198 = vmatmul.mubr.bf16.gmra.mxu0 %v1976
      %v2199 = vpop.f32.mrf.mxu0
      %v2200 = vadd.f32 %v2035, %v2199
      %v2201 = vpop.f32.mrf.mxu0
      %v2202 = vpop.f32.mrf.mxu0
      %v2203 = vadd.f32 %v2035, %v2202
      %v2204 = vpop.f32.mrf.mxu0
      %2205 = vmatprep.mubr.bf16.mxu0 0
      %2206 = vmatmul.mubr.bf16.gmra.mxu0 %v1977
      %v2207 = vpop.f32.mrf.mxu0
      %v2208 = vadd.f32 %v2035, %v2207
      %v2209 = vpop.f32.mrf.mxu0
      %v2210 = vpop.f32.mrf.mxu0
      %v2211 = vadd.f32 %v2035, %v2210
      %v2212 = vpop.f32.mrf.mxu0
      %2213 = vmatprep.mubr.bf16.mxu0 0
      %2214 = vmatmul.mubr.bf16.gmra.mxu0 %v1978
      %v2215 = vpop.f32.mrf.mxu0
      %v2216 = vadd.f32 %v2035, %v2215
      %v2217 = vpop.f32.mrf.mxu0
      %v2218 = vpop.f32.mrf.mxu0
      %v2219 = vadd.f32 %v2035, %v2218
      %v2220 = vpop.f32.mrf.mxu0
      %2221 = vmatprep.mubr.bf16.mxu0 0
      %2222 = vmatmul.mubr.bf16.gmra.mxu0 %v1979
      %v2223 = vpop.f32.mrf.mxu0
      %v2224 = vadd.f32 %v2035, %v2223
      %v2225 = vpop.f32.mrf.mxu0
      %v2226 = vpop.f32.mrf.mxu0
      %v2227 = vadd.f32 %v2035, %v2226
      %v2228 = vpop.f32.mrf.mxu0
      %2229 = vmatprep.mubr.bf16.mxu0 0
      %2230 = vmatmul.mubr.bf16.gmra.mxu0 %v1980
      %v2231 = vpop.f32.mrf.mxu0
      %v2232 = vadd.f32 %v2035, %v2231
      %v2233 = vpop.f32.mrf.mxu0
      %v2234 = vpop.f32.mrf.mxu0
      %v2235 = vadd.f32 %v2035, %v2234
      %v2236 = vpop.f32.mrf.mxu0
      %2237 = vmatprep.mubr.bf16.mxu0 0
      %2238 = vmatmul.mubr.bf16.gmra.mxu0 %v1981
      %v2239 = vpop.f32.mrf.mxu0
      %v2240 = vadd.f32 %v2035, %v2239
      %v2241 = vpop.f32.mrf.mxu0
      %v2242 = vpop.f32.mrf.mxu0
      %v2243 = vadd.f32 %v2035, %v2242
      %v2244 = vpop.f32.mrf.mxu0
      %2245 = vmatprep.mubr.bf16.mxu0 0
      %2246 = vmatmul.mubr.bf16.gmra.mxu0 %v1982
      %v2247 = vpop.f32.mrf.mxu0
      %v2248 = vadd.f32 %v2035, %v2247
      %v2249 = vpop.f32.mrf.mxu0
      %v2250 = vpop.f32.mrf.mxu0
      %v2251 = vadd.f32 %v2035, %v2250
      %v2252 = vpop.f32.mrf.mxu0
      %2253 = vmatprep.mubr.bf16.mxu0 0
      %2254 = vmatmul.mubr.bf16.gmra.mxu0 %v1983
      %v2255 = vpop.f32.mrf.mxu0
      %v2256 = vadd.f32 %v2035, %v2255
      %v2257 = vpop.f32.mrf.mxu0
      %v2258 = vpop.f32.mrf.mxu0
      %v2259 = vadd.f32 %v2035, %v2258
      %v2260 = vpop.f32.mrf.mxu0
      %2261 = vmatprep.mubr.bf16.mxu0 0
      %2262 = vmatmul.mubr.bf16.gmra.mxu0 %v1984
      %v2263 = vpop.f32.mrf.mxu0
      %v2264 = vadd.f32 %v2035, %v2263
      %v2265 = vpop.f32.mrf.mxu0
      %v2266 = vpop.f32.mrf.mxu0
      %v2267 = vadd.f32 %v2035, %v2266
      %v2268 = vpop.f32.mrf.mxu0
      %2269 = vmatprep.mubr.bf16.mxu0 0
      %2270 = vmatmul.mubr.bf16.gmra.mxu0 %v1985
      %v2271 = vpop.f32.mrf.mxu0
      %v2272 = vadd.f32 %v2035, %v2271
      %v2273 = vpop.f32.mrf.mxu0
      %v2274 = vpop.f32.mrf.mxu0
      %v2275 = vadd.f32 %v2035, %v2274
      %v2276 = vpop.f32.mrf.mxu0
      %2277 = vmatprep.mubr.bf16.mxu0 0
      %2278 = vmatmul.mubr.bf16.gmra.mxu0 %v1986
      %v2279 = vpop.f32.mrf.mxu0
      %v2280 = vadd.f32 %v2035, %v2279
      %v2281 = vpop.f32.mrf.mxu0
      %v2282 = vpop.f32.mrf.mxu0
      %v2283 = vadd.f32 %v2035, %v2282
      %v2284 = vpop.f32.mrf.mxu0
      %2285 = vmatprep.mubr.bf16.mxu0 0
      %2286 = vmatmul.mubr.bf16.gmra.mxu0 %v1987
      %v2287 = vpop.f32.mrf.mxu0
      %v2288 = vadd.f32 %v2035, %v2287
      %v2289 = vpop.f32.mrf.mxu0
      %v2290 = vpop.f32.mrf.mxu0
      %v2291 = vadd.f32 %v2035, %v2290
      %v2292 = vpop.f32.mrf.mxu0
      %2293 = vmatprep.mubr.bf16.mxu0 0
      %2294 = vmatmul.mubr.bf16.gmra.mxu0 %v1988
      %v2295 = vpop.f32.mrf.mxu0
      %v2296 = vadd.f32 %v2035, %v2295
      %v2297 = vpop.f32.mrf.mxu0
      %v2298 = vpop.f32.mrf.mxu0
      %v2299 = vadd.f32 %v2035, %v2298
      %v2300 = vpop.f32.mrf.mxu0
      %2301 = vmatprep.mubr.bf16.mxu0 0
      %2302 = vmatmul.mubr.bf16.gmra.mxu0 %v1989
      %v2303 = vpop.f32.mrf.mxu0
      %v2304 = vadd.f32 %v2035, %v2303
      %v2305 = vpop.f32.mrf.mxu0
      %v2306 = vpop.f32.mrf.mxu0
      %v2307 = vadd.f32 %v2035, %v2306
      %v2308 = vpop.f32.mrf.mxu0
      %2309 = vmatprep.mubr.bf16.mxu0 0
      %2310 = vmatmul.mubr.bf16.gmra.mxu0 %v1990
      %v2311 = vpop.f32.mrf.mxu0
      %v2312 = vadd.f32 %v2035, %v2311
      %v2313 = vpop.f32.mrf.mxu0
      %v2314 = vpop.f32.mrf.mxu0
      %v2315 = vadd.f32 %v2035, %v2314
      %v2316 = vpop.f32.mrf.mxu0
      %2317 = vmatprep.mubr.bf16.mxu0 0
      %2318 = vmatmul.mubr.bf16.gmra.mxu0 %v1991
      %v2319 = vpop.f32.mrf.mxu0
      %v2320 = vadd.f32 %v2035, %v2319
      %v2321 = vpop.f32.mrf.mxu0
      %v2322 = vpop.f32.mrf.mxu0
      %v2323 = vadd.f32 %v2035, %v2322
      %v2324 = vpop.f32.mrf.mxu0
      %2325 = vmatprep.mubr.bf16.mxu0 0
      %2326 = vmatmul.mubr.bf16.gmra.mxu0 %v1992
      %v2327 = vpop.f32.mrf.mxu0
      %v2328 = vadd.f32 %v2035, %v2327
      %v2329 = vpop.f32.mrf.mxu0
      %v2330 = vpop.f32.mrf.mxu0
      %v2331 = vadd.f32 %v2035, %v2330
      %v2332 = vpop.f32.mrf.mxu0
      %2333 = vmatprep.mubr.bf16.mxu0 0
      %2334 = vmatmul.mubr.bf16.gmra.mxu0 %v1993
      %v2335 = vpop.f32.mrf.mxu0
      %v2336 = vadd.f32 %v2035, %v2335
      %v2337 = vpop.f32.mrf.mxu0
      %v2338 = vpop.f32.mrf.mxu0
      %v2339 = vadd.f32 %v2035, %v2338
      %v2340 = vpop.f32.mrf.mxu0
      %2341 = vmatprep.mubr.bf16.mxu0 0
      %2342 = vmatmul.mubr.bf16.gmra.mxu0 %v1994
      %v2343 = vpop.f32.mrf.mxu0
      %v2344 = vadd.f32 %v2035, %v2343
      %v2345 = vpop.f32.mrf.mxu0
      %v2346 = vpop.f32.mrf.mxu0
      %v2347 = vadd.f32 %v2035, %v2346
      %v2348 = vpop.f32.mrf.mxu0
      %2349 = vmatprep.mubr.bf16.mxu0 0
      %2350 = vmatmul.mubr.bf16.gmra.mxu0 %v1995
      %v2351 = vpop.f32.mrf.mxu0
      %v2352 = vadd.f32 %v2035, %v2351
      %v2353 = vpop.f32.mrf.mxu0
      %v2354 = vpop.f32.mrf.mxu0
      %v2355 = vadd.f32 %v2035, %v2354
      %v2356 = vpop.f32.mrf.mxu0
      %2357 = vmatprep.mubr.bf16.mxu0 0
      %2358 = vmatmul.mubr.bf16.gmra.mxu0 %v1996
      %v2359 = vpop.f32.mrf.mxu0
      %v2360 = vadd.f32 %v2035, %v2359
      %v2361 = vpop.f32.mrf.mxu0
      %v2362 = vpop.f32.mrf.mxu0
      %v2363 = vadd.f32 %v2035, %v2362
      %v2364 = vpop.f32.mrf.mxu0
      %2365 = vmatprep.mubr.bf16.mxu0 0
      %2366 = vmatmul.mubr.bf16.gmra.mxu0 %v1997
      %v2367 = vpop.f32.mrf.mxu0
      %v2368 = vadd.f32 %v2035, %v2367
      %v2369 = vpop.f32.mrf.mxu0
      %v2370 = vpop.f32.mrf.mxu0
      %v2371 = vadd.f32 %v2035, %v2370
      %v2372 = vpop.f32.mrf.mxu0
      %2373 = vmatprep.mubr.bf16.mxu0 0
      %2374 = vmatmul.mubr.bf16.gmra.mxu0 %v1998
      %v2375 = vpop.f32.mrf.mxu0
      %v2376 = vadd.f32 %v2035, %v2375
      %v2377 = vpop.f32.mrf.mxu0
      %v2378 = vpop.f32.mrf.mxu0
      %v2379 = vadd.f32 %v2035, %v2378
      %v2380 = vpop.f32.mrf.mxu0
      %2381 = vmatprep.mubr.bf16.mxu0 0
      %2382 = vmatmul.mubr.bf16.gmra.mxu0 %v1999
      %v2383 = vpop.f32.mrf.mxu0
      %v2384 = vadd.f32 %v2035, %v2383
      %v2385 = vpop.f32.mrf.mxu0
      %v2386 = vpop.f32.mrf.mxu0
      %v2387 = vadd.f32 %v2035, %v2386
      %v2388 = vpop.f32.mrf.mxu0
      %2389 = vmatprep.mubr.bf16.mxu0 0
      %2390 = vmatmul.mubr.bf16.gmra.mxu0 %v2000
      %v2391 = vpop.f32.mrf.mxu0
      %v2392 = vadd.f32 %v2035, %v2391
      %v2393 = vpop.f32.mrf.mxu0
      %v2394 = vpop.f32.mrf.mxu0
      %v2395 = vadd.f32 %v2035, %v2394
      %v2396 = vpop.f32.mrf.mxu0
      %2397 = vmatprep.mubr.bf16.mxu0 0
      %2398 = vmatmul.mubr.bf16.gmra.mxu0 %v2001
      %v2399 = vpop.f32.mrf.mxu0
      %v2400 = vadd.f32 %v2035, %v2399
      %v2401 = vpop.f32.mrf.mxu0
      %v2402 = vpop.f32.mrf.mxu0
      %v2403 = vadd.f32 %v2035, %v2402
      %v2404 = vpop.f32.mrf.mxu0
      %2405 = vmatprep.mubr.bf16.mxu0 0
      %2406 = vmatmul.mubr.bf16.gmra.mxu0 %v2002
      %v2407 = vpop.f32.mrf.mxu0
      %v2408 = vadd.f32 %v2035, %v2407
      %v2409 = vpop.f32.mrf.mxu0
      %v2410 = vpop.f32.mrf.mxu0
      %v2411 = vadd.f32 %v2035, %v2410
      %v2412 = vpop.f32.mrf.mxu0
      %2413 = vmatprep.mubr.bf16.mxu0 0
      %2414 = vmatmul.mubr.bf16.gmra.mxu0 %v2003
      %v2415 = vpop.f32.mrf.mxu0
      %v2416 = vadd.f32 %v2035, %v2415
      %v2417 = vpop.f32.mrf.mxu0
      %v2418 = vpop.f32.mrf.mxu0
      %v2419 = vadd.f32 %v2035, %v2418
      %v2420 = vpop.f32.mrf.mxu0
      %2421 = vmatprep.mubr.bf16.mxu0 0
      %2422 = vmatmul.mubr.bf16.gmra.mxu0 %v2004
      %v2423 = vpop.f32.mrf.mxu0
      %v2424 = vadd.f32 %v2035, %v2423
      %v2425 = vpop.f32.mrf.mxu0
      %v2426 = vpop.f32.mrf.mxu0
      %v2427 = vadd.f32 %v2035, %v2426
      %v2428 = vpop.f32.mrf.mxu0
      %2429 = vmatprep.mubr.bf16.mxu0 0
      %2430 = vmatmul.mubr.bf16.gmra.mxu0 %v2005
      %v2431 = vpop.f32.mrf.mxu0
      %v2432 = vadd.f32 %v2035, %v2431
      %v2433 = vpop.f32.mrf.mxu0
      %v2434 = vpop.f32.mrf.mxu0
      %v2435 = vadd.f32 %v2035, %v2434
      %v2436 = vpop.f32.mrf.mxu0
      %2437 = vmatprep.mubr.bf16.mxu0 0
      %2438 = vmatmul.mubr.bf16.gmra.mxu0 %v2006
      %v2439 = vpop.f32.mrf.mxu0
      %v2440 = vadd.f32 %v2035, %v2439
      %v2441 = vpop.f32.mrf.mxu0
      %v2442 = vpop.f32.mrf.mxu0
      %v2443 = vadd.f32 %v2035, %v2442
      %v2444 = vpop.f32.mrf.mxu0
      %2445 = vmatprep.mubr.bf16.mxu0 0
      %2446 = vmatmul.mubr.bf16.gmra.mxu0 %v2007
      %v2447 = vpop.f32.mrf.mxu0
      %v2448 = vadd.f32 %v2035, %v2447
      %v2449 = vpop.f32.mrf.mxu0
      %v2450 = vpop.f32.mrf.mxu0
      %v2451 = vadd.f32 %v2035, %v2450
      %v2452 = vpop.f32.mrf.mxu0
      %2453 = vmatprep.mubr.bf16.mxu0 0
      %2454 = vmatmul.mubr.bf16.gmra.mxu0 %v2008
      %v2455 = vpop.f32.mrf.mxu0
      %v2456 = vadd.f32 %v2035, %v2455
      %v2457 = vpop.f32.mrf.mxu0
      %v2458 = vpop.f32.mrf.mxu0
      %v2459 = vadd.f32 %v2035, %v2458
      %v2460 = vpop.f32.mrf.mxu0
      %2461 = vmatprep.mubr.bf16.mxu0 0
      %2462 = vmatmul.mubr.bf16.gmra.mxu0 %v2009
      %v2463 = vpop.f32.mrf.mxu0
      %v2464 = vadd.f32 %v2035, %v2463
      %v2465 = vpop.f32.mrf.mxu0
      %v2466 = vpop.f32.mrf.mxu0
      %v2467 = vadd.f32 %v2035, %v2466
      %v2468 = vpop.f32.mrf.mxu0
      %2469 = vmatprep.mubr.bf16.mxu0 0
      %2470 = vmatmul.mubr.bf16.gmra.mxu0 %v2010
      %v2471 = vpop.f32.mrf.mxu0
      %v2472 = vadd.f32 %v2035, %v2471
      %v2473 = vpop.f32.mrf.mxu0
      %v2474 = vpop.f32.mrf.mxu0
      %v2475 = vadd.f32 %v2035, %v2474
      %v2476 = vpop.f32.mrf.mxu0
      %2477 = vmatprep.mubr.bf16.mxu0 0
      %2478 = vmatmul.mubr.bf16.gmra.mxu0 %v2011
      %v2479 = vpop.f32.mrf.mxu0
      %v2480 = vadd.f32 %v2035, %v2479
      %v2481 = vpop.f32.mrf.mxu0
      %v2482 = vpop.f32.mrf.mxu0
      %v2483 = vadd.f32 %v2035, %v2482
      %v2484 = vpop.f32.mrf.mxu0
      %2485 = vmatprep.mubr.bf16.mxu0 0
      %2486 = vmatmul.mubr.bf16.gmra.mxu0 %v2012
      %v2487 = vpop.f32.mrf.mxu0
      %v2488 = vadd.f32 %v2035, %v2487
      %v2489 = vpop.f32.mrf.mxu0
      %v2490 = vpop.f32.mrf.mxu0
      %v2491 = vadd.f32 %v2035, %v2490
      %v2492 = vpop.f32.mrf.mxu0
      %2493 = vmatprep.mubr.bf16.mxu0 0
      %2494 = vmatmul.mubr.bf16.gmra.mxu0 %v2013
      %v2495 = vpop.f32.mrf.mxu0
      %v2496 = vadd.f32 %v2035, %v2495
      %v2497 = vpop.f32.mrf.mxu0
      %v2498 = vpop.f32.mrf.mxu0
      %v2499 = vadd.f32 %v2035, %v2498
      %v2500 = vpop.f32.mrf.mxu0
      %2501 = vmatprep.mubr.bf16.mxu0 0
      %2502 = vmatmul.mubr.bf16.gmra.mxu0 %v2014
      %v2503 = vpop.f32.mrf.mxu0
      %v2504 = vadd.f32 %v2035, %v2503
      %v2505 = vpop.f32.mrf.mxu0
      %v2506 = vpop.f32.mrf.mxu0
      %v2507 = vadd.f32 %v2035, %v2506
      %v2508 = vpop.f32.mrf.mxu0
      %2509 = vmatprep.mubr.bf16.mxu0 0
      %2510 = vmatmul.mubr.bf16.gmra.mxu0 %v2015
      %v2511 = vpop.f32.mrf.mxu0
      %v2512 = vadd.f32 %v2035, %v2511
      %v2513 = vpop.f32.mrf.mxu0
      %v2514 = vpop.f32.mrf.mxu0
      %v2515 = vadd.f32 %v2035, %v2514
      %v2516 = vpop.f32.mrf.mxu0
      %2517 = vmatprep.mubr.bf16.mxu0 0
      %2518 = vmatmul.mubr.bf16.gmra.mxu0 %v2016
      %v2519 = vpop.f32.mrf.mxu0
      %v2520 = vadd.f32 %v2035, %v2519
      %v2521 = vpop.f32.mrf.mxu0
      %v2522 = vpop.f32.mrf.mxu0
      %v2523 = vadd.f32 %v2035, %v2522
      %v2524 = vpop.f32.mrf.mxu0
      %2525 = vmatprep.mubr.bf16.mxu0 0
      %2526 = vmatmul.mubr.bf16.gmra.mxu0 %v2017
      %v2527 = vpop.f32.mrf.mxu0
      %v2528 = vadd.f32 %v2035, %v2527
      %v2529 = vpop.f32.mrf.mxu0
      %v2530 = vpop.f32.mrf.mxu0
      %v2531 = vadd.f32 %v2035, %v2530
      %v2532 = vpop.f32.mrf.mxu0
      %2533 = vmatprep.mubr.bf16.mxu0 0
      %2534 = vmatmul.mubr.bf16.gmra.mxu0 %v2018
      %v2535 = vpop.f32.mrf.mxu0
      %v2536 = vadd.f32 %v2035, %v2535
      %v2537 = vpop.f32.mrf.mxu0
      %v2538 = vpop.f32.mrf.mxu0
      %v2539 = vadd.f32 %v2035, %v2538
      %v2540 = vpop.f32.mrf.mxu0
      %2541 = vmatprep.mubr.bf16.mxu0 0
      %2542 = vmatmul.mubr.bf16.gmra.mxu0 %v2019
      %v2543 = vpop.f32.mrf.mxu0
      %v2544 = vadd.f32 %v2035, %v2543
      %v2545 = vpop.f32.mrf.mxu0
      %v2546 = vpop.f32.mrf.mxu0
      %v2547 = vadd.f32 %v2035, %v2546
      %v2548 = vpop.f32.mrf.mxu0
      %2549 = vmatprep.mubr.bf16.mxu0 0
      %2550 = vmatmul.mubr.bf16.gmra.mxu0 %v2020
      %v2551 = vpop.f32.mrf.mxu0
      %v2552 = vadd.f32 %v2035, %v2551
      %v2553 = vpop.f32.mrf.mxu0
      %v2554 = vpop.f32.mrf.mxu0
      %v2555 = vadd.f32 %v2035, %v2554
      %v2556 = vpop.f32.mrf.mxu0
      %2557 = vmatprep.mubr.bf16.mxu0 0
      %2558 = vmatmul.mubr.bf16.gmra.mxu0 %v2021
      %v2559 = vpop.f32.mrf.mxu0
      %v2560 = vadd.f32 %v2035, %v2559
      %v2561 = vpop.f32.mrf.mxu0
      %v2562 = vpop.f32.mrf.mxu0
      %v2563 = vadd.f32 %v2035, %v2562
      %v2564 = vpop.f32.mrf.mxu0
      %2565 = vmatprep.mubr.bf16.mxu0 0
      %2566 = vmatmul.mubr.bf16.gmra.mxu0 %v2022
      %v2567 = vpop.f32.mrf.mxu0
      %v2568 = vadd.f32 %v2035, %v2567
      %v2569 = vpop.f32.mrf.mxu0
      %v2570 = vpop.f32.mrf.mxu0
      %v2571 = vadd.f32 %v2035, %v2570
      %v2572 = vpop.f32.mrf.mxu0
      %2573 = vmatprep.mubr.bf16.mxu0 0
      %2574 = vmatmul.mubr.bf16.gmra.mxu0 %v2023
      %v2575 = vpop.f32.mrf.mxu0
      %v2576 = vadd.f32 %v2035, %v2575
      %v2577 = vpop.f32.mrf.mxu0
      %v2578 = vpop.f32.mrf.mxu0
      %v2579 = vadd.f32 %v2035, %v2578
      %v2580 = vpop.f32.mrf.mxu0
      %2581 = vmatprep.mubr.bf16.mxu0 0
      %2582 = vmatmul.mubr.bf16.gmra.mxu0 %v2024
      %v2583 = vpop.f32.mrf.mxu0
      %v2584 = vadd.f32 %v2035, %v2583
      %v2585 = vpop.f32.mrf.mxu0
      %v2586 = vpop.f32.mrf.mxu0
      %v2587 = vadd.f32 %v2035, %v2586
      %v2588 = vpop.f32.mrf.mxu0
      %2589 = vmatprep.mubr.bf16.mxu0 0
      %2590 = vmatmul.mubr.bf16.gmra.mxu0 %v2025
      %v2591 = vpop.f32.mrf.mxu0
      %v2592 = vadd.f32 %v2035, %v2591
      %v2593 = vpop.f32.mrf.mxu0
      %v2594 = vpop.f32.mrf.mxu0
      %v2595 = vadd.f32 %v2035, %v2594
      %v2596 = vpop.f32.mrf.mxu0
      %2597 = vmatprep.mubr.bf16.mxu0 0
      %2598 = vmatmul.mubr.bf16.gmra.mxu0 %v2026
      %v2599 = vpop.f32.mrf.mxu0
      %v2600 = vadd.f32 %v2035, %v2599
      %v2601 = vpop.f32.mrf.mxu0
      %v2602 = vpop.f32.mrf.mxu0
      %v2603 = vadd.f32 %v2035, %v2602
      %v2604 = vpop.f32.mrf.mxu0
      %2605 = vmatprep.mubr.bf16.mxu0 0
      %2606 = vmatmul.mubr.bf16.gmra.mxu0 %v2027
      %v2607 = vpop.f32.mrf.mxu0
      %v2608 = vadd.f32 %v2035, %v2607
      %v2609 = vpop.f32.mrf.mxu0
      %v2610 = vpop.f32.mrf.mxu0
      %v2611 = vadd.f32 %v2035, %v2610
      %v2612 = vpop.f32.mrf.mxu0
      %2613 = vmatprep.mubr.bf16.mxu0 0
      %2614 = vmatmul.mubr.bf16.gmra.mxu0 %v2028
      %v2615 = vpop.f32.mrf.mxu0
      %v2616 = vadd.f32 %v2035, %v2615
      %v2617 = vpop.f32.mrf.mxu0
      %v2618 = vpop.f32.mrf.mxu0
      %v2619 = vadd.f32 %v2035, %v2618
      %v2620 = vpop.f32.mrf.mxu0
      %2621 = vmatprep.mubr.bf16.mxu0 0
      %2622 = vmatmul.mubr.bf16.gmra.mxu0 %v2029
      %v2623 = vpop.f32.mrf.mxu0
      %v2624 = vadd.f32 %v2035, %v2623
      %v2625 = vpop.f32.mrf.mxu0
      %v2626 = vpop.f32.mrf.mxu0
      %v2627 = vadd.f32 %v2035, %v2626
      %v2628 = vpop.f32.mrf.mxu0
      %2629 = vdwg.mxu0
      %v2630 = vmax.f32 %v2120, 0.0
      %v2631 = vmax.f32 %v2123, 0.0
      %v2632 = vmax.f32 %v2128, 0.0
      %v2633 = vmax.f32 %v2131, 0.0
      %v2634 = vmax.f32 %v2136, 0.0
      %v2635 = vmax.f32 %v2139, 0.0
      %v2636 = vmax.f32 %v2144, 0.0
      %v2637 = vmax.f32 %v2147, 0.0
      %v2638 = vmax.f32 %v2152, 0.0
      %v2639 = vmax.f32 %v2155, 0.0
      %v2640 = vmax.f32 %v2160, 0.0
      %v2641 = vmax.f32 %v2163, 0.0
      %v2642 = vmax.f32 %v2168, 0.0
      %v2643 = vmax.f32 %v2171, 0.0
      %v2644 = vmax.f32 %v2176, 0.0
      %v2645 = vmax.f32 %v2179, 0.0
      %v2646 = vmax.f32 %v2184, 0.0
      %v2647 = vmax.f32 %v2187, 0.0
      %v2648 = vmax.f32 %v2192, 0.0
      %v2649 = vmax.f32 %v2195, 0.0
      %v2650 = vmax.f32 %v2200, 0.0
      %v2651 = vmax.f32 %v2203, 0.0
      %v2652 = vmax.f32 %v2208, 0.0
      %v2653 = vmax.f32 %v2211, 0.0
      %v2654 = vmax.f32 %v2216, 0.0
      %v2655 = vmax.f32 %v2219, 0.0
      %v2656 = vmax.f32 %v2224, 0.0
      %v2657 = vmax.f32 %v2227, 0.0
      %v2658 = vmax.f32 %v2232, 0.0
      %v2659 = vmax.f32 %v2235, 0.0
      %v2660 = vmax.f32 %v2240, 0.0
      %v2661 = vmax.f32 %v2243, 0.0
      %v2662 = vmax.f32 %v2248, 0.0
      %v2663 = vmax.f32 %v2251, 0.0
      %v2664 = vmax.f32 %v2256, 0.0
      %v2665 = vmax.f32 %v2259, 0.0
      %v2666 = vmax.f32 %v2264, 0.0
      %v2667 = vmax.f32 %v2267, 0.0
      %v2668 = vmax.f32 %v2272, 0.0
      %v2669 = vmax.f32 %v2275, 0.0
      %v2670 = vmax.f32 %v2280, 0.0
      %v2671 = vmax.f32 %v2283, 0.0
      %v2672 = vmax.f32 %v2288, 0.0
      %v2673 = vmax.f32 %v2291, 0.0
      %v2674 = vmax.f32 %v2296, 0.0
      %v2675 = vmax.f32 %v2299, 0.0
      %v2676 = vmax.f32 %v2304, 0.0
      %v2677 = vmax.f32 %v2307, 0.0
      %v2678 = vmax.f32 %v2312, 0.0
      %v2679 = vmax.f32 %v2315, 0.0
      %v2680 = vmax.f32 %v2320, 0.0
      %v2681 = vmax.f32 %v2323, 0.0
      %v2682 = vmax.f32 %v2328, 0.0
      %v2683 = vmax.f32 %v2331, 0.0
      %v2684 = vmax.f32 %v2336, 0.0
      %v2685 = vmax.f32 %v2339, 0.0
      %v2686 = vmax.f32 %v2344, 0.0
      %v2687 = vmax.f32 %v2347, 0.0
      %v2688 = vmax.f32 %v2352, 0.0
      %v2689 = vmax.f32 %v2355, 0.0
      %v2690 = vmax.f32 %v2360, 0.0
      %v2691 = vmax.f32 %v2363, 0.0
      %v2692 = vmax.f32 %v2368, 0.0
      %v2693 = vmax.f32 %v2371, 0.0
      %v2694 = vmax.f32 %v2376, 0.0
      %v2695 = vmax.f32 %v2379, 0.0
      %v2696 = vmax.f32 %v2384, 0.0
      %v2697 = vmax.f32 %v2387, 0.0
      %v2698 = vmax.f32 %v2392, 0.0
      %v2699 = vmax.f32 %v2395, 0.0
      %v2700 = vmax.f32 %v2400, 0.0
      %v2701 = vmax.f32 %v2403, 0.0
      %v2702 = vmax.f32 %v2408, 0.0
      %v2703 = vmax.f32 %v2411, 0.0
      %v2704 = vmax.f32 %v2416, 0.0
      %v2705 = vmax.f32 %v2419, 0.0
      %v2706 = vmax.f32 %v2424, 0.0
      %v2707 = vmax.f32 %v2427, 0.0
      %v2708 = vmax.f32 %v2432, 0.0
      %v2709 = vmax.f32 %v2435, 0.0
      %v2710 = vmax.f32 %v2440, 0.0
      %v2711 = vmax.f32 %v2443, 0.0
      %v2712 = vmax.f32 %v2448, 0.0
      %v2713 = vmax.f32 %v2451, 0.0
      %v2714 = vmax.f32 %v2456, 0.0
      %v2715 = vmax.f32 %v2459, 0.0
      %v2716 = vmax.f32 %v2464, 0.0
      %v2717 = vmax.f32 %v2467, 0.0
      %v2718 = vmax.f32 %v2472, 0.0
      %v2719 = vmax.f32 %v2475, 0.0
      %v2720 = vmax.f32 %v2480, 0.0
      %v2721 = vmax.f32 %v2483, 0.0
      %v2722 = vmax.f32 %v2488, 0.0
      %v2723 = vmax.f32 %v2491, 0.0
      %v2724 = vmax.f32 %v2496, 0.0
      %v2725 = vmax.f32 %v2499, 0.0
      %v2726 = vmax.f32 %v2504, 0.0
      %v2727 = vmax.f32 %v2507, 0.0
      %v2728 = vmax.f32 %v2512, 0.0
      %v2729 = vmax.f32 %v2515, 0.0
      %v2730 = vmax.f32 %v2520, 0.0
      %v2731 = vmax.f32 %v2523, 0.0
      %v2732 = vmax.f32 %v2528, 0.0
      %v2733 = vmax.f32 %v2531, 0.0
      %v2734 = vmax.f32 %v2536, 0.0
      %v2735 = vmax.f32 %v2539, 0.0
      %v2736 = vmax.f32 %v2544, 0.0
      %v2737 = vmax.f32 %v2547, 0.0
      %v2738 = vmax.f32 %v2552, 0.0
      %v2739 = vmax.f32 %v2555, 0.0
      %v2740 = vmax.f32 %v2560, 0.0
      %v2741 = vmax.f32 %v2563, 0.0
      %v2742 = vmax.f32 %v2568, 0.0
      %v2743 = vmax.f32 %v2571, 0.0
      %v2744 = vmax.f32 %v2576, 0.0
      %v2745 = vmax.f32 %v2579, 0.0
      %v2746 = vmax.f32 %v2584, 0.0
      %v2747 = vmax.f32 %v2587, 0.0
      %v2748 = vmax.f32 %v2592, 0.0
      %v2749 = vmax.f32 %v2595, 0.0
      %v2750 = vmax.f32 %v2600, 0.0
      %v2751 = vmax.f32 %v2603, 0.0
      %v2752 = vmax.f32 %v2608, 0.0
      %v2753 = vmax.f32 %v2611, 0.0
      %v2754 = vmax.f32 %v2616, 0.0
      %v2755 = vmax.f32 %v2619, 0.0
      %v2756 = vmax.f32 %v2624, 0.0
      %v2757 = vmax.f32 %v2627, 0.0
      %v2758 = vld [vmem:[%s6] sm:$0xf]
      %v2759 = vld [vmem:[%s6 + $0x4] sm:$0xf]
      %v2760 = vld [vmem:[%s6 + $0x8] sm:$0xf]
      %v2761 = vld [vmem:[%s6 + $0xc] sm:$0xf]
      %v2762 = vld [vmem:[%s6 + $0x10] sm:$0xf]
      %v2763 = vld [vmem:[%s6 + $0x14] sm:$0xf]
      %v2764 = vld [vmem:[%s6 + $0x18] sm:$0xf]
      %v2765 = vld [vmem:[%s6 + $0x1c] sm:$0xf]
      %v2766 = vld [vmem:[%s6 + $0x20] sm:$0xf]
      %v2767 = vld [vmem:[%s6 + $0x24] sm:$0xf]
      %v2768 = vld [vmem:[%s6 + $0x28] sm:$0xf]
      %v2769 = vld [vmem:[%s6 + $0x2c] sm:$0xf]
      %v2770 = vld [vmem:[%s6 + $0x30] sm:$0xf]
      %v2771 = vld [vmem:[%s6 + $0x34] sm:$0xf]
      %v2772 = vld [vmem:[%s6 + $0x38] sm:$0xf]
      %v2773 = vld [vmem:[%s6 + $0x3c] sm:$0xf]
      %v2774 = vpack.c.bf16 %v2631, %v2630
      %v2775 = vpack.c.bf16 %v2633, %v2632
      %v2776 = vpack.c.bf16 %v2635, %v2634
      %v2777 = vpack.c.bf16 %v2637, %v2636
      %v2778 = vpack.c.bf16 %v2639, %v2638
      %v2779 = vpack.c.bf16 %v2641, %v2640
      %v2780 = vpack.c.bf16 %v2643, %v2642
      %v2781 = vpack.c.bf16 %v2645, %v2644
      %v2782 = vpack.c.bf16 %v2647, %v2646
      %v2783 = vpack.c.bf16 %v2649, %v2648
      %v2784 = vpack.c.bf16 %v2651, %v2650
      %v2785 = vpack.c.bf16 %v2653, %v2652
      %v2786 = vpack.c.bf16 %v2655, %v2654
      %v2787 = vpack.c.bf16 %v2657, %v2656
      %v2788 = vpack.c.bf16 %v2659, %v2658
      %v2789 = vpack.c.bf16 %v2661, %v2660
      %v2790 = vpack.c.bf16 %v2663, %v2662
      %v2791 = vpack.c.bf16 %v2665, %v2664
      %v2792 = vpack.c.bf16 %v2667, %v2666
      %v2793 = vpack.c.bf16 %v2669, %v2668
      %v2794 = vpack.c.bf16 %v2671, %v2670
      %v2795 = vpack.c.bf16 %v2673, %v2672
      %v2796 = vpack.c.bf16 %v2675, %v2674
      %v2797 = vpack.c.bf16 %v2677, %v2676
      %v2798 = vpack.c.bf16 %v2679, %v2678
      %v2799 = vpack.c.bf16 %v2681, %v2680
      %v2800 = vpack.c.bf16 %v2683, %v2682
      %v2801 = vpack.c.bf16 %v2685, %v2684
      %v2802 = vpack.c.bf16 %v2687, %v2686
      %v2803 = vpack.c.bf16 %v2689, %v2688
      %v2804 = vpack.c.bf16 %v2691, %v2690
      %v2805 = vpack.c.bf16 %v2693, %v2692
      %v2806 = vpack.c.bf16 %v2695, %v2694
      %v2807 = vpack.c.bf16 %v2697, %v2696
      %v2808 = vpack.c.bf16 %v2699, %v2698
      %v2809 = vpack.c.bf16 %v2701, %v2700
      %v2810 = vpack.c.bf16 %v2703, %v2702
      %v2811 = vpack.c.bf16 %v2705, %v2704
      %v2812 = vpack.c.bf16 %v2707, %v2706
      %v2813 = vpack.c.bf16 %v2709, %v2708
      %v2814 = vpack.c.bf16 %v2711, %v2710
      %v2815 = vpack.c.bf16 %v2713, %v2712
      %v2816 = vpack.c.bf16 %v2715, %v2714
      %v2817 = vpack.c.bf16 %v2717, %v2716
      %v2818 = vpack.c.bf16 %v2719, %v2718
      %v2819 = vpack.c.bf16 %v2721, %v2720
      %v2820 = vpack.c.bf16 %v2723, %v2722
      %v2821 = vpack.c.bf16 %v2725, %v2724
      %v2822 = vpack.c.bf16 %v2727, %v2726
      %v2823 = vpack.c.bf16 %v2729, %v2728
      %v2824 = vpack.c.bf16 %v2731, %v2730
      %v2825 = vpack.c.bf16 %v2733, %v2732
      %v2826 = vpack.c.bf16 %v2735, %v2734
      %v2827 = vpack.c.bf16 %v2737, %v2736
      %v2828 = vpack.c.bf16 %v2739, %v2738
      %v2829 = vpack.c.bf16 %v2741, %v2740
      %v2830 = vpack.c.bf16 %v2743, %v2742
      %v2831 = vpack.c.bf16 %v2745, %v2744
      %v2832 = vpack.c.bf16 %v2747, %v2746
      %v2833 = vpack.c.bf16 %v2749, %v2748
      %v2834 = vpack.c.bf16 %v2751, %v2750
      %v2835 = vpack.c.bf16 %v2753, %v2752
      %v2836 = vpack.c.bf16 %v2755, %v2754
      %v2837 = vpack.c.bf16 %v2757, %v2756
      %v2838 = vld [vmem:[%s7] sm:$0x1]
      %v2840 = vlaneseq
      %v2841 = vshrl.u32 %v2840, 7
      %v2842 = vsub.s32 0, %v2841
      %v2843 = vrot.slane %v2838, %v2842
      %v2861 = vunpack.c.l.b16 %v2758
      %v2862 = vunpack.c.l.b16 %v2759
      %v2863 = vunpack.c.l.b16 %v2760
      %v2864 = vunpack.c.l.b16 %v2761
      %v2865 = vunpack.c.l.b16 %v2762
      %v2866 = vunpack.c.l.b16 %v2763
      %v2867 = vunpack.c.l.b16 %v2764
      %v2868 = vunpack.c.l.b16 %v2765
      %v2869 = vunpack.c.l.b16 %v2766
      %v2870 = vunpack.c.l.b16 %v2767
      %v2871 = vunpack.c.l.b16 %v2768
      %v2872 = vunpack.c.l.b16 %v2769
      %v2873 = vunpack.c.l.b16 %v2770
      %v2874 = vunpack.c.l.b16 %v2771
      %v2875 = vunpack.c.l.b16 %v2772
      %v2876 = vunpack.c.l.b16 %v2773
      %v2877 = vpack.c.b16 %v2862, %v2861
      %v2878 = vpack.c.b16 %v2864, %v2863
      %v2879 = vpack.c.b16 %v2866, %v2865
      %v2880 = vpack.c.b16 %v2868, %v2867
      %v2881 = vpack.c.b16 %v2870, %v2869
      %v2882 = vpack.c.b16 %v2872, %v2871
      %v2883 = vpack.c.b16 %v2874, %v2873
      %v2884 = vpack.c.b16 %v2876, %v2875
      %2893 = vmatprep.subr.bf16.mxu0 0
      %2894 = vmatpush1.bf16.msra.mxu0 %v2884
      %2895 = vmatprep.subr.bf16.mxu0 0
      %2896 = vmatpush1.bf16.msra.mxu0 %v2883
      %2897 = vmatprep.subr.bf16.mxu0 0
      %2898 = vmatpush1.bf16.msra.mxu0 %v2882
      %2899 = vmatprep.subr.bf16.mxu0 0
      %2900 = vmatpush1.bf16.msra.mxu0 %v2881
      %2901 = vmatprep.subr.bf16.mxu0 0
      %2902 = vmatpush1.bf16.msra.mxu0 %v2880
      %2903 = vmatprep.subr.bf16.mxu0 0
      %2904 = vmatpush1.bf16.msra.mxu0 %v2879
      %2905 = vmatprep.subr.bf16.mxu0 0
      %2906 = vmatpush1.bf16.msra.mxu0 %v2878
      %2907 = vmatprep.subr.bf16.mxu0 0
      %2908 = vmatpush1.bf16.msra.mxu0 %v2877
      %2909 = vmatprep.subr.bf16.mxu0 0
      %2910 = vmatpush2.bf16.msra.mxu0 0
      %2911 = vmatprep.subr.bf16.mxu0 0
      %2912 = vmatpush2.bf16.msra.mxu0 0
      %2913 = vmatprep.subr.bf16.mxu0 0
      %2914 = vmatpush2.bf16.msra.mxu0 0
      %2915 = vmatprep.subr.bf16.mxu0 0
      %2916 = vmatpush2.bf16.msra.mxu0 0
      %2917 = vmatprep.subr.bf16.mxu0 0
      %2918 = vmatpush2.bf16.msra.mxu0 0
      %2919 = vmatprep.subr.bf16.mxu0 0
      %2920 = vmatpush2.bf16.msra.mxu0 0
      %2921 = vmatprep.subr.bf16.mxu0 0
      %2922 = vmatpush2.bf16.msra.mxu0 0
      %2923 = vmatprep.subr.bf16.mxu0 0
      %2924 = vmatpush2.bf16.msra.mxu0 0
      %2925 = vmatprep.mubr.bf16.mxu0 0
      %2926 = vmatmul.mubr.bf16.gmra.mxu0 %v2774
      %v2927 = vpop.f32.mrf.mxu0
      %v2928 = vadd.f32 %v2843, %v2927
      %v2929 = vpop.f32.mrf.mxu0
      %v2930 = vpop.f32.mrf.mxu0
      %v2931 = vadd.f32 %v2843, %v2930
      %v2932 = vpop.f32.mrf.mxu0
      %2933 = vmatprep.mubr.bf16.mxu0 0
      %2934 = vmatmul.mubr.bf16.gmra.mxu0 %v2775
      %v2935 = vpop.f32.mrf.mxu0
      %v2936 = vadd.f32 %v2843, %v2935
      %v2937 = vpop.f32.mrf.mxu0
      %v2938 = vpop.f32.mrf.mxu0
      %v2939 = vadd.f32 %v2843, %v2938
      %v2940 = vpop.f32.mrf.mxu0
      %2941 = vmatprep.mubr.bf16.mxu0 0
      %2942 = vmatmul.mubr.bf16.gmra.mxu0 %v2776
      %v2943 = vpop.f32.mrf.mxu0
      %v2944 = vadd.f32 %v2843, %v2943
      %v2945 = vpop.f32.mrf.mxu0
      %v2946 = vpop.f32.mrf.mxu0
      %v2947 = vadd.f32 %v2843, %v2946
      %v2948 = vpop.f32.mrf.mxu0
      %2949 = vmatprep.mubr.bf16.mxu0 0
      %2950 = vmatmul.mubr.bf16.gmra.mxu0 %v2777
      %v2951 = vpop.f32.mrf.mxu0
      %v2952 = vadd.f32 %v2843, %v2951
      %v2953 = vpop.f32.mrf.mxu0
      %v2954 = vpop.f32.mrf.mxu0
      %v2955 = vadd.f32 %v2843, %v2954
      %v2956 = vpop.f32.mrf.mxu0
      %2957 = vmatprep.mubr.bf16.mxu0 0
      %2958 = vmatmul.mubr.bf16.gmra.mxu0 %v2778
      %v2959 = vpop.f32.mrf.mxu0
      %v2960 = vadd.f32 %v2843, %v2959
      %v2961 = vpop.f32.mrf.mxu0
      %v2962 = vpop.f32.mrf.mxu0
      %v2963 = vadd.f32 %v2843, %v2962
      %v2964 = vpop.f32.mrf.mxu0
      %2965 = vmatprep.mubr.bf16.mxu0 0
      %2966 = vmatmul.mubr.bf16.gmra.mxu0 %v2779
      %v2967 = vpop.f32.mrf.mxu0
      %v2968 = vadd.f32 %v2843, %v2967
      %v2969 = vpop.f32.mrf.mxu0
      %v2970 = vpop.f32.mrf.mxu0
      %v2971 = vadd.f32 %v2843, %v2970
      %v2972 = vpop.f32.mrf.mxu0
      %2973 = vmatprep.mubr.bf16.mxu0 0
      %2974 = vmatmul.mubr.bf16.gmra.mxu0 %v2780
      %v2975 = vpop.f32.mrf.mxu0
      %v2976 = vadd.f32 %v2843, %v2975
      %v2977 = vpop.f32.mrf.mxu0
      %v2978 = vpop.f32.mrf.mxu0
      %v2979 = vadd.f32 %v2843, %v2978
      %v2980 = vpop.f32.mrf.mxu0
      %2981 = vmatprep.mubr.bf16.mxu0 0
      %2982 = vmatmul.mubr.bf16.gmra.mxu0 %v2781
      %v2983 = vpop.f32.mrf.mxu0
      %v2984 = vadd.f32 %v2843, %v2983
      %v2985 = vpop.f32.mrf.mxu0
      %v2986 = vpop.f32.mrf.mxu0
      %v2987 = vadd.f32 %v2843, %v2986
      %v2988 = vpop.f32.mrf.mxu0
      %2989 = vmatprep.mubr.bf16.mxu0 0
      %2990 = vmatmul.mubr.bf16.gmra.mxu0 %v2782
      %v2991 = vpop.f32.mrf.mxu0
      %v2992 = vadd.f32 %v2843, %v2991
      %v2993 = vpop.f32.mrf.mxu0
      %v2994 = vpop.f32.mrf.mxu0
      %v2995 = vadd.f32 %v2843, %v2994
      %v2996 = vpop.f32.mrf.mxu0
      %2997 = vmatprep.mubr.bf16.mxu0 0
      %2998 = vmatmul.mubr.bf16.gmra.mxu0 %v2783
      %v2999 = vpop.f32.mrf.mxu0
      %v3000 = vadd.f32 %v2843, %v2999
      %v3001 = vpop.f32.mrf.mxu0
      %v3002 = vpop.f32.mrf.mxu0
      %v3003 = vadd.f32 %v2843, %v3002
      %v3004 = vpop.f32.mrf.mxu0
      %3005 = vmatprep.mubr.bf16.mxu0 0
      %3006 = vmatmul.mubr.bf16.gmra.mxu0 %v2784
      %v3007 = vpop.f32.mrf.mxu0
      %v3008 = vadd.f32 %v2843, %v3007
      %v3009 = vpop.f32.mrf.mxu0
      %v3010 = vpop.f32.mrf.mxu0
      %v3011 = vadd.f32 %v2843, %v3010
      %v3012 = vpop.f32.mrf.mxu0
      %3013 = vmatprep.mubr.bf16.mxu0 0
      %3014 = vmatmul.mubr.bf16.gmra.mxu0 %v2785
      %v3015 = vpop.f32.mrf.mxu0
      %v3016 = vadd.f32 %v2843, %v3015
      %v3017 = vpop.f32.mrf.mxu0
      %v3018 = vpop.f32.mrf.mxu0
      %v3019 = vadd.f32 %v2843, %v3018
      %v3020 = vpop.f32.mrf.mxu0
      %3021 = vmatprep.mubr.bf16.mxu0 0
      %3022 = vmatmul.mubr.bf16.gmra.mxu0 %v2786
      %v3023 = vpop.f32.mrf.mxu0
      %v3024 = vadd.f32 %v2843, %v3023
      %v3025 = vpop.f32.mrf.mxu0
      %v3026 = vpop.f32.mrf.mxu0
      %v3027 = vadd.f32 %v2843, %v3026
      %v3028 = vpop.f32.mrf.mxu0
      %3029 = vmatprep.mubr.bf16.mxu0 0
      %3030 = vmatmul.mubr.bf16.gmra.mxu0 %v2787
      %v3031 = vpop.f32.mrf.mxu0
      %v3032 = vadd.f32 %v2843, %v3031
      %v3033 = vpop.f32.mrf.mxu0
      %v3034 = vpop.f32.mrf.mxu0
      %v3035 = vadd.f32 %v2843, %v3034
      %v3036 = vpop.f32.mrf.mxu0
      %3037 = vmatprep.mubr.bf16.mxu0 0
      %3038 = vmatmul.mubr.bf16.gmra.mxu0 %v2788
      %v3039 = vpop.f32.mrf.mxu0
      %v3040 = vadd.f32 %v2843, %v3039
      %v3041 = vpop.f32.mrf.mxu0
      %v3042 = vpop.f32.mrf.mxu0
      %v3043 = vadd.f32 %v2843, %v3042
      %v3044 = vpop.f32.mrf.mxu0
      %3045 = vmatprep.mubr.bf16.mxu0 0
      %3046 = vmatmul.mubr.bf16.gmra.mxu0 %v2789
      %v3047 = vpop.f32.mrf.mxu0
      %v3048 = vadd.f32 %v2843, %v3047
      %v3049 = vpop.f32.mrf.mxu0
      %v3050 = vpop.f32.mrf.mxu0
      %v3051 = vadd.f32 %v2843, %v3050
      %v3052 = vpop.f32.mrf.mxu0
      %3053 = vmatprep.mubr.bf16.mxu0 0
      %3054 = vmatmul.mubr.bf16.gmra.mxu0 %v2790
      %v3055 = vpop.f32.mrf.mxu0
      %v3056 = vadd.f32 %v2843, %v3055
      %v3057 = vpop.f32.mrf.mxu0
      %v3058 = vpop.f32.mrf.mxu0
      %v3059 = vadd.f32 %v2843, %v3058
      %v3060 = vpop.f32.mrf.mxu0
      %3061 = vmatprep.mubr.bf16.mxu0 0
      %3062 = vmatmul.mubr.bf16.gmra.mxu0 %v2791
      %v3063 = vpop.f32.mrf.mxu0
      %v3064 = vadd.f32 %v2843, %v3063
      %v3065 = vpop.f32.mrf.mxu0
      %v3066 = vpop.f32.mrf.mxu0
      %v3067 = vadd.f32 %v2843, %v3066
      %v3068 = vpop.f32.mrf.mxu0
      %3069 = vmatprep.mubr.bf16.mxu0 0
      %3070 = vmatmul.mubr.bf16.gmra.mxu0 %v2792
      %v3071 = vpop.f32.mrf.mxu0
      %v3072 = vadd.f32 %v2843, %v3071
      %v3073 = vpop.f32.mrf.mxu0
      %v3074 = vpop.f32.mrf.mxu0
      %v3075 = vadd.f32 %v2843, %v3074
      %v3076 = vpop.f32.mrf.mxu0
      %3077 = vmatprep.mubr.bf16.mxu0 0
      %3078 = vmatmul.mubr.bf16.gmra.mxu0 %v2793
      %v3079 = vpop.f32.mrf.mxu0
      %v3080 = vadd.f32 %v2843, %v3079
      %v3081 = vpop.f32.mrf.mxu0
      %v3082 = vpop.f32.mrf.mxu0
      %v3083 = vadd.f32 %v2843, %v3082
      %v3084 = vpop.f32.mrf.mxu0
      %3085 = vmatprep.mubr.bf16.mxu0 0
      %3086 = vmatmul.mubr.bf16.gmra.mxu0 %v2794
      %v3087 = vpop.f32.mrf.mxu0
      %v3088 = vadd.f32 %v2843, %v3087
      %v3089 = vpop.f32.mrf.mxu0
      %v3090 = vpop.f32.mrf.mxu0
      %v3091 = vadd.f32 %v2843, %v3090
      %v3092 = vpop.f32.mrf.mxu0
      %3093 = vmatprep.mubr.bf16.mxu0 0
      %3094 = vmatmul.mubr.bf16.gmra.mxu0 %v2795
      %v3095 = vpop.f32.mrf.mxu0
      %v3096 = vadd.f32 %v2843, %v3095
      %v3097 = vpop.f32.mrf.mxu0
      %v3098 = vpop.f32.mrf.mxu0
      %v3099 = vadd.f32 %v2843, %v3098
      %v3100 = vpop.f32.mrf.mxu0
      %3101 = vmatprep.mubr.bf16.mxu0 0
      %3102 = vmatmul.mubr.bf16.gmra.mxu0 %v2796
      %v3103 = vpop.f32.mrf.mxu0
      %v3104 = vadd.f32 %v2843, %v3103
      %v3105 = vpop.f32.mrf.mxu0
      %v3106 = vpop.f32.mrf.mxu0
      %v3107 = vadd.f32 %v2843, %v3106
      %v3108 = vpop.f32.mrf.mxu0
      %3109 = vmatprep.mubr.bf16.mxu0 0
      %3110 = vmatmul.mubr.bf16.gmra.mxu0 %v2797
      %v3111 = vpop.f32.mrf.mxu0
      %v3112 = vadd.f32 %v2843, %v3111
      %v3113 = vpop.f32.mrf.mxu0
      %v3114 = vpop.f32.mrf.mxu0
      %v3115 = vadd.f32 %v2843, %v3114
      %v3116 = vpop.f32.mrf.mxu0
      %3117 = vmatprep.mubr.bf16.mxu0 0
      %3118 = vmatmul.mubr.bf16.gmra.mxu0 %v2798
      %v3119 = vpop.f32.mrf.mxu0
      %v3120 = vadd.f32 %v2843, %v3119
      %v3121 = vpop.f32.mrf.mxu0
      %v3122 = vpop.f32.mrf.mxu0
      %v3123 = vadd.f32 %v2843, %v3122
      %v3124 = vpop.f32.mrf.mxu0
      %3125 = vmatprep.mubr.bf16.mxu0 0
      %3126 = vmatmul.mubr.bf16.gmra.mxu0 %v2799
      %v3127 = vpop.f32.mrf.mxu0
      %v3128 = vadd.f32 %v2843, %v3127
      %v3129 = vpop.f32.mrf.mxu0
      %v3130 = vpop.f32.mrf.mxu0
      %v3131 = vadd.f32 %v2843, %v3130
      %v3132 = vpop.f32.mrf.mxu0
      %3133 = vmatprep.mubr.bf16.mxu0 0
      %3134 = vmatmul.mubr.bf16.gmra.mxu0 %v2800
      %v3135 = vpop.f32.mrf.mxu0
      %v3136 = vadd.f32 %v2843, %v3135
      %v3137 = vpop.f32.mrf.mxu0
      %v3138 = vpop.f32.mrf.mxu0
      %v3139 = vadd.f32 %v2843, %v3138
      %v3140 = vpop.f32.mrf.mxu0
      %3141 = vmatprep.mubr.bf16.mxu0 0
      %3142 = vmatmul.mubr.bf16.gmra.mxu0 %v2801
      %v3143 = vpop.f32.mrf.mxu0
      %v3144 = vadd.f32 %v2843, %v3143
      %v3145 = vpop.f32.mrf.mxu0
      %v3146 = vpop.f32.mrf.mxu0
      %v3147 = vadd.f32 %v2843, %v3146
      %v3148 = vpop.f32.mrf.mxu0
      %3149 = vmatprep.mubr.bf16.mxu0 0
      %3150 = vmatmul.mubr.bf16.gmra.mxu0 %v2802
      %v3151 = vpop.f32.mrf.mxu0
      %v3152 = vadd.f32 %v2843, %v3151
      %v3153 = vpop.f32.mrf.mxu0
      %v3154 = vpop.f32.mrf.mxu0
      %v3155 = vadd.f32 %v2843, %v3154
      %v3156 = vpop.f32.mrf.mxu0
      %3157 = vmatprep.mubr.bf16.mxu0 0
      %3158 = vmatmul.mubr.bf16.gmra.mxu0 %v2803
      %v3159 = vpop.f32.mrf.mxu0
      %v3160 = vadd.f32 %v2843, %v3159
      %v3161 = vpop.f32.mrf.mxu0
      %v3162 = vpop.f32.mrf.mxu0
      %v3163 = vadd.f32 %v2843, %v3162
      %v3164 = vpop.f32.mrf.mxu0
      %3165 = vmatprep.mubr.bf16.mxu0 0
      %3166 = vmatmul.mubr.bf16.gmra.mxu0 %v2804
      %v3167 = vpop.f32.mrf.mxu0
      %v3168 = vadd.f32 %v2843, %v3167
      %v3169 = vpop.f32.mrf.mxu0
      %v3170 = vpop.f32.mrf.mxu0
      %v3171 = vadd.f32 %v2843, %v3170
      %v3172 = vpop.f32.mrf.mxu0
      %3173 = vmatprep.mubr.bf16.mxu0 0
      %3174 = vmatmul.mubr.bf16.gmra.mxu0 %v2805
      %v3175 = vpop.f32.mrf.mxu0
      %v3176 = vadd.f32 %v2843, %v3175
      %v3177 = vpop.f32.mrf.mxu0
      %v3178 = vpop.f32.mrf.mxu0
      %v3179 = vadd.f32 %v2843, %v3178
      %v3180 = vpop.f32.mrf.mxu0
      %3181 = vmatprep.mubr.bf16.mxu0 0
      %3182 = vmatmul.mubr.bf16.gmra.mxu0 %v2806
      %v3183 = vpop.f32.mrf.mxu0
      %v3184 = vadd.f32 %v2843, %v3183
      %v3185 = vpop.f32.mrf.mxu0
      %v3186 = vpop.f32.mrf.mxu0
      %v3187 = vadd.f32 %v2843, %v3186
      %v3188 = vpop.f32.mrf.mxu0
      %3189 = vmatprep.mubr.bf16.mxu0 0
      %3190 = vmatmul.mubr.bf16.gmra.mxu0 %v2807
      %v3191 = vpop.f32.mrf.mxu0
      %v3192 = vadd.f32 %v2843, %v3191
      %v3193 = vpop.f32.mrf.mxu0
      %v3194 = vpop.f32.mrf.mxu0
      %v3195 = vadd.f32 %v2843, %v3194
      %v3196 = vpop.f32.mrf.mxu0
      %3197 = vmatprep.mubr.bf16.mxu0 0
      %3198 = vmatmul.mubr.bf16.gmra.mxu0 %v2808
      %v3199 = vpop.f32.mrf.mxu0
      %v3200 = vadd.f32 %v2843, %v3199
      %v3201 = vpop.f32.mrf.mxu0
      %v3202 = vpop.f32.mrf.mxu0
      %v3203 = vadd.f32 %v2843, %v3202
      %v3204 = vpop.f32.mrf.mxu0
      %3205 = vmatprep.mubr.bf16.mxu0 0
      %3206 = vmatmul.mubr.bf16.gmra.mxu0 %v2809
      %v3207 = vpop.f32.mrf.mxu0
      %v3208 = vadd.f32 %v2843, %v3207
      %v3209 = vpop.f32.mrf.mxu0
      %v3210 = vpop.f32.mrf.mxu0
      %v3211 = vadd.f32 %v2843, %v3210
      %v3212 = vpop.f32.mrf.mxu0
      %3213 = vmatprep.mubr.bf16.mxu0 0
      %3214 = vmatmul.mubr.bf16.gmra.mxu0 %v2810
      %v3215 = vpop.f32.mrf.mxu0
      %v3216 = vadd.f32 %v2843, %v3215
      %v3217 = vpop.f32.mrf.mxu0
      %v3218 = vpop.f32.mrf.mxu0
      %v3219 = vadd.f32 %v2843, %v3218
      %v3220 = vpop.f32.mrf.mxu0
      %3221 = vmatprep.mubr.bf16.mxu0 0
      %3222 = vmatmul.mubr.bf16.gmra.mxu0 %v2811
      %v3223 = vpop.f32.mrf.mxu0
      %v3224 = vadd.f32 %v2843, %v3223
      %v3225 = vpop.f32.mrf.mxu0
      %v3226 = vpop.f32.mrf.mxu0
      %v3227 = vadd.f32 %v2843, %v3226
      %v3228 = vpop.f32.mrf.mxu0
      %3229 = vmatprep.mubr.bf16.mxu0 0
      %3230 = vmatmul.mubr.bf16.gmra.mxu0 %v2812
      %v3231 = vpop.f32.mrf.mxu0
      %v3232 = vadd.f32 %v2843, %v3231
      %v3233 = vpop.f32.mrf.mxu0
      %v3234 = vpop.f32.mrf.mxu0
      %v3235 = vadd.f32 %v2843, %v3234
      %v3236 = vpop.f32.mrf.mxu0
      %3237 = vmatprep.mubr.bf16.mxu0 0
      %3238 = vmatmul.mubr.bf16.gmra.mxu0 %v2813
      %v3239 = vpop.f32.mrf.mxu0
      %v3240 = vadd.f32 %v2843, %v3239
      %v3241 = vpop.f32.mrf.mxu0
      %v3242 = vpop.f32.mrf.mxu0
      %v3243 = vadd.f32 %v2843, %v3242
      %v3244 = vpop.f32.mrf.mxu0
      %3245 = vmatprep.mubr.bf16.mxu0 0
      %3246 = vmatmul.mubr.bf16.gmra.mxu0 %v2814
      %v3247 = vpop.f32.mrf.mxu0
      %v3248 = vadd.f32 %v2843, %v3247
      %v3249 = vpop.f32.mrf.mxu0
      %v3250 = vpop.f32.mrf.mxu0
      %v3251 = vadd.f32 %v2843, %v3250
      %v3252 = vpop.f32.mrf.mxu0
      %3253 = vmatprep.mubr.bf16.mxu0 0
      %3254 = vmatmul.mubr.bf16.gmra.mxu0 %v2815
      %v3255 = vpop.f32.mrf.mxu0
      %v3256 = vadd.f32 %v2843, %v3255
      %v3257 = vpop.f32.mrf.mxu0
      %v3258 = vpop.f32.mrf.mxu0
      %v3259 = vadd.f32 %v2843, %v3258
      %v3260 = vpop.f32.mrf.mxu0
      %3261 = vmatprep.mubr.bf16.mxu0 0
      %3262 = vmatmul.mubr.bf16.gmra.mxu0 %v2816
      %v3263 = vpop.f32.mrf.mxu0
      %v3264 = vadd.f32 %v2843, %v3263
      %v3265 = vpop.f32.mrf.mxu0
      %v3266 = vpop.f32.mrf.mxu0
      %v3267 = vadd.f32 %v2843, %v3266
      %v3268 = vpop.f32.mrf.mxu0
      %3269 = vmatprep.mubr.bf16.mxu0 0
      %3270 = vmatmul.mubr.bf16.gmra.mxu0 %v2817
      %v3271 = vpop.f32.mrf.mxu0
      %v3272 = vadd.f32 %v2843, %v3271
      %v3273 = vpop.f32.mrf.mxu0
      %v3274 = vpop.f32.mrf.mxu0
      %v3275 = vadd.f32 %v2843, %v3274
      %v3276 = vpop.f32.mrf.mxu0
      %3277 = vmatprep.mubr.bf16.mxu0 0
      %3278 = vmatmul.mubr.bf16.gmra.mxu0 %v2818
      %v3279 = vpop.f32.mrf.mxu0
      %v3280 = vadd.f32 %v2843, %v3279
      %v3281 = vpop.f32.mrf.mxu0
      %v3282 = vpop.f32.mrf.mxu0
      %v3283 = vadd.f32 %v2843, %v3282
      %v3284 = vpop.f32.mrf.mxu0
      %3285 = vmatprep.mubr.bf16.mxu0 0
      %3286 = vmatmul.mubr.bf16.gmra.mxu0 %v2819
      %v3287 = vpop.f32.mrf.mxu0
      %v3288 = vadd.f32 %v2843, %v3287
      %v3289 = vpop.f32.mrf.mxu0
      %v3290 = vpop.f32.mrf.mxu0
      %v3291 = vadd.f32 %v2843, %v3290
      %v3292 = vpop.f32.mrf.mxu0
      %3293 = vmatprep.mubr.bf16.mxu0 0
      %3294 = vmatmul.mubr.bf16.gmra.mxu0 %v2820
      %v3295 = vpop.f32.mrf.mxu0
      %v3296 = vadd.f32 %v2843, %v3295
      %v3297 = vpop.f32.mrf.mxu0
      %v3298 = vpop.f32.mrf.mxu0
      %v3299 = vadd.f32 %v2843, %v3298
      %v3300 = vpop.f32.mrf.mxu0
      %3301 = vmatprep.mubr.bf16.mxu0 0
      %3302 = vmatmul.mubr.bf16.gmra.mxu0 %v2821
      %v3303 = vpop.f32.mrf.mxu0
      %v3304 = vadd.f32 %v2843, %v3303
      %v3305 = vpop.f32.mrf.mxu0
      %v3306 = vpop.f32.mrf.mxu0
      %v3307 = vadd.f32 %v2843, %v3306
      %v3308 = vpop.f32.mrf.mxu0
      %3309 = vmatprep.mubr.bf16.mxu0 0
      %3310 = vmatmul.mubr.bf16.gmra.mxu0 %v2822
      %v3311 = vpop.f32.mrf.mxu0
      %v3312 = vadd.f32 %v2843, %v3311
      %v3313 = vpop.f32.mrf.mxu0
      %v3314 = vpop.f32.mrf.mxu0
      %v3315 = vadd.f32 %v2843, %v3314
      %v3316 = vpop.f32.mrf.mxu0
      %3317 = vmatprep.mubr.bf16.mxu0 0
      %3318 = vmatmul.mubr.bf16.gmra.mxu0 %v2823
      %v3319 = vpop.f32.mrf.mxu0
      %v3320 = vadd.f32 %v2843, %v3319
      %v3321 = vpop.f32.mrf.mxu0
      %v3322 = vpop.f32.mrf.mxu0
      %v3323 = vadd.f32 %v2843, %v3322
      %v3324 = vpop.f32.mrf.mxu0
      %3325 = vmatprep.mubr.bf16.mxu0 0
      %3326 = vmatmul.mubr.bf16.gmra.mxu0 %v2824
      %v3327 = vpop.f32.mrf.mxu0
      %v3328 = vadd.f32 %v2843, %v3327
      %v3329 = vpop.f32.mrf.mxu0
      %v3330 = vpop.f32.mrf.mxu0
      %v3331 = vadd.f32 %v2843, %v3330
      %v3332 = vpop.f32.mrf.mxu0
      %3333 = vmatprep.mubr.bf16.mxu0 0
      %3334 = vmatmul.mubr.bf16.gmra.mxu0 %v2825
      %v3335 = vpop.f32.mrf.mxu0
      %v3336 = vadd.f32 %v2843, %v3335
      %v3337 = vpop.f32.mrf.mxu0
      %v3338 = vpop.f32.mrf.mxu0
      %v3339 = vadd.f32 %v2843, %v3338
      %v3340 = vpop.f32.mrf.mxu0
      %3341 = vmatprep.mubr.bf16.mxu0 0
      %3342 = vmatmul.mubr.bf16.gmra.mxu0 %v2826
      %v3343 = vpop.f32.mrf.mxu0
      %v3344 = vadd.f32 %v2843, %v3343
      %v3345 = vpop.f32.mrf.mxu0
      %v3346 = vpop.f32.mrf.mxu0
      %v3347 = vadd.f32 %v2843, %v3346
      %v3348 = vpop.f32.mrf.mxu0
      %3349 = vmatprep.mubr.bf16.mxu0 0
      %3350 = vmatmul.mubr.bf16.gmra.mxu0 %v2827
      %v3351 = vpop.f32.mrf.mxu0
      %v3352 = vadd.f32 %v2843, %v3351
      %v3353 = vpop.f32.mrf.mxu0
      %v3354 = vpop.f32.mrf.mxu0
      %v3355 = vadd.f32 %v2843, %v3354
      %v3356 = vpop.f32.mrf.mxu0
      %3357 = vmatprep.mubr.bf16.mxu0 0
      %3358 = vmatmul.mubr.bf16.gmra.mxu0 %v2828
      %v3359 = vpop.f32.mrf.mxu0
      %v3360 = vadd.f32 %v2843, %v3359
      %v3361 = vpop.f32.mrf.mxu0
      %v3362 = vpop.f32.mrf.mxu0
      %v3363 = vadd.f32 %v2843, %v3362
      %v3364 = vpop.f32.mrf.mxu0
      %3365 = vmatprep.mubr.bf16.mxu0 0
      %3366 = vmatmul.mubr.bf16.gmra.mxu0 %v2829
      %v3367 = vpop.f32.mrf.mxu0
      %v3368 = vadd.f32 %v2843, %v3367
      %v3369 = vpop.f32.mrf.mxu0
      %v3370 = vpop.f32.mrf.mxu0
      %v3371 = vadd.f32 %v2843, %v3370
      %v3372 = vpop.f32.mrf.mxu0
      %3373 = vmatprep.mubr.bf16.mxu0 0
      %3374 = vmatmul.mubr.bf16.gmra.mxu0 %v2830
      %v3375 = vpop.f32.mrf.mxu0
      %v3376 = vadd.f32 %v2843, %v3375
      %v3377 = vpop.f32.mrf.mxu0
      %v3378 = vpop.f32.mrf.mxu0
      %v3379 = vadd.f32 %v2843, %v3378
      %v3380 = vpop.f32.mrf.mxu0
      %3381 = vmatprep.mubr.bf16.mxu0 0
      %3382 = vmatmul.mubr.bf16.gmra.mxu0 %v2831
      %v3383 = vpop.f32.mrf.mxu0
      %v3384 = vadd.f32 %v2843, %v3383
      %v3385 = vpop.f32.mrf.mxu0
      %v3386 = vpop.f32.mrf.mxu0
      %v3387 = vadd.f32 %v2843, %v3386
      %v3388 = vpop.f32.mrf.mxu0
      %3389 = vmatprep.mubr.bf16.mxu0 0
      %3390 = vmatmul.mubr.bf16.gmra.mxu0 %v2832
      %v3391 = vpop.f32.mrf.mxu0
      %v3392 = vadd.f32 %v2843, %v3391
      %v3393 = vpop.f32.mrf.mxu0
      %v3394 = vpop.f32.mrf.mxu0
      %v3395 = vadd.f32 %v2843, %v3394
      %v3396 = vpop.f32.mrf.mxu0
      %3397 = vmatprep.mubr.bf16.mxu0 0
      %3398 = vmatmul.mubr.bf16.gmra.mxu0 %v2833
      %v3399 = vpop.f32.mrf.mxu0
      %v3400 = vadd.f32 %v2843, %v3399
      %v3401 = vpop.f32.mrf.mxu0
      %v3402 = vpop.f32.mrf.mxu0
      %v3403 = vadd.f32 %v2843, %v3402
      %v3404 = vpop.f32.mrf.mxu0
      %3405 = vmatprep.mubr.bf16.mxu0 0
      %3406 = vmatmul.mubr.bf16.gmra.mxu0 %v2834
      %v3407 = vpop.f32.mrf.mxu0
      %v3408 = vadd.f32 %v2843, %v3407
      %v3409 = vpop.f32.mrf.mxu0
      %v3410 = vpop.f32.mrf.mxu0
      %v3411 = vadd.f32 %v2843, %v3410
      %v3412 = vpop.f32.mrf.mxu0
      %3413 = vmatprep.mubr.bf16.mxu0 0
      %3414 = vmatmul.mubr.bf16.gmra.mxu0 %v2835
      %v3415 = vpop.f32.mrf.mxu0
      %v3416 = vadd.f32 %v2843, %v3415
      %v3417 = vpop.f32.mrf.mxu0
      %v3418 = vpop.f32.mrf.mxu0
      %v3419 = vadd.f32 %v2843, %v3418
      %v3420 = vpop.f32.mrf.mxu0
      %3421 = vmatprep.mubr.bf16.mxu0 0
      %3422 = vmatmul.mubr.bf16.gmra.mxu0 %v2836
      %v3423 = vpop.f32.mrf.mxu0
      %v3424 = vadd.f32 %v2843, %v3423
      %v3425 = vpop.f32.mrf.mxu0
      %v3426 = vpop.f32.mrf.mxu0
      %v3427 = vadd.f32 %v2843, %v3426
      %v3428 = vpop.f32.mrf.mxu0
      %3429 = vmatprep.mubr.bf16.mxu0 0
      %3430 = vmatmul.mubr.bf16.gmra.mxu0 %v2837
      %v3431 = vpop.f32.mrf.mxu0
      %v3432 = vadd.f32 %v2843, %v3431
      %v3433 = vpop.f32.mrf.mxu0
      %v3434 = vpop.f32.mrf.mxu0
      %v3435 = vadd.f32 %v2843, %v3434
      %v3436 = vpop.f32.mrf.mxu0
      %3437 = vdwg.mxu0
      %v3438 = vmax.f32 %v2928, 0.0
      %v3439 = vmax.f32 %v2931, 0.0
      %v3440 = vmax.f32 %v2936, 0.0
      %v3441 = vmax.f32 %v2939, 0.0
      %v3442 = vmax.f32 %v2944, 0.0
      %v3443 = vmax.f32 %v2947, 0.0
      %v3444 = vmax.f32 %v2952, 0.0
      %v3445 = vmax.f32 %v2955, 0.0
      %v3446 = vmax.f32 %v2960, 0.0
      %v3447 = vmax.f32 %v2963, 0.0
      %v3448 = vmax.f32 %v2968, 0.0
      %v3449 = vmax.f32 %v2971, 0.0
      %v3450 = vmax.f32 %v2976, 0.0
      %v3451 = vmax.f32 %v2979, 0.0
      %v3452 = vmax.f32 %v2984, 0.0
      %v3453 = vmax.f32 %v2987, 0.0
      %v3454 = vmax.f32 %v2992, 0.0
      %v3455 = vmax.f32 %v2995, 0.0
      %v3456 = vmax.f32 %v3000, 0.0
      %v3457 = vmax.f32 %v3003, 0.0
      %v3458 = vmax.f32 %v3008, 0.0
      %v3459 = vmax.f32 %v3011, 0.0
      %v3460 = vmax.f32 %v3016, 0.0
      %v3461 = vmax.f32 %v3019, 0.0
      %v3462 = vmax.f32 %v3024, 0.0
      %v3463 = vmax.f32 %v3027, 0.0
      %v3464 = vmax.f32 %v3032, 0.0
      %v3465 = vmax.f32 %v3035, 0.0
      %v3466 = vmax.f32 %v3040, 0.0
      %v3467 = vmax.f32 %v3043, 0.0
      %v3468 = vmax.f32 %v3048, 0.0
      %v3469 = vmax.f32 %v3051, 0.0
      %v3470 = vmax.f32 %v3056, 0.0
      %v3471 = vmax.f32 %v3059, 0.0
      %v3472 = vmax.f32 %v3064, 0.0
      %v3473 = vmax.f32 %v3067, 0.0
      %v3474 = vmax.f32 %v3072, 0.0
      %v3475 = vmax.f32 %v3075, 0.0
      %v3476 = vmax.f32 %v3080, 0.0
      %v3477 = vmax.f32 %v3083, 0.0
      %v3478 = vmax.f32 %v3088, 0.0
      %v3479 = vmax.f32 %v3091, 0.0
      %v3480 = vmax.f32 %v3096, 0.0
      %v3481 = vmax.f32 %v3099, 0.0
      %v3482 = vmax.f32 %v3104, 0.0
      %v3483 = vmax.f32 %v3107, 0.0
      %v3484 = vmax.f32 %v3112, 0.0
      %v3485 = vmax.f32 %v3115, 0.0
      %v3486 = vmax.f32 %v3120, 0.0
      %v3487 = vmax.f32 %v3123, 0.0
      %v3488 = vmax.f32 %v3128, 0.0
      %v3489 = vmax.f32 %v3131, 0.0
      %v3490 = vmax.f32 %v3136, 0.0
      %v3491 = vmax.f32 %v3139, 0.0
      %v3492 = vmax.f32 %v3144, 0.0
      %v3493 = vmax.f32 %v3147, 0.0
      %v3494 = vmax.f32 %v3152, 0.0
      %v3495 = vmax.f32 %v3155, 0.0
      %v3496 = vmax.f32 %v3160, 0.0
      %v3497 = vmax.f32 %v3163, 0.0
      %v3498 = vmax.f32 %v3168, 0.0
      %v3499 = vmax.f32 %v3171, 0.0
      %v3500 = vmax.f32 %v3176, 0.0
      %v3501 = vmax.f32 %v3179, 0.0
      %v3502 = vmax.f32 %v3184, 0.0
      %v3503 = vmax.f32 %v3187, 0.0
      %v3504 = vmax.f32 %v3192, 0.0
      %v3505 = vmax.f32 %v3195, 0.0
      %v3506 = vmax.f32 %v3200, 0.0
      %v3507 = vmax.f32 %v3203, 0.0
      %v3508 = vmax.f32 %v3208, 0.0
      %v3509 = vmax.f32 %v3211, 0.0
      %v3510 = vmax.f32 %v3216, 0.0
      %v3511 = vmax.f32 %v3219, 0.0
      %v3512 = vmax.f32 %v3224, 0.0
      %v3513 = vmax.f32 %v3227, 0.0
      %v3514 = vmax.f32 %v3232, 0.0
      %v3515 = vmax.f32 %v3235, 0.0
      %v3516 = vmax.f32 %v3240, 0.0
      %v3517 = vmax.f32 %v3243, 0.0
      %v3518 = vmax.f32 %v3248, 0.0
      %v3519 = vmax.f32 %v3251, 0.0
      %v3520 = vmax.f32 %v3256, 0.0
      %v3521 = vmax.f32 %v3259, 0.0
      %v3522 = vmax.f32 %v3264, 0.0
      %v3523 = vmax.f32 %v3267, 0.0
      %v3524 = vmax.f32 %v3272, 0.0
      %v3525 = vmax.f32 %v3275, 0.0
      %v3526 = vmax.f32 %v3280, 0.0
      %v3527 = vmax.f32 %v3283, 0.0
      %v3528 = vmax.f32 %v3288, 0.0
      %v3529 = vmax.f32 %v3291, 0.0
      %v3530 = vmax.f32 %v3296, 0.0
      %v3531 = vmax.f32 %v3299, 0.0
      %v3532 = vmax.f32 %v3304, 0.0
      %v3533 = vmax.f32 %v3307, 0.0
      %v3534 = vmax.f32 %v3312, 0.0
      %v3535 = vmax.f32 %v3315, 0.0
      %v3536 = vmax.f32 %v3320, 0.0
      %v3537 = vmax.f32 %v3323, 0.0
      %v3538 = vmax.f32 %v3328, 0.0
      %v3539 = vmax.f32 %v3331, 0.0
      %v3540 = vmax.f32 %v3336, 0.0
      %v3541 = vmax.f32 %v3339, 0.0
      %v3542 = vmax.f32 %v3344, 0.0
      %v3543 = vmax.f32 %v3347, 0.0
      %v3544 = vmax.f32 %v3352, 0.0
      %v3545 = vmax.f32 %v3355, 0.0
      %v3546 = vmax.f32 %v3360, 0.0
      %v3547 = vmax.f32 %v3363, 0.0
      %v3548 = vmax.f32 %v3368, 0.0
      %v3549 = vmax.f32 %v3371, 0.0
      %v3550 = vmax.f32 %v3376, 0.0
      %v3551 = vmax.f32 %v3379, 0.0
      %v3552 = vmax.f32 %v3384, 0.0
      %v3553 = vmax.f32 %v3387, 0.0
      %v3554 = vmax.f32 %v3392, 0.0
      %v3555 = vmax.f32 %v3395, 0.0
      %v3556 = vmax.f32 %v3400, 0.0
      %v3557 = vmax.f32 %v3403, 0.0
      %v3558 = vmax.f32 %v3408, 0.0
      %v3559 = vmax.f32 %v3411, 0.0
      %v3560 = vmax.f32 %v3416, 0.0
      %v3561 = vmax.f32 %v3419, 0.0
      %v3562 = vmax.f32 %v3424, 0.0
      %v3563 = vmax.f32 %v3427, 0.0
      %v3564 = vmax.f32 %v3432, 0.0
      %v3565 = vmax.f32 %v3435, 0.0
      %v3566 = vld [vmem:[%s8] sm:$0xf]
      %v3567 = vld [vmem:[%s8 + $0x4] sm:$0xf]
      %v3568 = vld [vmem:[%s8 + $0x8] sm:$0xf]
      %v3569 = vld [vmem:[%s8 + $0xc] sm:$0xf]
      %v3570 = vld [vmem:[%s8 + $0x10] sm:$0xf]
      %v3571 = vld [vmem:[%s8 + $0x14] sm:$0xf]
      %v3572 = vld [vmem:[%s8 + $0x18] sm:$0xf]
      %v3573 = vld [vmem:[%s8 + $0x1c] sm:$0xf]
      %v3574 = vld [vmem:[%s8 + $0x20] sm:$0xf]
      %v3575 = vld [vmem:[%s8 + $0x24] sm:$0xf]
      %v3576 = vld [vmem:[%s8 + $0x28] sm:$0xf]
      %v3577 = vld [vmem:[%s8 + $0x2c] sm:$0xf]
      %v3578 = vld [vmem:[%s8 + $0x30] sm:$0xf]
      %v3579 = vld [vmem:[%s8 + $0x34] sm:$0xf]
      %v3580 = vld [vmem:[%s8 + $0x38] sm:$0xf]
      %v3581 = vld [vmem:[%s8 + $0x3c] sm:$0xf]
      %v3582 = vpack.c.bf16 %v3439, %v3438
      %v3583 = vpack.c.bf16 %v3441, %v3440
      %v3584 = vpack.c.bf16 %v3443, %v3442
      %v3585 = vpack.c.bf16 %v3445, %v3444
      %v3586 = vpack.c.bf16 %v3447, %v3446
      %v3587 = vpack.c.bf16 %v3449, %v3448
      %v3588 = vpack.c.bf16 %v3451, %v3450
      %v3589 = vpack.c.bf16 %v3453, %v3452
      %v3590 = vpack.c.bf16 %v3455, %v3454
      %v3591 = vpack.c.bf16 %v3457, %v3456
      %v3592 = vpack.c.bf16 %v3459, %v3458
      %v3593 = vpack.c.bf16 %v3461, %v3460
      %v3594 = vpack.c.bf16 %v3463, %v3462
      %v3595 = vpack.c.bf16 %v3465, %v3464
      %v3596 = vpack.c.bf16 %v3467, %v3466
      %v3597 = vpack.c.bf16 %v3469, %v3468
      %v3598 = vpack.c.bf16 %v3471, %v3470
      %v3599 = vpack.c.bf16 %v3473, %v3472
      %v3600 = vpack.c.bf16 %v3475, %v3474
      %v3601 = vpack.c.bf16 %v3477, %v3476
      %v3602 = vpack.c.bf16 %v3479, %v3478
      %v3603 = vpack.c.bf16 %v3481, %v3480
      %v3604 = vpack.c.bf16 %v3483, %v3482
      %v3605 = vpack.c.bf16 %v3485, %v3484
      %v3606 = vpack.c.bf16 %v3487, %v3486
      %v3607 = vpack.c.bf16 %v3489, %v3488
      %v3608 = vpack.c.bf16 %v3491, %v3490
      %v3609 = vpack.c.bf16 %v3493, %v3492
      %v3610 = vpack.c.bf16 %v3495, %v3494
      %v3611 = vpack.c.bf16 %v3497, %v3496
      %v3612 = vpack.c.bf16 %v3499, %v3498
      %v3613 = vpack.c.bf16 %v3501, %v3500
      %v3614 = vpack.c.bf16 %v3503, %v3502
      %v3615 = vpack.c.bf16 %v3505, %v3504
      %v3616 = vpack.c.bf16 %v3507, %v3506
      %v3617 = vpack.c.bf16 %v3509, %v3508
      %v3618 = vpack.c.bf16 %v3511, %v3510
      %v3619 = vpack.c.bf16 %v3513, %v3512
      %v3620 = vpack.c.bf16 %v3515, %v3514
      %v3621 = vpack.c.bf16 %v3517, %v3516
      %v3622 = vpack.c.bf16 %v3519, %v3518
      %v3623 = vpack.c.bf16 %v3521, %v3520
      %v3624 = vpack.c.bf16 %v3523, %v3522
      %v3625 = vpack.c.bf16 %v3525, %v3524
      %v3626 = vpack.c.bf16 %v3527, %v3526
      %v3627 = vpack.c.bf16 %v3529, %v3528
      %v3628 = vpack.c.bf16 %v3531, %v3530
      %v3629 = vpack.c.bf16 %v3533, %v3532
      %v3630 = vpack.c.bf16 %v3535, %v3534
      %v3631 = vpack.c.bf16 %v3537, %v3536
      %v3632 = vpack.c.bf16 %v3539, %v3538
      %v3633 = vpack.c.bf16 %v3541, %v3540
      %v3634 = vpack.c.bf16 %v3543, %v3542
      %v3635 = vpack.c.bf16 %v3545, %v3544
      %v3636 = vpack.c.bf16 %v3547, %v3546
      %v3637 = vpack.c.bf16 %v3549, %v3548
      %v3638 = vpack.c.bf16 %v3551, %v3550
      %v3639 = vpack.c.bf16 %v3553, %v3552
      %v3640 = vpack.c.bf16 %v3555, %v3554
      %v3641 = vpack.c.bf16 %v3557, %v3556
      %v3642 = vpack.c.bf16 %v3559, %v3558
      %v3643 = vpack.c.bf16 %v3561, %v3560
      %v3644 = vpack.c.bf16 %v3563, %v3562
      %v3645 = vpack.c.bf16 %v3565, %v3564
      %v3646 = vld [vmem:[%s9] sm:$0x1]
      %v3648 = vlaneseq
      %v3649 = vshrl.u32 %v3648, 7
      %v3650 = vsub.s32 0, %v3649
      %v3651 = vrot.slane %v3646, %v3650
      %v3669 = vunpack.c.l.b16 %v3566
      %v3670 = vunpack.c.l.b16 %v3567
      %v3671 = vunpack.c.l.b16 %v3568
      %v3672 = vunpack.c.l.b16 %v3569
      %v3673 = vunpack.c.l.b16 %v3570
      %v3674 = vunpack.c.l.b16 %v3571
      %v3675 = vunpack.c.l.b16 %v3572
      %v3676 = vunpack.c.l.b16 %v3573
      %v3677 = vunpack.c.l.b16 %v3574
      %v3678 = vunpack.c.l.b16 %v3575
      %v3679 = vunpack.c.l.b16 %v3576
      %v3680 = vunpack.c.l.b16 %v3577
      %v3681 = vunpack.c.l.b16 %v3578
      %v3682 = vunpack.c.l.b16 %v3579
      %v3683 = vunpack.c.l.b16 %v3580
      %v3684 = vunpack.c.l.b16 %v3581
      %v3685 = vpack.c.b16 %v3670, %v3669
      %v3686 = vpack.c.b16 %v3672, %v3671
      %v3687 = vpack.c.b16 %v3674, %v3673
      %v3688 = vpack.c.b16 %v3676, %v3675
      %v3689 = vpack.c.b16 %v3678, %v3677
      %v3690 = vpack.c.b16 %v3680, %v3679
      %v3691 = vpack.c.b16 %v3682, %v3681
      %v3692 = vpack.c.b16 %v3684, %v3683
      %3701 = vmatprep.subr.bf16.mxu0 0
      %3702 = vmatpush1.bf16.msra.mxu0 %v3692
      %3703 = vmatprep.subr.bf16.mxu0 0
      %3704 = vmatpush1.bf16.msra.mxu0 %v3691
      %3705 = vmatprep.subr.bf16.mxu0 0
      %3706 = vmatpush1.bf16.msra.mxu0 %v3690
      %3707 = vmatprep.subr.bf16.mxu0 0
      %3708 = vmatpush1.bf16.msra.mxu0 %v3689
      %3709 = vmatprep.subr.bf16.mxu0 0
      %3710 = vmatpush1.bf16.msra.mxu0 %v3688
      %3711 = vmatprep.subr.bf16.mxu0 0
      %3712 = vmatpush1.bf16.msra.mxu0 %v3687
      %3713 = vmatprep.subr.bf16.mxu0 0
      %3714 = vmatpush1.bf16.msra.mxu0 %v3686
      %3715 = vmatprep.subr.bf16.mxu0 0
      %3716 = vmatpush1.bf16.msra.mxu0 %v3685
      %3717 = vmatprep.subr.bf16.mxu0 0
      %3718 = vmatpush2.bf16.msra.mxu0 0
      %3719 = vmatprep.subr.bf16.mxu0 0
      %3720 = vmatpush2.bf16.msra.mxu0 0
      %3721 = vmatprep.subr.bf16.mxu0 0
      %3722 = vmatpush2.bf16.msra.mxu0 0
      %3723 = vmatprep.subr.bf16.mxu0 0
      %3724 = vmatpush2.bf16.msra.mxu0 0
      %3725 = vmatprep.subr.bf16.mxu0 0
      %3726 = vmatpush2.bf16.msra.mxu0 0
      %3727 = vmatprep.subr.bf16.mxu0 0
      %3728 = vmatpush2.bf16.msra.mxu0 0
      %3729 = vmatprep.subr.bf16.mxu0 0
      %3730 = vmatpush2.bf16.msra.mxu0 0
      %3731 = vmatprep.subr.bf16.mxu0 0
      %3732 = vmatpush2.bf16.msra.mxu0 0
      %3733 = vmatprep.mubr.bf16.mxu0 0
      %3734 = vmatmul.mubr.bf16.gmra.mxu0 %v3582
      %v3735 = vpop.f32.mrf.mxu0
      %v3736 = vadd.f32 %v3651, %v3735
      %v3737 = vpop.f32.mrf.mxu0
      %v3738 = vpop.f32.mrf.mxu0
      %v3739 = vadd.f32 %v3651, %v3738
      %v3740 = vpop.f32.mrf.mxu0
      %3741 = vmatprep.mubr.bf16.mxu0 0
      %3742 = vmatmul.mubr.bf16.gmra.mxu0 %v3583
      %v3743 = vpop.f32.mrf.mxu0
      %v3744 = vadd.f32 %v3651, %v3743
      %v3745 = vpop.f32.mrf.mxu0
      %v3746 = vpop.f32.mrf.mxu0
      %v3747 = vadd.f32 %v3651, %v3746
      %v3748 = vpop.f32.mrf.mxu0
      %3749 = vmatprep.mubr.bf16.mxu0 0
      %3750 = vmatmul.mubr.bf16.gmra.mxu0 %v3584
      %v3751 = vpop.f32.mrf.mxu0
      %v3752 = vadd.f32 %v3651, %v3751
      %v3753 = vpop.f32.mrf.mxu0
      %v3754 = vpop.f32.mrf.mxu0
      %v3755 = vadd.f32 %v3651, %v3754
      %v3756 = vpop.f32.mrf.mxu0
      %3757 = vmatprep.mubr.bf16.mxu0 0
      %3758 = vmatmul.mubr.bf16.gmra.mxu0 %v3585
      %v3759 = vpop.f32.mrf.mxu0
      %v3760 = vadd.f32 %v3651, %v3759
      %v3761 = vpop.f32.mrf.mxu0
      %v3762 = vpop.f32.mrf.mxu0
      %v3763 = vadd.f32 %v3651, %v3762
      %v3764 = vpop.f32.mrf.mxu0
      %3765 = vmatprep.mubr.bf16.mxu0 0
      %3766 = vmatmul.mubr.bf16.gmra.mxu0 %v3586
      %v3767 = vpop.f32.mrf.mxu0
      %v3768 = vadd.f32 %v3651, %v3767
      %v3769 = vpop.f32.mrf.mxu0
      %v3770 = vpop.f32.mrf.mxu0
      %v3771 = vadd.f32 %v3651, %v3770
      %v3772 = vpop.f32.mrf.mxu0
      %3773 = vmatprep.mubr.bf16.mxu0 0
      %3774 = vmatmul.mubr.bf16.gmra.mxu0 %v3587
      %v3775 = vpop.f32.mrf.mxu0
      %v3776 = vadd.f32 %v3651, %v3775
      %v3777 = vpop.f32.mrf.mxu0
      %v3778 = vpop.f32.mrf.mxu0
      %v3779 = vadd.f32 %v3651, %v3778
      %v3780 = vpop.f32.mrf.mxu0
      %3781 = vmatprep.mubr.bf16.mxu0 0
      %3782 = vmatmul.mubr.bf16.gmra.mxu0 %v3588
      %v3783 = vpop.f32.mrf.mxu0
      %v3784 = vadd.f32 %v3651, %v3783
      %v3785 = vpop.f32.mrf.mxu0
      %v3786 = vpop.f32.mrf.mxu0
      %v3787 = vadd.f32 %v3651, %v3786
      %v3788 = vpop.f32.mrf.mxu0
      %3789 = vmatprep.mubr.bf16.mxu0 0
      %3790 = vmatmul.mubr.bf16.gmra.mxu0 %v3589
      %v3791 = vpop.f32.mrf.mxu0
      %v3792 = vadd.f32 %v3651, %v3791
      %v3793 = vpop.f32.mrf.mxu0
      %v3794 = vpop.f32.mrf.mxu0
      %v3795 = vadd.f32 %v3651, %v3794
      %v3796 = vpop.f32.mrf.mxu0
      %3797 = vmatprep.mubr.bf16.mxu0 0
      %3798 = vmatmul.mubr.bf16.gmra.mxu0 %v3590
      %v3799 = vpop.f32.mrf.mxu0
      %v3800 = vadd.f32 %v3651, %v3799
      %v3801 = vpop.f32.mrf.mxu0
      %v3802 = vpop.f32.mrf.mxu0
      %v3803 = vadd.f32 %v3651, %v3802
      %v3804 = vpop.f32.mrf.mxu0
      %3805 = vmatprep.mubr.bf16.mxu0 0
      %3806 = vmatmul.mubr.bf16.gmra.mxu0 %v3591
      %v3807 = vpop.f32.mrf.mxu0
      %v3808 = vadd.f32 %v3651, %v3807
      %v3809 = vpop.f32.mrf.mxu0
      %v3810 = vpop.f32.mrf.mxu0
      %v3811 = vadd.f32 %v3651, %v3810
      %v3812 = vpop.f32.mrf.mxu0
      %3813 = vmatprep.mubr.bf16.mxu0 0
      %3814 = vmatmul.mubr.bf16.gmra.mxu0 %v3592
      %v3815 = vpop.f32.mrf.mxu0
      %v3816 = vadd.f32 %v3651, %v3815
      %v3817 = vpop.f32.mrf.mxu0
      %v3818 = vpop.f32.mrf.mxu0
      %v3819 = vadd.f32 %v3651, %v3818
      %v3820 = vpop.f32.mrf.mxu0
      %3821 = vmatprep.mubr.bf16.mxu0 0
      %3822 = vmatmul.mubr.bf16.gmra.mxu0 %v3593
      %v3823 = vpop.f32.mrf.mxu0
      %v3824 = vadd.f32 %v3651, %v3823
      %v3825 = vpop.f32.mrf.mxu0
      %v3826 = vpop.f32.mrf.mxu0
      %v3827 = vadd.f32 %v3651, %v3826
      %v3828 = vpop.f32.mrf.mxu0
      %3829 = vmatprep.mubr.bf16.mxu0 0
      %3830 = vmatmul.mubr.bf16.gmra.mxu0 %v3594
      %v3831 = vpop.f32.mrf.mxu0
      %v3832 = vadd.f32 %v3651, %v3831
      %v3833 = vpop.f32.mrf.mxu0
      %v3834 = vpop.f32.mrf.mxu0
      %v3835 = vadd.f32 %v3651, %v3834
      %v3836 = vpop.f32.mrf.mxu0
      %3837 = vmatprep.mubr.bf16.mxu0 0
      %3838 = vmatmul.mubr.bf16.gmra.mxu0 %v3595
      %v3839 = vpop.f32.mrf.mxu0
      %v3840 = vadd.f32 %v3651, %v3839
      %v3841 = vpop.f32.mrf.mxu0
      %v3842 = vpop.f32.mrf.mxu0
      %v3843 = vadd.f32 %v3651, %v3842
      %v3844 = vpop.f32.mrf.mxu0
      %3845 = vmatprep.mubr.bf16.mxu0 0
      %3846 = vmatmul.mubr.bf16.gmra.mxu0 %v3596
      %v3847 = vpop.f32.mrf.mxu0
      %v3848 = vadd.f32 %v3651, %v3847
      %v3849 = vpop.f32.mrf.mxu0
      %v3850 = vpop.f32.mrf.mxu0
      %v3851 = vadd.f32 %v3651, %v3850
      %v3852 = vpop.f32.mrf.mxu0
      %3853 = vmatprep.mubr.bf16.mxu0 0
      %3854 = vmatmul.mubr.bf16.gmra.mxu0 %v3597
      %v3855 = vpop.f32.mrf.mxu0
      %v3856 = vadd.f32 %v3651, %v3855
      %v3857 = vpop.f32.mrf.mxu0
      %v3858 = vpop.f32.mrf.mxu0
      %v3859 = vadd.f32 %v3651, %v3858
      %v3860 = vpop.f32.mrf.mxu0
      %3861 = vmatprep.mubr.bf16.mxu0 0
      %3862 = vmatmul.mubr.bf16.gmra.mxu0 %v3598
      %v3863 = vpop.f32.mrf.mxu0
      %v3864 = vadd.f32 %v3651, %v3863
      %v3865 = vpop.f32.mrf.mxu0
      %v3866 = vpop.f32.mrf.mxu0
      %v3867 = vadd.f32 %v3651, %v3866
      %v3868 = vpop.f32.mrf.mxu0
      %3869 = vmatprep.mubr.bf16.mxu0 0
      %3870 = vmatmul.mubr.bf16.gmra.mxu0 %v3599
      %v3871 = vpop.f32.mrf.mxu0
      %v3872 = vadd.f32 %v3651, %v3871
      %v3873 = vpop.f32.mrf.mxu0
      %v3874 = vpop.f32.mrf.mxu0
      %v3875 = vadd.f32 %v3651, %v3874
      %v3876 = vpop.f32.mrf.mxu0
      %3877 = vmatprep.mubr.bf16.mxu0 0
      %3878 = vmatmul.mubr.bf16.gmra.mxu0 %v3600
      %v3879 = vpop.f32.mrf.mxu0
      %v3880 = vadd.f32 %v3651, %v3879
      %v3881 = vpop.f32.mrf.mxu0
      %v3882 = vpop.f32.mrf.mxu0
      %v3883 = vadd.f32 %v3651, %v3882
      %v3884 = vpop.f32.mrf.mxu0
      %3885 = vmatprep.mubr.bf16.mxu0 0
      %3886 = vmatmul.mubr.bf16.gmra.mxu0 %v3601
      %v3887 = vpop.f32.mrf.mxu0
      %v3888 = vadd.f32 %v3651, %v3887
      %v3889 = vpop.f32.mrf.mxu0
      %v3890 = vpop.f32.mrf.mxu0
      %v3891 = vadd.f32 %v3651, %v3890
      %v3892 = vpop.f32.mrf.mxu0
      %3893 = vmatprep.mubr.bf16.mxu0 0
      %3894 = vmatmul.mubr.bf16.gmra.mxu0 %v3602
      %v3895 = vpop.f32.mrf.mxu0
      %v3896 = vadd.f32 %v3651, %v3895
      %v3897 = vpop.f32.mrf.mxu0
      %v3898 = vpop.f32.mrf.mxu0
      %v3899 = vadd.f32 %v3651, %v3898
      %v3900 = vpop.f32.mrf.mxu0
      %3901 = vmatprep.mubr.bf16.mxu0 0
      %3902 = vmatmul.mubr.bf16.gmra.mxu0 %v3603
      %v3903 = vpop.f32.mrf.mxu0
      %v3904 = vadd.f32 %v3651, %v3903
      %v3905 = vpop.f32.mrf.mxu0
      %v3906 = vpop.f32.mrf.mxu0
      %v3907 = vadd.f32 %v3651, %v3906
      %v3908 = vpop.f32.mrf.mxu0
      %3909 = vmatprep.mubr.bf16.mxu0 0
      %3910 = vmatmul.mubr.bf16.gmra.mxu0 %v3604
      %v3911 = vpop.f32.mrf.mxu0
      %v3912 = vadd.f32 %v3651, %v3911
      %v3913 = vpop.f32.mrf.mxu0
      %v3914 = vpop.f32.mrf.mxu0
      %v3915 = vadd.f32 %v3651, %v3914
      %v3916 = vpop.f32.mrf.mxu0
      %3917 = vmatprep.mubr.bf16.mxu0 0
      %3918 = vmatmul.mubr.bf16.gmra.mxu0 %v3605
      %v3919 = vpop.f32.mrf.mxu0
      %v3920 = vadd.f32 %v3651, %v3919
      %v3921 = vpop.f32.mrf.mxu0
      %v3922 = vpop.f32.mrf.mxu0
      %v3923 = vadd.f32 %v3651, %v3922
      %v3924 = vpop.f32.mrf.mxu0
      %3925 = vmatprep.mubr.bf16.mxu0 0
      %3926 = vmatmul.mubr.bf16.gmra.mxu0 %v3606
      %v3927 = vpop.f32.mrf.mxu0
      %v3928 = vadd.f32 %v3651, %v3927
      %v3929 = vpop.f32.mrf.mxu0
      %v3930 = vpop.f32.mrf.mxu0
      %v3931 = vadd.f32 %v3651, %v3930
      %v3932 = vpop.f32.mrf.mxu0
      %3933 = vmatprep.mubr.bf16.mxu0 0
      %3934 = vmatmul.mubr.bf16.gmra.mxu0 %v3607
      %v3935 = vpop.f32.mrf.mxu0
      %v3936 = vadd.f32 %v3651, %v3935
      %v3937 = vpop.f32.mrf.mxu0
      %v3938 = vpop.f32.mrf.mxu0
      %v3939 = vadd.f32 %v3651, %v3938
      %v3940 = vpop.f32.mrf.mxu0
      %3941 = vmatprep.mubr.bf16.mxu0 0
      %3942 = vmatmul.mubr.bf16.gmra.mxu0 %v3608
      %v3943 = vpop.f32.mrf.mxu0
      %v3944 = vadd.f32 %v3651, %v3943
      %v3945 = vpop.f32.mrf.mxu0
      %v3946 = vpop.f32.mrf.mxu0
      %v3947 = vadd.f32 %v3651, %v3946
      %v3948 = vpop.f32.mrf.mxu0
      %3949 = vmatprep.mubr.bf16.mxu0 0
      %3950 = vmatmul.mubr.bf16.gmra.mxu0 %v3609
      %v3951 = vpop.f32.mrf.mxu0
      %v3952 = vadd.f32 %v3651, %v3951
      %v3953 = vpop.f32.mrf.mxu0
      %v3954 = vpop.f32.mrf.mxu0
      %v3955 = vadd.f32 %v3651, %v3954
      %v3956 = vpop.f32.mrf.mxu0
      %3957 = vmatprep.mubr.bf16.mxu0 0
      %3958 = vmatmul.mubr.bf16.gmra.mxu0 %v3610
      %v3959 = vpop.f32.mrf.mxu0
      %v3960 = vadd.f32 %v3651, %v3959
      %v3961 = vpop.f32.mrf.mxu0
      %v3962 = vpop.f32.mrf.mxu0
      %v3963 = vadd.f32 %v3651, %v3962
      %v3964 = vpop.f32.mrf.mxu0
      %3965 = vmatprep.mubr.bf16.mxu0 0
      %3966 = vmatmul.mubr.bf16.gmra.mxu0 %v3611
      %v3967 = vpop.f32.mrf.mxu0
      %v3968 = vadd.f32 %v3651, %v3967
      %v3969 = vpop.f32.mrf.mxu0
      %v3970 = vpop.f32.mrf.mxu0
      %v3971 = vadd.f32 %v3651, %v3970
      %v3972 = vpop.f32.mrf.mxu0
      %3973 = vmatprep.mubr.bf16.mxu0 0
      %3974 = vmatmul.mubr.bf16.gmra.mxu0 %v3612
      %v3975 = vpop.f32.mrf.mxu0
      %v3976 = vadd.f32 %v3651, %v3975
      %v3977 = vpop.f32.mrf.mxu0
      %v3978 = vpop.f32.mrf.mxu0
      %v3979 = vadd.f32 %v3651, %v3978
      %v3980 = vpop.f32.mrf.mxu0
      %3981 = vmatprep.mubr.bf16.mxu0 0
      %3982 = vmatmul.mubr.bf16.gmra.mxu0 %v3613
      %v3983 = vpop.f32.mrf.mxu0
      %v3984 = vadd.f32 %v3651, %v3983
      %v3985 = vpop.f32.mrf.mxu0
      %v3986 = vpop.f32.mrf.mxu0
      %v3987 = vadd.f32 %v3651, %v3986
      %v3988 = vpop.f32.mrf.mxu0
      %3989 = vmatprep.mubr.bf16.mxu0 0
      %3990 = vmatmul.mubr.bf16.gmra.mxu0 %v3614
      %v3991 = vpop.f32.mrf.mxu0
      %v3992 = vadd.f32 %v3651, %v3991
      %v3993 = vpop.f32.mrf.mxu0
      %v3994 = vpop.f32.mrf.mxu0
      %v3995 = vadd.f32 %v3651, %v3994
      %v3996 = vpop.f32.mrf.mxu0
      %3997 = vmatprep.mubr.bf16.mxu0 0
      %3998 = vmatmul.mubr.bf16.gmra.mxu0 %v3615
      %v3999 = vpop.f32.mrf.mxu0
      %v4000 = vadd.f32 %v3651, %v3999
      %v4001 = vpop.f32.mrf.mxu0
      %v4002 = vpop.f32.mrf.mxu0
      %v4003 = vadd.f32 %v3651, %v4002
      %v4004 = vpop.f32.mrf.mxu0
      %4005 = vmatprep.mubr.bf16.mxu0 0
      %4006 = vmatmul.mubr.bf16.gmra.mxu0 %v3616
      %v4007 = vpop.f32.mrf.mxu0
      %v4008 = vadd.f32 %v3651, %v4007
      %v4009 = vpop.f32.mrf.mxu0
      %v4010 = vpop.f32.mrf.mxu0
      %v4011 = vadd.f32 %v3651, %v4010
      %v4012 = vpop.f32.mrf.mxu0
      %4013 = vmatprep.mubr.bf16.mxu0 0
      %4014 = vmatmul.mubr.bf16.gmra.mxu0 %v3617
      %v4015 = vpop.f32.mrf.mxu0
      %v4016 = vadd.f32 %v3651, %v4015
      %v4017 = vpop.f32.mrf.mxu0
      %v4018 = vpop.f32.mrf.mxu0
      %v4019 = vadd.f32 %v3651, %v4018
      %v4020 = vpop.f32.mrf.mxu0
      %4021 = vmatprep.mubr.bf16.mxu0 0
      %4022 = vmatmul.mubr.bf16.gmra.mxu0 %v3618
      %v4023 = vpop.f32.mrf.mxu0
      %v4024 = vadd.f32 %v3651, %v4023
      %v4025 = vpop.f32.mrf.mxu0
      %v4026 = vpop.f32.mrf.mxu0
      %v4027 = vadd.f32 %v3651, %v4026
      %v4028 = vpop.f32.mrf.mxu0
      %4029 = vmatprep.mubr.bf16.mxu0 0
      %4030 = vmatmul.mubr.bf16.gmra.mxu0 %v3619
      %v4031 = vpop.f32.mrf.mxu0
      %v4032 = vadd.f32 %v3651, %v4031
      %v4033 = vpop.f32.mrf.mxu0
      %v4034 = vpop.f32.mrf.mxu0
      %v4035 = vadd.f32 %v3651, %v4034
      %v4036 = vpop.f32.mrf.mxu0
      %4037 = vmatprep.mubr.bf16.mxu0 0
      %4038 = vmatmul.mubr.bf16.gmra.mxu0 %v3620
      %v4039 = vpop.f32.mrf.mxu0
      %v4040 = vadd.f32 %v3651, %v4039
      %v4041 = vpop.f32.mrf.mxu0
      %v4042 = vpop.f32.mrf.mxu0
      %v4043 = vadd.f32 %v3651, %v4042
      %v4044 = vpop.f32.mrf.mxu0
      %4045 = vmatprep.mubr.bf16.mxu0 0
      %4046 = vmatmul.mubr.bf16.gmra.mxu0 %v3621
      %v4047 = vpop.f32.mrf.mxu0
      %v4048 = vadd.f32 %v3651, %v4047
      %v4049 = vpop.f32.mrf.mxu0
      %v4050 = vpop.f32.mrf.mxu0
      %v4051 = vadd.f32 %v3651, %v4050
      %v4052 = vpop.f32.mrf.mxu0
      %4053 = vmatprep.mubr.bf16.mxu0 0
      %4054 = vmatmul.mubr.bf16.gmra.mxu0 %v3622
      %v4055 = vpop.f32.mrf.mxu0
      %v4056 = vadd.f32 %v3651, %v4055
      %v4057 = vpop.f32.mrf.mxu0
      %v4058 = vpop.f32.mrf.mxu0
      %v4059 = vadd.f32 %v3651, %v4058
      %v4060 = vpop.f32.mrf.mxu0
      %4061 = vmatprep.mubr.bf16.mxu0 0
      %4062 = vmatmul.mubr.bf16.gmra.mxu0 %v3623
      %v4063 = vpop.f32.mrf.mxu0
      %v4064 = vadd.f32 %v3651, %v4063
      %v4065 = vpop.f32.mrf.mxu0
      %v4066 = vpop.f32.mrf.mxu0
      %v4067 = vadd.f32 %v3651, %v4066
      %v4068 = vpop.f32.mrf.mxu0
      %4069 = vmatprep.mubr.bf16.mxu0 0
      %4070 = vmatmul.mubr.bf16.gmra.mxu0 %v3624
      %v4071 = vpop.f32.mrf.mxu0
      %v4072 = vadd.f32 %v3651, %v4071
      %v4073 = vpop.f32.mrf.mxu0
      %v4074 = vpop.f32.mrf.mxu0
      %v4075 = vadd.f32 %v3651, %v4074
      %v4076 = vpop.f32.mrf.mxu0
      %4077 = vmatprep.mubr.bf16.mxu0 0
      %4078 = vmatmul.mubr.bf16.gmra.mxu0 %v3625
      %v4079 = vpop.f32.mrf.mxu0
      %v4080 = vadd.f32 %v3651, %v4079
      %v4081 = vpop.f32.mrf.mxu0
      %v4082 = vpop.f32.mrf.mxu0
      %v4083 = vadd.f32 %v3651, %v4082
      %v4084 = vpop.f32.mrf.mxu0
      %4085 = vmatprep.mubr.bf16.mxu0 0
      %4086 = vmatmul.mubr.bf16.gmra.mxu0 %v3626
      %v4087 = vpop.f32.mrf.mxu0
      %v4088 = vadd.f32 %v3651, %v4087
      %v4089 = vpop.f32.mrf.mxu0
      %v4090 = vpop.f32.mrf.mxu0
      %v4091 = vadd.f32 %v3651, %v4090
      %v4092 = vpop.f32.mrf.mxu0
      %4093 = vmatprep.mubr.bf16.mxu0 0
      %4094 = vmatmul.mubr.bf16.gmra.mxu0 %v3627
      %v4095 = vpop.f32.mrf.mxu0
      %v4096 = vadd.f32 %v3651, %v4095
      %v4097 = vpop.f32.mrf.mxu0
      %v4098 = vpop.f32.mrf.mxu0
      %v4099 = vadd.f32 %v3651, %v4098
      %v4100 = vpop.f32.mrf.mxu0
      %4101 = vmatprep.mubr.bf16.mxu0 0
      %4102 = vmatmul.mubr.bf16.gmra.mxu0 %v3628
      %v4103 = vpop.f32.mrf.mxu0
      %v4104 = vadd.f32 %v3651, %v4103
      %v4105 = vpop.f32.mrf.mxu0
      %v4106 = vpop.f32.mrf.mxu0
      %v4107 = vadd.f32 %v3651, %v4106
      %v4108 = vpop.f32.mrf.mxu0
      %4109 = vmatprep.mubr.bf16.mxu0 0
      %4110 = vmatmul.mubr.bf16.gmra.mxu0 %v3629
      %v4111 = vpop.f32.mrf.mxu0
      %v4112 = vadd.f32 %v3651, %v4111
      %v4113 = vpop.f32.mrf.mxu0
      %v4114 = vpop.f32.mrf.mxu0
      %v4115 = vadd.f32 %v3651, %v4114
      %v4116 = vpop.f32.mrf.mxu0
      %4117 = vmatprep.mubr.bf16.mxu0 0
      %4118 = vmatmul.mubr.bf16.gmra.mxu0 %v3630
      %v4119 = vpop.f32.mrf.mxu0
      %v4120 = vadd.f32 %v3651, %v4119
      %v4121 = vpop.f32.mrf.mxu0
      %v4122 = vpop.f32.mrf.mxu0
      %v4123 = vadd.f32 %v3651, %v4122
      %v4124 = vpop.f32.mrf.mxu0
      %4125 = vmatprep.mubr.bf16.mxu0 0
      %4126 = vmatmul.mubr.bf16.gmra.mxu0 %v3631
      %v4127 = vpop.f32.mrf.mxu0
      %v4128 = vadd.f32 %v3651, %v4127
      %v4129 = vpop.f32.mrf.mxu0
      %v4130 = vpop.f32.mrf.mxu0
      %v4131 = vadd.f32 %v3651, %v4130
      %v4132 = vpop.f32.mrf.mxu0
      %4133 = vmatprep.mubr.bf16.mxu0 0
      %4134 = vmatmul.mubr.bf16.gmra.mxu0 %v3632
      %v4135 = vpop.f32.mrf.mxu0
      %v4136 = vadd.f32 %v3651, %v4135
      %v4137 = vpop.f32.mrf.mxu0
      %v4138 = vpop.f32.mrf.mxu0
      %v4139 = vadd.f32 %v3651, %v4138
      %v4140 = vpop.f32.mrf.mxu0
      %4141 = vmatprep.mubr.bf16.mxu0 0
      %4142 = vmatmul.mubr.bf16.gmra.mxu0 %v3633
      %v4143 = vpop.f32.mrf.mxu0
      %v4144 = vadd.f32 %v3651, %v4143
      %v4145 = vpop.f32.mrf.mxu0
      %v4146 = vpop.f32.mrf.mxu0
      %v4147 = vadd.f32 %v3651, %v4146
      %v4148 = vpop.f32.mrf.mxu0
      %4149 = vmatprep.mubr.bf16.mxu0 0
      %4150 = vmatmul.mubr.bf16.gmra.mxu0 %v3634
      %v4151 = vpop.f32.mrf.mxu0
      %v4152 = vadd.f32 %v3651, %v4151
      %v4153 = vpop.f32.mrf.mxu0
      %v4154 = vpop.f32.mrf.mxu0
      %v4155 = vadd.f32 %v3651, %v4154
      %v4156 = vpop.f32.mrf.mxu0
      %4157 = vmatprep.mubr.bf16.mxu0 0
      %4158 = vmatmul.mubr.bf16.gmra.mxu0 %v3635
      %v4159 = vpop.f32.mrf.mxu0
      %v4160 = vadd.f32 %v3651, %v4159
      %v4161 = vpop.f32.mrf.mxu0
      %v4162 = vpop.f32.mrf.mxu0
      %v4163 = vadd.f32 %v3651, %v4162
      %v4164 = vpop.f32.mrf.mxu0
      %4165 = vmatprep.mubr.bf16.mxu0 0
      %4166 = vmatmul.mubr.bf16.gmra.mxu0 %v3636
      %v4167 = vpop.f32.mrf.mxu0
      %v4168 = vadd.f32 %v3651, %v4167
      %v4169 = vpop.f32.mrf.mxu0
      %v4170 = vpop.f32.mrf.mxu0
      %v4171 = vadd.f32 %v3651, %v4170
      %v4172 = vpop.f32.mrf.mxu0
      %4173 = vmatprep.mubr.bf16.mxu0 0
      %4174 = vmatmul.mubr.bf16.gmra.mxu0 %v3637
      %v4175 = vpop.f32.mrf.mxu0
      %v4176 = vadd.f32 %v3651, %v4175
      %v4177 = vpop.f32.mrf.mxu0
      %v4178 = vpop.f32.mrf.mxu0
      %v4179 = vadd.f32 %v3651, %v4178
      %v4180 = vpop.f32.mrf.mxu0
      %4181 = vmatprep.mubr.bf16.mxu0 0
      %4182 = vmatmul.mubr.bf16.gmra.mxu0 %v3638
      %v4183 = vpop.f32.mrf.mxu0
      %v4184 = vadd.f32 %v3651, %v4183
      %v4185 = vpop.f32.mrf.mxu0
      %v4186 = vpop.f32.mrf.mxu0
      %v4187 = vadd.f32 %v3651, %v4186
      %v4188 = vpop.f32.mrf.mxu0
      %4189 = vmatprep.mubr.bf16.mxu0 0
      %4190 = vmatmul.mubr.bf16.gmra.mxu0 %v3639
      %v4191 = vpop.f32.mrf.mxu0
      %v4192 = vadd.f32 %v3651, %v4191
      %v4193 = vpop.f32.mrf.mxu0
      %v4194 = vpop.f32.mrf.mxu0
      %v4195 = vadd.f32 %v3651, %v4194
      %v4196 = vpop.f32.mrf.mxu0
      %4197 = vmatprep.mubr.bf16.mxu0 0
      %4198 = vmatmul.mubr.bf16.gmra.mxu0 %v3640
      %v4199 = vpop.f32.mrf.mxu0
      %v4200 = vadd.f32 %v3651, %v4199
      %v4201 = vpop.f32.mrf.mxu0
      %v4202 = vpop.f32.mrf.mxu0
      %v4203 = vadd.f32 %v3651, %v4202
      %v4204 = vpop.f32.mrf.mxu0
      %4205 = vmatprep.mubr.bf16.mxu0 0
      %4206 = vmatmul.mubr.bf16.gmra.mxu0 %v3641
      %v4207 = vpop.f32.mrf.mxu0
      %v4208 = vadd.f32 %v3651, %v4207
      %v4209 = vpop.f32.mrf.mxu0
      %v4210 = vpop.f32.mrf.mxu0
      %v4211 = vadd.f32 %v3651, %v4210
      %v4212 = vpop.f32.mrf.mxu0
      %4213 = vmatprep.mubr.bf16.mxu0 0
      %4214 = vmatmul.mubr.bf16.gmra.mxu0 %v3642
      %v4215 = vpop.f32.mrf.mxu0
      %v4216 = vadd.f32 %v3651, %v4215
      %v4217 = vpop.f32.mrf.mxu0
      %v4218 = vpop.f32.mrf.mxu0
      %v4219 = vadd.f32 %v3651, %v4218
      %v4220 = vpop.f32.mrf.mxu0
      %4221 = vmatprep.mubr.bf16.mxu0 0
      %4222 = vmatmul.mubr.bf16.gmra.mxu0 %v3643
      %v4223 = vpop.f32.mrf.mxu0
      %v4224 = vadd.f32 %v3651, %v4223
      %v4225 = vpop.f32.mrf.mxu0
      %v4226 = vpop.f32.mrf.mxu0
      %v4227 = vadd.f32 %v3651, %v4226
      %v4228 = vpop.f32.mrf.mxu0
      %4229 = vmatprep.mubr.bf16.mxu0 0
      %4230 = vmatmul.mubr.bf16.gmra.mxu0 %v3644
      %v4231 = vpop.f32.mrf.mxu0
      %v4232 = vadd.f32 %v3651, %v4231
      %v4233 = vpop.f32.mrf.mxu0
      %v4234 = vpop.f32.mrf.mxu0
      %v4235 = vadd.f32 %v3651, %v4234
      %v4236 = vpop.f32.mrf.mxu0
      %4237 = vmatprep.mubr.bf16.mxu0 0
      %4238 = vmatmul.mubr.bf16.gmra.mxu0 %v3645
      %v4239 = vpop.f32.mrf.mxu0
      %v4240 = vadd.f32 %v3651, %v4239
      %v4241 = vpop.f32.mrf.mxu0
      %v4242 = vpop.f32.mrf.mxu0
      %v4243 = vadd.f32 %v3651, %v4242
      %v4244 = vpop.f32.mrf.mxu0
      %4245 = vdwg.mxu0
      %v4246 = vmax.f32 %v3736, 0.0
      %v4247 = vmax.f32 %v3739, 0.0
      %v4248 = vmax.f32 %v3744, 0.0
      %v4249 = vmax.f32 %v3747, 0.0
      %v4250 = vmax.f32 %v3752, 0.0
      %v4251 = vmax.f32 %v3755, 0.0
      %v4252 = vmax.f32 %v3760, 0.0
      %v4253 = vmax.f32 %v3763, 0.0
      %v4254 = vmax.f32 %v3768, 0.0
      %v4255 = vmax.f32 %v3771, 0.0
      %v4256 = vmax.f32 %v3776, 0.0
      %v4257 = vmax.f32 %v3779, 0.0
      %v4258 = vmax.f32 %v3784, 0.0
      %v4259 = vmax.f32 %v3787, 0.0
      %v4260 = vmax.f32 %v3792, 0.0
      %v4261 = vmax.f32 %v3795, 0.0
      %v4262 = vmax.f32 %v3800, 0.0
      %v4263 = vmax.f32 %v3803, 0.0
      %v4264 = vmax.f32 %v3808, 0.0
      %v4265 = vmax.f32 %v3811, 0.0
      %v4266 = vmax.f32 %v3816, 0.0
      %v4267 = vmax.f32 %v3819, 0.0
      %v4268 = vmax.f32 %v3824, 0.0
      %v4269 = vmax.f32 %v3827, 0.0
      %v4270 = vmax.f32 %v3832, 0.0
      %v4271 = vmax.f32 %v3835, 0.0
      %v4272 = vmax.f32 %v3840, 0.0
      %v4273 = vmax.f32 %v3843, 0.0
      %v4274 = vmax.f32 %v3848, 0.0
      %v4275 = vmax.f32 %v3851, 0.0
      %v4276 = vmax.f32 %v3856, 0.0
      %v4277 = vmax.f32 %v3859, 0.0
      %v4278 = vmax.f32 %v3864, 0.0
      %v4279 = vmax.f32 %v3867, 0.0
      %v4280 = vmax.f32 %v3872, 0.0
      %v4281 = vmax.f32 %v3875, 0.0
      %v4282 = vmax.f32 %v3880, 0.0
      %v4283 = vmax.f32 %v3883, 0.0
      %v4284 = vmax.f32 %v3888, 0.0
      %v4285 = vmax.f32 %v3891, 0.0
      %v4286 = vmax.f32 %v3896, 0.0
      %v4287 = vmax.f32 %v3899, 0.0
      %v4288 = vmax.f32 %v3904, 0.0
      %v4289 = vmax.f32 %v3907, 0.0
      %v4290 = vmax.f32 %v3912, 0.0
      %v4291 = vmax.f32 %v3915, 0.0
      %v4292 = vmax.f32 %v3920, 0.0
      %v4293 = vmax.f32 %v3923, 0.0
      %v4294 = vmax.f32 %v3928, 0.0
      %v4295 = vmax.f32 %v3931, 0.0
      %v4296 = vmax.f32 %v3936, 0.0
      %v4297 = vmax.f32 %v3939, 0.0
      %v4298 = vmax.f32 %v3944, 0.0
      %v4299 = vmax.f32 %v3947, 0.0
      %v4300 = vmax.f32 %v3952, 0.0
      %v4301 = vmax.f32 %v3955, 0.0
      %v4302 = vmax.f32 %v3960, 0.0
      %v4303 = vmax.f32 %v3963, 0.0
      %v4304 = vmax.f32 %v3968, 0.0
      %v4305 = vmax.f32 %v3971, 0.0
      %v4306 = vmax.f32 %v3976, 0.0
      %v4307 = vmax.f32 %v3979, 0.0
      %v4308 = vmax.f32 %v3984, 0.0
      %v4309 = vmax.f32 %v3987, 0.0
      %v4310 = vmax.f32 %v3992, 0.0
      %v4311 = vmax.f32 %v3995, 0.0
      %v4312 = vmax.f32 %v4000, 0.0
      %v4313 = vmax.f32 %v4003, 0.0
      %v4314 = vmax.f32 %v4008, 0.0
      %v4315 = vmax.f32 %v4011, 0.0
      %v4316 = vmax.f32 %v4016, 0.0
      %v4317 = vmax.f32 %v4019, 0.0
      %v4318 = vmax.f32 %v4024, 0.0
      %v4319 = vmax.f32 %v4027, 0.0
      %v4320 = vmax.f32 %v4032, 0.0
      %v4321 = vmax.f32 %v4035, 0.0
      %v4322 = vmax.f32 %v4040, 0.0
      %v4323 = vmax.f32 %v4043, 0.0
      %v4324 = vmax.f32 %v4048, 0.0
      %v4325 = vmax.f32 %v4051, 0.0
      %v4326 = vmax.f32 %v4056, 0.0
      %v4327 = vmax.f32 %v4059, 0.0
      %v4328 = vmax.f32 %v4064, 0.0
      %v4329 = vmax.f32 %v4067, 0.0
      %v4330 = vmax.f32 %v4072, 0.0
      %v4331 = vmax.f32 %v4075, 0.0
      %v4332 = vmax.f32 %v4080, 0.0
      %v4333 = vmax.f32 %v4083, 0.0
      %v4334 = vmax.f32 %v4088, 0.0
      %v4335 = vmax.f32 %v4091, 0.0
      %v4336 = vmax.f32 %v4096, 0.0
      %v4337 = vmax.f32 %v4099, 0.0
      %v4338 = vmax.f32 %v4104, 0.0
      %v4339 = vmax.f32 %v4107, 0.0
      %v4340 = vmax.f32 %v4112, 0.0
      %v4341 = vmax.f32 %v4115, 0.0
      %v4342 = vmax.f32 %v4120, 0.0
      %v4343 = vmax.f32 %v4123, 0.0
      %v4344 = vmax.f32 %v4128, 0.0
      %v4345 = vmax.f32 %v4131, 0.0
      %v4346 = vmax.f32 %v4136, 0.0
      %v4347 = vmax.f32 %v4139, 0.0
      %v4348 = vmax.f32 %v4144, 0.0
      %v4349 = vmax.f32 %v4147, 0.0
      %v4350 = vmax.f32 %v4152, 0.0
      %v4351 = vmax.f32 %v4155, 0.0
      %v4352 = vmax.f32 %v4160, 0.0
      %v4353 = vmax.f32 %v4163, 0.0
      %v4354 = vmax.f32 %v4168, 0.0
      %v4355 = vmax.f32 %v4171, 0.0
      %v4356 = vmax.f32 %v4176, 0.0
      %v4357 = vmax.f32 %v4179, 0.0
      %v4358 = vmax.f32 %v4184, 0.0
      %v4359 = vmax.f32 %v4187, 0.0
      %v4360 = vmax.f32 %v4192, 0.0
      %v4361 = vmax.f32 %v4195, 0.0
      %v4362 = vmax.f32 %v4200, 0.0
      %v4363 = vmax.f32 %v4203, 0.0
      %v4364 = vmax.f32 %v4208, 0.0
      %v4365 = vmax.f32 %v4211, 0.0
      %v4366 = vmax.f32 %v4216, 0.0
      %v4367 = vmax.f32 %v4219, 0.0
      %v4368 = vmax.f32 %v4224, 0.0
      %v4369 = vmax.f32 %v4227, 0.0
      %v4370 = vmax.f32 %v4232, 0.0
      %v4371 = vmax.f32 %v4235, 0.0
      %v4372 = vmax.f32 %v4240, 0.0
      %v4373 = vmax.f32 %v4243, 0.0
      %v4374 = vpack.c.bf16 %v4247, %v4246
      %v4375 = vpack.c.bf16 %v4249, %v4248
      %v4376 = vpack.c.bf16 %v4251, %v4250
      %v4377 = vpack.c.bf16 %v4253, %v4252
      %v4378 = vpack.c.bf16 %v4255, %v4254
      %v4379 = vpack.c.bf16 %v4257, %v4256
      %v4380 = vpack.c.bf16 %v4259, %v4258
      %v4381 = vpack.c.bf16 %v4261, %v4260
      %v4382 = vpack.c.bf16 %v4263, %v4262
      %v4383 = vpack.c.bf16 %v4265, %v4264
      %v4384 = vpack.c.bf16 %v4267, %v4266
      %v4385 = vpack.c.bf16 %v4269, %v4268
      %v4386 = vpack.c.bf16 %v4271, %v4270
      %v4387 = vpack.c.bf16 %v4273, %v4272
      %v4388 = vpack.c.bf16 %v4275, %v4274
      %v4389 = vpack.c.bf16 %v4277, %v4276
      %v4390 = vpack.c.bf16 %v4279, %v4278
      %v4391 = vpack.c.bf16 %v4281, %v4280
      %v4392 = vpack.c.bf16 %v4283, %v4282
      %v4393 = vpack.c.bf16 %v4285, %v4284
      %v4394 = vpack.c.bf16 %v4287, %v4286
      %v4395 = vpack.c.bf16 %v4289, %v4288
      %v4396 = vpack.c.bf16 %v4291, %v4290
      %v4397 = vpack.c.bf16 %v4293, %v4292
      %v4398 = vpack.c.bf16 %v4295, %v4294
      %v4399 = vpack.c.bf16 %v4297, %v4296
      %v4400 = vpack.c.bf16 %v4299, %v4298
      %v4401 = vpack.c.bf16 %v4301, %v4300
      %v4402 = vpack.c.bf16 %v4303, %v4302
      %v4403 = vpack.c.bf16 %v4305, %v4304
      %v4404 = vpack.c.bf16 %v4307, %v4306
      %v4405 = vpack.c.bf16 %v4309, %v4308
      %v4406 = vpack.c.bf16 %v4311, %v4310
      %v4407 = vpack.c.bf16 %v4313, %v4312
      %v4408 = vpack.c.bf16 %v4315, %v4314
      %v4409 = vpack.c.bf16 %v4317, %v4316
      %v4410 = vpack.c.bf16 %v4319, %v4318
      %v4411 = vpack.c.bf16 %v4321, %v4320
      %v4412 = vpack.c.bf16 %v4323, %v4322
      %v4413 = vpack.c.bf16 %v4325, %v4324
      %v4414 = vpack.c.bf16 %v4327, %v4326
      %v4415 = vpack.c.bf16 %v4329, %v4328
      %v4416 = vpack.c.bf16 %v4331, %v4330
      %v4417 = vpack.c.bf16 %v4333, %v4332
      %v4418 = vpack.c.bf16 %v4335, %v4334
      %v4419 = vpack.c.bf16 %v4337, %v4336
      %v4420 = vpack.c.bf16 %v4339, %v4338
      %v4421 = vpack.c.bf16 %v4341, %v4340
      %v4422 = vpack.c.bf16 %v4343, %v4342
      %v4423 = vpack.c.bf16 %v4345, %v4344
      %v4424 = vpack.c.bf16 %v4347, %v4346
      %v4425 = vpack.c.bf16 %v4349, %v4348
      %v4426 = vpack.c.bf16 %v4351, %v4350
      %v4427 = vpack.c.bf16 %v4353, %v4352
      %v4428 = vpack.c.bf16 %v4355, %v4354
      %v4429 = vpack.c.bf16 %v4357, %v4356
      %v4430 = vpack.c.bf16 %v4359, %v4358
      %v4431 = vpack.c.bf16 %v4361, %v4360
      %v4432 = vpack.c.bf16 %v4363, %v4362
      %v4433 = vpack.c.bf16 %v4365, %v4364
      %v4434 = vpack.c.bf16 %v4367, %v4366
      %v4435 = vpack.c.bf16 %v4369, %v4368
      %v4436 = vpack.c.bf16 %v4371, %v4370
      %v4437 = vpack.c.bf16 %v4373, %v4372
      %v4438 = vld [vmem:[%s10] sm:$0xf]
      %v4439 = vld [vmem:[%s10 + $0x4] sm:$0xf]
      %v4440 = vld [vmem:[%s10 + $0x8] sm:$0xf]
      %v4441 = vld [vmem:[%s10 + $0xc] sm:$0xf]
      %v4442 = vld [vmem:[%s10 + $0x10] sm:$0xf]
      %v4443 = vld [vmem:[%s10 + $0x14] sm:$0xf]
      %v4444 = vld [vmem:[%s10 + $0x18] sm:$0xf]
      %v4445 = vld [vmem:[%s10 + $0x1c] sm:$0xf]
      %v4446 = vld [vmem:[%s10 + $0x20] sm:$0xf]
      %v4447 = vld [vmem:[%s10 + $0x24] sm:$0xf]
      %v4448 = vld [vmem:[%s10 + $0x28] sm:$0xf]
      %v4449 = vld [vmem:[%s10 + $0x2c] sm:$0xf]
      %v4450 = vld [vmem:[%s10 + $0x30] sm:$0xf]
      %v4451 = vld [vmem:[%s10 + $0x34] sm:$0xf]
      %v4452 = vld [vmem:[%s10 + $0x38] sm:$0xf]
      %v4453 = vld [vmem:[%s10 + $0x3c] sm:$0xf]
      %v4454 = vld [vmem:[%s11] sm:$0x1]
      %v4456 = vlaneseq
      %v4457 = vshrl.u32 %v4456, 7
      %v4458 = vsub.s32 0, %v4457
      %v4459 = vrot.slane %v4454, %v4458
      %v4477 = vunpack.c.l.b16 %v4438
      %v4478 = vunpack.c.l.b16 %v4439
      %v4479 = vunpack.c.l.b16 %v4440
      %v4480 = vunpack.c.l.b16 %v4441
      %v4481 = vunpack.c.l.b16 %v4442
      %v4482 = vunpack.c.l.b16 %v4443
      %v4483 = vunpack.c.l.b16 %v4444
      %v4484 = vunpack.c.l.b16 %v4445
      %v4485 = vunpack.c.l.b16 %v4446
      %v4486 = vunpack.c.l.b16 %v4447
      %v4487 = vunpack.c.l.b16 %v4448
      %v4488 = vunpack.c.l.b16 %v4449
      %v4489 = vunpack.c.l.b16 %v4450
      %v4490 = vunpack.c.l.b16 %v4451
      %v4491 = vunpack.c.l.b16 %v4452
      %v4492 = vunpack.c.l.b16 %v4453
      %v4493 = vpack.c.b16 %v4478, %v4477
      %v4494 = vpack.c.b16 %v4480, %v4479
      %v4495 = vpack.c.b16 %v4482, %v4481
      %v4496 = vpack.c.b16 %v4484, %v4483
      %v4497 = vpack.c.b16 %v4486, %v4485
      %v4498 = vpack.c.b16 %v4488, %v4487
      %v4499 = vpack.c.b16 %v4490, %v4489
      %v4500 = vpack.c.b16 %v4492, %v4491
      %4509 = vmatprep.subr.bf16.mxu0 0
      %4510 = vmatpush1.bf16.msra.mxu0 %v4500
      %4511 = vmatprep.subr.bf16.mxu0 0
      %4512 = vmatpush1.bf16.msra.mxu0 %v4499
      %4513 = vmatprep.subr.bf16.mxu0 0
      %4514 = vmatpush1.bf16.msra.mxu0 %v4498
      %4515 = vmatprep.subr.bf16.mxu0 0
      %4516 = vmatpush1.bf16.msra.mxu0 %v4497
      %4517 = vmatprep.subr.bf16.mxu0 0
      %4518 = vmatpush1.bf16.msra.mxu0 %v4496
      %4519 = vmatprep.subr.bf16.mxu0 0
      %4520 = vmatpush1.bf16.msra.mxu0 %v4495
      %4521 = vmatprep.subr.bf16.mxu0 0
      %4522 = vmatpush1.bf16.msra.mxu0 %v4494
      %4523 = vmatprep.subr.bf16.mxu0 0
      %4524 = vmatpush1.bf16.msra.mxu0 %v4493
      %4525 = vmatprep.subr.bf16.mxu0 0
      %4526 = vmatpush2.bf16.msra.mxu0 0
      %4527 = vmatprep.subr.bf16.mxu0 0
      %4528 = vmatpush2.bf16.msra.mxu0 0
      %4529 = vmatprep.subr.bf16.mxu0 0
      %4530 = vmatpush2.bf16.msra.mxu0 0
      %4531 = vmatprep.subr.bf16.mxu0 0
      %4532 = vmatpush2.bf16.msra.mxu0 0
      %4533 = vmatprep.subr.bf16.mxu0 0
      %4534 = vmatpush2.bf16.msra.mxu0 0
      %4535 = vmatprep.subr.bf16.mxu0 0
      %4536 = vmatpush2.bf16.msra.mxu0 0
      %4537 = vmatprep.subr.bf16.mxu0 0
      %4538 = vmatpush2.bf16.msra.mxu0 0
      %4539 = vmatprep.subr.bf16.mxu0 0
      %4540 = vmatpush2.bf16.msra.mxu0 0
      %4541 = vmatprep.mubr.bf16.mxu0 0
      %4542 = vmatmul.mubr.bf16.gmra.mxu0 %v4374
      %v4543 = vpop.f32.mrf.mxu0
      %v4544 = vadd.f32 %v4459, %v4543
      %v4545 = vpop.f32.mrf.mxu0
      %v4546 = vpop.f32.mrf.mxu0
      %v4547 = vadd.f32 %v4459, %v4546
      %v4548 = vpop.f32.mrf.mxu0
      %4549 = vmatprep.mubr.bf16.mxu0 0
      %4550 = vmatmul.mubr.bf16.gmra.mxu0 %v4375
      %v4551 = vpop.f32.mrf.mxu0
      %v4552 = vadd.f32 %v4459, %v4551
      %v4553 = vpop.f32.mrf.mxu0
      %v4554 = vpop.f32.mrf.mxu0
      %v4555 = vadd.f32 %v4459, %v4554
      %v4556 = vpop.f32.mrf.mxu0
      %4557 = vmatprep.mubr.bf16.mxu0 0
      %4558 = vmatmul.mubr.bf16.gmra.mxu0 %v4376
      %v4559 = vpop.f32.mrf.mxu0
      %v4560 = vadd.f32 %v4459, %v4559
      %v4561 = vpop.f32.mrf.mxu0
      %v4562 = vpop.f32.mrf.mxu0
      %v4563 = vadd.f32 %v4459, %v4562
      %v4564 = vpop.f32.mrf.mxu0
      %4565 = vmatprep.mubr.bf16.mxu0 0
      %4566 = vmatmul.mubr.bf16.gmra.mxu0 %v4377
      %v4567 = vpop.f32.mrf.mxu0
      %v4568 = vadd.f32 %v4459, %v4567
      %v4569 = vpop.f32.mrf.mxu0
      %v4570 = vpop.f32.mrf.mxu0
      %v4571 = vadd.f32 %v4459, %v4570
      %v4572 = vpop.f32.mrf.mxu0
      %4573 = vmatprep.mubr.bf16.mxu0 0
      %4574 = vmatmul.mubr.bf16.gmra.mxu0 %v4378
      %v4575 = vpop.f32.mrf.mxu0
      %v4576 = vadd.f32 %v4459, %v4575
      %v4577 = vpop.f32.mrf.mxu0
      %v4578 = vpop.f32.mrf.mxu0
      %v4579 = vadd.f32 %v4459, %v4578
      %v4580 = vpop.f32.mrf.mxu0
      %4581 = vmatprep.mubr.bf16.mxu0 0
      %4582 = vmatmul.mubr.bf16.gmra.mxu0 %v4379
      %v4583 = vpop.f32.mrf.mxu0
      %v4584 = vadd.f32 %v4459, %v4583
      %v4585 = vpop.f32.mrf.mxu0
      %v4586 = vpop.f32.mrf.mxu0
      %v4587 = vadd.f32 %v4459, %v4586
      %v4588 = vpop.f32.mrf.mxu0
      %4589 = vmatprep.mubr.bf16.mxu0 0
      %4590 = vmatmul.mubr.bf16.gmra.mxu0 %v4380
      %v4591 = vpop.f32.mrf.mxu0
      %v4592 = vadd.f32 %v4459, %v4591
      %v4593 = vpop.f32.mrf.mxu0
      %v4594 = vpop.f32.mrf.mxu0
      %v4595 = vadd.f32 %v4459, %v4594
      %v4596 = vpop.f32.mrf.mxu0
      %4597 = vmatprep.mubr.bf16.mxu0 0
      %4598 = vmatmul.mubr.bf16.gmra.mxu0 %v4381
      %v4599 = vpop.f32.mrf.mxu0
      %v4600 = vadd.f32 %v4459, %v4599
      %v4601 = vpop.f32.mrf.mxu0
      %v4602 = vpop.f32.mrf.mxu0
      %v4603 = vadd.f32 %v4459, %v4602
      %v4604 = vpop.f32.mrf.mxu0
      %4605 = vmatprep.mubr.bf16.mxu0 0
      %4606 = vmatmul.mubr.bf16.gmra.mxu0 %v4382
      %v4607 = vpop.f32.mrf.mxu0
      %v4608 = vadd.f32 %v4459, %v4607
      %v4609 = vpop.f32.mrf.mxu0
      %v4610 = vpop.f32.mrf.mxu0
      %v4611 = vadd.f32 %v4459, %v4610
      %v4612 = vpop.f32.mrf.mxu0
      %4613 = vmatprep.mubr.bf16.mxu0 0
      %4614 = vmatmul.mubr.bf16.gmra.mxu0 %v4383
      %v4615 = vpop.f32.mrf.mxu0
      %v4616 = vadd.f32 %v4459, %v4615
      %v4617 = vpop.f32.mrf.mxu0
      %v4618 = vpop.f32.mrf.mxu0
      %v4619 = vadd.f32 %v4459, %v4618
      %v4620 = vpop.f32.mrf.mxu0
      %4621 = vmatprep.mubr.bf16.mxu0 0
      %4622 = vmatmul.mubr.bf16.gmra.mxu0 %v4384
      %v4623 = vpop.f32.mrf.mxu0
      %v4624 = vadd.f32 %v4459, %v4623
      %v4625 = vpop.f32.mrf.mxu0
      %v4626 = vpop.f32.mrf.mxu0
      %v4627 = vadd.f32 %v4459, %v4626
      %v4628 = vpop.f32.mrf.mxu0
      %4629 = vmatprep.mubr.bf16.mxu0 0
      %4630 = vmatmul.mubr.bf16.gmra.mxu0 %v4385
      %v4631 = vpop.f32.mrf.mxu0
      %v4632 = vadd.f32 %v4459, %v4631
      %v4633 = vpop.f32.mrf.mxu0
      %v4634 = vpop.f32.mrf.mxu0
      %v4635 = vadd.f32 %v4459, %v4634
      %v4636 = vpop.f32.mrf.mxu0
      %4637 = vmatprep.mubr.bf16.mxu0 0
      %4638 = vmatmul.mubr.bf16.gmra.mxu0 %v4386
      %v4639 = vpop.f32.mrf.mxu0
      %v4640 = vadd.f32 %v4459, %v4639
      %v4641 = vpop.f32.mrf.mxu0
      %v4642 = vpop.f32.mrf.mxu0
      %v4643 = vadd.f32 %v4459, %v4642
      %v4644 = vpop.f32.mrf.mxu0
      %4645 = vmatprep.mubr.bf16.mxu0 0
      %4646 = vmatmul.mubr.bf16.gmra.mxu0 %v4387
      %v4647 = vpop.f32.mrf.mxu0
      %v4648 = vadd.f32 %v4459, %v4647
      %v4649 = vpop.f32.mrf.mxu0
      %v4650 = vpop.f32.mrf.mxu0
      %v4651 = vadd.f32 %v4459, %v4650
      %v4652 = vpop.f32.mrf.mxu0
      %4653 = vmatprep.mubr.bf16.mxu0 0
      %4654 = vmatmul.mubr.bf16.gmra.mxu0 %v4388
      %v4655 = vpop.f32.mrf.mxu0
      %v4656 = vadd.f32 %v4459, %v4655
      %v4657 = vpop.f32.mrf.mxu0
      %v4658 = vpop.f32.mrf.mxu0
      %v4659 = vadd.f32 %v4459, %v4658
      %v4660 = vpop.f32.mrf.mxu0
      %4661 = vmatprep.mubr.bf16.mxu0 0
      %4662 = vmatmul.mubr.bf16.gmra.mxu0 %v4389
      %v4663 = vpop.f32.mrf.mxu0
      %v4664 = vadd.f32 %v4459, %v4663
      %v4665 = vpop.f32.mrf.mxu0
      %v4666 = vpop.f32.mrf.mxu0
      %v4667 = vadd.f32 %v4459, %v4666
      %v4668 = vpop.f32.mrf.mxu0
      %4669 = vmatprep.mubr.bf16.mxu0 0
      %4670 = vmatmul.mubr.bf16.gmra.mxu0 %v4390
      %v4671 = vpop.f32.mrf.mxu0
      %v4672 = vadd.f32 %v4459, %v4671
      %v4673 = vpop.f32.mrf.mxu0
      %v4674 = vpop.f32.mrf.mxu0
      %v4675 = vadd.f32 %v4459, %v4674
      %v4676 = vpop.f32.mrf.mxu0
      %4677 = vmatprep.mubr.bf16.mxu0 0
      %4678 = vmatmul.mubr.bf16.gmra.mxu0 %v4391
      %v4679 = vpop.f32.mrf.mxu0
      %v4680 = vadd.f32 %v4459, %v4679
      %v4681 = vpop.f32.mrf.mxu0
      %v4682 = vpop.f32.mrf.mxu0
      %v4683 = vadd.f32 %v4459, %v4682
      %v4684 = vpop.f32.mrf.mxu0
      %4685 = vmatprep.mubr.bf16.mxu0 0
      %4686 = vmatmul.mubr.bf16.gmra.mxu0 %v4392
      %v4687 = vpop.f32.mrf.mxu0
      %v4688 = vadd.f32 %v4459, %v4687
      %v4689 = vpop.f32.mrf.mxu0
      %v4690 = vpop.f32.mrf.mxu0
      %v4691 = vadd.f32 %v4459, %v4690
      %v4692 = vpop.f32.mrf.mxu0
      %4693 = vmatprep.mubr.bf16.mxu0 0
      %4694 = vmatmul.mubr.bf16.gmra.mxu0 %v4393
      %v4695 = vpop.f32.mrf.mxu0
      %v4696 = vadd.f32 %v4459, %v4695
      %v4697 = vpop.f32.mrf.mxu0
      %v4698 = vpop.f32.mrf.mxu0
      %v4699 = vadd.f32 %v4459, %v4698
      %v4700 = vpop.f32.mrf.mxu0
      %4701 = vmatprep.mubr.bf16.mxu0 0
      %4702 = vmatmul.mubr.bf16.gmra.mxu0 %v4394
      %v4703 = vpop.f32.mrf.mxu0
      %v4704 = vadd.f32 %v4459, %v4703
      %v4705 = vpop.f32.mrf.mxu0
      %v4706 = vpop.f32.mrf.mxu0
      %v4707 = vadd.f32 %v4459, %v4706
      %v4708 = vpop.f32.mrf.mxu0
      %4709 = vmatprep.mubr.bf16.mxu0 0
      %4710 = vmatmul.mubr.bf16.gmra.mxu0 %v4395
      %v4711 = vpop.f32.mrf.mxu0
      %v4712 = vadd.f32 %v4459, %v4711
      %v4713 = vpop.f32.mrf.mxu0
      %v4714 = vpop.f32.mrf.mxu0
      %v4715 = vadd.f32 %v4459, %v4714
      %v4716 = vpop.f32.mrf.mxu0
      %4717 = vmatprep.mubr.bf16.mxu0 0
      %4718 = vmatmul.mubr.bf16.gmra.mxu0 %v4396
      %v4719 = vpop.f32.mrf.mxu0
      %v4720 = vadd.f32 %v4459, %v4719
      %v4721 = vpop.f32.mrf.mxu0
      %v4722 = vpop.f32.mrf.mxu0
      %v4723 = vadd.f32 %v4459, %v4722
      %v4724 = vpop.f32.mrf.mxu0
      %4725 = vmatprep.mubr.bf16.mxu0 0
      %4726 = vmatmul.mubr.bf16.gmra.mxu0 %v4397
      %v4727 = vpop.f32.mrf.mxu0
      %v4728 = vadd.f32 %v4459, %v4727
      %v4729 = vpop.f32.mrf.mxu0
      %v4730 = vpop.f32.mrf.mxu0
      %v4731 = vadd.f32 %v4459, %v4730
      %v4732 = vpop.f32.mrf.mxu0
      %4733 = vmatprep.mubr.bf16.mxu0 0
      %4734 = vmatmul.mubr.bf16.gmra.mxu0 %v4398
      %v4735 = vpop.f32.mrf.mxu0
      %v4736 = vadd.f32 %v4459, %v4735
      %v4737 = vpop.f32.mrf.mxu0
      %v4738 = vpop.f32.mrf.mxu0
      %v4739 = vadd.f32 %v4459, %v4738
      %v4740 = vpop.f32.mrf.mxu0
      %4741 = vmatprep.mubr.bf16.mxu0 0
      %4742 = vmatmul.mubr.bf16.gmra.mxu0 %v4399
      %v4743 = vpop.f32.mrf.mxu0
      %v4744 = vadd.f32 %v4459, %v4743
      %v4745 = vpop.f32.mrf.mxu0
      %v4746 = vpop.f32.mrf.mxu0
      %v4747 = vadd.f32 %v4459, %v4746
      %v4748 = vpop.f32.mrf.mxu0
      %4749 = vmatprep.mubr.bf16.mxu0 0
      %4750 = vmatmul.mubr.bf16.gmra.mxu0 %v4400
      %v4751 = vpop.f32.mrf.mxu0
      %v4752 = vadd.f32 %v4459, %v4751
      %v4753 = vpop.f32.mrf.mxu0
      %v4754 = vpop.f32.mrf.mxu0
      %v4755 = vadd.f32 %v4459, %v4754
      %v4756 = vpop.f32.mrf.mxu0
      %4757 = vmatprep.mubr.bf16.mxu0 0
      %4758 = vmatmul.mubr.bf16.gmra.mxu0 %v4401
      %v4759 = vpop.f32.mrf.mxu0
      %v4760 = vadd.f32 %v4459, %v4759
      %v4761 = vpop.f32.mrf.mxu0
      %v4762 = vpop.f32.mrf.mxu0
      %v4763 = vadd.f32 %v4459, %v4762
      %v4764 = vpop.f32.mrf.mxu0
      %4765 = vmatprep.mubr.bf16.mxu0 0
      %4766 = vmatmul.mubr.bf16.gmra.mxu0 %v4402
      %v4767 = vpop.f32.mrf.mxu0
      %v4768 = vadd.f32 %v4459, %v4767
      %v4769 = vpop.f32.mrf.mxu0
      %v4770 = vpop.f32.mrf.mxu0
      %v4771 = vadd.f32 %v4459, %v4770
      %v4772 = vpop.f32.mrf.mxu0
      %4773 = vmatprep.mubr.bf16.mxu0 0
      %4774 = vmatmul.mubr.bf16.gmra.mxu0 %v4403
      %v4775 = vpop.f32.mrf.mxu0
      %v4776 = vadd.f32 %v4459, %v4775
      %v4777 = vpop.f32.mrf.mxu0
      %v4778 = vpop.f32.mrf.mxu0
      %v4779 = vadd.f32 %v4459, %v4778
      %v4780 = vpop.f32.mrf.mxu0
      %4781 = vmatprep.mubr.bf16.mxu0 0
      %4782 = vmatmul.mubr.bf16.gmra.mxu0 %v4404
      %v4783 = vpop.f32.mrf.mxu0
      %v4784 = vadd.f32 %v4459, %v4783
      %v4785 = vpop.f32.mrf.mxu0
      %v4786 = vpop.f32.mrf.mxu0
      %v4787 = vadd.f32 %v4459, %v4786
      %v4788 = vpop.f32.mrf.mxu0
      %4789 = vmatprep.mubr.bf16.mxu0 0
      %4790 = vmatmul.mubr.bf16.gmra.mxu0 %v4405
      %v4791 = vpop.f32.mrf.mxu0
      %v4792 = vadd.f32 %v4459, %v4791
      %v4793 = vpop.f32.mrf.mxu0
      %v4794 = vpop.f32.mrf.mxu0
      %v4795 = vadd.f32 %v4459, %v4794
      %v4796 = vpop.f32.mrf.mxu0
      %4797 = vmatprep.mubr.bf16.mxu0 0
      %4798 = vmatmul.mubr.bf16.gmra.mxu0 %v4406
      %v4799 = vpop.f32.mrf.mxu0
      %v4800 = vadd.f32 %v4459, %v4799
      %v4801 = vpop.f32.mrf.mxu0
      %v4802 = vpop.f32.mrf.mxu0
      %v4803 = vadd.f32 %v4459, %v4802
      %v4804 = vpop.f32.mrf.mxu0
      %4805 = vmatprep.mubr.bf16.mxu0 0
      %4806 = vmatmul.mubr.bf16.gmra.mxu0 %v4407
      %v4807 = vpop.f32.mrf.mxu0
      %v4808 = vadd.f32 %v4459, %v4807
      %v4809 = vpop.f32.mrf.mxu0
      %v4810 = vpop.f32.mrf.mxu0
      %v4811 = vadd.f32 %v4459, %v4810
      %v4812 = vpop.f32.mrf.mxu0
      %4813 = vmatprep.mubr.bf16.mxu0 0
      %4814 = vmatmul.mubr.bf16.gmra.mxu0 %v4408
      %v4815 = vpop.f32.mrf.mxu0
      %v4816 = vadd.f32 %v4459, %v4815
      %v4817 = vpop.f32.mrf.mxu0
      %v4818 = vpop.f32.mrf.mxu0
      %v4819 = vadd.f32 %v4459, %v4818
      %v4820 = vpop.f32.mrf.mxu0
      %4821 = vmatprep.mubr.bf16.mxu0 0
      %4822 = vmatmul.mubr.bf16.gmra.mxu0 %v4409
      %v4823 = vpop.f32.mrf.mxu0
      %v4824 = vadd.f32 %v4459, %v4823
      %v4825 = vpop.f32.mrf.mxu0
      %v4826 = vpop.f32.mrf.mxu0
      %v4827 = vadd.f32 %v4459, %v4826
      %v4828 = vpop.f32.mrf.mxu0
      %4829 = vmatprep.mubr.bf16.mxu0 0
      %4830 = vmatmul.mubr.bf16.gmra.mxu0 %v4410
      %v4831 = vpop.f32.mrf.mxu0
      %v4832 = vadd.f32 %v4459, %v4831
      %v4833 = vpop.f32.mrf.mxu0
      %v4834 = vpop.f32.mrf.mxu0
      %v4835 = vadd.f32 %v4459, %v4834
      %v4836 = vpop.f32.mrf.mxu0
      %4837 = vmatprep.mubr.bf16.mxu0 0
      %4838 = vmatmul.mubr.bf16.gmra.mxu0 %v4411
      %v4839 = vpop.f32.mrf.mxu0
      %v4840 = vadd.f32 %v4459, %v4839
      %v4841 = vpop.f32.mrf.mxu0
      %v4842 = vpop.f32.mrf.mxu0
      %v4843 = vadd.f32 %v4459, %v4842
      %v4844 = vpop.f32.mrf.mxu0
      %4845 = vmatprep.mubr.bf16.mxu0 0
      %4846 = vmatmul.mubr.bf16.gmra.mxu0 %v4412
      %v4847 = vpop.f32.mrf.mxu0
      %v4848 = vadd.f32 %v4459, %v4847
      %v4849 = vpop.f32.mrf.mxu0
      %v4850 = vpop.f32.mrf.mxu0
      %v4851 = vadd.f32 %v4459, %v4850
      %v4852 = vpop.f32.mrf.mxu0
      %4853 = vmatprep.mubr.bf16.mxu0 0
      %4854 = vmatmul.mubr.bf16.gmra.mxu0 %v4413
      %v4855 = vpop.f32.mrf.mxu0
      %v4856 = vadd.f32 %v4459, %v4855
      %v4857 = vpop.f32.mrf.mxu0
      %v4858 = vpop.f32.mrf.mxu0
      %v4859 = vadd.f32 %v4459, %v4858
      %v4860 = vpop.f32.mrf.mxu0
      %4861 = vmatprep.mubr.bf16.mxu0 0
      %4862 = vmatmul.mubr.bf16.gmra.mxu0 %v4414
      %v4863 = vpop.f32.mrf.mxu0
      %v4864 = vadd.f32 %v4459, %v4863
      %v4865 = vpop.f32.mrf.mxu0
      %v4866 = vpop.f32.mrf.mxu0
      %v4867 = vadd.f32 %v4459, %v4866
      %v4868 = vpop.f32.mrf.mxu0
      %4869 = vmatprep.mubr.bf16.mxu0 0
      %4870 = vmatmul.mubr.bf16.gmra.mxu0 %v4415
      %v4871 = vpop.f32.mrf.mxu0
      %v4872 = vadd.f32 %v4459, %v4871
      %v4873 = vpop.f32.mrf.mxu0
      %v4874 = vpop.f32.mrf.mxu0
      %v4875 = vadd.f32 %v4459, %v4874
      %v4876 = vpop.f32.mrf.mxu0
      %4877 = vmatprep.mubr.bf16.mxu0 0
      %4878 = vmatmul.mubr.bf16.gmra.mxu0 %v4416
      %v4879 = vpop.f32.mrf.mxu0
      %v4880 = vadd.f32 %v4459, %v4879
      %v4881 = vpop.f32.mrf.mxu0
      %v4882 = vpop.f32.mrf.mxu0
      %v4883 = vadd.f32 %v4459, %v4882
      %v4884 = vpop.f32.mrf.mxu0
      %4885 = vmatprep.mubr.bf16.mxu0 0
      %4886 = vmatmul.mubr.bf16.gmra.mxu0 %v4417
      %v4887 = vpop.f32.mrf.mxu0
      %v4888 = vadd.f32 %v4459, %v4887
      %v4889 = vpop.f32.mrf.mxu0
      %v4890 = vpop.f32.mrf.mxu0
      %v4891 = vadd.f32 %v4459, %v4890
      %v4892 = vpop.f32.mrf.mxu0
      %4893 = vmatprep.mubr.bf16.mxu0 0
      %4894 = vmatmul.mubr.bf16.gmra.mxu0 %v4418
      %v4895 = vpop.f32.mrf.mxu0
      %v4896 = vadd.f32 %v4459, %v4895
      %v4897 = vpop.f32.mrf.mxu0
      %v4898 = vpop.f32.mrf.mxu0
      %v4899 = vadd.f32 %v4459, %v4898
      %v4900 = vpop.f32.mrf.mxu0
      %4901 = vmatprep.mubr.bf16.mxu0 0
      %4902 = vmatmul.mubr.bf16.gmra.mxu0 %v4419
      %v4903 = vpop.f32.mrf.mxu0
      %v4904 = vadd.f32 %v4459, %v4903
      %v4905 = vpop.f32.mrf.mxu0
      %v4906 = vpop.f32.mrf.mxu0
      %v4907 = vadd.f32 %v4459, %v4906
      %v4908 = vpop.f32.mrf.mxu0
      %4909 = vmatprep.mubr.bf16.mxu0 0
      %4910 = vmatmul.mubr.bf16.gmra.mxu0 %v4420
      %v4911 = vpop.f32.mrf.mxu0
      %v4912 = vadd.f32 %v4459, %v4911
      %v4913 = vpop.f32.mrf.mxu0
      %v4914 = vpop.f32.mrf.mxu0
      %v4915 = vadd.f32 %v4459, %v4914
      %v4916 = vpop.f32.mrf.mxu0
      %4917 = vmatprep.mubr.bf16.mxu0 0
      %4918 = vmatmul.mubr.bf16.gmra.mxu0 %v4421
      %v4919 = vpop.f32.mrf.mxu0
      %v4920 = vadd.f32 %v4459, %v4919
      %v4921 = vpop.f32.mrf.mxu0
      %v4922 = vpop.f32.mrf.mxu0
      %v4923 = vadd.f32 %v4459, %v4922
      %v4924 = vpop.f32.mrf.mxu0
      %4925 = vmatprep.mubr.bf16.mxu0 0
      %4926 = vmatmul.mubr.bf16.gmra.mxu0 %v4422
      %v4927 = vpop.f32.mrf.mxu0
      %v4928 = vadd.f32 %v4459, %v4927
      %v4929 = vpop.f32.mrf.mxu0
      %v4930 = vpop.f32.mrf.mxu0
      %v4931 = vadd.f32 %v4459, %v4930
      %v4932 = vpop.f32.mrf.mxu0
      %4933 = vmatprep.mubr.bf16.mxu0 0
      %4934 = vmatmul.mubr.bf16.gmra.mxu0 %v4423
      %v4935 = vpop.f32.mrf.mxu0
      %v4936 = vadd.f32 %v4459, %v4935
      %v4937 = vpop.f32.mrf.mxu0
      %v4938 = vpop.f32.mrf.mxu0
      %v4939 = vadd.f32 %v4459, %v4938
      %v4940 = vpop.f32.mrf.mxu0
      %4941 = vmatprep.mubr.bf16.mxu0 0
      %4942 = vmatmul.mubr.bf16.gmra.mxu0 %v4424
      %v4943 = vpop.f32.mrf.mxu0
      %v4944 = vadd.f32 %v4459, %v4943
      %v4945 = vpop.f32.mrf.mxu0
      %v4946 = vpop.f32.mrf.mxu0
      %v4947 = vadd.f32 %v4459, %v4946
      %v4948 = vpop.f32.mrf.mxu0
      %4949 = vmatprep.mubr.bf16.mxu0 0
      %4950 = vmatmul.mubr.bf16.gmra.mxu0 %v4425
      %v4951 = vpop.f32.mrf.mxu0
      %v4952 = vadd.f32 %v4459, %v4951
      %v4953 = vpop.f32.mrf.mxu0
      %v4954 = vpop.f32.mrf.mxu0
      %v4955 = vadd.f32 %v4459, %v4954
      %v4956 = vpop.f32.mrf.mxu0
      %4957 = vmatprep.mubr.bf16.mxu0 0
      %4958 = vmatmul.mubr.bf16.gmra.mxu0 %v4426
      %v4959 = vpop.f32.mrf.mxu0
      %v4960 = vadd.f32 %v4459, %v4959
      %v4961 = vpop.f32.mrf.mxu0
      %v4962 = vpop.f32.mrf.mxu0
      %v4963 = vadd.f32 %v4459, %v4962
      %v4964 = vpop.f32.mrf.mxu0
      %4965 = vmatprep.mubr.bf16.mxu0 0
      %4966 = vmatmul.mubr.bf16.gmra.mxu0 %v4427
      %v4967 = vpop.f32.mrf.mxu0
      %v4968 = vadd.f32 %v4459, %v4967
      %v4969 = vpop.f32.mrf.mxu0
      %v4970 = vpop.f32.mrf.mxu0
      %v4971 = vadd.f32 %v4459, %v4970
      %v4972 = vpop.f32.mrf.mxu0
      %4973 = vmatprep.mubr.bf16.mxu0 0
      %4974 = vmatmul.mubr.bf16.gmra.mxu0 %v4428
      %v4975 = vpop.f32.mrf.mxu0
      %v4976 = vadd.f32 %v4459, %v4975
      %v4977 = vpop.f32.mrf.mxu0
      %v4978 = vpop.f32.mrf.mxu0
      %v4979 = vadd.f32 %v4459, %v4978
      %v4980 = vpop.f32.mrf.mxu0
      %4981 = vmatprep.mubr.bf16.mxu0 0
      %4982 = vmatmul.mubr.bf16.gmra.mxu0 %v4429
      %v4983 = vpop.f32.mrf.mxu0
      %v4984 = vadd.f32 %v4459, %v4983
      %v4985 = vpop.f32.mrf.mxu0
      %v4986 = vpop.f32.mrf.mxu0
      %v4987 = vadd.f32 %v4459, %v4986
      %v4988 = vpop.f32.mrf.mxu0
      %4989 = vmatprep.mubr.bf16.mxu0 0
      %4990 = vmatmul.mubr.bf16.gmra.mxu0 %v4430
      %v4991 = vpop.f32.mrf.mxu0
      %v4992 = vadd.f32 %v4459, %v4991
      %v4993 = vpop.f32.mrf.mxu0
      %v4994 = vpop.f32.mrf.mxu0
      %v4995 = vadd.f32 %v4459, %v4994
      %v4996 = vpop.f32.mrf.mxu0
      %4997 = vmatprep.mubr.bf16.mxu0 0
      %4998 = vmatmul.mubr.bf16.gmra.mxu0 %v4431
      %v4999 = vpop.f32.mrf.mxu0
      %v5000 = vadd.f32 %v4459, %v4999
      %v5001 = vpop.f32.mrf.mxu0
      %v5002 = vpop.f32.mrf.mxu0
      %v5003 = vadd.f32 %v4459, %v5002
      %v5004 = vpop.f32.mrf.mxu0
      %5005 = vmatprep.mubr.bf16.mxu0 0
      %5006 = vmatmul.mubr.bf16.gmra.mxu0 %v4432
      %v5007 = vpop.f32.mrf.mxu0
      %v5008 = vadd.f32 %v4459, %v5007
      %v5009 = vpop.f32.mrf.mxu0
      %v5010 = vpop.f32.mrf.mxu0
      %v5011 = vadd.f32 %v4459, %v5010
      %v5012 = vpop.f32.mrf.mxu0
      %5013 = vmatprep.mubr.bf16.mxu0 0
      %5014 = vmatmul.mubr.bf16.gmra.mxu0 %v4433
      %v5015 = vpop.f32.mrf.mxu0
      %v5016 = vadd.f32 %v4459, %v5015
      %v5017 = vpop.f32.mrf.mxu0
      %v5018 = vpop.f32.mrf.mxu0
      %v5019 = vadd.f32 %v4459, %v5018
      %v5020 = vpop.f32.mrf.mxu0
      %5021 = vmatprep.mubr.bf16.mxu0 0
      %5022 = vmatmul.mubr.bf16.gmra.mxu0 %v4434
      %v5023 = vpop.f32.mrf.mxu0
      %v5024 = vadd.f32 %v4459, %v5023
      %v5025 = vpop.f32.mrf.mxu0
      %v5026 = vpop.f32.mrf.mxu0
      %v5027 = vadd.f32 %v4459, %v5026
      %v5028 = vpop.f32.mrf.mxu0
      %5029 = vmatprep.mubr.bf16.mxu0 0
      %5030 = vmatmul.mubr.bf16.gmra.mxu0 %v4435
      %v5031 = vpop.f32.mrf.mxu0
      %v5032 = vadd.f32 %v4459, %v5031
      %v5033 = vpop.f32.mrf.mxu0
      %v5034 = vpop.f32.mrf.mxu0
      %v5035 = vadd.f32 %v4459, %v5034
      %v5036 = vpop.f32.mrf.mxu0
      %5037 = vmatprep.mubr.bf16.mxu0 0
      %5038 = vmatmul.mubr.bf16.gmra.mxu0 %v4436
      %v5039 = vpop.f32.mrf.mxu0
      %v5040 = vadd.f32 %v4459, %v5039
      %v5041 = vpop.f32.mrf.mxu0
      %v5042 = vpop.f32.mrf.mxu0
      %v5043 = vadd.f32 %v4459, %v5042
      %v5044 = vpop.f32.mrf.mxu0
      %5045 = vmatprep.mubr.bf16.mxu0 0
      %5046 = vmatmul.mubr.bf16.gmra.mxu0 %v4437
      %v5047 = vpop.f32.mrf.mxu0
      %v5048 = vadd.f32 %v4459, %v5047
      %v5049 = vpop.f32.mrf.mxu0
      %v5050 = vpop.f32.mrf.mxu0
      %v5051 = vadd.f32 %v4459, %v5050
      %v5052 = vpop.f32.mrf.mxu0
      %5053 = vdwg.mxu0
      %v5054 = vmax.f32 %v4544, 0.0
      %v5055 = vmax.f32 %v4547, 0.0
      %v5056 = vmax.f32 %v4552, 0.0
      %v5057 = vmax.f32 %v4555, 0.0
      %v5058 = vmax.f32 %v4560, 0.0
      %v5059 = vmax.f32 %v4563, 0.0
      %v5060 = vmax.f32 %v4568, 0.0
      %v5061 = vmax.f32 %v4571, 0.0
      %v5062 = vmax.f32 %v4576, 0.0
      %v5063 = vmax.f32 %v4579, 0.0
      %v5064 = vmax.f32 %v4584, 0.0
      %v5065 = vmax.f32 %v4587, 0.0
      %v5066 = vmax.f32 %v4592, 0.0
      %v5067 = vmax.f32 %v4595, 0.0
      %v5068 = vmax.f32 %v4600, 0.0
      %v5069 = vmax.f32 %v4603, 0.0
      %v5070 = vmax.f32 %v4608, 0.0
      %v5071 = vmax.f32 %v4611, 0.0
      %v5072 = vmax.f32 %v4616, 0.0
      %v5073 = vmax.f32 %v4619, 0.0
      %v5074 = vmax.f32 %v4624, 0.0
      %v5075 = vmax.f32 %v4627, 0.0
      %v5076 = vmax.f32 %v4632, 0.0
      %v5077 = vmax.f32 %v4635, 0.0
      %v5078 = vmax.f32 %v4640, 0.0
      %v5079 = vmax.f32 %v4643, 0.0
      %v5080 = vmax.f32 %v4648, 0.0
      %v5081 = vmax.f32 %v4651, 0.0
      %v5082 = vmax.f32 %v4656, 0.0
      %v5083 = vmax.f32 %v4659, 0.0
      %v5084 = vmax.f32 %v4664, 0.0
      %v5085 = vmax.f32 %v4667, 0.0
      %v5086 = vmax.f32 %v4672, 0.0
      %v5087 = vmax.f32 %v4675, 0.0
      %v5088 = vmax.f32 %v4680, 0.0
      %v5089 = vmax.f32 %v4683, 0.0
      %v5090 = vmax.f32 %v4688, 0.0
      %v5091 = vmax.f32 %v4691, 0.0
      %v5092 = vmax.f32 %v4696, 0.0
      %v5093 = vmax.f32 %v4699, 0.0
      %v5094 = vmax.f32 %v4704, 0.0
      %v5095 = vmax.f32 %v4707, 0.0
      %v5096 = vmax.f32 %v4712, 0.0
      %v5097 = vmax.f32 %v4715, 0.0
      %v5098 = vmax.f32 %v4720, 0.0
      %v5099 = vmax.f32 %v4723, 0.0
      %v5100 = vmax.f32 %v4728, 0.0
      %v5101 = vmax.f32 %v4731, 0.0
      %v5102 = vmax.f32 %v4736, 0.0
      %v5103 = vmax.f32 %v4739, 0.0
      %v5104 = vmax.f32 %v4744, 0.0
      %v5105 = vmax.f32 %v4747, 0.0
      %v5106 = vmax.f32 %v4752, 0.0
      %v5107 = vmax.f32 %v4755, 0.0
      %v5108 = vmax.f32 %v4760, 0.0
      %v5109 = vmax.f32 %v4763, 0.0
      %v5110 = vmax.f32 %v4768, 0.0
      %v5111 = vmax.f32 %v4771, 0.0
      %v5112 = vmax.f32 %v4776, 0.0
      %v5113 = vmax.f32 %v4779, 0.0
      %v5114 = vmax.f32 %v4784, 0.0
      %v5115 = vmax.f32 %v4787, 0.0
      %v5116 = vmax.f32 %v4792, 0.0
      %v5117 = vmax.f32 %v4795, 0.0
      %v5118 = vmax.f32 %v4800, 0.0
      %v5119 = vmax.f32 %v4803, 0.0
      %v5120 = vmax.f32 %v4808, 0.0
      %v5121 = vmax.f32 %v4811, 0.0
      %v5122 = vmax.f32 %v4816, 0.0
      %v5123 = vmax.f32 %v4819, 0.0
      %v5124 = vmax.f32 %v4824, 0.0
      %v5125 = vmax.f32 %v4827, 0.0
      %v5126 = vmax.f32 %v4832, 0.0
      %v5127 = vmax.f32 %v4835, 0.0
      %v5128 = vmax.f32 %v4840, 0.0
      %v5129 = vmax.f32 %v4843, 0.0
      %v5130 = vmax.f32 %v4848, 0.0
      %v5131 = vmax.f32 %v4851, 0.0
      %v5132 = vmax.f32 %v4856, 0.0
      %v5133 = vmax.f32 %v4859, 0.0
      %v5134 = vmax.f32 %v4864, 0.0
      %v5135 = vmax.f32 %v4867, 0.0
      %v5136 = vmax.f32 %v4872, 0.0
      %v5137 = vmax.f32 %v4875, 0.0
      %v5138 = vmax.f32 %v4880, 0.0
      %v5139 = vmax.f32 %v4883, 0.0
      %v5140 = vmax.f32 %v4888, 0.0
      %v5141 = vmax.f32 %v4891, 0.0
      %v5142 = vmax.f32 %v4896, 0.0
      %v5143 = vmax.f32 %v4899, 0.0
      %v5144 = vmax.f32 %v4904, 0.0
      %v5145 = vmax.f32 %v4907, 0.0
      %v5146 = vmax.f32 %v4912, 0.0
      %v5147 = vmax.f32 %v4915, 0.0
      %v5148 = vmax.f32 %v4920, 0.0
      %v5149 = vmax.f32 %v4923, 0.0
      %v5150 = vmax.f32 %v4928, 0.0
      %v5151 = vmax.f32 %v4931, 0.0
      %v5152 = vmax.f32 %v4936, 0.0
      %v5153 = vmax.f32 %v4939, 0.0
      %v5154 = vmax.f32 %v4944, 0.0
      %v5155 = vmax.f32 %v4947, 0.0
      %v5156 = vmax.f32 %v4952, 0.0
      %v5157 = vmax.f32 %v4955, 0.0
      %v5158 = vmax.f32 %v4960, 0.0
      %v5159 = vmax.f32 %v4963, 0.0
      %v5160 = vmax.f32 %v4968, 0.0
      %v5161 = vmax.f32 %v4971, 0.0
      %v5162 = vmax.f32 %v4976, 0.0
      %v5163 = vmax.f32 %v4979, 0.0
      %v5164 = vmax.f32 %v4984, 0.0
      %v5165 = vmax.f32 %v4987, 0.0
      %v5166 = vmax.f32 %v4992, 0.0
      %v5167 = vmax.f32 %v4995, 0.0
      %v5168 = vmax.f32 %v5000, 0.0
      %v5169 = vmax.f32 %v5003, 0.0
      %v5170 = vmax.f32 %v5008, 0.0
      %v5171 = vmax.f32 %v5011, 0.0
      %v5172 = vmax.f32 %v5016, 0.0
      %v5173 = vmax.f32 %v5019, 0.0
      %v5174 = vmax.f32 %v5024, 0.0
      %v5175 = vmax.f32 %v5027, 0.0
      %v5176 = vmax.f32 %v5032, 0.0
      %v5177 = vmax.f32 %v5035, 0.0
      %v5178 = vmax.f32 %v5040, 0.0
      %v5179 = vmax.f32 %v5043, 0.0
      %v5180 = vmax.f32 %v5048, 0.0
      %v5181 = vmax.f32 %v5051, 0.0
      %v5182 = vld [vmem:[%s12] sm:$0xf]
      %v5183 = vld [vmem:[%s12 + $0x4] sm:$0xf]
      %v5184 = vld [vmem:[%s12 + $0x8] sm:$0xf]
      %v5185 = vld [vmem:[%s12 + $0xc] sm:$0xf]
      %v5186 = vld [vmem:[%s12 + $0x10] sm:$0xf]
      %v5187 = vld [vmem:[%s12 + $0x14] sm:$0xf]
      %v5188 = vld [vmem:[%s12 + $0x18] sm:$0xf]
      %v5189 = vld [vmem:[%s12 + $0x1c] sm:$0xf]
      %v5190 = vld [vmem:[%s12 + $0x20] sm:$0xf]
      %v5191 = vld [vmem:[%s12 + $0x24] sm:$0xf]
      %v5192 = vld [vmem:[%s12 + $0x28] sm:$0xf]
      %v5193 = vld [vmem:[%s12 + $0x2c] sm:$0xf]
      %v5194 = vld [vmem:[%s12 + $0x30] sm:$0xf]
      %v5195 = vld [vmem:[%s12 + $0x34] sm:$0xf]
      %v5196 = vld [vmem:[%s12 + $0x38] sm:$0xf]
      %v5197 = vld [vmem:[%s12 + $0x3c] sm:$0xf]
      %v5198 = vpack.c.bf16 %v5055, %v5054
      %v5199 = vpack.c.bf16 %v5057, %v5056
      %v5200 = vpack.c.bf16 %v5059, %v5058
      %v5201 = vpack.c.bf16 %v5061, %v5060
      %v5202 = vpack.c.bf16 %v5063, %v5062
      %v5203 = vpack.c.bf16 %v5065, %v5064
      %v5204 = vpack.c.bf16 %v5067, %v5066
      %v5205 = vpack.c.bf16 %v5069, %v5068
      %v5206 = vpack.c.bf16 %v5071, %v5070
      %v5207 = vpack.c.bf16 %v5073, %v5072
      %v5208 = vpack.c.bf16 %v5075, %v5074
      %v5209 = vpack.c.bf16 %v5077, %v5076
      %v5210 = vpack.c.bf16 %v5079, %v5078
      %v5211 = vpack.c.bf16 %v5081, %v5080
      %v5212 = vpack.c.bf16 %v5083, %v5082
      %v5213 = vpack.c.bf16 %v5085, %v5084
      %v5214 = vpack.c.bf16 %v5087, %v5086
      %v5215 = vpack.c.bf16 %v5089, %v5088
      %v5216 = vpack.c.bf16 %v5091, %v5090
      %v5217 = vpack.c.bf16 %v5093, %v5092
      %v5218 = vpack.c.bf16 %v5095, %v5094
      %v5219 = vpack.c.bf16 %v5097, %v5096
      %v5220 = vpack.c.bf16 %v5099, %v5098
      %v5221 = vpack.c.bf16 %v5101, %v5100
      %v5222 = vpack.c.bf16 %v5103, %v5102
      %v5223 = vpack.c.bf16 %v5105, %v5104
      %v5224 = vpack.c.bf16 %v5107, %v5106
      %v5225 = vpack.c.bf16 %v5109, %v5108
      %v5226 = vpack.c.bf16 %v5111, %v5110
      %v5227 = vpack.c.bf16 %v5113, %v5112
      %v5228 = vpack.c.bf16 %v5115, %v5114
      %v5229 = vpack.c.bf16 %v5117, %v5116
      %v5230 = vpack.c.bf16 %v5119, %v5118
      %v5231 = vpack.c.bf16 %v5121, %v5120
      %v5232 = vpack.c.bf16 %v5123, %v5122
      %v5233 = vpack.c.bf16 %v5125, %v5124
      %v5234 = vpack.c.bf16 %v5127, %v5126
      %v5235 = vpack.c.bf16 %v5129, %v5128
      %v5236 = vpack.c.bf16 %v5131, %v5130
      %v5237 = vpack.c.bf16 %v5133, %v5132
      %v5238 = vpack.c.bf16 %v5135, %v5134
      %v5239 = vpack.c.bf16 %v5137, %v5136
      %v5240 = vpack.c.bf16 %v5139, %v5138
      %v5241 = vpack.c.bf16 %v5141, %v5140
      %v5242 = vpack.c.bf16 %v5143, %v5142
      %v5243 = vpack.c.bf16 %v5145, %v5144
      %v5244 = vpack.c.bf16 %v5147, %v5146
      %v5245 = vpack.c.bf16 %v5149, %v5148
      %v5246 = vpack.c.bf16 %v5151, %v5150
      %v5247 = vpack.c.bf16 %v5153, %v5152
      %v5248 = vpack.c.bf16 %v5155, %v5154
      %v5249 = vpack.c.bf16 %v5157, %v5156
      %v5250 = vpack.c.bf16 %v5159, %v5158
      %v5251 = vpack.c.bf16 %v5161, %v5160
      %v5252 = vpack.c.bf16 %v5163, %v5162
      %v5253 = vpack.c.bf16 %v5165, %v5164
      %v5254 = vpack.c.bf16 %v5167, %v5166
      %v5255 = vpack.c.bf16 %v5169, %v5168
      %v5256 = vpack.c.bf16 %v5171, %v5170
      %v5257 = vpack.c.bf16 %v5173, %v5172
      %v5258 = vpack.c.bf16 %v5175, %v5174
      %v5259 = vpack.c.bf16 %v5177, %v5176
      %v5260 = vpack.c.bf16 %v5179, %v5178
      %v5261 = vpack.c.bf16 %v5181, %v5180
      %v5262 = vld [vmem:[%s13] sm:$0xf]
      %v5263 = vld [vmem:[%s13 + $0x4] sm:$0xf]
      %v5264 = vld [vmem:[%s13 + $0x8] sm:$0xf]
      %v5265 = vld [vmem:[%s13 + $0xc] sm:$0x3]
      %v5394 = vunpack.c.l.b16 %v730
      %v5395 = vunpack.c.l.b16 %v731
      %v5396 = vunpack.c.l.b16 %v732
      %v5397 = vunpack.c.l.b16 %v733
      %v5398 = vunpack.c.l.b16 %v734
      %v5399 = vunpack.c.l.b16 %v735
      %v5400 = vunpack.c.l.b16 %v736
      %v5401 = vunpack.c.l.b16 %v737
      %v5402 = vunpack.c.l.b16 %v738
      %v5403 = vunpack.c.l.b16 %v739
      %v5404 = vunpack.c.l.b16 %v740
      %v5405 = vunpack.c.l.b16 %v741
      %v5406 = vunpack.c.l.b16 %v742
      %v5407 = vunpack.c.l.b16 %v743
      %v5408 = vunpack.c.l.b16 %v744
      %v5409 = vunpack.c.l.b16 %v745
      %v5410 = vunpack.c.l.b16 %v746
      %v5411 = vunpack.c.l.b16 %v747
      %v5412 = vunpack.c.l.b16 %v748
      %v5413 = vunpack.c.l.b16 %v749
      %v5414 = vunpack.c.l.b16 %v750
      %v5415 = vunpack.c.l.b16 %v751
      %v5416 = vunpack.c.l.b16 %v752
      %v5417 = vunpack.c.l.b16 %v753
      %v5418 = vunpack.c.l.b16 %v754
      %v5419 = vunpack.c.l.b16 %v755
      %v5420 = vunpack.c.l.b16 %v756
      %v5421 = vunpack.c.l.b16 %v757
      %v5422 = vunpack.c.l.b16 %v758
      %v5423 = vunpack.c.l.b16 %v759
      %v5424 = vunpack.c.l.b16 %v760
      %v5425 = vunpack.c.l.b16 %v761
      %v5426 = vunpack.c.l.b16 %v762
      %v5427 = vunpack.c.l.b16 %v763
      %v5428 = vunpack.c.l.b16 %v764
      %v5429 = vunpack.c.l.b16 %v765
      %v5430 = vunpack.c.l.b16 %v766
      %v5431 = vunpack.c.l.b16 %v767
      %v5432 = vunpack.c.l.b16 %v768
      %v5433 = vunpack.c.l.b16 %v769
      %v5434 = vunpack.c.l.b16 %v770
      %v5435 = vunpack.c.l.b16 %v771
      %v5436 = vunpack.c.l.b16 %v772
      %v5437 = vunpack.c.l.b16 %v773
      %v5438 = vunpack.c.l.b16 %v774
      %v5439 = vunpack.c.l.b16 %v775
      %v5440 = vunpack.c.l.b16 %v776
      %v5441 = vunpack.c.l.b16 %v777
      %v5442 = vunpack.c.l.b16 %v778
      %v5443 = vunpack.c.l.b16 %v779
      %v5444 = vunpack.c.l.b16 %v780
      %v5445 = vunpack.c.l.b16 %v781
      %v5446 = vunpack.c.l.b16 %v782
      %v5447 = vunpack.c.l.b16 %v783
      %v5448 = vunpack.c.l.b16 %v784
      %v5449 = vunpack.c.l.b16 %v785
      %v5450 = vunpack.c.l.b16 %v786
      %v5451 = vunpack.c.l.b16 %v787
      %v5452 = vunpack.c.l.b16 %v788
      %v5453 = vunpack.c.l.b16 %v789
      %v5454 = vunpack.c.l.b16 %v790
      %v5455 = vunpack.c.l.b16 %v791
      %v5456 = vunpack.c.l.b16 %v792
      %v5457 = vunpack.c.l.b16 %v793
      %v5458 = vunpack.c.l.b16 %v794
      %v5459 = vunpack.c.l.b16 %v795
      %v5460 = vunpack.c.l.b16 %v796
      %v5461 = vunpack.c.l.b16 %v797
      %v5462 = vunpack.c.l.b16 %v798
      %v5463 = vunpack.c.l.b16 %v799
      %v5464 = vunpack.c.l.b16 %v800
      %v5465 = vunpack.c.l.b16 %v801
      %v5466 = vunpack.c.l.b16 %v802
      %v5467 = vunpack.c.l.b16 %v803
      %v5468 = vunpack.c.l.b16 %v804
      %v5469 = vunpack.c.l.b16 %v805
      %v5470 = vunpack.c.l.b16 %v806
      %v5471 = vunpack.c.l.b16 %v807
      %v5472 = vunpack.c.l.b16 %v808
      %v5473 = vunpack.c.l.b16 %v809
      %v5474 = vunpack.c.l.b16 %v810
      %v5475 = vunpack.c.l.b16 %v811
      %v5476 = vunpack.c.l.b16 %v812
      %v5477 = vunpack.c.l.b16 %v813
      %v5478 = vunpack.c.l.b16 %v814
      %v5479 = vunpack.c.l.b16 %v815
      %v5480 = vunpack.c.l.b16 %v816
      %v5481 = vunpack.c.l.b16 %v817
      %v5482 = vunpack.c.l.b16 %v818
      %v5483 = vunpack.c.l.b16 %v819
      %v5484 = vunpack.c.l.b16 %v820
      %v5485 = vunpack.c.l.b16 %v821
      %v5486 = vunpack.c.l.b16 %v822
      %v5487 = vunpack.c.l.b16 %v823
      %v5488 = vunpack.c.l.b16 %v824
      %v5489 = vunpack.c.l.b16 %v825
      %v5490 = vunpack.c.l.b16 %v826
      %v5491 = vunpack.c.l.b16 %v827
      %v5492 = vunpack.c.l.b16 %v828
      %v5493 = vunpack.c.l.b16 %v829
      %v5494 = vunpack.c.l.b16 %v830
      %v5495 = vunpack.c.l.b16 %v831
      %v5496 = vunpack.c.l.b16 %v832
      %v5497 = vunpack.c.l.b16 %v833
      %v5498 = vunpack.c.l.b16 %v834
      %v5499 = vunpack.c.l.b16 %v835
      %v5500 = vunpack.c.l.b16 %v836
      %v5501 = vunpack.c.l.b16 %v837
      %v5502 = vunpack.c.l.b16 %v838
      %v5503 = vunpack.c.l.b16 %v839
      %v5504 = vunpack.c.l.b16 %v840
      %v5505 = vunpack.c.l.b16 %v841
      %v5506 = vunpack.c.l.b16 %v842
      %v5507 = vunpack.c.l.b16 %v843
      %v5508 = vunpack.c.l.b16 %v844
      %v5509 = vunpack.c.l.b16 %v845
      %v5510 = vunpack.c.l.b16 %v846
      %v5511 = vunpack.c.l.b16 %v847
      %v5512 = vunpack.c.l.b16 %v848
      %v5513 = vunpack.c.l.b16 %v849
      %v5514 = vunpack.c.l.b16 %v850
      %v5515 = vunpack.c.l.b16 %v851
      %v5516 = vunpack.c.l.b16 %v852
      %v5517 = vunpack.c.l.b16 %v853
      %v5518 = vunpack.c.l.b16 %v854
      %v5519 = vunpack.c.l.b16 %v855
      %v5520 = vunpack.c.l.b16 %v856
      %v5521 = vunpack.c.l.b16 %v857
      %v5522 = vpack.c.b16 %v5395, %v5394
      %v5523 = vpack.c.b16 %v5397, %v5396
      %v5524 = vpack.c.b16 %v5399, %v5398
      %v5525 = vpack.c.b16 %v5401, %v5400
      %v5526 = vpack.c.b16 %v5403, %v5402
      %v5527 = vpack.c.b16 %v5405, %v5404
      %v5528 = vpack.c.b16 %v5407, %v5406
      %v5529 = vpack.c.b16 %v5409, %v5408
      %v5530 = vpack.c.b16 %v5411, %v5410
      %v5531 = vpack.c.b16 %v5413, %v5412
      %v5532 = vpack.c.b16 %v5415, %v5414
      %v5533 = vpack.c.b16 %v5417, %v5416
      %v5534 = vpack.c.b16 %v5419, %v5418
      %v5535 = vpack.c.b16 %v5421, %v5420
      %v5536 = vpack.c.b16 %v5423, %v5422
      %v5537 = vpack.c.b16 %v5425, %v5424
      %v5538 = vpack.c.b16 %v5427, %v5426
      %v5539 = vpack.c.b16 %v5429, %v5428
      %v5540 = vpack.c.b16 %v5431, %v5430
      %v5541 = vpack.c.b16 %v5433, %v5432
      %v5542 = vpack.c.b16 %v5435, %v5434
      %v5543 = vpack.c.b16 %v5437, %v5436
      %v5544 = vpack.c.b16 %v5439, %v5438
      %v5545 = vpack.c.b16 %v5441, %v5440
      %v5546 = vpack.c.b16 %v5443, %v5442
      %v5547 = vpack.c.b16 %v5445, %v5444
      %v5548 = vpack.c.b16 %v5447, %v5446
      %v5549 = vpack.c.b16 %v5449, %v5448
      %v5550 = vpack.c.b16 %v5451, %v5450
      %v5551 = vpack.c.b16 %v5453, %v5452
      %v5552 = vpack.c.b16 %v5455, %v5454
      %v5553 = vpack.c.b16 %v5457, %v5456
      %v5554 = vpack.c.b16 %v5459, %v5458
      %v5555 = vpack.c.b16 %v5461, %v5460
      %v5556 = vpack.c.b16 %v5463, %v5462
      %v5557 = vpack.c.b16 %v5465, %v5464
      %v5558 = vpack.c.b16 %v5467, %v5466
      %v5559 = vpack.c.b16 %v5469, %v5468
      %v5560 = vpack.c.b16 %v5471, %v5470
      %v5561 = vpack.c.b16 %v5473, %v5472
      %v5562 = vpack.c.b16 %v5475, %v5474
      %v5563 = vpack.c.b16 %v5477, %v5476
      %v5564 = vpack.c.b16 %v5479, %v5478
      %v5565 = vpack.c.b16 %v5481, %v5480
      %v5566 = vpack.c.b16 %v5483, %v5482
      %v5567 = vpack.c.b16 %v5485, %v5484
      %v5568 = vpack.c.b16 %v5487, %v5486
      %v5569 = vpack.c.b16 %v5489, %v5488
      %v5570 = vpack.c.b16 %v5491, %v5490
      %v5571 = vpack.c.b16 %v5493, %v5492
      %v5572 = vpack.c.b16 %v5495, %v5494
      %v5573 = vpack.c.b16 %v5497, %v5496
      %v5574 = vpack.c.b16 %v5499, %v5498
      %v5575 = vpack.c.b16 %v5501, %v5500
      %v5576 = vpack.c.b16 %v5503, %v5502
      %v5577 = vpack.c.b16 %v5505, %v5504
      %v5578 = vpack.c.b16 %v5507, %v5506
      %v5579 = vpack.c.b16 %v5509, %v5508
      %v5580 = vpack.c.b16 %v5511, %v5510
      %v5581 = vpack.c.b16 %v5513, %v5512
      %v5582 = vpack.c.b16 %v5515, %v5514
      %v5583 = vpack.c.b16 %v5517, %v5516
      %v5584 = vpack.c.b16 %v5519, %v5518
      %v5585 = vpack.c.b16 %v5521, %v5520
      %v5590 = vunpack.c.l.b16 %v5262
      %v5591 = vunpack.c.l.b16 %v5263
      %v5592 = vunpack.c.l.b16 %v5264
      %v5593 = vunpack.c.l.b16 %v5265
      %v5594 = vpack.c.b16 %v5591, %v5590
      %v5595 = vpack.c.b16 %v5593, %v5592
      %vm5597 = vcmask 220160
      %v5599 = vsel %vm5597, %v5522, 0
      %v5602 = vsel %vm5597, %v5523, 0
      %v5605 = vsel %vm5597, %v5524, 0
      %v5608 = vsel %vm5597, %v5525, 0
      %v5611 = vsel %vm5597, %v5526, 0
      %v5614 = vsel %vm5597, %v5527, 0
      %v5617 = vsel %vm5597, %v5528, 0
      %v5620 = vsel %vm5597, %v5529, 0
      %v5623 = vsel %vm5597, %v5530, 0
      %v5626 = vsel %vm5597, %v5531, 0
      %v5629 = vsel %vm5597, %v5532, 0
      %v5632 = vsel %vm5597, %v5533, 0
      %v5635 = vsel %vm5597, %v5534, 0
      %v5638 = vsel %vm5597, %v5535, 0
      %v5641 = vsel %vm5597, %v5536, 0
      %v5644 = vsel %vm5597, %v5537, 0
      %v5647 = vsel %vm5597, %v5538, 0
      %v5650 = vsel %vm5597, %v5539, 0
      %v5653 = vsel %vm5597, %v5540, 0
      %v5656 = vsel %vm5597, %v5541, 0
      %v5659 = vsel %vm5597, %v5542, 0
      %v5662 = vsel %vm5597, %v5543, 0
      %v5665 = vsel %vm5597, %v5544, 0
      %v5668 = vsel %vm5597, %v5545, 0
      %v5671 = vsel %vm5597, %v5546, 0
      %v5674 = vsel %vm5597, %v5547, 0
      %v5677 = vsel %vm5597, %v5548, 0
      %v5680 = vsel %vm5597, %v5549, 0
      %v5683 = vsel %vm5597, %v5550, 0
      %v5686 = vsel %vm5597, %v5551, 0
      %v5689 = vsel %vm5597, %v5552, 0
      %v5692 = vsel %vm5597, %v5553, 0
      %v5695 = vsel %vm5597, %v5554, 0
      %v5698 = vsel %vm5597, %v5555, 0
      %v5701 = vsel %vm5597, %v5556, 0
      %v5704 = vsel %vm5597, %v5557, 0
      %v5707 = vsel %vm5597, %v5558, 0
      %v5710 = vsel %vm5597, %v5559, 0
      %v5713 = vsel %vm5597, %v5560, 0
      %v5716 = vsel %vm5597, %v5561, 0
      %v5719 = vsel %vm5597, %v5562, 0
      %v5722 = vsel %vm5597, %v5563, 0
      %v5725 = vsel %vm5597, %v5564, 0
      %v5728 = vsel %vm5597, %v5565, 0
      %v5731 = vsel %vm5597, %v5566, 0
      %v5734 = vsel %vm5597, %v5567, 0
      %v5737 = vsel %vm5597, %v5568, 0
      %v5740 = vsel %vm5597, %v5569, 0
      %v5743 = vsel %vm5597, %v5570, 0
      %v5746 = vsel %vm5597, %v5571, 0
      %v5749 = vsel %vm5597, %v5572, 0
      %v5752 = vsel %vm5597, %v5573, 0
      %v5755 = vsel %vm5597, %v5574, 0
      %v5758 = vsel %vm5597, %v5575, 0
      %v5761 = vsel %vm5597, %v5576, 0
      %v5764 = vsel %vm5597, %v5577, 0
      %v5767 = vsel %vm5597, %v5578, 0
      %v5770 = vsel %vm5597, %v5579, 0
      %v5773 = vsel %vm5597, %v5580, 0
      %v5776 = vsel %vm5597, %v5581, 0
      %v5779 = vsel %vm5597, %v5582, 0
      %v5782 = vsel %vm5597, %v5583, 0
      %v5785 = vsel %vm5597, %v5584, 0
      %v5788 = vsel %vm5597, %v5585, 0
      %vm5790 = vcmask 1044480
      %vm5791 = vcmask 1045504
      %v5792 = vsel %vm5790, 4294967295, 65535
      %v5793 = vsel %vm5791, %v5792, 0
      %v5795 = vand.u32 %v5595, %v5793
      %5797 = vmatprep.subr.bf16.mxu0 0
      %5798 = vmatpush1.bf16.msra.mxu0 0
      %5799 = vmatprep.subr.bf16.mxu0 0
      %5800 = vmatpush1.bf16.msra.mxu0 0
      %5801 = vmatprep.subr.bf16.mxu0 0
      %5802 = vmatpush1.bf16.msra.mxu0 0
      %5803 = vmatprep.subr.bf16.mxu0 0
      %5804 = vmatpush1.bf16.msra.mxu0 0
      %5805 = vmatprep.subr.bf16.mxu0 0
      %5806 = vmatpush1.bf16.msra.mxu0 0
      %5807 = vmatprep.subr.bf16.mxu0 0
      %5808 = vmatpush1.bf16.msra.mxu0 0
      %5809 = vmatprep.subr.bf16.mxu0 0
      %5810 = vmatpush1.bf16.msra.mxu0 %v5795
      %5811 = vmatprep.subr.bf16.mxu0 0
      %5812 = vmatpush1.bf16.msra.mxu0 %v5594
      %5813 = vmatprep.subr.bf16.mxu0 0
      %5814 = vmatpush2.bf16.msra.mxu0 0
      %5815 = vmatprep.subr.bf16.mxu0 0
      %5816 = vmatpush2.bf16.msra.mxu0 0
      %5817 = vmatprep.subr.bf16.mxu0 0
      %5818 = vmatpush2.bf16.msra.mxu0 0
      %5819 = vmatprep.subr.bf16.mxu0 0
      %5820 = vmatpush2.bf16.msra.mxu0 0
      %5821 = vmatprep.subr.bf16.mxu0 0
      %5822 = vmatpush2.bf16.msra.mxu0 0
      %5823 = vmatprep.subr.bf16.mxu0 0
      %5824 = vmatpush2.bf16.msra.mxu0 0
      %5825 = vmatprep.subr.bf16.mxu0 0
      %5826 = vmatpush2.bf16.msra.mxu0 0
      %5827 = vmatprep.subr.bf16.mxu0 0
      %5828 = vmatpush2.bf16.msra.mxu0 0
      %5829 = vmatprep.mubr.bf16.mxu0 0
      %5830 = vmatmul.mubr.bf16.gmra.mxu0 %v5599
      %v5831 = vpop.f32.mrf.mxu0
      %v5832 = vadd.f32 0.0, %v5831
      %v5833 = vpop.f32.mrf.mxu0
      %v5834 = vpop.f32.mrf.mxu0
      %v5835 = vadd.f32 0.0, %v5834
      %v5836 = vpop.f32.mrf.mxu0
      %5837 = vmatprep.mubr.bf16.mxu0 0
      %5838 = vmatmul.mubr.bf16.gmra.mxu0 %v5602
      %v5839 = vpop.f32.mrf.mxu0
      %v5840 = vadd.f32 0.0, %v5839
      %v5841 = vpop.f32.mrf.mxu0
      %v5842 = vpop.f32.mrf.mxu0
      %v5843 = vadd.f32 0.0, %v5842
      %v5844 = vpop.f32.mrf.mxu0
      %5845 = vmatprep.mubr.bf16.mxu0 0
      %5846 = vmatmul.mubr.bf16.gmra.mxu0 %v5605
      %v5847 = vpop.f32.mrf.mxu0
      %v5848 = vadd.f32 0.0, %v5847
      %v5849 = vpop.f32.mrf.mxu0
      %v5850 = vpop.f32.mrf.mxu0
      %v5851 = vadd.f32 0.0, %v5850
      %v5852 = vpop.f32.mrf.mxu0
      %5853 = vmatprep.mubr.bf16.mxu0 0
      %5854 = vmatmul.mubr.bf16.gmra.mxu0 %v5608
      %v5855 = vpop.f32.mrf.mxu0
      %v5856 = vadd.f32 0.0, %v5855
      %v5857 = vpop.f32.mrf.mxu0
      %v5858 = vpop.f32.mrf.mxu0
      %v5859 = vadd.f32 0.0, %v5858
      %v5860 = vpop.f32.mrf.mxu0
      %5861 = vmatprep.mubr.bf16.mxu0 0
      %5862 = vmatmul.mubr.bf16.gmra.mxu0 %v5611
      %v5863 = vpop.f32.mrf.mxu0
      %v5864 = vadd.f32 0.0, %v5863
      %v5865 = vpop.f32.mrf.mxu0
      %v5866 = vpop.f32.mrf.mxu0
      %v5867 = vadd.f32 0.0, %v5866
      %v5868 = vpop.f32.mrf.mxu0
      %5869 = vmatprep.mubr.bf16.mxu0 0
      %5870 = vmatmul.mubr.bf16.gmra.mxu0 %v5614
      %v5871 = vpop.f32.mrf.mxu0
      %v5872 = vadd.f32 0.0, %v5871
      %v5873 = vpop.f32.mrf.mxu0
      %v5874 = vpop.f32.mrf.mxu0
      %v5875 = vadd.f32 0.0, %v5874
      %v5876 = vpop.f32.mrf.mxu0
      %5877 = vmatprep.mubr.bf16.mxu0 0
      %5878 = vmatmul.mubr.bf16.gmra.mxu0 %v5617
      %v5879 = vpop.f32.mrf.mxu0
      %v5880 = vadd.f32 0.0, %v5879
      %v5881 = vpop.f32.mrf.mxu0
      %v5882 = vpop.f32.mrf.mxu0
      %v5883 = vadd.f32 0.0, %v5882
      %v5884 = vpop.f32.mrf.mxu0
      %5885 = vmatprep.mubr.bf16.mxu0 0
      %5886 = vmatmul.mubr.bf16.gmra.mxu0 %v5620
      %v5887 = vpop.f32.mrf.mxu0
      %v5888 = vadd.f32 0.0, %v5887
      %v5889 = vpop.f32.mrf.mxu0
      %v5890 = vpop.f32.mrf.mxu0
      %v5891 = vadd.f32 0.0, %v5890
      %v5892 = vpop.f32.mrf.mxu0
      %5893 = vmatprep.mubr.bf16.mxu0 0
      %5894 = vmatmul.mubr.bf16.gmra.mxu0 %v5623
      %v5895 = vpop.f32.mrf.mxu0
      %v5896 = vadd.f32 0.0, %v5895
      %v5897 = vpop.f32.mrf.mxu0
      %v5898 = vpop.f32.mrf.mxu0
      %v5899 = vadd.f32 0.0, %v5898
      %v5900 = vpop.f32.mrf.mxu0
      %5901 = vmatprep.mubr.bf16.mxu0 0
      %5902 = vmatmul.mubr.bf16.gmra.mxu0 %v5626
      %v5903 = vpop.f32.mrf.mxu0
      %v5904 = vadd.f32 0.0, %v5903
      %v5905 = vpop.f32.mrf.mxu0
      %v5906 = vpop.f32.mrf.mxu0
      %v5907 = vadd.f32 0.0, %v5906
      %v5908 = vpop.f32.mrf.mxu0
      %5909 = vmatprep.mubr.bf16.mxu0 0
      %5910 = vmatmul.mubr.bf16.gmra.mxu0 %v5629
      %v5911 = vpop.f32.mrf.mxu0
      %v5912 = vadd.f32 0.0, %v5911
      %v5913 = vpop.f32.mrf.mxu0
      %v5914 = vpop.f32.mrf.mxu0
      %v5915 = vadd.f32 0.0, %v5914
      %v5916 = vpop.f32.mrf.mxu0
      %5917 = vmatprep.mubr.bf16.mxu0 0
      %5918 = vmatmul.mubr.bf16.gmra.mxu0 %v5632
      %v5919 = vpop.f32.mrf.mxu0
      %v5920 = vadd.f32 0.0, %v5919
      %v5921 = vpop.f32.mrf.mxu0
      %v5922 = vpop.f32.mrf.mxu0
      %v5923 = vadd.f32 0.0, %v5922
      %v5924 = vpop.f32.mrf.mxu0
      %5925 = vmatprep.mubr.bf16.mxu0 0
      %5926 = vmatmul.mubr.bf16.gmra.mxu0 %v5635
      %v5927 = vpop.f32.mrf.mxu0
      %v5928 = vadd.f32 0.0, %v5927
      %v5929 = vpop.f32.mrf.mxu0
      %v5930 = vpop.f32.mrf.mxu0
      %v5931 = vadd.f32 0.0, %v5930
      %v5932 = vpop.f32.mrf.mxu0
      %5933 = vmatprep.mubr.bf16.mxu0 0
      %5934 = vmatmul.mubr.bf16.gmra.mxu0 %v5638
      %v5935 = vpop.f32.mrf.mxu0
      %v5936 = vadd.f32 0.0, %v5935
      %v5937 = vpop.f32.mrf.mxu0
      %v5938 = vpop.f32.mrf.mxu0
      %v5939 = vadd.f32 0.0, %v5938
      %v5940 = vpop.f32.mrf.mxu0
      %5941 = vmatprep.mubr.bf16.mxu0 0
      %5942 = vmatmul.mubr.bf16.gmra.mxu0 %v5641
      %v5943 = vpop.f32.mrf.mxu0
      %v5944 = vadd.f32 0.0, %v5943
      %v5945 = vpop.f32.mrf.mxu0
      %v5946 = vpop.f32.mrf.mxu0
      %v5947 = vadd.f32 0.0, %v5946
      %v5948 = vpop.f32.mrf.mxu0
      %5949 = vmatprep.mubr.bf16.mxu0 0
      %5950 = vmatmul.mubr.bf16.gmra.mxu0 %v5644
      %v5951 = vpop.f32.mrf.mxu0
      %v5952 = vadd.f32 0.0, %v5951
      %v5953 = vpop.f32.mrf.mxu0
      %v5954 = vpop.f32.mrf.mxu0
      %v5955 = vadd.f32 0.0, %v5954
      %v5956 = vpop.f32.mrf.mxu0
      %5957 = vmatprep.mubr.bf16.mxu0 0
      %5958 = vmatmul.mubr.bf16.gmra.mxu0 %v5647
      %v5959 = vpop.f32.mrf.mxu0
      %v5960 = vadd.f32 0.0, %v5959
      %v5961 = vpop.f32.mrf.mxu0
      %v5962 = vpop.f32.mrf.mxu0
      %v5963 = vadd.f32 0.0, %v5962
      %v5964 = vpop.f32.mrf.mxu0
      %5965 = vmatprep.mubr.bf16.mxu0 0
      %5966 = vmatmul.mubr.bf16.gmra.mxu0 %v5650
      %v5967 = vpop.f32.mrf.mxu0
      %v5968 = vadd.f32 0.0, %v5967
      %v5969 = vpop.f32.mrf.mxu0
      %v5970 = vpop.f32.mrf.mxu0
      %v5971 = vadd.f32 0.0, %v5970
      %v5972 = vpop.f32.mrf.mxu0
      %5973 = vmatprep.mubr.bf16.mxu0 0
      %5974 = vmatmul.mubr.bf16.gmra.mxu0 %v5653
      %v5975 = vpop.f32.mrf.mxu0
      %v5976 = vadd.f32 0.0, %v5975
      %v5977 = vpop.f32.mrf.mxu0
      %v5978 = vpop.f32.mrf.mxu0
      %v5979 = vadd.f32 0.0, %v5978
      %v5980 = vpop.f32.mrf.mxu0
      %5981 = vmatprep.mubr.bf16.mxu0 0
      %5982 = vmatmul.mubr.bf16.gmra.mxu0 %v5656
      %v5983 = vpop.f32.mrf.mxu0
      %v5984 = vadd.f32 0.0, %v5983
      %v5985 = vpop.f32.mrf.mxu0
      %v5986 = vpop.f32.mrf.mxu0
      %v5987 = vadd.f32 0.0, %v5986
      %v5988 = vpop.f32.mrf.mxu0
      %5989 = vmatprep.mubr.bf16.mxu0 0
      %5990 = vmatmul.mubr.bf16.gmra.mxu0 %v5659
      %v5991 = vpop.f32.mrf.mxu0
      %v5992 = vadd.f32 0.0, %v5991
      %v5993 = vpop.f32.mrf.mxu0
      %v5994 = vpop.f32.mrf.mxu0
      %v5995 = vadd.f32 0.0, %v5994
      %v5996 = vpop.f32.mrf.mxu0
      %5997 = vmatprep.mubr.bf16.mxu0 0
      %5998 = vmatmul.mubr.bf16.gmra.mxu0 %v5662
      %v5999 = vpop.f32.mrf.mxu0
      %v6000 = vadd.f32 0.0, %v5999
      %v6001 = vpop.f32.mrf.mxu0
      %v6002 = vpop.f32.mrf.mxu0
      %v6003 = vadd.f32 0.0, %v6002
      %v6004 = vpop.f32.mrf.mxu0
      %6005 = vmatprep.mubr.bf16.mxu0 0
      %6006 = vmatmul.mubr.bf16.gmra.mxu0 %v5665
      %v6007 = vpop.f32.mrf.mxu0
      %v6008 = vadd.f32 0.0, %v6007
      %v6009 = vpop.f32.mrf.mxu0
      %v6010 = vpop.f32.mrf.mxu0
      %v6011 = vadd.f32 0.0, %v6010
      %v6012 = vpop.f32.mrf.mxu0
      %6013 = vmatprep.mubr.bf16.mxu0 0
      %6014 = vmatmul.mubr.bf16.gmra.mxu0 %v5668
      %v6015 = vpop.f32.mrf.mxu0
      %v6016 = vadd.f32 0.0, %v6015
      %v6017 = vpop.f32.mrf.mxu0
      %v6018 = vpop.f32.mrf.mxu0
      %v6019 = vadd.f32 0.0, %v6018
      %v6020 = vpop.f32.mrf.mxu0
      %6021 = vmatprep.mubr.bf16.mxu0 0
      %6022 = vmatmul.mubr.bf16.gmra.mxu0 %v5671
      %v6023 = vpop.f32.mrf.mxu0
      %v6024 = vadd.f32 0.0, %v6023
      %v6025 = vpop.f32.mrf.mxu0
      %v6026 = vpop.f32.mrf.mxu0
      %v6027 = vadd.f32 0.0, %v6026
      %v6028 = vpop.f32.mrf.mxu0
      %6029 = vmatprep.mubr.bf16.mxu0 0
      %6030 = vmatmul.mubr.bf16.gmra.mxu0 %v5674
      %v6031 = vpop.f32.mrf.mxu0
      %v6032 = vadd.f32 0.0, %v6031
      %v6033 = vpop.f32.mrf.mxu0
      %v6034 = vpop.f32.mrf.mxu0
      %v6035 = vadd.f32 0.0, %v6034
      %v6036 = vpop.f32.mrf.mxu0
      %6037 = vmatprep.mubr.bf16.mxu0 0
      %6038 = vmatmul.mubr.bf16.gmra.mxu0 %v5677
      %v6039 = vpop.f32.mrf.mxu0
      %v6040 = vadd.f32 0.0, %v6039
      %v6041 = vpop.f32.mrf.mxu0
      %v6042 = vpop.f32.mrf.mxu0
      %v6043 = vadd.f32 0.0, %v6042
      %v6044 = vpop.f32.mrf.mxu0
      %6045 = vmatprep.mubr.bf16.mxu0 0
      %6046 = vmatmul.mubr.bf16.gmra.mxu0 %v5680
      %v6047 = vpop.f32.mrf.mxu0
      %v6048 = vadd.f32 0.0, %v6047
      %v6049 = vpop.f32.mrf.mxu0
      %v6050 = vpop.f32.mrf.mxu0
      %v6051 = vadd.f32 0.0, %v6050
      %v6052 = vpop.f32.mrf.mxu0
      %6053 = vmatprep.mubr.bf16.mxu0 0
      %6054 = vmatmul.mubr.bf16.gmra.mxu0 %v5683
      %v6055 = vpop.f32.mrf.mxu0
      %v6056 = vadd.f32 0.0, %v6055
      %v6057 = vpop.f32.mrf.mxu0
      %v6058 = vpop.f32.mrf.mxu0
      %v6059 = vadd.f32 0.0, %v6058
      %v6060 = vpop.f32.mrf.mxu0
      %6061 = vmatprep.mubr.bf16.mxu0 0
      %6062 = vmatmul.mubr.bf16.gmra.mxu0 %v5686
      %v6063 = vpop.f32.mrf.mxu0
      %v6064 = vadd.f32 0.0, %v6063
      %v6065 = vpop.f32.mrf.mxu0
      %v6066 = vpop.f32.mrf.mxu0
      %v6067 = vadd.f32 0.0, %v6066
      %v6068 = vpop.f32.mrf.mxu0
      %6069 = vmatprep.mubr.bf16.mxu0 0
      %6070 = vmatmul.mubr.bf16.gmra.mxu0 %v5689
      %v6071 = vpop.f32.mrf.mxu0
      %v6072 = vadd.f32 0.0, %v6071
      %v6073 = vpop.f32.mrf.mxu0
      %v6074 = vpop.f32.mrf.mxu0
      %v6075 = vadd.f32 0.0, %v6074
      %v6076 = vpop.f32.mrf.mxu0
      %6077 = vmatprep.mubr.bf16.mxu0 0
      %6078 = vmatmul.mubr.bf16.gmra.mxu0 %v5692
      %v6079 = vpop.f32.mrf.mxu0
      %v6080 = vadd.f32 0.0, %v6079
      %v6081 = vpop.f32.mrf.mxu0
      %v6082 = vpop.f32.mrf.mxu0
      %v6083 = vadd.f32 0.0, %v6082
      %v6084 = vpop.f32.mrf.mxu0
      %6085 = vmatprep.mubr.bf16.mxu0 0
      %6086 = vmatmul.mubr.bf16.gmra.mxu0 %v5695
      %v6087 = vpop.f32.mrf.mxu0
      %v6088 = vadd.f32 0.0, %v6087
      %v6089 = vpop.f32.mrf.mxu0
      %v6090 = vpop.f32.mrf.mxu0
      %v6091 = vadd.f32 0.0, %v6090
      %v6092 = vpop.f32.mrf.mxu0
      %6093 = vmatprep.mubr.bf16.mxu0 0
      %6094 = vmatmul.mubr.bf16.gmra.mxu0 %v5698
      %v6095 = vpop.f32.mrf.mxu0
      %v6096 = vadd.f32 0.0, %v6095
      %v6097 = vpop.f32.mrf.mxu0
      %v6098 = vpop.f32.mrf.mxu0
      %v6099 = vadd.f32 0.0, %v6098
      %v6100 = vpop.f32.mrf.mxu0
      %6101 = vmatprep.mubr.bf16.mxu0 0
      %6102 = vmatmul.mubr.bf16.gmra.mxu0 %v5701
      %v6103 = vpop.f32.mrf.mxu0
      %v6104 = vadd.f32 0.0, %v6103
      %v6105 = vpop.f32.mrf.mxu0
      %v6106 = vpop.f32.mrf.mxu0
      %v6107 = vadd.f32 0.0, %v6106
      %v6108 = vpop.f32.mrf.mxu0
      %6109 = vmatprep.mubr.bf16.mxu0 0
      %6110 = vmatmul.mubr.bf16.gmra.mxu0 %v5704
      %v6111 = vpop.f32.mrf.mxu0
      %v6112 = vadd.f32 0.0, %v6111
      %v6113 = vpop.f32.mrf.mxu0
      %v6114 = vpop.f32.mrf.mxu0
      %v6115 = vadd.f32 0.0, %v6114
      %v6116 = vpop.f32.mrf.mxu0
      %6117 = vmatprep.mubr.bf16.mxu0 0
      %6118 = vmatmul.mubr.bf16.gmra.mxu0 %v5707
      %v6119 = vpop.f32.mrf.mxu0
      %v6120 = vadd.f32 0.0, %v6119
      %v6121 = vpop.f32.mrf.mxu0
      %v6122 = vpop.f32.mrf.mxu0
      %v6123 = vadd.f32 0.0, %v6122
      %v6124 = vpop.f32.mrf.mxu0
      %6125 = vmatprep.mubr.bf16.mxu0 0
      %6126 = vmatmul.mubr.bf16.gmra.mxu0 %v5710
      %v6127 = vpop.f32.mrf.mxu0
      %v6128 = vadd.f32 0.0, %v6127
      %v6129 = vpop.f32.mrf.mxu0
      %v6130 = vpop.f32.mrf.mxu0
      %v6131 = vadd.f32 0.0, %v6130
      %v6132 = vpop.f32.mrf.mxu0
      %6133 = vmatprep.mubr.bf16.mxu0 0
      %6134 = vmatmul.mubr.bf16.gmra.mxu0 %v5713
      %v6135 = vpop.f32.mrf.mxu0
      %v6136 = vadd.f32 0.0, %v6135
      %v6137 = vpop.f32.mrf.mxu0
      %v6138 = vpop.f32.mrf.mxu0
      %v6139 = vadd.f32 0.0, %v6138
      %v6140 = vpop.f32.mrf.mxu0
      %6141 = vmatprep.mubr.bf16.mxu0 0
      %6142 = vmatmul.mubr.bf16.gmra.mxu0 %v5716
      %v6143 = vpop.f32.mrf.mxu0
      %v6144 = vadd.f32 0.0, %v6143
      %v6145 = vpop.f32.mrf.mxu0
      %v6146 = vpop.f32.mrf.mxu0
      %v6147 = vadd.f32 0.0, %v6146
      %v6148 = vpop.f32.mrf.mxu0
      %6149 = vmatprep.mubr.bf16.mxu0 0
      %6150 = vmatmul.mubr.bf16.gmra.mxu0 %v5719
      %v6151 = vpop.f32.mrf.mxu0
      %v6152 = vadd.f32 0.0, %v6151
      %v6153 = vpop.f32.mrf.mxu0
      %v6154 = vpop.f32.mrf.mxu0
      %v6155 = vadd.f32 0.0, %v6154
      %v6156 = vpop.f32.mrf.mxu0
      %6157 = vmatprep.mubr.bf16.mxu0 0
      %6158 = vmatmul.mubr.bf16.gmra.mxu0 %v5722
      %v6159 = vpop.f32.mrf.mxu0
      %v6160 = vadd.f32 0.0, %v6159
      %v6161 = vpop.f32.mrf.mxu0
      %v6162 = vpop.f32.mrf.mxu0
      %v6163 = vadd.f32 0.0, %v6162
      %v6164 = vpop.f32.mrf.mxu0
      %6165 = vmatprep.mubr.bf16.mxu0 0
      %6166 = vmatmul.mubr.bf16.gmra.mxu0 %v5725
      %v6167 = vpop.f32.mrf.mxu0
      %v6168 = vadd.f32 0.0, %v6167
      %v6169 = vpop.f32.mrf.mxu0
      %v6170 = vpop.f32.mrf.mxu0
      %v6171 = vadd.f32 0.0, %v6170
      %v6172 = vpop.f32.mrf.mxu0
      %6173 = vmatprep.mubr.bf16.mxu0 0
      %6174 = vmatmul.mubr.bf16.gmra.mxu0 %v5728
      %v6175 = vpop.f32.mrf.mxu0
      %v6176 = vadd.f32 0.0, %v6175
      %v6177 = vpop.f32.mrf.mxu0
      %v6178 = vpop.f32.mrf.mxu0
      %v6179 = vadd.f32 0.0, %v6178
      %v6180 = vpop.f32.mrf.mxu0
      %6181 = vmatprep.mubr.bf16.mxu0 0
      %6182 = vmatmul.mubr.bf16.gmra.mxu0 %v5731
      %v6183 = vpop.f32.mrf.mxu0
      %v6184 = vadd.f32 0.0, %v6183
      %v6185 = vpop.f32.mrf.mxu0
      %v6186 = vpop.f32.mrf.mxu0
      %v6187 = vadd.f32 0.0, %v6186
      %v6188 = vpop.f32.mrf.mxu0
      %6189 = vmatprep.mubr.bf16.mxu0 0
      %6190 = vmatmul.mubr.bf16.gmra.mxu0 %v5734
      %v6191 = vpop.f32.mrf.mxu0
      %v6192 = vadd.f32 0.0, %v6191
      %v6193 = vpop.f32.mrf.mxu0
      %v6194 = vpop.f32.mrf.mxu0
      %v6195 = vadd.f32 0.0, %v6194
      %v6196 = vpop.f32.mrf.mxu0
      %6197 = vmatprep.mubr.bf16.mxu0 0
      %6198 = vmatmul.mubr.bf16.gmra.mxu0 %v5737
      %v6199 = vpop.f32.mrf.mxu0
      %v6200 = vadd.f32 0.0, %v6199
      %v6201 = vpop.f32.mrf.mxu0
      %v6202 = vpop.f32.mrf.mxu0
      %v6203 = vadd.f32 0.0, %v6202
      %v6204 = vpop.f32.mrf.mxu0
      %6205 = vmatprep.mubr.bf16.mxu0 0
      %6206 = vmatmul.mubr.bf16.gmra.mxu0 %v5740
      %v6207 = vpop.f32.mrf.mxu0
      %v6208 = vadd.f32 0.0, %v6207
      %v6209 = vpop.f32.mrf.mxu0
      %v6210 = vpop.f32.mrf.mxu0
      %v6211 = vadd.f32 0.0, %v6210
      %v6212 = vpop.f32.mrf.mxu0
      %6213 = vmatprep.mubr.bf16.mxu0 0
      %6214 = vmatmul.mubr.bf16.gmra.mxu0 %v5743
      %v6215 = vpop.f32.mrf.mxu0
      %v6216 = vadd.f32 0.0, %v6215
      %v6217 = vpop.f32.mrf.mxu0
      %v6218 = vpop.f32.mrf.mxu0
      %v6219 = vadd.f32 0.0, %v6218
      %v6220 = vpop.f32.mrf.mxu0
      %6221 = vmatprep.mubr.bf16.mxu0 0
      %6222 = vmatmul.mubr.bf16.gmra.mxu0 %v5746
      %v6223 = vpop.f32.mrf.mxu0
      %v6224 = vadd.f32 0.0, %v6223
      %v6225 = vpop.f32.mrf.mxu0
      %v6226 = vpop.f32.mrf.mxu0
      %v6227 = vadd.f32 0.0, %v6226
      %v6228 = vpop.f32.mrf.mxu0
      %6229 = vmatprep.mubr.bf16.mxu0 0
      %6230 = vmatmul.mubr.bf16.gmra.mxu0 %v5749
      %v6231 = vpop.f32.mrf.mxu0
      %v6232 = vadd.f32 0.0, %v6231
      %v6233 = vpop.f32.mrf.mxu0
      %v6234 = vpop.f32.mrf.mxu0
      %v6235 = vadd.f32 0.0, %v6234
      %v6236 = vpop.f32.mrf.mxu0
      %6237 = vmatprep.mubr.bf16.mxu0 0
      %6238 = vmatmul.mubr.bf16.gmra.mxu0 %v5752
      %v6239 = vpop.f32.mrf.mxu0
      %v6240 = vadd.f32 0.0, %v6239
      %v6241 = vpop.f32.mrf.mxu0
      %v6242 = vpop.f32.mrf.mxu0
      %v6243 = vadd.f32 0.0, %v6242
      %v6244 = vpop.f32.mrf.mxu0
      %6245 = vmatprep.mubr.bf16.mxu0 0
      %6246 = vmatmul.mubr.bf16.gmra.mxu0 %v5755
      %v6247 = vpop.f32.mrf.mxu0
      %v6248 = vadd.f32 0.0, %v6247
      %v6249 = vpop.f32.mrf.mxu0
      %v6250 = vpop.f32.mrf.mxu0
      %v6251 = vadd.f32 0.0, %v6250
      %v6252 = vpop.f32.mrf.mxu0
      %6253 = vmatprep.mubr.bf16.mxu0 0
      %6254 = vmatmul.mubr.bf16.gmra.mxu0 %v5758
      %v6255 = vpop.f32.mrf.mxu0
      %v6256 = vadd.f32 0.0, %v6255
      %v6257 = vpop.f32.mrf.mxu0
      %v6258 = vpop.f32.mrf.mxu0
      %v6259 = vadd.f32 0.0, %v6258
      %v6260 = vpop.f32.mrf.mxu0
      %6261 = vmatprep.mubr.bf16.mxu0 0
      %6262 = vmatmul.mubr.bf16.gmra.mxu0 %v5761
      %v6263 = vpop.f32.mrf.mxu0
      %v6264 = vadd.f32 0.0, %v6263
      %v6265 = vpop.f32.mrf.mxu0
      %v6266 = vpop.f32.mrf.mxu0
      %v6267 = vadd.f32 0.0, %v6266
      %v6268 = vpop.f32.mrf.mxu0
      %6269 = vmatprep.mubr.bf16.mxu0 0
      %6270 = vmatmul.mubr.bf16.gmra.mxu0 %v5764
      %v6271 = vpop.f32.mrf.mxu0
      %v6272 = vadd.f32 0.0, %v6271
      %v6273 = vpop.f32.mrf.mxu0
      %v6274 = vpop.f32.mrf.mxu0
      %v6275 = vadd.f32 0.0, %v6274
      %v6276 = vpop.f32.mrf.mxu0
      %6277 = vmatprep.mubr.bf16.mxu0 0
      %6278 = vmatmul.mubr.bf16.gmra.mxu0 %v5767
      %v6279 = vpop.f32.mrf.mxu0
      %v6280 = vadd.f32 0.0, %v6279
      %v6281 = vpop.f32.mrf.mxu0
      %v6282 = vpop.f32.mrf.mxu0
      %v6283 = vadd.f32 0.0, %v6282
      %v6284 = vpop.f32.mrf.mxu0
      %6285 = vmatprep.mubr.bf16.mxu0 0
      %6286 = vmatmul.mubr.bf16.gmra.mxu0 %v5770
      %v6287 = vpop.f32.mrf.mxu0
      %v6288 = vadd.f32 0.0, %v6287
      %v6289 = vpop.f32.mrf.mxu0
      %v6290 = vpop.f32.mrf.mxu0
      %v6291 = vadd.f32 0.0, %v6290
      %v6292 = vpop.f32.mrf.mxu0
      %6293 = vmatprep.mubr.bf16.mxu0 0
      %6294 = vmatmul.mubr.bf16.gmra.mxu0 %v5773
      %v6295 = vpop.f32.mrf.mxu0
      %v6296 = vadd.f32 0.0, %v6295
      %v6297 = vpop.f32.mrf.mxu0
      %v6298 = vpop.f32.mrf.mxu0
      %v6299 = vadd.f32 0.0, %v6298
      %v6300 = vpop.f32.mrf.mxu0
      %6301 = vmatprep.mubr.bf16.mxu0 0
      %6302 = vmatmul.mubr.bf16.gmra.mxu0 %v5776
      %v6303 = vpop.f32.mrf.mxu0
      %v6304 = vadd.f32 0.0, %v6303
      %v6305 = vpop.f32.mrf.mxu0
      %v6306 = vpop.f32.mrf.mxu0
      %v6307 = vadd.f32 0.0, %v6306
      %v6308 = vpop.f32.mrf.mxu0
      %6309 = vmatprep.mubr.bf16.mxu0 0
      %6310 = vmatmul.mubr.bf16.gmra.mxu0 %v5779
      %v6311 = vpop.f32.mrf.mxu0
      %v6312 = vadd.f32 0.0, %v6311
      %v6313 = vpop.f32.mrf.mxu0
      %v6314 = vpop.f32.mrf.mxu0
      %v6315 = vadd.f32 0.0, %v6314
      %v6316 = vpop.f32.mrf.mxu0
      %6317 = vmatprep.mubr.bf16.mxu0 0
      %6318 = vmatmul.mubr.bf16.gmra.mxu0 %v5782
      %v6319 = vpop.f32.mrf.mxu0
      %v6320 = vadd.f32 0.0, %v6319
      %v6321 = vpop.f32.mrf.mxu0
      %v6322 = vpop.f32.mrf.mxu0
      %v6323 = vadd.f32 0.0, %v6322
      %v6324 = vpop.f32.mrf.mxu0
      %6325 = vmatprep.mubr.bf16.mxu0 0
      %6326 = vmatmul.mubr.bf16.gmra.mxu0 %v5785
      %v6327 = vpop.f32.mrf.mxu0
      %v6328 = vadd.f32 0.0, %v6327
      %v6329 = vpop.f32.mrf.mxu0
      %v6330 = vpop.f32.mrf.mxu0
      %v6331 = vadd.f32 0.0, %v6330
      %v6332 = vpop.f32.mrf.mxu0
      %6333 = vmatprep.mubr.bf16.mxu0 0
      %6334 = vmatmul.mubr.bf16.gmra.mxu0 %v5788
      %v6335 = vpop.f32.mrf.mxu0
      %v6336 = vadd.f32 0.0, %v6335
      %v6337 = vpop.f32.mrf.mxu0
      %v6338 = vpop.f32.mrf.mxu0
      %v6339 = vadd.f32 0.0, %v6338
      %v6340 = vpop.f32.mrf.mxu0
      %6341 = vdwg.mxu0
      %v6358 = vunpack.c.l.b16 %v5182
      %v6359 = vunpack.c.l.b16 %v5183
      %v6360 = vunpack.c.l.b16 %v5184
      %v6361 = vunpack.c.l.b16 %v5185
      %v6362 = vunpack.c.l.b16 %v5186
      %v6363 = vunpack.c.l.b16 %v5187
      %v6364 = vunpack.c.l.b16 %v5188
      %v6365 = vunpack.c.l.b16 %v5189
      %v6366 = vunpack.c.l.b16 %v5190
      %v6367 = vunpack.c.l.b16 %v5191
      %v6368 = vunpack.c.l.b16 %v5192
      %v6369 = vunpack.c.l.b16 %v5193
      %v6370 = vunpack.c.l.b16 %v5194
      %v6371 = vunpack.c.l.b16 %v5195
      %v6372 = vunpack.c.l.b16 %v5196
      %v6373 = vunpack.c.l.b16 %v5197
      %v6374 = vpack.c.b16 %v6359, %v6358
      %v6375 = vpack.c.b16 %v6361, %v6360
      %v6376 = vpack.c.b16 %v6363, %v6362
      %v6377 = vpack.c.b16 %v6365, %v6364
      %v6378 = vpack.c.b16 %v6367, %v6366
      %v6379 = vpack.c.b16 %v6369, %v6368
      %v6380 = vpack.c.b16 %v6371, %v6370
      %v6381 = vpack.c.b16 %v6373, %v6372
      %6390 = vmatprep.subr.bf16.mxu0 0
      %6391 = vmatpush1.bf16.msra.mxu0 %v6381
      %6392 = vmatprep.subr.bf16.mxu0 0
      %6393 = vmatpush1.bf16.msra.mxu0 %v6380
      %6394 = vmatprep.subr.bf16.mxu0 0
      %6395 = vmatpush1.bf16.msra.mxu0 %v6379
      %6396 = vmatprep.subr.bf16.mxu0 0
      %6397 = vmatpush1.bf16.msra.mxu0 %v6378
      %6398 = vmatprep.subr.bf16.mxu0 0
      %6399 = vmatpush1.bf16.msra.mxu0 %v6377
      %6400 = vmatprep.subr.bf16.mxu0 0
      %6401 = vmatpush1.bf16.msra.mxu0 %v6376
      %6402 = vmatprep.subr.bf16.mxu0 0
      %6403 = vmatpush1.bf16.msra.mxu0 %v6375
      %6404 = vmatprep.subr.bf16.mxu0 0
      %6405 = vmatpush1.bf16.msra.mxu0 %v6374
      %6406 = vmatprep.subr.bf16.mxu0 0
      %6407 = vmatpush2.bf16.msra.mxu0 0
      %6408 = vmatprep.subr.bf16.mxu0 0
      %6409 = vmatpush2.bf16.msra.mxu0 0
      %6410 = vmatprep.subr.bf16.mxu0 0
      %6411 = vmatpush2.bf16.msra.mxu0 0
      %6412 = vmatprep.subr.bf16.mxu0 0
      %6413 = vmatpush2.bf16.msra.mxu0 0
      %6414 = vmatprep.subr.bf16.mxu0 0
      %6415 = vmatpush2.bf16.msra.mxu0 0
      %6416 = vmatprep.subr.bf16.mxu0 0
      %6417 = vmatpush2.bf16.msra.mxu0 0
      %6418 = vmatprep.subr.bf16.mxu0 0
      %6419 = vmatpush2.bf16.msra.mxu0 0
      %6420 = vmatprep.subr.bf16.mxu0 0
      %6421 = vmatpush2.bf16.msra.mxu0 0
      %6422 = vmatprep.mubr.bf16.mxu0 0
      %6423 = vmatmul.mubr.bf16.gmra.mxu0 %v5198
      %v6424 = vpop.f32.mrf.mxu0
      %v6425 = vadd.f32 %v5832, %v6424
      %v6426 = vpop.f32.mrf.mxu0
      %v6427 = vpop.f32.mrf.mxu0
      %v6428 = vadd.f32 %v5835, %v6427
      %v6429 = vpop.f32.mrf.mxu0
      %6430 = vmatprep.mubr.bf16.mxu0 0
      %6431 = vmatmul.mubr.bf16.gmra.mxu0 %v5199
      %v6432 = vpop.f32.mrf.mxu0
      %v6433 = vadd.f32 %v5840, %v6432
      %v6434 = vpop.f32.mrf.mxu0
      %v6435 = vpop.f32.mrf.mxu0
      %v6436 = vadd.f32 %v5843, %v6435
      %v6437 = vpop.f32.mrf.mxu0
      %6438 = vmatprep.mubr.bf16.mxu0 0
      %6439 = vmatmul.mubr.bf16.gmra.mxu0 %v5200
      %v6440 = vpop.f32.mrf.mxu0
      %v6441 = vadd.f32 %v5848, %v6440
      %v6442 = vpop.f32.mrf.mxu0
      %v6443 = vpop.f32.mrf.mxu0
      %v6444 = vadd.f32 %v5851, %v6443
      %v6445 = vpop.f32.mrf.mxu0
      %6446 = vmatprep.mubr.bf16.mxu0 0
      %6447 = vmatmul.mubr.bf16.gmra.mxu0 %v5201
      %v6448 = vpop.f32.mrf.mxu0
      %v6449 = vadd.f32 %v5856, %v6448
      %v6450 = vpop.f32.mrf.mxu0
      %v6451 = vpop.f32.mrf.mxu0
      %v6452 = vadd.f32 %v5859, %v6451
      %v6453 = vpop.f32.mrf.mxu0
      %6454 = vmatprep.mubr.bf16.mxu0 0
      %6455 = vmatmul.mubr.bf16.gmra.mxu0 %v5202
      %v6456 = vpop.f32.mrf.mxu0
      %v6457 = vadd.f32 %v5864, %v6456
      %v6458 = vpop.f32.mrf.mxu0
      %v6459 = vpop.f32.mrf.mxu0
      %v6460 = vadd.f32 %v5867, %v6459
      %v6461 = vpop.f32.mrf.mxu0
      %6462 = vmatprep.mubr.bf16.mxu0 0
      %6463 = vmatmul.mubr.bf16.gmra.mxu0 %v5203
      %v6464 = vpop.f32.mrf.mxu0
      %v6465 = vadd.f32 %v5872, %v6464
      %v6466 = vpop.f32.mrf.mxu0
      %v6467 = vpop.f32.mrf.mxu0
      %v6468 = vadd.f32 %v5875, %v6467
      %v6469 = vpop.f32.mrf.mxu0
      %6470 = vmatprep.mubr.bf16.mxu0 0
      %6471 = vmatmul.mubr.bf16.gmra.mxu0 %v5204
      %v6472 = vpop.f32.mrf.mxu0
      %v6473 = vadd.f32 %v5880, %v6472
      %v6474 = vpop.f32.mrf.mxu0
      %v6475 = vpop.f32.mrf.mxu0
      %v6476 = vadd.f32 %v5883, %v6475
      %v6477 = vpop.f32.mrf.mxu0
      %6478 = vmatprep.mubr.bf16.mxu0 0
      %6479 = vmatmul.mubr.bf16.gmra.mxu0 %v5205
      %v6480 = vpop.f32.mrf.mxu0
      %v6481 = vadd.f32 %v5888, %v6480
      %v6482 = vpop.f32.mrf.mxu0
      %v6483 = vpop.f32.mrf.mxu0
      %v6484 = vadd.f32 %v5891, %v6483
      %v6485 = vpop.f32.mrf.mxu0
      %6486 = vmatprep.mubr.bf16.mxu0 0
      %6487 = vmatmul.mubr.bf16.gmra.mxu0 %v5206
      %v6488 = vpop.f32.mrf.mxu0
      %v6489 = vadd.f32 %v5896, %v6488
      %v6490 = vpop.f32.mrf.mxu0
      %v6491 = vpop.f32.mrf.mxu0
      %v6492 = vadd.f32 %v5899, %v6491
      %v6493 = vpop.f32.mrf.mxu0
      %6494 = vmatprep.mubr.bf16.mxu0 0
      %6495 = vmatmul.mubr.bf16.gmra.mxu0 %v5207
      %v6496 = vpop.f32.mrf.mxu0
      %v6497 = vadd.f32 %v5904, %v6496
      %v6498 = vpop.f32.mrf.mxu0
      %v6499 = vpop.f32.mrf.mxu0
      %v6500 = vadd.f32 %v5907, %v6499
      %v6501 = vpop.f32.mrf.mxu0
      %6502 = vmatprep.mubr.bf16.mxu0 0
      %6503 = vmatmul.mubr.bf16.gmra.mxu0 %v5208
      %v6504 = vpop.f32.mrf.mxu0
      %v6505 = vadd.f32 %v5912, %v6504
      %v6506 = vpop.f32.mrf.mxu0
      %v6507 = vpop.f32.mrf.mxu0
      %v6508 = vadd.f32 %v5915, %v6507
      %v6509 = vpop.f32.mrf.mxu0
      %6510 = vmatprep.mubr.bf16.mxu0 0
      %6511 = vmatmul.mubr.bf16.gmra.mxu0 %v5209
      %v6512 = vpop.f32.mrf.mxu0
      %v6513 = vadd.f32 %v5920, %v6512
      %v6514 = vpop.f32.mrf.mxu0
      %v6515 = vpop.f32.mrf.mxu0
      %v6516 = vadd.f32 %v5923, %v6515
      %v6517 = vpop.f32.mrf.mxu0
      %6518 = vmatprep.mubr.bf16.mxu0 0
      %6519 = vmatmul.mubr.bf16.gmra.mxu0 %v5210
      %v6520 = vpop.f32.mrf.mxu0
      %v6521 = vadd.f32 %v5928, %v6520
      %v6522 = vpop.f32.mrf.mxu0
      %v6523 = vpop.f32.mrf.mxu0
      %v6524 = vadd.f32 %v5931, %v6523
      %v6525 = vpop.f32.mrf.mxu0
      %6526 = vmatprep.mubr.bf16.mxu0 0
      %6527 = vmatmul.mubr.bf16.gmra.mxu0 %v5211
      %v6528 = vpop.f32.mrf.mxu0
      %v6529 = vadd.f32 %v5936, %v6528
      %v6530 = vpop.f32.mrf.mxu0
      %v6531 = vpop.f32.mrf.mxu0
      %v6532 = vadd.f32 %v5939, %v6531
      %v6533 = vpop.f32.mrf.mxu0
      %6534 = vmatprep.mubr.bf16.mxu0 0
      %6535 = vmatmul.mubr.bf16.gmra.mxu0 %v5212
      %v6536 = vpop.f32.mrf.mxu0
      %v6537 = vadd.f32 %v5944, %v6536
      %v6538 = vpop.f32.mrf.mxu0
      %v6539 = vpop.f32.mrf.mxu0
      %v6540 = vadd.f32 %v5947, %v6539
      %v6541 = vpop.f32.mrf.mxu0
      %6542 = vmatprep.mubr.bf16.mxu0 0
      %6543 = vmatmul.mubr.bf16.gmra.mxu0 %v5213
      %v6544 = vpop.f32.mrf.mxu0
      %v6545 = vadd.f32 %v5952, %v6544
      %v6546 = vpop.f32.mrf.mxu0
      %v6547 = vpop.f32.mrf.mxu0
      %v6548 = vadd.f32 %v5955, %v6547
      %v6549 = vpop.f32.mrf.mxu0
      %6550 = vmatprep.mubr.bf16.mxu0 0
      %6551 = vmatmul.mubr.bf16.gmra.mxu0 %v5214
      %v6552 = vpop.f32.mrf.mxu0
      %v6553 = vadd.f32 %v5960, %v6552
      %v6554 = vpop.f32.mrf.mxu0
      %v6555 = vpop.f32.mrf.mxu0
      %v6556 = vadd.f32 %v5963, %v6555
      %v6557 = vpop.f32.mrf.mxu0
      %6558 = vmatprep.mubr.bf16.mxu0 0
      %6559 = vmatmul.mubr.bf16.gmra.mxu0 %v5215
      %v6560 = vpop.f32.mrf.mxu0
      %v6561 = vadd.f32 %v5968, %v6560
      %v6562 = vpop.f32.mrf.mxu0
      %v6563 = vpop.f32.mrf.mxu0
      %v6564 = vadd.f32 %v5971, %v6563
      %v6565 = vpop.f32.mrf.mxu0
      %6566 = vmatprep.mubr.bf16.mxu0 0
      %6567 = vmatmul.mubr.bf16.gmra.mxu0 %v5216
      %v6568 = vpop.f32.mrf.mxu0
      %v6569 = vadd.f32 %v5976, %v6568
      %v6570 = vpop.f32.mrf.mxu0
      %v6571 = vpop.f32.mrf.mxu0
      %v6572 = vadd.f32 %v5979, %v6571
      %v6573 = vpop.f32.mrf.mxu0
      %6574 = vmatprep.mubr.bf16.mxu0 0
      %6575 = vmatmul.mubr.bf16.gmra.mxu0 %v5217
      %v6576 = vpop.f32.mrf.mxu0
      %v6577 = vadd.f32 %v5984, %v6576
      %v6578 = vpop.f32.mrf.mxu0
      %v6579 = vpop.f32.mrf.mxu0
      %v6580 = vadd.f32 %v5987, %v6579
      %v6581 = vpop.f32.mrf.mxu0
      %6582 = vmatprep.mubr.bf16.mxu0 0
      %6583 = vmatmul.mubr.bf16.gmra.mxu0 %v5218
      %v6584 = vpop.f32.mrf.mxu0
      %v6585 = vadd.f32 %v5992, %v6584
      %v6586 = vpop.f32.mrf.mxu0
      %v6587 = vpop.f32.mrf.mxu0
      %v6588 = vadd.f32 %v5995, %v6587
      %v6589 = vpop.f32.mrf.mxu0
      %6590 = vmatprep.mubr.bf16.mxu0 0
      %6591 = vmatmul.mubr.bf16.gmra.mxu0 %v5219
      %v6592 = vpop.f32.mrf.mxu0
      %v6593 = vadd.f32 %v6000, %v6592
      %v6594 = vpop.f32.mrf.mxu0
      %v6595 = vpop.f32.mrf.mxu0
      %v6596 = vadd.f32 %v6003, %v6595
      %v6597 = vpop.f32.mrf.mxu0
      %6598 = vmatprep.mubr.bf16.mxu0 0
      %6599 = vmatmul.mubr.bf16.gmra.mxu0 %v5220
      %v6600 = vpop.f32.mrf.mxu0
      %v6601 = vadd.f32 %v6008, %v6600
      %v6602 = vpop.f32.mrf.mxu0
      %v6603 = vpop.f32.mrf.mxu0
      %v6604 = vadd.f32 %v6011, %v6603
      %v6605 = vpop.f32.mrf.mxu0
      %6606 = vmatprep.mubr.bf16.mxu0 0
      %6607 = vmatmul.mubr.bf16.gmra.mxu0 %v5221
      %v6608 = vpop.f32.mrf.mxu0
      %v6609 = vadd.f32 %v6016, %v6608
      %v6610 = vpop.f32.mrf.mxu0
      %v6611 = vpop.f32.mrf.mxu0
      %v6612 = vadd.f32 %v6019, %v6611
      %v6613 = vpop.f32.mrf.mxu0
      %6614 = vmatprep.mubr.bf16.mxu0 0
      %6615 = vmatmul.mubr.bf16.gmra.mxu0 %v5222
      %v6616 = vpop.f32.mrf.mxu0
      %v6617 = vadd.f32 %v6024, %v6616
      %v6618 = vpop.f32.mrf.mxu0
      %v6619 = vpop.f32.mrf.mxu0
      %v6620 = vadd.f32 %v6027, %v6619
      %v6621 = vpop.f32.mrf.mxu0
      %6622 = vmatprep.mubr.bf16.mxu0 0
      %6623 = vmatmul.mubr.bf16.gmra.mxu0 %v5223
      %v6624 = vpop.f32.mrf.mxu0
      %v6625 = vadd.f32 %v6032, %v6624
      %v6626 = vpop.f32.mrf.mxu0
      %v6627 = vpop.f32.mrf.mxu0
      %v6628 = vadd.f32 %v6035, %v6627
      %v6629 = vpop.f32.mrf.mxu0
      %6630 = vmatprep.mubr.bf16.mxu0 0
      %6631 = vmatmul.mubr.bf16.gmra.mxu0 %v5224
      %v6632 = vpop.f32.mrf.mxu0
      %v6633 = vadd.f32 %v6040, %v6632
      %v6634 = vpop.f32.mrf.mxu0
      %v6635 = vpop.f32.mrf.mxu0
      %v6636 = vadd.f32 %v6043, %v6635
      %v6637 = vpop.f32.mrf.mxu0
      %6638 = vmatprep.mubr.bf16.mxu0 0
      %6639 = vmatmul.mubr.bf16.gmra.mxu0 %v5225
      %v6640 = vpop.f32.mrf.mxu0
      %v6641 = vadd.f32 %v6048, %v6640
      %v6642 = vpop.f32.mrf.mxu0
      %v6643 = vpop.f32.mrf.mxu0
      %v6644 = vadd.f32 %v6051, %v6643
      %v6645 = vpop.f32.mrf.mxu0
      %6646 = vmatprep.mubr.bf16.mxu0 0
      %6647 = vmatmul.mubr.bf16.gmra.mxu0 %v5226
      %v6648 = vpop.f32.mrf.mxu0
      %v6649 = vadd.f32 %v6056, %v6648
      %v6650 = vpop.f32.mrf.mxu0
      %v6651 = vpop.f32.mrf.mxu0
      %v6652 = vadd.f32 %v6059, %v6651
      %v6653 = vpop.f32.mrf.mxu0
      %6654 = vmatprep.mubr.bf16.mxu0 0
      %6655 = vmatmul.mubr.bf16.gmra.mxu0 %v5227
      %v6656 = vpop.f32.mrf.mxu0
      %v6657 = vadd.f32 %v6064, %v6656
      %v6658 = vpop.f32.mrf.mxu0
      %v6659 = vpop.f32.mrf.mxu0
      %v6660 = vadd.f32 %v6067, %v6659
      %v6661 = vpop.f32.mrf.mxu0
      %6662 = vmatprep.mubr.bf16.mxu0 0
      %6663 = vmatmul.mubr.bf16.gmra.mxu0 %v5228
      %v6664 = vpop.f32.mrf.mxu0
      %v6665 = vadd.f32 %v6072, %v6664
      %v6666 = vpop.f32.mrf.mxu0
      %v6667 = vpop.f32.mrf.mxu0
      %v6668 = vadd.f32 %v6075, %v6667
      %v6669 = vpop.f32.mrf.mxu0
      %6670 = vmatprep.mubr.bf16.mxu0 0
      %6671 = vmatmul.mubr.bf16.gmra.mxu0 %v5229
      %v6672 = vpop.f32.mrf.mxu0
      %v6673 = vadd.f32 %v6080, %v6672
      %v6674 = vpop.f32.mrf.mxu0
      %v6675 = vpop.f32.mrf.mxu0
      %v6676 = vadd.f32 %v6083, %v6675
      %v6677 = vpop.f32.mrf.mxu0
      %6678 = vmatprep.mubr.bf16.mxu0 0
      %6679 = vmatmul.mubr.bf16.gmra.mxu0 %v5230
      %v6680 = vpop.f32.mrf.mxu0
      %v6681 = vadd.f32 %v6088, %v6680
      %v6682 = vpop.f32.mrf.mxu0
      %v6683 = vpop.f32.mrf.mxu0
      %v6684 = vadd.f32 %v6091, %v6683
      %v6685 = vpop.f32.mrf.mxu0
      %6686 = vmatprep.mubr.bf16.mxu0 0
      %6687 = vmatmul.mubr.bf16.gmra.mxu0 %v5231
      %v6688 = vpop.f32.mrf.mxu0
      %v6689 = vadd.f32 %v6096, %v6688
      %v6690 = vpop.f32.mrf.mxu0
      %v6691 = vpop.f32.mrf.mxu0
      %v6692 = vadd.f32 %v6099, %v6691
      %v6693 = vpop.f32.mrf.mxu0
      %6694 = vmatprep.mubr.bf16.mxu0 0
      %6695 = vmatmul.mubr.bf16.gmra.mxu0 %v5232
      %v6696 = vpop.f32.mrf.mxu0
      %v6697 = vadd.f32 %v6104, %v6696
      %v6698 = vpop.f32.mrf.mxu0
      %v6699 = vpop.f32.mrf.mxu0
      %v6700 = vadd.f32 %v6107, %v6699
      %v6701 = vpop.f32.mrf.mxu0
      %6702 = vmatprep.mubr.bf16.mxu0 0
      %6703 = vmatmul.mubr.bf16.gmra.mxu0 %v5233
      %v6704 = vpop.f32.mrf.mxu0
      %v6705 = vadd.f32 %v6112, %v6704
      %v6706 = vpop.f32.mrf.mxu0
      %v6707 = vpop.f32.mrf.mxu0
      %v6708 = vadd.f32 %v6115, %v6707
      %v6709 = vpop.f32.mrf.mxu0
      %6710 = vmatprep.mubr.bf16.mxu0 0
      %6711 = vmatmul.mubr.bf16.gmra.mxu0 %v5234
      %v6712 = vpop.f32.mrf.mxu0
      %v6713 = vadd.f32 %v6120, %v6712
      %v6714 = vpop.f32.mrf.mxu0
      %v6715 = vpop.f32.mrf.mxu0
      %v6716 = vadd.f32 %v6123, %v6715
      %v6717 = vpop.f32.mrf.mxu0
      %6718 = vmatprep.mubr.bf16.mxu0 0
      %6719 = vmatmul.mubr.bf16.gmra.mxu0 %v5235
      %v6720 = vpop.f32.mrf.mxu0
      %v6721 = vadd.f32 %v6128, %v6720
      %v6722 = vpop.f32.mrf.mxu0
      %v6723 = vpop.f32.mrf.mxu0
      %v6724 = vadd.f32 %v6131, %v6723
      %v6725 = vpop.f32.mrf.mxu0
      %6726 = vmatprep.mubr.bf16.mxu0 0
      %6727 = vmatmul.mubr.bf16.gmra.mxu0 %v5236
      %v6728 = vpop.f32.mrf.mxu0
      %v6729 = vadd.f32 %v6136, %v6728
      %v6730 = vpop.f32.mrf.mxu0
      %v6731 = vpop.f32.mrf.mxu0
      %v6732 = vadd.f32 %v6139, %v6731
      %v6733 = vpop.f32.mrf.mxu0
      %6734 = vmatprep.mubr.bf16.mxu0 0
      %6735 = vmatmul.mubr.bf16.gmra.mxu0 %v5237
      %v6736 = vpop.f32.mrf.mxu0
      %v6737 = vadd.f32 %v6144, %v6736
      %v6738 = vpop.f32.mrf.mxu0
      %v6739 = vpop.f32.mrf.mxu0
      %v6740 = vadd.f32 %v6147, %v6739
      %v6741 = vpop.f32.mrf.mxu0
      %6742 = vmatprep.mubr.bf16.mxu0 0
      %6743 = vmatmul.mubr.bf16.gmra.mxu0 %v5238
      %v6744 = vpop.f32.mrf.mxu0
      %v6745 = vadd.f32 %v6152, %v6744
      %v6746 = vpop.f32.mrf.mxu0
      %v6747 = vpop.f32.mrf.mxu0
      %v6748 = vadd.f32 %v6155, %v6747
      %v6749 = vpop.f32.mrf.mxu0
      %6750 = vmatprep.mubr.bf16.mxu0 0
      %6751 = vmatmul.mubr.bf16.gmra.mxu0 %v5239
      %v6752 = vpop.f32.mrf.mxu0
      %v6753 = vadd.f32 %v6160, %v6752
      %v6754 = vpop.f32.mrf.mxu0
      %v6755 = vpop.f32.mrf.mxu0
      %v6756 = vadd.f32 %v6163, %v6755
      %v6757 = vpop.f32.mrf.mxu0
      %6758 = vmatprep.mubr.bf16.mxu0 0
      %6759 = vmatmul.mubr.bf16.gmra.mxu0 %v5240
      %v6760 = vpop.f32.mrf.mxu0
      %v6761 = vadd.f32 %v6168, %v6760
      %v6762 = vpop.f32.mrf.mxu0
      %v6763 = vpop.f32.mrf.mxu0
      %v6764 = vadd.f32 %v6171, %v6763
      %v6765 = vpop.f32.mrf.mxu0
      %6766 = vmatprep.mubr.bf16.mxu0 0
      %6767 = vmatmul.mubr.bf16.gmra.mxu0 %v5241
      %v6768 = vpop.f32.mrf.mxu0
      %v6769 = vadd.f32 %v6176, %v6768
      %v6770 = vpop.f32.mrf.mxu0
      %v6771 = vpop.f32.mrf.mxu0
      %v6772 = vadd.f32 %v6179, %v6771
      %v6773 = vpop.f32.mrf.mxu0
      %6774 = vmatprep.mubr.bf16.mxu0 0
      %6775 = vmatmul.mubr.bf16.gmra.mxu0 %v5242
      %v6776 = vpop.f32.mrf.mxu0
      %v6777 = vadd.f32 %v6184, %v6776
      %v6778 = vpop.f32.mrf.mxu0
      %v6779 = vpop.f32.mrf.mxu0
      %v6780 = vadd.f32 %v6187, %v6779
      %v6781 = vpop.f32.mrf.mxu0
      %6782 = vmatprep.mubr.bf16.mxu0 0
      %6783 = vmatmul.mubr.bf16.gmra.mxu0 %v5243
      %v6784 = vpop.f32.mrf.mxu0
      %v6785 = vadd.f32 %v6192, %v6784
      %v6786 = vpop.f32.mrf.mxu0
      %v6787 = vpop.f32.mrf.mxu0
      %v6788 = vadd.f32 %v6195, %v6787
      %v6789 = vpop.f32.mrf.mxu0
      %6790 = vmatprep.mubr.bf16.mxu0 0
      %6791 = vmatmul.mubr.bf16.gmra.mxu0 %v5244
      %v6792 = vpop.f32.mrf.mxu0
      %v6793 = vadd.f32 %v6200, %v6792
      %v6794 = vpop.f32.mrf.mxu0
      %v6795 = vpop.f32.mrf.mxu0
      %v6796 = vadd.f32 %v6203, %v6795
      %v6797 = vpop.f32.mrf.mxu0
      %6798 = vmatprep.mubr.bf16.mxu0 0
      %6799 = vmatmul.mubr.bf16.gmra.mxu0 %v5245
      %v6800 = vpop.f32.mrf.mxu0
      %v6801 = vadd.f32 %v6208, %v6800
      %v6802 = vpop.f32.mrf.mxu0
      %v6803 = vpop.f32.mrf.mxu0
      %v6804 = vadd.f32 %v6211, %v6803
      %v6805 = vpop.f32.mrf.mxu0
      %6806 = vmatprep.mubr.bf16.mxu0 0
      %6807 = vmatmul.mubr.bf16.gmra.mxu0 %v5246
      %v6808 = vpop.f32.mrf.mxu0
      %v6809 = vadd.f32 %v6216, %v6808
      %v6810 = vpop.f32.mrf.mxu0
      %v6811 = vpop.f32.mrf.mxu0
      %v6812 = vadd.f32 %v6219, %v6811
      %v6813 = vpop.f32.mrf.mxu0
      %6814 = vmatprep.mubr.bf16.mxu0 0
      %6815 = vmatmul.mubr.bf16.gmra.mxu0 %v5247
      %v6816 = vpop.f32.mrf.mxu0
      %v6817 = vadd.f32 %v6224, %v6816
      %v6818 = vpop.f32.mrf.mxu0
      %v6819 = vpop.f32.mrf.mxu0
      %v6820 = vadd.f32 %v6227, %v6819
      %v6821 = vpop.f32.mrf.mxu0
      %6822 = vmatprep.mubr.bf16.mxu0 0
      %6823 = vmatmul.mubr.bf16.gmra.mxu0 %v5248
      %v6824 = vpop.f32.mrf.mxu0
      %v6825 = vadd.f32 %v6232, %v6824
      %v6826 = vpop.f32.mrf.mxu0
      %v6827 = vpop.f32.mrf.mxu0
      %v6828 = vadd.f32 %v6235, %v6827
      %v6829 = vpop.f32.mrf.mxu0
      %6830 = vmatprep.mubr.bf16.mxu0 0
      %6831 = vmatmul.mubr.bf16.gmra.mxu0 %v5249
      %v6832 = vpop.f32.mrf.mxu0
      %v6833 = vadd.f32 %v6240, %v6832
      %v6834 = vpop.f32.mrf.mxu0
      %v6835 = vpop.f32.mrf.mxu0
      %v6836 = vadd.f32 %v6243, %v6835
      %v6837 = vpop.f32.mrf.mxu0
      %6838 = vmatprep.mubr.bf16.mxu0 0
      %6839 = vmatmul.mubr.bf16.gmra.mxu0 %v5250
      %v6840 = vpop.f32.mrf.mxu0
      %v6841 = vadd.f32 %v6248, %v6840
      %v6842 = vpop.f32.mrf.mxu0
      %v6843 = vpop.f32.mrf.mxu0
      %v6844 = vadd.f32 %v6251, %v6843
      %v6845 = vpop.f32.mrf.mxu0
      %6846 = vmatprep.mubr.bf16.mxu0 0
      %6847 = vmatmul.mubr.bf16.gmra.mxu0 %v5251
      %v6848 = vpop.f32.mrf.mxu0
      %v6849 = vadd.f32 %v6256, %v6848
      %v6850 = vpop.f32.mrf.mxu0
      %v6851 = vpop.f32.mrf.mxu0
      %v6852 = vadd.f32 %v6259, %v6851
      %v6853 = vpop.f32.mrf.mxu0
      %6854 = vmatprep.mubr.bf16.mxu0 0
      %6855 = vmatmul.mubr.bf16.gmra.mxu0 %v5252
      %v6856 = vpop.f32.mrf.mxu0
      %v6857 = vadd.f32 %v6264, %v6856
      %v6858 = vpop.f32.mrf.mxu0
      %v6859 = vpop.f32.mrf.mxu0
      %v6860 = vadd.f32 %v6267, %v6859
      %v6861 = vpop.f32.mrf.mxu0
      %6862 = vmatprep.mubr.bf16.mxu0 0
      %6863 = vmatmul.mubr.bf16.gmra.mxu0 %v5253
      %v6864 = vpop.f32.mrf.mxu0
      %v6865 = vadd.f32 %v6272, %v6864
      %v6866 = vpop.f32.mrf.mxu0
      %v6867 = vpop.f32.mrf.mxu0
      %v6868 = vadd.f32 %v6275, %v6867
      %v6869 = vpop.f32.mrf.mxu0
      %6870 = vmatprep.mubr.bf16.mxu0 0
      %6871 = vmatmul.mubr.bf16.gmra.mxu0 %v5254
      %v6872 = vpop.f32.mrf.mxu0
      %v6873 = vadd.f32 %v6280, %v6872
      %v6874 = vpop.f32.mrf.mxu0
      %v6875 = vpop.f32.mrf.mxu0
      %v6876 = vadd.f32 %v6283, %v6875
      %v6877 = vpop.f32.mrf.mxu0
      %6878 = vmatprep.mubr.bf16.mxu0 0
      %6879 = vmatmul.mubr.bf16.gmra.mxu0 %v5255
      %v6880 = vpop.f32.mrf.mxu0
      %v6881 = vadd.f32 %v6288, %v6880
      %v6882 = vpop.f32.mrf.mxu0
      %v6883 = vpop.f32.mrf.mxu0
      %v6884 = vadd.f32 %v6291, %v6883
      %v6885 = vpop.f32.mrf.mxu0
      %6886 = vmatprep.mubr.bf16.mxu0 0
      %6887 = vmatmul.mubr.bf16.gmra.mxu0 %v5256
      %v6888 = vpop.f32.mrf.mxu0
      %v6889 = vadd.f32 %v6296, %v6888
      %v6890 = vpop.f32.mrf.mxu0
      %v6891 = vpop.f32.mrf.mxu0
      %v6892 = vadd.f32 %v6299, %v6891
      %v6893 = vpop.f32.mrf.mxu0
      %6894 = vmatprep.mubr.bf16.mxu0 0
      %6895 = vmatmul.mubr.bf16.gmra.mxu0 %v5257
      %v6896 = vpop.f32.mrf.mxu0
      %v6897 = vadd.f32 %v6304, %v6896
      %v6898 = vpop.f32.mrf.mxu0
      %v6899 = vpop.f32.mrf.mxu0
      %v6900 = vadd.f32 %v6307, %v6899
      %v6901 = vpop.f32.mrf.mxu0
      %6902 = vmatprep.mubr.bf16.mxu0 0
      %6903 = vmatmul.mubr.bf16.gmra.mxu0 %v5258
      %v6904 = vpop.f32.mrf.mxu0
      %v6905 = vadd.f32 %v6312, %v6904
      %v6906 = vpop.f32.mrf.mxu0
      %v6907 = vpop.f32.mrf.mxu0
      %v6908 = vadd.f32 %v6315, %v6907
      %v6909 = vpop.f32.mrf.mxu0
      %6910 = vmatprep.mubr.bf16.mxu0 0
      %6911 = vmatmul.mubr.bf16.gmra.mxu0 %v5259
      %v6912 = vpop.f32.mrf.mxu0
      %v6913 = vadd.f32 %v6320, %v6912
      %v6914 = vpop.f32.mrf.mxu0
      %v6915 = vpop.f32.mrf.mxu0
      %v6916 = vadd.f32 %v6323, %v6915
      %v6917 = vpop.f32.mrf.mxu0
      %6918 = vmatprep.mubr.bf16.mxu0 0
      %6919 = vmatmul.mubr.bf16.gmra.mxu0 %v5260
      %v6920 = vpop.f32.mrf.mxu0
      %v6921 = vadd.f32 %v6328, %v6920
      %v6922 = vpop.f32.mrf.mxu0
      %v6923 = vpop.f32.mrf.mxu0
      %v6924 = vadd.f32 %v6331, %v6923
      %v6925 = vpop.f32.mrf.mxu0
      %6926 = vmatprep.mubr.bf16.mxu0 0
      %6927 = vmatmul.mubr.bf16.gmra.mxu0 %v5261
      %v6928 = vpop.f32.mrf.mxu0
      %v6929 = vadd.f32 %v6336, %v6928
      %v6930 = vpop.f32.mrf.mxu0
      %v6931 = vpop.f32.mrf.mxu0
      %v6932 = vadd.f32 %v6339, %v6931
      %v6933 = vpop.f32.mrf.mxu0
      %6934 = vdwg.mxu0
      %v6935 = vld [vmem:[%s14] sm:$0x1]
      %v6937 = vlaneseq
      %v6938 = vshrl.u32 %v6937, 7
      %v6939 = vsub.s32 0, %v6938
      %v6940 = vrot.slane %v6935, %v6939
      %v6942 = vadd.f32 %v6425, %v6940
      %v6943 = vadd.f32 %v6428, %v6940
      %v6944 = vadd.f32 %v6433, %v6940
      %v6945 = vadd.f32 %v6436, %v6940
      %v6946 = vadd.f32 %v6441, %v6940
      %v6947 = vadd.f32 %v6444, %v6940
      %v6948 = vadd.f32 %v6449, %v6940
      %v6949 = vadd.f32 %v6452, %v6940
      %v6950 = vadd.f32 %v6457, %v6940
      %v6951 = vadd.f32 %v6460, %v6940
      %v6952 = vadd.f32 %v6465, %v6940
      %v6953 = vadd.f32 %v6468, %v6940
      %v6954 = vadd.f32 %v6473, %v6940
      %v6955 = vadd.f32 %v6476, %v6940
      %v6956 = vadd.f32 %v6481, %v6940
      %v6957 = vadd.f32 %v6484, %v6940
      %v6958 = vadd.f32 %v6489, %v6940
      %v6959 = vadd.f32 %v6492, %v6940
      %v6960 = vadd.f32 %v6497, %v6940
      %v6961 = vadd.f32 %v6500, %v6940
      %v6962 = vadd.f32 %v6505, %v6940
      %v6963 = vadd.f32 %v6508, %v6940
      %v6964 = vadd.f32 %v6513, %v6940
      %v6965 = vadd.f32 %v6516, %v6940
      %v6966 = vadd.f32 %v6521, %v6940
      %v6967 = vadd.f32 %v6524, %v6940
      %v6968 = vadd.f32 %v6529, %v6940
      %v6969 = vadd.f32 %v6532, %v6940
      %v6970 = vadd.f32 %v6537, %v6940
      %v6971 = vadd.f32 %v6540, %v6940
      %v6972 = vadd.f32 %v6545, %v6940
      %v6973 = vadd.f32 %v6548, %v6940
      %v6974 = vadd.f32 %v6553, %v6940
      %v6975 = vadd.f32 %v6556, %v6940
      %v6976 = vadd.f32 %v6561, %v6940
      %v6977 = vadd.f32 %v6564, %v6940
      %v6978 = vadd.f32 %v6569, %v6940
      %v6979 = vadd.f32 %v6572, %v6940
      %v6980 = vadd.f32 %v6577, %v6940
      %v6981 = vadd.f32 %v6580, %v6940
      %v6982 = vadd.f32 %v6585, %v6940
      %v6983 = vadd.f32 %v6588, %v6940
      %v6984 = vadd.f32 %v6593, %v6940
      %v6985 = vadd.f32 %v6596, %v6940
      %v6986 = vadd.f32 %v6601, %v6940
      %v6987 = vadd.f32 %v6604, %v6940
      %v6988 = vadd.f32 %v6609, %v6940
      %v6989 = vadd.f32 %v6612, %v6940
      %v6990 = vadd.f32 %v6617, %v6940
      %v6991 = vadd.f32 %v6620, %v6940
      %v6992 = vadd.f32 %v6625, %v6940
      %v6993 = vadd.f32 %v6628, %v6940
      %v6994 = vadd.f32 %v6633, %v6940
      %v6995 = vadd.f32 %v6636, %v6940
      %v6996 = vadd.f32 %v6641, %v6940
      %v6997 = vadd.f32 %v6644, %v6940
      %v6998 = vadd.f32 %v6649, %v6940
      %v6999 = vadd.f32 %v6652, %v6940
      %v7000 = vadd.f32 %v6657, %v6940
      %v7001 = vadd.f32 %v6660, %v6940
      %v7002 = vadd.f32 %v6665, %v6940
      %v7003 = vadd.f32 %v6668, %v6940
      %v7004 = vadd.f32 %v6673, %v6940
      %v7005 = vadd.f32 %v6676, %v6940
      %v7006 = vadd.f32 %v6681, %v6940
      %v7007 = vadd.f32 %v6684, %v6940
      %v7008 = vadd.f32 %v6689, %v6940
      %v7009 = vadd.f32 %v6692, %v6940
      %v7010 = vadd.f32 %v6697, %v6940
      %v7011 = vadd.f32 %v6700, %v6940
      %v7012 = vadd.f32 %v6705, %v6940
      %v7013 = vadd.f32 %v6708, %v6940
      %v7014 = vadd.f32 %v6713, %v6940
      %v7015 = vadd.f32 %v6716, %v6940
      %v7016 = vadd.f32 %v6721, %v6940
      %v7017 = vadd.f32 %v6724, %v6940
      %v7018 = vadd.f32 %v6729, %v6940
      %v7019 = vadd.f32 %v6732, %v6940
      %v7020 = vadd.f32 %v6737, %v6940
      %v7021 = vadd.f32 %v6740, %v6940
      %v7022 = vadd.f32 %v6745, %v6940
      %v7023 = vadd.f32 %v6748, %v6940
      %v7024 = vadd.f32 %v6753, %v6940
      %v7025 = vadd.f32 %v6756, %v6940
      %v7026 = vadd.f32 %v6761, %v6940
      %v7027 = vadd.f32 %v6764, %v6940
      %v7028 = vadd.f32 %v6769, %v6940
      %v7029 = vadd.f32 %v6772, %v6940
      %v7030 = vadd.f32 %v6777, %v6940
      %v7031 = vadd.f32 %v6780, %v6940
      %v7032 = vadd.f32 %v6785, %v6940
      %v7033 = vadd.f32 %v6788, %v6940
      %v7034 = vadd.f32 %v6793, %v6940
      %v7035 = vadd.f32 %v6796, %v6940
      %v7036 = vadd.f32 %v6801, %v6940
      %v7037 = vadd.f32 %v6804, %v6940
      %v7038 = vadd.f32 %v6809, %v6940
      %v7039 = vadd.f32 %v6812, %v6940
      %v7040 = vadd.f32 %v6817, %v6940
      %v7041 = vadd.f32 %v6820, %v6940
      %v7042 = vadd.f32 %v6825, %v6940
      %v7043 = vadd.f32 %v6828, %v6940
      %v7044 = vadd.f32 %v6833, %v6940
      %v7045 = vadd.f32 %v6836, %v6940
      %v7046 = vadd.f32 %v6841, %v6940
      %v7047 = vadd.f32 %v6844, %v6940
      %v7048 = vadd.f32 %v6849, %v6940
      %v7049 = vadd.f32 %v6852, %v6940
      %v7050 = vadd.f32 %v6857, %v6940
      %v7051 = vadd.f32 %v6860, %v6940
      %v7052 = vadd.f32 %v6865, %v6940
      %v7053 = vadd.f32 %v6868, %v6940
      %v7054 = vadd.f32 %v6873, %v6940
      %v7055 = vadd.f32 %v6876, %v6940
      %v7056 = vadd.f32 %v6881, %v6940
      %v7057 = vadd.f32 %v6884, %v6940
      %v7058 = vadd.f32 %v6889, %v6940
      %v7059 = vadd.f32 %v6892, %v6940
      %v7060 = vadd.f32 %v6897, %v6940
      %v7061 = vadd.f32 %v6900, %v6940
      %v7062 = vadd.f32 %v6905, %v6940
      %v7063 = vadd.f32 %v6908, %v6940
      %v7064 = vadd.f32 %v6913, %v6940
      %v7065 = vadd.f32 %v6916, %v6940
      %v7066 = vadd.f32 %v6921, %v6940
      %v7067 = vadd.f32 %v6924, %v6940
      %v7068 = vadd.f32 %v6929, %v6940
      %v7069 = vadd.f32 %v6932, %v6940
      %v7070 = vmax.f32 %v6942, 0.0
      %v7071 = vmax.f32 %v6943, 0.0
      %v7072 = vmax.f32 %v6944, 0.0
      %v7073 = vmax.f32 %v6945, 0.0
      %v7074 = vmax.f32 %v6946, 0.0
      %v7075 = vmax.f32 %v6947, 0.0
      %v7076 = vmax.f32 %v6948, 0.0
      %v7077 = vmax.f32 %v6949, 0.0
      %v7078 = vmax.f32 %v6950, 0.0
      %v7079 = vmax.f32 %v6951, 0.0
      %v7080 = vmax.f32 %v6952, 0.0
      %v7081 = vmax.f32 %v6953, 0.0
      %v7082 = vmax.f32 %v6954, 0.0
      %v7083 = vmax.f32 %v6955, 0.0
      %v7084 = vmax.f32 %v6956, 0.0
      %v7085 = vmax.f32 %v6957, 0.0
      %v7086 = vmax.f32 %v6958, 0.0
      %v7087 = vmax.f32 %v6959, 0.0
      %v7088 = vmax.f32 %v6960, 0.0
      %v7089 = vmax.f32 %v6961, 0.0
      %v7090 = vmax.f32 %v6962, 0.0
      %v7091 = vmax.f32 %v6963, 0.0
      %v7092 = vmax.f32 %v6964, 0.0
      %v7093 = vmax.f32 %v6965, 0.0
      %v7094 = vmax.f32 %v6966, 0.0
      %v7095 = vmax.f32 %v6967, 0.0
      %v7096 = vmax.f32 %v6968, 0.0
      %v7097 = vmax.f32 %v6969, 0.0
      %v7098 = vmax.f32 %v6970, 0.0
      %v7099 = vmax.f32 %v6971, 0.0
      %v7100 = vmax.f32 %v6972, 0.0
      %v7101 = vmax.f32 %v6973, 0.0
      %v7102 = vmax.f32 %v6974, 0.0
      %v7103 = vmax.f32 %v6975, 0.0
      %v7104 = vmax.f32 %v6976, 0.0
      %v7105 = vmax.f32 %v6977, 0.0
      %v7106 = vmax.f32 %v6978, 0.0
      %v7107 = vmax.f32 %v6979, 0.0
      %v7108 = vmax.f32 %v6980, 0.0
      %v7109 = vmax.f32 %v6981, 0.0
      %v7110 = vmax.f32 %v6982, 0.0
      %v7111 = vmax.f32 %v6983, 0.0
      %v7112 = vmax.f32 %v6984, 0.0
      %v7113 = vmax.f32 %v6985, 0.0
      %v7114 = vmax.f32 %v6986, 0.0
      %v7115 = vmax.f32 %v6987, 0.0
      %v7116 = vmax.f32 %v6988, 0.0
      %v7117 = vmax.f32 %v6989, 0.0
      %v7118 = vmax.f32 %v6990, 0.0
      %v7119 = vmax.f32 %v6991, 0.0
      %v7120 = vmax.f32 %v6992, 0.0
      %v7121 = vmax.f32 %v6993, 0.0
      %v7122 = vmax.f32 %v6994, 0.0
      %v7123 = vmax.f32 %v6995, 0.0
      %v7124 = vmax.f32 %v6996, 0.0
      %v7125 = vmax.f32 %v6997, 0.0
      %v7126 = vmax.f32 %v6998, 0.0
      %v7127 = vmax.f32 %v6999, 0.0
      %v7128 = vmax.f32 %v7000, 0.0
      %v7129 = vmax.f32 %v7001, 0.0
      %v7130 = vmax.f32 %v7002, 0.0
      %v7131 = vmax.f32 %v7003, 0.0
      %v7132 = vmax.f32 %v7004, 0.0
      %v7133 = vmax.f32 %v7005, 0.0
      %v7134 = vmax.f32 %v7006, 0.0
      %v7135 = vmax.f32 %v7007, 0.0
      %v7136 = vmax.f32 %v7008, 0.0
      %v7137 = vmax.f32 %v7009, 0.0
      %v7138 = vmax.f32 %v7010, 0.0
      %v7139 = vmax.f32 %v7011, 0.0
      %v7140 = vmax.f32 %v7012, 0.0
      %v7141 = vmax.f32 %v7013, 0.0
      %v7142 = vmax.f32 %v7014, 0.0
      %v7143 = vmax.f32 %v7015, 0.0
      %v7144 = vmax.f32 %v7016, 0.0
      %v7145 = vmax.f32 %v7017, 0.0
      %v7146 = vmax.f32 %v7018, 0.0
      %v7147 = vmax.f32 %v7019, 0.0
      %v7148 = vmax.f32 %v7020, 0.0
      %v7149 = vmax.f32 %v7021, 0.0
      %v7150 = vmax.f32 %v7022, 0.0
      %v7151 = vmax.f32 %v7023, 0.0
      %v7152 = vmax.f32 %v7024, 0.0
      %v7153 = vmax.f32 %v7025, 0.0
      %v7154 = vmax.f32 %v7026, 0.0
      %v7155 = vmax.f32 %v7027, 0.0
      %v7156 = vmax.f32 %v7028, 0.0
      %v7157 = vmax.f32 %v7029, 0.0
      %v7158 = vmax.f32 %v7030, 0.0
      %v7159 = vmax.f32 %v7031, 0.0
      %v7160 = vmax.f32 %v7032, 0.0
      %v7161 = vmax.f32 %v7033, 0.0
      %v7162 = vmax.f32 %v7034, 0.0
      %v7163 = vmax.f32 %v7035, 0.0
      %v7164 = vmax.f32 %v7036, 0.0
      %v7165 = vmax.f32 %v7037, 0.0
      %v7166 = vmax.f32 %v7038, 0.0
      %v7167 = vmax.f32 %v7039, 0.0
      %v7168 = vmax.f32 %v7040, 0.0
      %v7169 = vmax.f32 %v7041, 0.0
      %v7170 = vmax.f32 %v7042, 0.0
      %v7171 = vmax.f32 %v7043, 0.0
      %v7172 = vmax.f32 %v7044, 0.0
      %v7173 = vmax.f32 %v7045, 0.0
      %v7174 = vmax.f32 %v7046, 0.0
      %v7175 = vmax.f32 %v7047, 0.0
      %v7176 = vmax.f32 %v7048, 0.0
      %v7177 = vmax.f32 %v7049, 0.0
      %v7178 = vmax.f32 %v7050, 0.0
      %v7179 = vmax.f32 %v7051, 0.0
      %v7180 = vmax.f32 %v7052, 0.0
      %v7181 = vmax.f32 %v7053, 0.0
      %v7182 = vmax.f32 %v7054, 0.0
      %v7183 = vmax.f32 %v7055, 0.0
      %v7184 = vmax.f32 %v7056, 0.0
      %v7185 = vmax.f32 %v7057, 0.0
      %v7186 = vmax.f32 %v7058, 0.0
      %v7187 = vmax.f32 %v7059, 0.0
      %v7188 = vmax.f32 %v7060, 0.0
      %v7189 = vmax.f32 %v7061, 0.0
      %v7190 = vmax.f32 %v7062, 0.0
      %v7191 = vmax.f32 %v7063, 0.0
      %v7192 = vmax.f32 %v7064, 0.0
      %v7193 = vmax.f32 %v7065, 0.0
      %v7194 = vmax.f32 %v7066, 0.0
      %v7195 = vmax.f32 %v7067, 0.0
      %v7196 = vmax.f32 %v7068, 0.0
      %v7197 = vmax.f32 %v7069, 0.0
      %v7198 = vld [vmem:[%s16] sm:$0xf]
      %v7199 = vld [vmem:[%s16 + $0x4] sm:$0xf]
      %v7200 = vld [vmem:[%s16 + $0x8] sm:$0xf]
      %v7201 = vld [vmem:[%s16 + $0xc] sm:$0xf]
      %v7202 = vld [vmem:[%s16 + $0x10] sm:$0xf]
      %v7203 = vld [vmem:[%s16 + $0x14] sm:$0xf]
      %v7204 = vld [vmem:[%s16 + $0x18] sm:$0xf]
      %v7205 = vld [vmem:[%s16 + $0x1c] sm:$0xf]
      %v7206 = vpack.c.bf16 %v7071, %v7070
      %v7207 = vpack.c.bf16 %v7073, %v7072
      %v7208 = vpack.c.bf16 %v7075, %v7074
      %v7209 = vpack.c.bf16 %v7077, %v7076
      %v7210 = vpack.c.bf16 %v7079, %v7078
      %v7211 = vpack.c.bf16 %v7081, %v7080
      %v7212 = vpack.c.bf16 %v7083, %v7082
      %v7213 = vpack.c.bf16 %v7085, %v7084
      %v7214 = vpack.c.bf16 %v7087, %v7086
      %v7215 = vpack.c.bf16 %v7089, %v7088
      %v7216 = vpack.c.bf16 %v7091, %v7090
      %v7217 = vpack.c.bf16 %v7093, %v7092
      %v7218 = vpack.c.bf16 %v7095, %v7094
      %v7219 = vpack.c.bf16 %v7097, %v7096
      %v7220 = vpack.c.bf16 %v7099, %v7098
      %v7221 = vpack.c.bf16 %v7101, %v7100
      %v7222 = vpack.c.bf16 %v7103, %v7102
      %v7223 = vpack.c.bf16 %v7105, %v7104
      %v7224 = vpack.c.bf16 %v7107, %v7106
      %v7225 = vpack.c.bf16 %v7109, %v7108
      %v7226 = vpack.c.bf16 %v7111, %v7110
      %v7227 = vpack.c.bf16 %v7113, %v7112
      %v7228 = vpack.c.bf16 %v7115, %v7114
      %v7229 = vpack.c.bf16 %v7117, %v7116
      %v7230 = vpack.c.bf16 %v7119, %v7118
      %v7231 = vpack.c.bf16 %v7121, %v7120
      %v7232 = vpack.c.bf16 %v7123, %v7122
      %v7233 = vpack.c.bf16 %v7125, %v7124
      %v7234 = vpack.c.bf16 %v7127, %v7126
      %v7235 = vpack.c.bf16 %v7129, %v7128
      %v7236 = vpack.c.bf16 %v7131, %v7130
      %v7237 = vpack.c.bf16 %v7133, %v7132
      %v7238 = vpack.c.bf16 %v7135, %v7134
      %v7239 = vpack.c.bf16 %v7137, %v7136
      %v7240 = vpack.c.bf16 %v7139, %v7138
      %v7241 = vpack.c.bf16 %v7141, %v7140
      %v7242 = vpack.c.bf16 %v7143, %v7142
      %v7243 = vpack.c.bf16 %v7145, %v7144
      %v7244 = vpack.c.bf16 %v7147, %v7146
      %v7245 = vpack.c.bf16 %v7149, %v7148
      %v7246 = vpack.c.bf16 %v7151, %v7150
      %v7247 = vpack.c.bf16 %v7153, %v7152
      %v7248 = vpack.c.bf16 %v7155, %v7154
      %v7249 = vpack.c.bf16 %v7157, %v7156
      %v7250 = vpack.c.bf16 %v7159, %v7158
      %v7251 = vpack.c.bf16 %v7161, %v7160
      %v7252 = vpack.c.bf16 %v7163, %v7162
      %v7253 = vpack.c.bf16 %v7165, %v7164
      %v7254 = vpack.c.bf16 %v7167, %v7166
      %v7255 = vpack.c.bf16 %v7169, %v7168
      %v7256 = vpack.c.bf16 %v7171, %v7170
      %v7257 = vpack.c.bf16 %v7173, %v7172
      %v7258 = vpack.c.bf16 %v7175, %v7174
      %v7259 = vpack.c.bf16 %v7177, %v7176
      %v7260 = vpack.c.bf16 %v7179, %v7178
      %v7261 = vpack.c.bf16 %v7181, %v7180
      %v7262 = vpack.c.bf16 %v7183, %v7182
      %v7263 = vpack.c.bf16 %v7185, %v7184
      %v7264 = vpack.c.bf16 %v7187, %v7186
      %v7265 = vpack.c.bf16 %v7189, %v7188
      %v7266 = vpack.c.bf16 %v7191, %v7190
      %v7267 = vpack.c.bf16 %v7193, %v7192
      %v7268 = vpack.c.bf16 %v7195, %v7194
      %v7269 = vpack.c.bf16 %v7197, %v7196
      %v7270 = vld [vmem:[%s15] sm:$0xf]
      %v7271 = vld [vmem:[%s15 + $0x4] sm:$0xf]
      %v7272 = vld [vmem:[%s15 + $0x8] sm:$0xf]
      %v7273 = vld [vmem:[%s15 + $0xc] sm:$0xf]
      %v7274 = vld [vmem:[%s15 + $0x10] sm:$0xf]
      %v7275 = vld [vmem:[%s15 + $0x14] sm:$0xf]
      %v7276 = vld [vmem:[%s15 + $0x18] sm:$0xf]
      %v7277 = vld [vmem:[%s15 + $0x1c] sm:$0xf]
      %v7278 = vld [vmem:[%s15 + $0x20] sm:$0xf]
      %v7279 = vld [vmem:[%s15 + $0x24] sm:$0xf]
      %v7280 = vld [vmem:[%s15 + $0x28] sm:$0xf]
      %v7281 = vld [vmem:[%s15 + $0x2c] sm:$0xf]
      %v7282 = vld [vmem:[%s15 + $0x30] sm:$0xf]
      %v7283 = vld [vmem:[%s15 + $0x34] sm:$0xf]
      %v7284 = vld [vmem:[%s15 + $0x38] sm:$0xf]
      %v7285 = vld [vmem:[%s15 + $0x3c] sm:$0xf]
      %v7302 = vunpack.c.l.b16 %v7270
      %v7303 = vunpack.c.l.b16 %v7271
      %v7304 = vunpack.c.l.b16 %v7272
      %v7305 = vunpack.c.l.b16 %v7273
      %v7306 = vunpack.c.l.b16 %v7274
      %v7307 = vunpack.c.l.b16 %v7275
      %v7308 = vunpack.c.l.b16 %v7276
      %v7309 = vunpack.c.l.b16 %v7277
      %v7310 = vunpack.c.l.b16 %v7278
      %v7311 = vunpack.c.l.b16 %v7279
      %v7312 = vunpack.c.l.b16 %v7280
      %v7313 = vunpack.c.l.b16 %v7281
      %v7314 = vunpack.c.l.b16 %v7282
      %v7315 = vunpack.c.l.b16 %v7283
      %v7316 = vunpack.c.l.b16 %v7284
      %v7317 = vunpack.c.l.b16 %v7285
      %v7318 = vpack.c.b16 %v7303, %v7302
      %v7319 = vpack.c.b16 %v7305, %v7304
      %v7320 = vpack.c.b16 %v7307, %v7306
      %v7321 = vpack.c.b16 %v7309, %v7308
      %v7322 = vpack.c.b16 %v7311, %v7310
      %v7323 = vpack.c.b16 %v7313, %v7312
      %v7324 = vpack.c.b16 %v7315, %v7314
      %v7325 = vpack.c.b16 %v7317, %v7316
      %7334 = vmatprep.subr.bf16.mxu0 0
      %7335 = vmatpush1.bf16.msra.mxu0 %v7325
      %7336 = vmatprep.subr.bf16.mxu0 0
      %7337 = vmatpush1.bf16.msra.mxu0 %v7324
      %7338 = vmatprep.subr.bf16.mxu0 0
      %7339 = vmatpush1.bf16.msra.mxu0 %v7323
      %7340 = vmatprep.subr.bf16.mxu0 0
      %7341 = vmatpush1.bf16.msra.mxu0 %v7322
      %7342 = vmatprep.subr.bf16.mxu0 0
      %7343 = vmatpush1.bf16.msra.mxu0 %v7321
      %7344 = vmatprep.subr.bf16.mxu0 0
      %7345 = vmatpush1.bf16.msra.mxu0 %v7320
      %7346 = vmatprep.subr.bf16.mxu0 0
      %7347 = vmatpush1.bf16.msra.mxu0 %v7319
      %7348 = vmatprep.subr.bf16.mxu0 0
      %7349 = vmatpush1.bf16.msra.mxu0 %v7318
      %7350 = vmatprep.subr.bf16.mxu0 0
      %7351 = vmatpush2.bf16.msra.mxu0 0
      %7352 = vmatprep.subr.bf16.mxu0 0
      %7353 = vmatpush2.bf16.msra.mxu0 0
      %7354 = vmatprep.subr.bf16.mxu0 0
      %7355 = vmatpush2.bf16.msra.mxu0 0
      %7356 = vmatprep.subr.bf16.mxu0 0
      %7357 = vmatpush2.bf16.msra.mxu0 0
      %7358 = vmatprep.subr.bf16.mxu0 0
      %7359 = vmatpush2.bf16.msra.mxu0 0
      %7360 = vmatprep.subr.bf16.mxu0 0
      %7361 = vmatpush2.bf16.msra.mxu0 0
      %7362 = vmatprep.subr.bf16.mxu0 0
      %7363 = vmatpush2.bf16.msra.mxu0 0
      %7364 = vmatprep.subr.bf16.mxu0 0
      %7365 = vmatpush2.bf16.msra.mxu0 0
      %7366 = vmatprep.mubr.bf16.mxu0 0
      %7367 = vmatmul.mubr.bf16.gmra.mxu0 %v4374
      %v7368 = vpop.f32.mrf.mxu0
      %v7369 = vadd.f32 0.0, %v7368
      %v7370 = vpop.f32.mrf.mxu0
      %v7371 = vpop.f32.mrf.mxu0
      %v7372 = vadd.f32 0.0, %v7371
      %v7373 = vpop.f32.mrf.mxu0
      %7374 = vmatprep.mubr.bf16.mxu0 0
      %7375 = vmatmul.mubr.bf16.gmra.mxu0 %v4375
      %v7376 = vpop.f32.mrf.mxu0
      %v7377 = vadd.f32 0.0, %v7376
      %v7378 = vpop.f32.mrf.mxu0
      %v7379 = vpop.f32.mrf.mxu0
      %v7380 = vadd.f32 0.0, %v7379
      %v7381 = vpop.f32.mrf.mxu0
      %7382 = vmatprep.mubr.bf16.mxu0 0
      %7383 = vmatmul.mubr.bf16.gmra.mxu0 %v4376
      %v7384 = vpop.f32.mrf.mxu0
      %v7385 = vadd.f32 0.0, %v7384
      %v7386 = vpop.f32.mrf.mxu0
      %v7387 = vpop.f32.mrf.mxu0
      %v7388 = vadd.f32 0.0, %v7387
      %v7389 = vpop.f32.mrf.mxu0
      %7390 = vmatprep.mubr.bf16.mxu0 0
      %7391 = vmatmul.mubr.bf16.gmra.mxu0 %v4377
      %v7392 = vpop.f32.mrf.mxu0
      %v7393 = vadd.f32 0.0, %v7392
      %v7394 = vpop.f32.mrf.mxu0
      %v7395 = vpop.f32.mrf.mxu0
      %v7396 = vadd.f32 0.0, %v7395
      %v7397 = vpop.f32.mrf.mxu0
      %7398 = vmatprep.mubr.bf16.mxu0 0
      %7399 = vmatmul.mubr.bf16.gmra.mxu0 %v4378
      %v7400 = vpop.f32.mrf.mxu0
      %v7401 = vadd.f32 0.0, %v7400
      %v7402 = vpop.f32.mrf.mxu0
      %v7403 = vpop.f32.mrf.mxu0
      %v7404 = vadd.f32 0.0, %v7403
      %v7405 = vpop.f32.mrf.mxu0
      %7406 = vmatprep.mubr.bf16.mxu0 0
      %7407 = vmatmul.mubr.bf16.gmra.mxu0 %v4379
      %v7408 = vpop.f32.mrf.mxu0
      %v7409 = vadd.f32 0.0, %v7408
      %v7410 = vpop.f32.mrf.mxu0
      %v7411 = vpop.f32.mrf.mxu0
      %v7412 = vadd.f32 0.0, %v7411
      %v7413 = vpop.f32.mrf.mxu0
      %7414 = vmatprep.mubr.bf16.mxu0 0
      %7415 = vmatmul.mubr.bf16.gmra.mxu0 %v4380
      %v7416 = vpop.f32.mrf.mxu0
      %v7417 = vadd.f32 0.0, %v7416
      %v7418 = vpop.f32.mrf.mxu0
      %v7419 = vpop.f32.mrf.mxu0
      %v7420 = vadd.f32 0.0, %v7419
      %v7421 = vpop.f32.mrf.mxu0
      %7422 = vmatprep.mubr.bf16.mxu0 0
      %7423 = vmatmul.mubr.bf16.gmra.mxu0 %v4381
      %v7424 = vpop.f32.mrf.mxu0
      %v7425 = vadd.f32 0.0, %v7424
      %v7426 = vpop.f32.mrf.mxu0
      %v7427 = vpop.f32.mrf.mxu0
      %v7428 = vadd.f32 0.0, %v7427
      %v7429 = vpop.f32.mrf.mxu0
      %7430 = vmatprep.mubr.bf16.mxu0 0
      %7431 = vmatmul.mubr.bf16.gmra.mxu0 %v4382
      %v7432 = vpop.f32.mrf.mxu0
      %v7433 = vadd.f32 0.0, %v7432
      %v7434 = vpop.f32.mrf.mxu0
      %v7435 = vpop.f32.mrf.mxu0
      %v7436 = vadd.f32 0.0, %v7435
      %v7437 = vpop.f32.mrf.mxu0
      %7438 = vmatprep.mubr.bf16.mxu0 0
      %7439 = vmatmul.mubr.bf16.gmra.mxu0 %v4383
      %v7440 = vpop.f32.mrf.mxu0
      %v7441 = vadd.f32 0.0, %v7440
      %v7442 = vpop.f32.mrf.mxu0
      %v7443 = vpop.f32.mrf.mxu0
      %v7444 = vadd.f32 0.0, %v7443
      %v7445 = vpop.f32.mrf.mxu0
      %7446 = vmatprep.mubr.bf16.mxu0 0
      %7447 = vmatmul.mubr.bf16.gmra.mxu0 %v4384
      %v7448 = vpop.f32.mrf.mxu0
      %v7449 = vadd.f32 0.0, %v7448
      %v7450 = vpop.f32.mrf.mxu0
      %v7451 = vpop.f32.mrf.mxu0
      %v7452 = vadd.f32 0.0, %v7451
      %v7453 = vpop.f32.mrf.mxu0
      %7454 = vmatprep.mubr.bf16.mxu0 0
      %7455 = vmatmul.mubr.bf16.gmra.mxu0 %v4385
      %v7456 = vpop.f32.mrf.mxu0
      %v7457 = vadd.f32 0.0, %v7456
      %v7458 = vpop.f32.mrf.mxu0
      %v7459 = vpop.f32.mrf.mxu0
      %v7460 = vadd.f32 0.0, %v7459
      %v7461 = vpop.f32.mrf.mxu0
      %7462 = vmatprep.mubr.bf16.mxu0 0
      %7463 = vmatmul.mubr.bf16.gmra.mxu0 %v4386
      %v7464 = vpop.f32.mrf.mxu0
      %v7465 = vadd.f32 0.0, %v7464
      %v7466 = vpop.f32.mrf.mxu0
      %v7467 = vpop.f32.mrf.mxu0
      %v7468 = vadd.f32 0.0, %v7467
      %v7469 = vpop.f32.mrf.mxu0
      %7470 = vmatprep.mubr.bf16.mxu0 0
      %7471 = vmatmul.mubr.bf16.gmra.mxu0 %v4387
      %v7472 = vpop.f32.mrf.mxu0
      %v7473 = vadd.f32 0.0, %v7472
      %v7474 = vpop.f32.mrf.mxu0
      %v7475 = vpop.f32.mrf.mxu0
      %v7476 = vadd.f32 0.0, %v7475
      %v7477 = vpop.f32.mrf.mxu0
      %7478 = vmatprep.mubr.bf16.mxu0 0
      %7479 = vmatmul.mubr.bf16.gmra.mxu0 %v4388
      %v7480 = vpop.f32.mrf.mxu0
      %v7481 = vadd.f32 0.0, %v7480
      %v7482 = vpop.f32.mrf.mxu0
      %v7483 = vpop.f32.mrf.mxu0
      %v7484 = vadd.f32 0.0, %v7483
      %v7485 = vpop.f32.mrf.mxu0
      %7486 = vmatprep.mubr.bf16.mxu0 0
      %7487 = vmatmul.mubr.bf16.gmra.mxu0 %v4389
      %v7488 = vpop.f32.mrf.mxu0
      %v7489 = vadd.f32 0.0, %v7488
      %v7490 = vpop.f32.mrf.mxu0
      %v7491 = vpop.f32.mrf.mxu0
      %v7492 = vadd.f32 0.0, %v7491
      %v7493 = vpop.f32.mrf.mxu0
      %7494 = vmatprep.mubr.bf16.mxu0 0
      %7495 = vmatmul.mubr.bf16.gmra.mxu0 %v4390
      %v7496 = vpop.f32.mrf.mxu0
      %v7497 = vadd.f32 0.0, %v7496
      %v7498 = vpop.f32.mrf.mxu0
      %v7499 = vpop.f32.mrf.mxu0
      %v7500 = vadd.f32 0.0, %v7499
      %v7501 = vpop.f32.mrf.mxu0
      %7502 = vmatprep.mubr.bf16.mxu0 0
      %7503 = vmatmul.mubr.bf16.gmra.mxu0 %v4391
      %v7504 = vpop.f32.mrf.mxu0
      %v7505 = vadd.f32 0.0, %v7504
      %v7506 = vpop.f32.mrf.mxu0
      %v7507 = vpop.f32.mrf.mxu0
      %v7508 = vadd.f32 0.0, %v7507
      %v7509 = vpop.f32.mrf.mxu0
      %7510 = vmatprep.mubr.bf16.mxu0 0
      %7511 = vmatmul.mubr.bf16.gmra.mxu0 %v4392
      %v7512 = vpop.f32.mrf.mxu0
      %v7513 = vadd.f32 0.0, %v7512
      %v7514 = vpop.f32.mrf.mxu0
      %v7515 = vpop.f32.mrf.mxu0
      %v7516 = vadd.f32 0.0, %v7515
      %v7517 = vpop.f32.mrf.mxu0
      %7518 = vmatprep.mubr.bf16.mxu0 0
      %7519 = vmatmul.mubr.bf16.gmra.mxu0 %v4393
      %v7520 = vpop.f32.mrf.mxu0
      %v7521 = vadd.f32 0.0, %v7520
      %v7522 = vpop.f32.mrf.mxu0
      %v7523 = vpop.f32.mrf.mxu0
      %v7524 = vadd.f32 0.0, %v7523
      %v7525 = vpop.f32.mrf.mxu0
      %7526 = vmatprep.mubr.bf16.mxu0 0
      %7527 = vmatmul.mubr.bf16.gmra.mxu0 %v4394
      %v7528 = vpop.f32.mrf.mxu0
      %v7529 = vadd.f32 0.0, %v7528
      %v7530 = vpop.f32.mrf.mxu0
      %v7531 = vpop.f32.mrf.mxu0
      %v7532 = vadd.f32 0.0, %v7531
      %v7533 = vpop.f32.mrf.mxu0
      %7534 = vmatprep.mubr.bf16.mxu0 0
      %7535 = vmatmul.mubr.bf16.gmra.mxu0 %v4395
      %v7536 = vpop.f32.mrf.mxu0
      %v7537 = vadd.f32 0.0, %v7536
      %v7538 = vpop.f32.mrf.mxu0
      %v7539 = vpop.f32.mrf.mxu0
      %v7540 = vadd.f32 0.0, %v7539
      %v7541 = vpop.f32.mrf.mxu0
      %7542 = vmatprep.mubr.bf16.mxu0 0
      %7543 = vmatmul.mubr.bf16.gmra.mxu0 %v4396
      %v7544 = vpop.f32.mrf.mxu0
      %v7545 = vadd.f32 0.0, %v7544
      %v7546 = vpop.f32.mrf.mxu0
      %v7547 = vpop.f32.mrf.mxu0
      %v7548 = vadd.f32 0.0, %v7547
      %v7549 = vpop.f32.mrf.mxu0
      %7550 = vmatprep.mubr.bf16.mxu0 0
      %7551 = vmatmul.mubr.bf16.gmra.mxu0 %v4397
      %v7552 = vpop.f32.mrf.mxu0
      %v7553 = vadd.f32 0.0, %v7552
      %v7554 = vpop.f32.mrf.mxu0
      %v7555 = vpop.f32.mrf.mxu0
      %v7556 = vadd.f32 0.0, %v7555
      %v7557 = vpop.f32.mrf.mxu0
      %7558 = vmatprep.mubr.bf16.mxu0 0
      %7559 = vmatmul.mubr.bf16.gmra.mxu0 %v4398
      %v7560 = vpop.f32.mrf.mxu0
      %v7561 = vadd.f32 0.0, %v7560
      %v7562 = vpop.f32.mrf.mxu0
      %v7563 = vpop.f32.mrf.mxu0
      %v7564 = vadd.f32 0.0, %v7563
      %v7565 = vpop.f32.mrf.mxu0
      %7566 = vmatprep.mubr.bf16.mxu0 0
      %7567 = vmatmul.mubr.bf16.gmra.mxu0 %v4399
      %v7568 = vpop.f32.mrf.mxu0
      %v7569 = vadd.f32 0.0, %v7568
      %v7570 = vpop.f32.mrf.mxu0
      %v7571 = vpop.f32.mrf.mxu0
      %v7572 = vadd.f32 0.0, %v7571
      %v7573 = vpop.f32.mrf.mxu0
      %7574 = vmatprep.mubr.bf16.mxu0 0
      %7575 = vmatmul.mubr.bf16.gmra.mxu0 %v4400
      %v7576 = vpop.f32.mrf.mxu0
      %v7577 = vadd.f32 0.0, %v7576
      %v7578 = vpop.f32.mrf.mxu0
      %v7579 = vpop.f32.mrf.mxu0
      %v7580 = vadd.f32 0.0, %v7579
      %v7581 = vpop.f32.mrf.mxu0
      %7582 = vmatprep.mubr.bf16.mxu0 0
      %7583 = vmatmul.mubr.bf16.gmra.mxu0 %v4401
      %v7584 = vpop.f32.mrf.mxu0
      %v7585 = vadd.f32 0.0, %v7584
      %v7586 = vpop.f32.mrf.mxu0
      %v7587 = vpop.f32.mrf.mxu0
      %v7588 = vadd.f32 0.0, %v7587
      %v7589 = vpop.f32.mrf.mxu0
      %7590 = vmatprep.mubr.bf16.mxu0 0
      %7591 = vmatmul.mubr.bf16.gmra.mxu0 %v4402
      %v7592 = vpop.f32.mrf.mxu0
      %v7593 = vadd.f32 0.0, %v7592
      %v7594 = vpop.f32.mrf.mxu0
      %v7595 = vpop.f32.mrf.mxu0
      %v7596 = vadd.f32 0.0, %v7595
      %v7597 = vpop.f32.mrf.mxu0
      %7598 = vmatprep.mubr.bf16.mxu0 0
      %7599 = vmatmul.mubr.bf16.gmra.mxu0 %v4403
      %v7600 = vpop.f32.mrf.mxu0
      %v7601 = vadd.f32 0.0, %v7600
      %v7602 = vpop.f32.mrf.mxu0
      %v7603 = vpop.f32.mrf.mxu0
      %v7604 = vadd.f32 0.0, %v7603
      %v7605 = vpop.f32.mrf.mxu0
      %7606 = vmatprep.mubr.bf16.mxu0 0
      %7607 = vmatmul.mubr.bf16.gmra.mxu0 %v4404
      %v7608 = vpop.f32.mrf.mxu0
      %v7609 = vadd.f32 0.0, %v7608
      %v7610 = vpop.f32.mrf.mxu0
      %v7611 = vpop.f32.mrf.mxu0
      %v7612 = vadd.f32 0.0, %v7611
      %v7613 = vpop.f32.mrf.mxu0
      %7614 = vmatprep.mubr.bf16.mxu0 0
      %7615 = vmatmul.mubr.bf16.gmra.mxu0 %v4405
      %v7616 = vpop.f32.mrf.mxu0
      %v7617 = vadd.f32 0.0, %v7616
      %v7618 = vpop.f32.mrf.mxu0
      %v7619 = vpop.f32.mrf.mxu0
      %v7620 = vadd.f32 0.0, %v7619
      %v7621 = vpop.f32.mrf.mxu0
      %7622 = vmatprep.mubr.bf16.mxu0 0
      %7623 = vmatmul.mubr.bf16.gmra.mxu0 %v4406
      %v7624 = vpop.f32.mrf.mxu0
      %v7625 = vadd.f32 0.0, %v7624
      %v7626 = vpop.f32.mrf.mxu0
      %v7627 = vpop.f32.mrf.mxu0
      %v7628 = vadd.f32 0.0, %v7627
      %v7629 = vpop.f32.mrf.mxu0
      %7630 = vmatprep.mubr.bf16.mxu0 0
      %7631 = vmatmul.mubr.bf16.gmra.mxu0 %v4407
      %v7632 = vpop.f32.mrf.mxu0
      %v7633 = vadd.f32 0.0, %v7632
      %v7634 = vpop.f32.mrf.mxu0
      %v7635 = vpop.f32.mrf.mxu0
      %v7636 = vadd.f32 0.0, %v7635
      %v7637 = vpop.f32.mrf.mxu0
      %7638 = vmatprep.mubr.bf16.mxu0 0
      %7639 = vmatmul.mubr.bf16.gmra.mxu0 %v4408
      %v7640 = vpop.f32.mrf.mxu0
      %v7641 = vadd.f32 0.0, %v7640
      %v7642 = vpop.f32.mrf.mxu0
      %v7643 = vpop.f32.mrf.mxu0
      %v7644 = vadd.f32 0.0, %v7643
      %v7645 = vpop.f32.mrf.mxu0
      %7646 = vmatprep.mubr.bf16.mxu0 0
      %7647 = vmatmul.mubr.bf16.gmra.mxu0 %v4409
      %v7648 = vpop.f32.mrf.mxu0
      %v7649 = vadd.f32 0.0, %v7648
      %v7650 = vpop.f32.mrf.mxu0
      %v7651 = vpop.f32.mrf.mxu0
      %v7652 = vadd.f32 0.0, %v7651
      %v7653 = vpop.f32.mrf.mxu0
      %7654 = vmatprep.mubr.bf16.mxu0 0
      %7655 = vmatmul.mubr.bf16.gmra.mxu0 %v4410
      %v7656 = vpop.f32.mrf.mxu0
      %v7657 = vadd.f32 0.0, %v7656
      %v7658 = vpop.f32.mrf.mxu0
      %v7659 = vpop.f32.mrf.mxu0
      %v7660 = vadd.f32 0.0, %v7659
      %v7661 = vpop.f32.mrf.mxu0
      %7662 = vmatprep.mubr.bf16.mxu0 0
      %7663 = vmatmul.mubr.bf16.gmra.mxu0 %v4411
      %v7664 = vpop.f32.mrf.mxu0
      %v7665 = vadd.f32 0.0, %v7664
      %v7666 = vpop.f32.mrf.mxu0
      %v7667 = vpop.f32.mrf.mxu0
      %v7668 = vadd.f32 0.0, %v7667
      %v7669 = vpop.f32.mrf.mxu0
      %7670 = vmatprep.mubr.bf16.mxu0 0
      %7671 = vmatmul.mubr.bf16.gmra.mxu0 %v4412
      %v7672 = vpop.f32.mrf.mxu0
      %v7673 = vadd.f32 0.0, %v7672
      %v7674 = vpop.f32.mrf.mxu0
      %v7675 = vpop.f32.mrf.mxu0
      %v7676 = vadd.f32 0.0, %v7675
      %v7677 = vpop.f32.mrf.mxu0
      %7678 = vmatprep.mubr.bf16.mxu0 0
      %7679 = vmatmul.mubr.bf16.gmra.mxu0 %v4413
      %v7680 = vpop.f32.mrf.mxu0
      %v7681 = vadd.f32 0.0, %v7680
      %v7682 = vpop.f32.mrf.mxu0
      %v7683 = vpop.f32.mrf.mxu0
      %v7684 = vadd.f32 0.0, %v7683
      %v7685 = vpop.f32.mrf.mxu0
      %7686 = vmatprep.mubr.bf16.mxu0 0
      %7687 = vmatmul.mubr.bf16.gmra.mxu0 %v4414
      %v7688 = vpop.f32.mrf.mxu0
      %v7689 = vadd.f32 0.0, %v7688
      %v7690 = vpop.f32.mrf.mxu0
      %v7691 = vpop.f32.mrf.mxu0
      %v7692 = vadd.f32 0.0, %v7691
      %v7693 = vpop.f32.mrf.mxu0
      %7694 = vmatprep.mubr.bf16.mxu0 0
      %7695 = vmatmul.mubr.bf16.gmra.mxu0 %v4415
      %v7696 = vpop.f32.mrf.mxu0
      %v7697 = vadd.f32 0.0, %v7696
      %v7698 = vpop.f32.mrf.mxu0
      %v7699 = vpop.f32.mrf.mxu0
      %v7700 = vadd.f32 0.0, %v7699
      %v7701 = vpop.f32.mrf.mxu0
      %7702 = vmatprep.mubr.bf16.mxu0 0
      %7703 = vmatmul.mubr.bf16.gmra.mxu0 %v4416
      %v7704 = vpop.f32.mrf.mxu0
      %v7705 = vadd.f32 0.0, %v7704
      %v7706 = vpop.f32.mrf.mxu0
      %v7707 = vpop.f32.mrf.mxu0
      %v7708 = vadd.f32 0.0, %v7707
      %v7709 = vpop.f32.mrf.mxu0
      %7710 = vmatprep.mubr.bf16.mxu0 0
      %7711 = vmatmul.mubr.bf16.gmra.mxu0 %v4417
      %v7712 = vpop.f32.mrf.mxu0
      %v7713 = vadd.f32 0.0, %v7712
      %v7714 = vpop.f32.mrf.mxu0
      %v7715 = vpop.f32.mrf.mxu0
      %v7716 = vadd.f32 0.0, %v7715
      %v7717 = vpop.f32.mrf.mxu0
      %7718 = vmatprep.mubr.bf16.mxu0 0
      %7719 = vmatmul.mubr.bf16.gmra.mxu0 %v4418
      %v7720 = vpop.f32.mrf.mxu0
      %v7721 = vadd.f32 0.0, %v7720
      %v7722 = vpop.f32.mrf.mxu0
      %v7723 = vpop.f32.mrf.mxu0
      %v7724 = vadd.f32 0.0, %v7723
      %v7725 = vpop.f32.mrf.mxu0
      %7726 = vmatprep.mubr.bf16.mxu0 0
      %7727 = vmatmul.mubr.bf16.gmra.mxu0 %v4419
      %v7728 = vpop.f32.mrf.mxu0
      %v7729 = vadd.f32 0.0, %v7728
      %v7730 = vpop.f32.mrf.mxu0
      %v7731 = vpop.f32.mrf.mxu0
      %v7732 = vadd.f32 0.0, %v7731
      %v7733 = vpop.f32.mrf.mxu0
      %7734 = vmatprep.mubr.bf16.mxu0 0
      %7735 = vmatmul.mubr.bf16.gmra.mxu0 %v4420
      %v7736 = vpop.f32.mrf.mxu0
      %v7737 = vadd.f32 0.0, %v7736
      %v7738 = vpop.f32.mrf.mxu0
      %v7739 = vpop.f32.mrf.mxu0
      %v7740 = vadd.f32 0.0, %v7739
      %v7741 = vpop.f32.mrf.mxu0
      %7742 = vmatprep.mubr.bf16.mxu0 0
      %7743 = vmatmul.mubr.bf16.gmra.mxu0 %v4421
      %v7744 = vpop.f32.mrf.mxu0
      %v7745 = vadd.f32 0.0, %v7744
      %v7746 = vpop.f32.mrf.mxu0
      %v7747 = vpop.f32.mrf.mxu0
      %v7748 = vadd.f32 0.0, %v7747
      %v7749 = vpop.f32.mrf.mxu0
      %7750 = vmatprep.mubr.bf16.mxu0 0
      %7751 = vmatmul.mubr.bf16.gmra.mxu0 %v4422
      %v7752 = vpop.f32.mrf.mxu0
      %v7753 = vadd.f32 0.0, %v7752
      %v7754 = vpop.f32.mrf.mxu0
      %v7755 = vpop.f32.mrf.mxu0
      %v7756 = vadd.f32 0.0, %v7755
      %v7757 = vpop.f32.mrf.mxu0
      %7758 = vmatprep.mubr.bf16.mxu0 0
      %7759 = vmatmul.mubr.bf16.gmra.mxu0 %v4423
      %v7760 = vpop.f32.mrf.mxu0
      %v7761 = vadd.f32 0.0, %v7760
      %v7762 = vpop.f32.mrf.mxu0
      %v7763 = vpop.f32.mrf.mxu0
      %v7764 = vadd.f32 0.0, %v7763
      %v7765 = vpop.f32.mrf.mxu0
      %7766 = vmatprep.mubr.bf16.mxu0 0
      %7767 = vmatmul.mubr.bf16.gmra.mxu0 %v4424
      %v7768 = vpop.f32.mrf.mxu0
      %v7769 = vadd.f32 0.0, %v7768
      %v7770 = vpop.f32.mrf.mxu0
      %v7771 = vpop.f32.mrf.mxu0
      %v7772 = vadd.f32 0.0, %v7771
      %v7773 = vpop.f32.mrf.mxu0
      %7774 = vmatprep.mubr.bf16.mxu0 0
      %7775 = vmatmul.mubr.bf16.gmra.mxu0 %v4425
      %v7776 = vpop.f32.mrf.mxu0
      %v7777 = vadd.f32 0.0, %v7776
      %v7778 = vpop.f32.mrf.mxu0
      %v7779 = vpop.f32.mrf.mxu0
      %v7780 = vadd.f32 0.0, %v7779
      %v7781 = vpop.f32.mrf.mxu0
      %7782 = vmatprep.mubr.bf16.mxu0 0
      %7783 = vmatmul.mubr.bf16.gmra.mxu0 %v4426
      %v7784 = vpop.f32.mrf.mxu0
      %v7785 = vadd.f32 0.0, %v7784
      %v7786 = vpop.f32.mrf.mxu0
      %v7787 = vpop.f32.mrf.mxu0
      %v7788 = vadd.f32 0.0, %v7787
      %v7789 = vpop.f32.mrf.mxu0
      %7790 = vmatprep.mubr.bf16.mxu0 0
      %7791 = vmatmul.mubr.bf16.gmra.mxu0 %v4427
      %v7792 = vpop.f32.mrf.mxu0
      %v7793 = vadd.f32 0.0, %v7792
      %v7794 = vpop.f32.mrf.mxu0
      %v7795 = vpop.f32.mrf.mxu0
      %v7796 = vadd.f32 0.0, %v7795
      %v7797 = vpop.f32.mrf.mxu0
      %7798 = vmatprep.mubr.bf16.mxu0 0
      %7799 = vmatmul.mubr.bf16.gmra.mxu0 %v4428
      %v7800 = vpop.f32.mrf.mxu0
      %v7801 = vadd.f32 0.0, %v7800
      %v7802 = vpop.f32.mrf.mxu0
      %v7803 = vpop.f32.mrf.mxu0
      %v7804 = vadd.f32 0.0, %v7803
      %v7805 = vpop.f32.mrf.mxu0
      %7806 = vmatprep.mubr.bf16.mxu0 0
      %7807 = vmatmul.mubr.bf16.gmra.mxu0 %v4429
      %v7808 = vpop.f32.mrf.mxu0
      %v7809 = vadd.f32 0.0, %v7808
      %v7810 = vpop.f32.mrf.mxu0
      %v7811 = vpop.f32.mrf.mxu0
      %v7812 = vadd.f32 0.0, %v7811
      %v7813 = vpop.f32.mrf.mxu0
      %7814 = vmatprep.mubr.bf16.mxu0 0
      %7815 = vmatmul.mubr.bf16.gmra.mxu0 %v4430
      %v7816 = vpop.f32.mrf.mxu0
      %v7817 = vadd.f32 0.0, %v7816
      %v7818 = vpop.f32.mrf.mxu0
      %v7819 = vpop.f32.mrf.mxu0
      %v7820 = vadd.f32 0.0, %v7819
      %v7821 = vpop.f32.mrf.mxu0
      %7822 = vmatprep.mubr.bf16.mxu0 0
      %7823 = vmatmul.mubr.bf16.gmra.mxu0 %v4431
      %v7824 = vpop.f32.mrf.mxu0
      %v7825 = vadd.f32 0.0, %v7824
      %v7826 = vpop.f32.mrf.mxu0
      %v7827 = vpop.f32.mrf.mxu0
      %v7828 = vadd.f32 0.0, %v7827
      %v7829 = vpop.f32.mrf.mxu0
      %7830 = vmatprep.mubr.bf16.mxu0 0
      %7831 = vmatmul.mubr.bf16.gmra.mxu0 %v4432
      %v7832 = vpop.f32.mrf.mxu0
      %v7833 = vadd.f32 0.0, %v7832
      %v7834 = vpop.f32.mrf.mxu0
      %v7835 = vpop.f32.mrf.mxu0
      %v7836 = vadd.f32 0.0, %v7835
      %v7837 = vpop.f32.mrf.mxu0
      %7838 = vmatprep.mubr.bf16.mxu0 0
      %7839 = vmatmul.mubr.bf16.gmra.mxu0 %v4433
      %v7840 = vpop.f32.mrf.mxu0
      %v7841 = vadd.f32 0.0, %v7840
      %v7842 = vpop.f32.mrf.mxu0
      %v7843 = vpop.f32.mrf.mxu0
      %v7844 = vadd.f32 0.0, %v7843
      %v7845 = vpop.f32.mrf.mxu0
      %7846 = vmatprep.mubr.bf16.mxu0 0
      %7847 = vmatmul.mubr.bf16.gmra.mxu0 %v4434
      %v7848 = vpop.f32.mrf.mxu0
      %v7849 = vadd.f32 0.0, %v7848
      %v7850 = vpop.f32.mrf.mxu0
      %v7851 = vpop.f32.mrf.mxu0
      %v7852 = vadd.f32 0.0, %v7851
      %v7853 = vpop.f32.mrf.mxu0
      %7854 = vmatprep.mubr.bf16.mxu0 0
      %7855 = vmatmul.mubr.bf16.gmra.mxu0 %v4435
      %v7856 = vpop.f32.mrf.mxu0
      %v7857 = vadd.f32 0.0, %v7856
      %v7858 = vpop.f32.mrf.mxu0
      %v7859 = vpop.f32.mrf.mxu0
      %v7860 = vadd.f32 0.0, %v7859
      %v7861 = vpop.f32.mrf.mxu0
      %7862 = vmatprep.mubr.bf16.mxu0 0
      %7863 = vmatmul.mubr.bf16.gmra.mxu0 %v4436
      %v7864 = vpop.f32.mrf.mxu0
      %v7865 = vadd.f32 0.0, %v7864
      %v7866 = vpop.f32.mrf.mxu0
      %v7867 = vpop.f32.mrf.mxu0
      %v7868 = vadd.f32 0.0, %v7867
      %v7869 = vpop.f32.mrf.mxu0
      %7870 = vmatprep.mubr.bf16.mxu0 0
      %7871 = vmatmul.mubr.bf16.gmra.mxu0 %v4437
      %v7872 = vpop.f32.mrf.mxu0
      %v7873 = vadd.f32 0.0, %v7872
      %v7874 = vpop.f32.mrf.mxu0
      %v7875 = vpop.f32.mrf.mxu0
      %v7876 = vadd.f32 0.0, %v7875
      %v7877 = vpop.f32.mrf.mxu0
      %7878 = vdwg.mxu0
      %v7887 = vunpack.c.l.b16 %v7198
      %v7888 = vunpack.c.l.b16 %v7199
      %v7889 = vunpack.c.l.b16 %v7200
      %v7890 = vunpack.c.l.b16 %v7201
      %v7891 = vunpack.c.l.b16 %v7202
      %v7892 = vunpack.c.l.b16 %v7203
      %v7893 = vunpack.c.l.b16 %v7204
      %v7894 = vunpack.c.l.b16 %v7205
      %v7895 = vpack.c.b16 %v7888, %v7887
      %v7896 = vpack.c.b16 %v7890, %v7889
      %v7897 = vpack.c.b16 %v7892, %v7891
      %v7898 = vpack.c.b16 %v7894, %v7893
      %vm7903 = vcmask 523264
      %v7905 = vsel %vm7903, %v7206, 0
      %v7908 = vsel %vm7903, %v7207, 0
      %v7911 = vsel %vm7903, %v7208, 0
      %v7914 = vsel %vm7903, %v7209, 0
      %v7917 = vsel %vm7903, %v7210, 0
      %v7920 = vsel %vm7903, %v7211, 0
      %v7923 = vsel %vm7903, %v7212, 0
      %v7926 = vsel %vm7903, %v7213, 0
      %v7929 = vsel %vm7903, %v7214, 0
      %v7932 = vsel %vm7903, %v7215, 0
      %v7935 = vsel %vm7903, %v7216, 0
      %v7938 = vsel %vm7903, %v7217, 0
      %v7941 = vsel %vm7903, %v7218, 0
      %v7944 = vsel %vm7903, %v7219, 0
      %v7947 = vsel %vm7903, %v7220, 0
      %v7950 = vsel %vm7903, %v7221, 0
      %v7953 = vsel %vm7903, %v7222, 0
      %v7956 = vsel %vm7903, %v7223, 0
      %v7959 = vsel %vm7903, %v7224, 0
      %v7962 = vsel %vm7903, %v7225, 0
      %v7965 = vsel %vm7903, %v7226, 0
      %v7968 = vsel %vm7903, %v7227, 0
      %v7971 = vsel %vm7903, %v7228, 0
      %v7974 = vsel %vm7903, %v7229, 0
      %v7977 = vsel %vm7903, %v7230, 0
      %v7980 = vsel %vm7903, %v7231, 0
      %v7983 = vsel %vm7903, %v7232, 0
      %v7986 = vsel %vm7903, %v7233, 0
      %v7989 = vsel %vm7903, %v7234, 0
      %v7992 = vsel %vm7903, %v7235, 0
      %v7995 = vsel %vm7903, %v7236, 0
      %v7998 = vsel %vm7903, %v7237, 0
      %v8001 = vsel %vm7903, %v7238, 0
      %v8004 = vsel %vm7903, %v7239, 0
      %v8007 = vsel %vm7903, %v7240, 0
      %v8010 = vsel %vm7903, %v7241, 0
      %v8013 = vsel %vm7903, %v7242, 0
      %v8016 = vsel %vm7903, %v7243, 0
      %v8019 = vsel %vm7903, %v7244, 0
      %v8022 = vsel %vm7903, %v7245, 0
      %v8025 = vsel %vm7903, %v7246, 0
      %v8028 = vsel %vm7903, %v7247, 0
      %v8031 = vsel %vm7903, %v7248, 0
      %v8034 = vsel %vm7903, %v7249, 0
      %v8037 = vsel %vm7903, %v7250, 0
      %v8040 = vsel %vm7903, %v7251, 0
      %v8043 = vsel %vm7903, %v7252, 0
      %v8046 = vsel %vm7903, %v7253, 0
      %v8049 = vsel %vm7903, %v7254, 0
      %v8052 = vsel %vm7903, %v7255, 0
      %v8055 = vsel %vm7903, %v7256, 0
      %v8058 = vsel %vm7903, %v7257, 0
      %v8061 = vsel %vm7903, %v7258, 0
      %v8064 = vsel %vm7903, %v7259, 0
      %v8067 = vsel %vm7903, %v7260, 0
      %v8070 = vsel %vm7903, %v7261, 0
      %v8073 = vsel %vm7903, %v7262, 0
      %v8076 = vsel %vm7903, %v7263, 0
      %v8079 = vsel %vm7903, %v7264, 0
      %v8082 = vsel %vm7903, %v7265, 0
      %v8085 = vsel %vm7903, %v7266, 0
      %v8088 = vsel %vm7903, %v7267, 0
      %v8091 = vsel %vm7903, %v7268, 0
      %v8094 = vsel %vm7903, %v7269, 0
      %8096 = vmatprep.subr.bf16.mxu0 0
      %8097 = vmatpush1.bf16.msra.mxu0 0
      %8098 = vmatprep.subr.bf16.mxu0 0
      %8099 = vmatpush1.bf16.msra.mxu0 0
      %8100 = vmatprep.subr.bf16.mxu0 0
      %8101 = vmatpush1.bf16.msra.mxu0 0
      %8102 = vmatprep.subr.bf16.mxu0 0
      %8103 = vmatpush1.bf16.msra.mxu0 0
      %8104 = vmatprep.subr.bf16.mxu0 0
      %8105 = vmatpush1.bf16.msra.mxu0 %v7898
      %8106 = vmatprep.subr.bf16.mxu0 0
      %8107 = vmatpush1.bf16.msra.mxu0 %v7897
      %8108 = vmatprep.subr.bf16.mxu0 0
      %8109 = vmatpush1.bf16.msra.mxu0 %v7896
      %8110 = vmatprep.subr.bf16.mxu0 0
      %8111 = vmatpush1.bf16.msra.mxu0 %v7895
      %8112 = vmatprep.subr.bf16.mxu0 0
      %8113 = vmatpush2.bf16.msra.mxu0 0
      %8114 = vmatprep.subr.bf16.mxu0 0
      %8115 = vmatpush2.bf16.msra.mxu0 0
      %8116 = vmatprep.subr.bf16.mxu0 0
      %8117 = vmatpush2.bf16.msra.mxu0 0
      %8118 = vmatprep.subr.bf16.mxu0 0
      %8119 = vmatpush2.bf16.msra.mxu0 0
      %8120 = vmatprep.subr.bf16.mxu0 0
      %8121 = vmatpush2.bf16.msra.mxu0 0
      %8122 = vmatprep.subr.bf16.mxu0 0
      %8123 = vmatpush2.bf16.msra.mxu0 0
      %8124 = vmatprep.subr.bf16.mxu0 0
      %8125 = vmatpush2.bf16.msra.mxu0 0
      %8126 = vmatprep.subr.bf16.mxu0 0
      %8127 = vmatpush2.bf16.msra.mxu0 0
      %8128 = vmatprep.mubr.bf16.mxu0 0
      %8129 = vmatmul.mubr.bf16.gmra.mxu0 %v7905
      %v8130 = vpop.f32.mrf.mxu0
      %v8131 = vadd.f32 %v7369, %v8130
      %v8132 = vpop.f32.mrf.mxu0
      %v8133 = vpop.f32.mrf.mxu0
      %v8134 = vadd.f32 %v7372, %v8133
      %v8135 = vpop.f32.mrf.mxu0
      %8136 = vmatprep.mubr.bf16.mxu0 0
      %8137 = vmatmul.mubr.bf16.gmra.mxu0 %v7908
      %v8138 = vpop.f32.mrf.mxu0
      %v8139 = vadd.f32 %v7377, %v8138
      %v8140 = vpop.f32.mrf.mxu0
      %v8141 = vpop.f32.mrf.mxu0
      %v8142 = vadd.f32 %v7380, %v8141
      %v8143 = vpop.f32.mrf.mxu0
      %8144 = vmatprep.mubr.bf16.mxu0 0
      %8145 = vmatmul.mubr.bf16.gmra.mxu0 %v7911
      %v8146 = vpop.f32.mrf.mxu0
      %v8147 = vadd.f32 %v7385, %v8146
      %v8148 = vpop.f32.mrf.mxu0
      %v8149 = vpop.f32.mrf.mxu0
      %v8150 = vadd.f32 %v7388, %v8149
      %v8151 = vpop.f32.mrf.mxu0
      %8152 = vmatprep.mubr.bf16.mxu0 0
      %8153 = vmatmul.mubr.bf16.gmra.mxu0 %v7914
      %v8154 = vpop.f32.mrf.mxu0
      %v8155 = vadd.f32 %v7393, %v8154
      %v8156 = vpop.f32.mrf.mxu0
      %v8157 = vpop.f32.mrf.mxu0
      %v8158 = vadd.f32 %v7396, %v8157
      %v8159 = vpop.f32.mrf.mxu0
      %8160 = vmatprep.mubr.bf16.mxu0 0
      %8161 = vmatmul.mubr.bf16.gmra.mxu0 %v7917
      %v8162 = vpop.f32.mrf.mxu0
      %v8163 = vadd.f32 %v7401, %v8162
      %v8164 = vpop.f32.mrf.mxu0
      %v8165 = vpop.f32.mrf.mxu0
      %v8166 = vadd.f32 %v7404, %v8165
      %v8167 = vpop.f32.mrf.mxu0
      %8168 = vmatprep.mubr.bf16.mxu0 0
      %8169 = vmatmul.mubr.bf16.gmra.mxu0 %v7920
      %v8170 = vpop.f32.mrf.mxu0
      %v8171 = vadd.f32 %v7409, %v8170
      %v8172 = vpop.f32.mrf.mxu0
      %v8173 = vpop.f32.mrf.mxu0
      %v8174 = vadd.f32 %v7412, %v8173
      %v8175 = vpop.f32.mrf.mxu0
      %8176 = vmatprep.mubr.bf16.mxu0 0
      %8177 = vmatmul.mubr.bf16.gmra.mxu0 %v7923
      %v8178 = vpop.f32.mrf.mxu0
      %v8179 = vadd.f32 %v7417, %v8178
      %v8180 = vpop.f32.mrf.mxu0
      %v8181 = vpop.f32.mrf.mxu0
      %v8182 = vadd.f32 %v7420, %v8181
      %v8183 = vpop.f32.mrf.mxu0
      %8184 = vmatprep.mubr.bf16.mxu0 0
      %8185 = vmatmul.mubr.bf16.gmra.mxu0 %v7926
      %v8186 = vpop.f32.mrf.mxu0
      %v8187 = vadd.f32 %v7425, %v8186
      %v8188 = vpop.f32.mrf.mxu0
      %v8189 = vpop.f32.mrf.mxu0
      %v8190 = vadd.f32 %v7428, %v8189
      %v8191 = vpop.f32.mrf.mxu0
      %8192 = vmatprep.mubr.bf16.mxu0 0
      %8193 = vmatmul.mubr.bf16.gmra.mxu0 %v7929
      %v8194 = vpop.f32.mrf.mxu0
      %v8195 = vadd.f32 %v7433, %v8194
      %v8196 = vpop.f32.mrf.mxu0
      %v8197 = vpop.f32.mrf.mxu0
      %v8198 = vadd.f32 %v7436, %v8197
      %v8199 = vpop.f32.mrf.mxu0
      %8200 = vmatprep.mubr.bf16.mxu0 0
      %8201 = vmatmul.mubr.bf16.gmra.mxu0 %v7932
      %v8202 = vpop.f32.mrf.mxu0
      %v8203 = vadd.f32 %v7441, %v8202
      %v8204 = vpop.f32.mrf.mxu0
      %v8205 = vpop.f32.mrf.mxu0
      %v8206 = vadd.f32 %v7444, %v8205
      %v8207 = vpop.f32.mrf.mxu0
      %8208 = vmatprep.mubr.bf16.mxu0 0
      %8209 = vmatmul.mubr.bf16.gmra.mxu0 %v7935
      %v8210 = vpop.f32.mrf.mxu0
      %v8211 = vadd.f32 %v7449, %v8210
      %v8212 = vpop.f32.mrf.mxu0
      %v8213 = vpop.f32.mrf.mxu0
      %v8214 = vadd.f32 %v7452, %v8213
      %v8215 = vpop.f32.mrf.mxu0
      %8216 = vmatprep.mubr.bf16.mxu0 0
      %8217 = vmatmul.mubr.bf16.gmra.mxu0 %v7938
      %v8218 = vpop.f32.mrf.mxu0
      %v8219 = vadd.f32 %v7457, %v8218
      %v8220 = vpop.f32.mrf.mxu0
      %v8221 = vpop.f32.mrf.mxu0
      %v8222 = vadd.f32 %v7460, %v8221
      %v8223 = vpop.f32.mrf.mxu0
      %8224 = vmatprep.mubr.bf16.mxu0 0
      %8225 = vmatmul.mubr.bf16.gmra.mxu0 %v7941
      %v8226 = vpop.f32.mrf.mxu0
      %v8227 = vadd.f32 %v7465, %v8226
      %v8228 = vpop.f32.mrf.mxu0
      %v8229 = vpop.f32.mrf.mxu0
      %v8230 = vadd.f32 %v7468, %v8229
      %v8231 = vpop.f32.mrf.mxu0
      %8232 = vmatprep.mubr.bf16.mxu0 0
      %8233 = vmatmul.mubr.bf16.gmra.mxu0 %v7944
      %v8234 = vpop.f32.mrf.mxu0
      %v8235 = vadd.f32 %v7473, %v8234
      %v8236 = vpop.f32.mrf.mxu0
      %v8237 = vpop.f32.mrf.mxu0
      %v8238 = vadd.f32 %v7476, %v8237
      %v8239 = vpop.f32.mrf.mxu0
      %8240 = vmatprep.mubr.bf16.mxu0 0
      %8241 = vmatmul.mubr.bf16.gmra.mxu0 %v7947
      %v8242 = vpop.f32.mrf.mxu0
      %v8243 = vadd.f32 %v7481, %v8242
      %v8244 = vpop.f32.mrf.mxu0
      %v8245 = vpop.f32.mrf.mxu0
      %v8246 = vadd.f32 %v7484, %v8245
      %v8247 = vpop.f32.mrf.mxu0
      %8248 = vmatprep.mubr.bf16.mxu0 0
      %8249 = vmatmul.mubr.bf16.gmra.mxu0 %v7950
      %v8250 = vpop.f32.mrf.mxu0
      %v8251 = vadd.f32 %v7489, %v8250
      %v8252 = vpop.f32.mrf.mxu0
      %v8253 = vpop.f32.mrf.mxu0
      %v8254 = vadd.f32 %v7492, %v8253
      %v8255 = vpop.f32.mrf.mxu0
      %8256 = vmatprep.mubr.bf16.mxu0 0
      %8257 = vmatmul.mubr.bf16.gmra.mxu0 %v7953
      %v8258 = vpop.f32.mrf.mxu0
      %v8259 = vadd.f32 %v7497, %v8258
      %v8260 = vpop.f32.mrf.mxu0
      %v8261 = vpop.f32.mrf.mxu0
      %v8262 = vadd.f32 %v7500, %v8261
      %v8263 = vpop.f32.mrf.mxu0
      %8264 = vmatprep.mubr.bf16.mxu0 0
      %8265 = vmatmul.mubr.bf16.gmra.mxu0 %v7956
      %v8266 = vpop.f32.mrf.mxu0
      %v8267 = vadd.f32 %v7505, %v8266
      %v8268 = vpop.f32.mrf.mxu0
      %v8269 = vpop.f32.mrf.mxu0
      %v8270 = vadd.f32 %v7508, %v8269
      %v8271 = vpop.f32.mrf.mxu0
      %8272 = vmatprep.mubr.bf16.mxu0 0
      %8273 = vmatmul.mubr.bf16.gmra.mxu0 %v7959
      %v8274 = vpop.f32.mrf.mxu0
      %v8275 = vadd.f32 %v7513, %v8274
      %v8276 = vpop.f32.mrf.mxu0
      %v8277 = vpop.f32.mrf.mxu0
      %v8278 = vadd.f32 %v7516, %v8277
      %v8279 = vpop.f32.mrf.mxu0
      %8280 = vmatprep.mubr.bf16.mxu0 0
      %8281 = vmatmul.mubr.bf16.gmra.mxu0 %v7962
      %v8282 = vpop.f32.mrf.mxu0
      %v8283 = vadd.f32 %v7521, %v8282
      %v8284 = vpop.f32.mrf.mxu0
      %v8285 = vpop.f32.mrf.mxu0
      %v8286 = vadd.f32 %v7524, %v8285
      %v8287 = vpop.f32.mrf.mxu0
      %8288 = vmatprep.mubr.bf16.mxu0 0
      %8289 = vmatmul.mubr.bf16.gmra.mxu0 %v7965
      %v8290 = vpop.f32.mrf.mxu0
      %v8291 = vadd.f32 %v7529, %v8290
      %v8292 = vpop.f32.mrf.mxu0
      %v8293 = vpop.f32.mrf.mxu0
      %v8294 = vadd.f32 %v7532, %v8293
      %v8295 = vpop.f32.mrf.mxu0
      %8296 = vmatprep.mubr.bf16.mxu0 0
      %8297 = vmatmul.mubr.bf16.gmra.mxu0 %v7968
      %v8298 = vpop.f32.mrf.mxu0
      %v8299 = vadd.f32 %v7537, %v8298
      %v8300 = vpop.f32.mrf.mxu0
      %v8301 = vpop.f32.mrf.mxu0
      %v8302 = vadd.f32 %v7540, %v8301
      %v8303 = vpop.f32.mrf.mxu0
      %8304 = vmatprep.mubr.bf16.mxu0 0
      %8305 = vmatmul.mubr.bf16.gmra.mxu0 %v7971
      %v8306 = vpop.f32.mrf.mxu0
      %v8307 = vadd.f32 %v7545, %v8306
      %v8308 = vpop.f32.mrf.mxu0
      %v8309 = vpop.f32.mrf.mxu0
      %v8310 = vadd.f32 %v7548, %v8309
      %v8311 = vpop.f32.mrf.mxu0
      %8312 = vmatprep.mubr.bf16.mxu0 0
      %8313 = vmatmul.mubr.bf16.gmra.mxu0 %v7974
      %v8314 = vpop.f32.mrf.mxu0
      %v8315 = vadd.f32 %v7553, %v8314
      %v8316 = vpop.f32.mrf.mxu0
      %v8317 = vpop.f32.mrf.mxu0
      %v8318 = vadd.f32 %v7556, %v8317
      %v8319 = vpop.f32.mrf.mxu0
      %8320 = vmatprep.mubr.bf16.mxu0 0
      %8321 = vmatmul.mubr.bf16.gmra.mxu0 %v7977
      %v8322 = vpop.f32.mrf.mxu0
      %v8323 = vadd.f32 %v7561, %v8322
      %v8324 = vpop.f32.mrf.mxu0
      %v8325 = vpop.f32.mrf.mxu0
      %v8326 = vadd.f32 %v7564, %v8325
      %v8327 = vpop.f32.mrf.mxu0
      %8328 = vmatprep.mubr.bf16.mxu0 0
      %8329 = vmatmul.mubr.bf16.gmra.mxu0 %v7980
      %v8330 = vpop.f32.mrf.mxu0
      %v8331 = vadd.f32 %v7569, %v8330
      %v8332 = vpop.f32.mrf.mxu0
      %v8333 = vpop.f32.mrf.mxu0
      %v8334 = vadd.f32 %v7572, %v8333
      %v8335 = vpop.f32.mrf.mxu0
      %8336 = vmatprep.mubr.bf16.mxu0 0
      %8337 = vmatmul.mubr.bf16.gmra.mxu0 %v7983
      %v8338 = vpop.f32.mrf.mxu0
      %v8339 = vadd.f32 %v7577, %v8338
      %v8340 = vpop.f32.mrf.mxu0
      %v8341 = vpop.f32.mrf.mxu0
      %v8342 = vadd.f32 %v7580, %v8341
      %v8343 = vpop.f32.mrf.mxu0
      %8344 = vmatprep.mubr.bf16.mxu0 0
      %8345 = vmatmul.mubr.bf16.gmra.mxu0 %v7986
      %v8346 = vpop.f32.mrf.mxu0
      %v8347 = vadd.f32 %v7585, %v8346
      %v8348 = vpop.f32.mrf.mxu0
      %v8349 = vpop.f32.mrf.mxu0
      %v8350 = vadd.f32 %v7588, %v8349
      %v8351 = vpop.f32.mrf.mxu0
      %8352 = vmatprep.mubr.bf16.mxu0 0
      %8353 = vmatmul.mubr.bf16.gmra.mxu0 %v7989
      %v8354 = vpop.f32.mrf.mxu0
      %v8355 = vadd.f32 %v7593, %v8354
      %v8356 = vpop.f32.mrf.mxu0
      %v8357 = vpop.f32.mrf.mxu0
      %v8358 = vadd.f32 %v7596, %v8357
      %v8359 = vpop.f32.mrf.mxu0
      %8360 = vmatprep.mubr.bf16.mxu0 0
      %8361 = vmatmul.mubr.bf16.gmra.mxu0 %v7992
      %v8362 = vpop.f32.mrf.mxu0
      %v8363 = vadd.f32 %v7601, %v8362
      %v8364 = vpop.f32.mrf.mxu0
      %v8365 = vpop.f32.mrf.mxu0
      %v8366 = vadd.f32 %v7604, %v8365
      %v8367 = vpop.f32.mrf.mxu0
      %8368 = vmatprep.mubr.bf16.mxu0 0
      %8369 = vmatmul.mubr.bf16.gmra.mxu0 %v7995
      %v8370 = vpop.f32.mrf.mxu0
      %v8371 = vadd.f32 %v7609, %v8370
      %v8372 = vpop.f32.mrf.mxu0
      %v8373 = vpop.f32.mrf.mxu0
      %v8374 = vadd.f32 %v7612, %v8373
      %v8375 = vpop.f32.mrf.mxu0
      %8376 = vmatprep.mubr.bf16.mxu0 0
      %8377 = vmatmul.mubr.bf16.gmra.mxu0 %v7998
      %v8378 = vpop.f32.mrf.mxu0
      %v8379 = vadd.f32 %v7617, %v8378
      %v8380 = vpop.f32.mrf.mxu0
      %v8381 = vpop.f32.mrf.mxu0
      %v8382 = vadd.f32 %v7620, %v8381
      %v8383 = vpop.f32.mrf.mxu0
      %8384 = vmatprep.mubr.bf16.mxu0 0
      %8385 = vmatmul.mubr.bf16.gmra.mxu0 %v8001
      %v8386 = vpop.f32.mrf.mxu0
      %v8387 = vadd.f32 %v7625, %v8386
      %v8388 = vpop.f32.mrf.mxu0
      %v8389 = vpop.f32.mrf.mxu0
      %v8390 = vadd.f32 %v7628, %v8389
      %v8391 = vpop.f32.mrf.mxu0
      %8392 = vmatprep.mubr.bf16.mxu0 0
      %8393 = vmatmul.mubr.bf16.gmra.mxu0 %v8004
      %v8394 = vpop.f32.mrf.mxu0
      %v8395 = vadd.f32 %v7633, %v8394
      %v8396 = vpop.f32.mrf.mxu0
      %v8397 = vpop.f32.mrf.mxu0
      %v8398 = vadd.f32 %v7636, %v8397
      %v8399 = vpop.f32.mrf.mxu0
      %8400 = vmatprep.mubr.bf16.mxu0 0
      %8401 = vmatmul.mubr.bf16.gmra.mxu0 %v8007
      %v8402 = vpop.f32.mrf.mxu0
      %v8403 = vadd.f32 %v7641, %v8402
      %v8404 = vpop.f32.mrf.mxu0
      %v8405 = vpop.f32.mrf.mxu0
      %v8406 = vadd.f32 %v7644, %v8405
      %v8407 = vpop.f32.mrf.mxu0
      %8408 = vmatprep.mubr.bf16.mxu0 0
      %8409 = vmatmul.mubr.bf16.gmra.mxu0 %v8010
      %v8410 = vpop.f32.mrf.mxu0
      %v8411 = vadd.f32 %v7649, %v8410
      %v8412 = vpop.f32.mrf.mxu0
      %v8413 = vpop.f32.mrf.mxu0
      %v8414 = vadd.f32 %v7652, %v8413
      %v8415 = vpop.f32.mrf.mxu0
      %8416 = vmatprep.mubr.bf16.mxu0 0
      %8417 = vmatmul.mubr.bf16.gmra.mxu0 %v8013
      %v8418 = vpop.f32.mrf.mxu0
      %v8419 = vadd.f32 %v7657, %v8418
      %v8420 = vpop.f32.mrf.mxu0
      %v8421 = vpop.f32.mrf.mxu0
      %v8422 = vadd.f32 %v7660, %v8421
      %v8423 = vpop.f32.mrf.mxu0
      %8424 = vmatprep.mubr.bf16.mxu0 0
      %8425 = vmatmul.mubr.bf16.gmra.mxu0 %v8016
      %v8426 = vpop.f32.mrf.mxu0
      %v8427 = vadd.f32 %v7665, %v8426
      %v8428 = vpop.f32.mrf.mxu0
      %v8429 = vpop.f32.mrf.mxu0
      %v8430 = vadd.f32 %v7668, %v8429
      %v8431 = vpop.f32.mrf.mxu0
      %8432 = vmatprep.mubr.bf16.mxu0 0
      %8433 = vmatmul.mubr.bf16.gmra.mxu0 %v8019
      %v8434 = vpop.f32.mrf.mxu0
      %v8435 = vadd.f32 %v7673, %v8434
      %v8436 = vpop.f32.mrf.mxu0
      %v8437 = vpop.f32.mrf.mxu0
      %v8438 = vadd.f32 %v7676, %v8437
      %v8439 = vpop.f32.mrf.mxu0
      %8440 = vmatprep.mubr.bf16.mxu0 0
      %8441 = vmatmul.mubr.bf16.gmra.mxu0 %v8022
      %v8442 = vpop.f32.mrf.mxu0
      %v8443 = vadd.f32 %v7681, %v8442
      %v8444 = vpop.f32.mrf.mxu0
      %v8445 = vpop.f32.mrf.mxu0
      %v8446 = vadd.f32 %v7684, %v8445
      %v8447 = vpop.f32.mrf.mxu0
      %8448 = vmatprep.mubr.bf16.mxu0 0
      %8449 = vmatmul.mubr.bf16.gmra.mxu0 %v8025
      %v8450 = vpop.f32.mrf.mxu0
      %v8451 = vadd.f32 %v7689, %v8450
      %v8452 = vpop.f32.mrf.mxu0
      %v8453 = vpop.f32.mrf.mxu0
      %v8454 = vadd.f32 %v7692, %v8453
      %v8455 = vpop.f32.mrf.mxu0
      %8456 = vmatprep.mubr.bf16.mxu0 0
      %8457 = vmatmul.mubr.bf16.gmra.mxu0 %v8028
      %v8458 = vpop.f32.mrf.mxu0
      %v8459 = vadd.f32 %v7697, %v8458
      %v8460 = vpop.f32.mrf.mxu0
      %v8461 = vpop.f32.mrf.mxu0
      %v8462 = vadd.f32 %v7700, %v8461
      %v8463 = vpop.f32.mrf.mxu0
      %8464 = vmatprep.mubr.bf16.mxu0 0
      %8465 = vmatmul.mubr.bf16.gmra.mxu0 %v8031
      %v8466 = vpop.f32.mrf.mxu0
      %v8467 = vadd.f32 %v7705, %v8466
      %v8468 = vpop.f32.mrf.mxu0
      %v8469 = vpop.f32.mrf.mxu0
      %v8470 = vadd.f32 %v7708, %v8469
      %v8471 = vpop.f32.mrf.mxu0
      %8472 = vmatprep.mubr.bf16.mxu0 0
      %8473 = vmatmul.mubr.bf16.gmra.mxu0 %v8034
      %v8474 = vpop.f32.mrf.mxu0
      %v8475 = vadd.f32 %v7713, %v8474
      %v8476 = vpop.f32.mrf.mxu0
      %v8477 = vpop.f32.mrf.mxu0
      %v8478 = vadd.f32 %v7716, %v8477
      %v8479 = vpop.f32.mrf.mxu0
      %8480 = vmatprep.mubr.bf16.mxu0 0
      %8481 = vmatmul.mubr.bf16.gmra.mxu0 %v8037
      %v8482 = vpop.f32.mrf.mxu0
      %v8483 = vadd.f32 %v7721, %v8482
      %v8484 = vpop.f32.mrf.mxu0
      %v8485 = vpop.f32.mrf.mxu0
      %v8486 = vadd.f32 %v7724, %v8485
      %v8487 = vpop.f32.mrf.mxu0
      %8488 = vmatprep.mubr.bf16.mxu0 0
      %8489 = vmatmul.mubr.bf16.gmra.mxu0 %v8040
      %v8490 = vpop.f32.mrf.mxu0
      %v8491 = vadd.f32 %v7729, %v8490
      %v8492 = vpop.f32.mrf.mxu0
      %v8493 = vpop.f32.mrf.mxu0
      %v8494 = vadd.f32 %v7732, %v8493
      %v8495 = vpop.f32.mrf.mxu0
      %8496 = vmatprep.mubr.bf16.mxu0 0
      %8497 = vmatmul.mubr.bf16.gmra.mxu0 %v8043
      %v8498 = vpop.f32.mrf.mxu0
      %v8499 = vadd.f32 %v7737, %v8498
      %v8500 = vpop.f32.mrf.mxu0
      %v8501 = vpop.f32.mrf.mxu0
      %v8502 = vadd.f32 %v7740, %v8501
      %v8503 = vpop.f32.mrf.mxu0
      %8504 = vmatprep.mubr.bf16.mxu0 0
      %8505 = vmatmul.mubr.bf16.gmra.mxu0 %v8046
      %v8506 = vpop.f32.mrf.mxu0
      %v8507 = vadd.f32 %v7745, %v8506
      %v8508 = vpop.f32.mrf.mxu0
      %v8509 = vpop.f32.mrf.mxu0
      %v8510 = vadd.f32 %v7748, %v8509
      %v8511 = vpop.f32.mrf.mxu0
      %8512 = vmatprep.mubr.bf16.mxu0 0
      %8513 = vmatmul.mubr.bf16.gmra.mxu0 %v8049
      %v8514 = vpop.f32.mrf.mxu0
      %v8515 = vadd.f32 %v7753, %v8514
      %v8516 = vpop.f32.mrf.mxu0
      %v8517 = vpop.f32.mrf.mxu0
      %v8518 = vadd.f32 %v7756, %v8517
      %v8519 = vpop.f32.mrf.mxu0
      %8520 = vmatprep.mubr.bf16.mxu0 0
      %8521 = vmatmul.mubr.bf16.gmra.mxu0 %v8052
      %v8522 = vpop.f32.mrf.mxu0
      %v8523 = vadd.f32 %v7761, %v8522
      %v8524 = vpop.f32.mrf.mxu0
      %v8525 = vpop.f32.mrf.mxu0
      %v8526 = vadd.f32 %v7764, %v8525
      %v8527 = vpop.f32.mrf.mxu0
      %8528 = vmatprep.mubr.bf16.mxu0 0
      %8529 = vmatmul.mubr.bf16.gmra.mxu0 %v8055
      %v8530 = vpop.f32.mrf.mxu0
      %v8531 = vadd.f32 %v7769, %v8530
      %v8532 = vpop.f32.mrf.mxu0
      %v8533 = vpop.f32.mrf.mxu0
      %v8534 = vadd.f32 %v7772, %v8533
      %v8535 = vpop.f32.mrf.mxu0
      %8536 = vmatprep.mubr.bf16.mxu0 0
      %8537 = vmatmul.mubr.bf16.gmra.mxu0 %v8058
      %v8538 = vpop.f32.mrf.mxu0
      %v8539 = vadd.f32 %v7777, %v8538
      %v8540 = vpop.f32.mrf.mxu0
      %v8541 = vpop.f32.mrf.mxu0
      %v8542 = vadd.f32 %v7780, %v8541
      %v8543 = vpop.f32.mrf.mxu0
      %8544 = vmatprep.mubr.bf16.mxu0 0
      %8545 = vmatmul.mubr.bf16.gmra.mxu0 %v8061
      %v8546 = vpop.f32.mrf.mxu0
      %v8547 = vadd.f32 %v7785, %v8546
      %v8548 = vpop.f32.mrf.mxu0
      %v8549 = vpop.f32.mrf.mxu0
      %v8550 = vadd.f32 %v7788, %v8549
      %v8551 = vpop.f32.mrf.mxu0
      %8552 = vmatprep.mubr.bf16.mxu0 0
      %8553 = vmatmul.mubr.bf16.gmra.mxu0 %v8064
      %v8554 = vpop.f32.mrf.mxu0
      %v8555 = vadd.f32 %v7793, %v8554
      %v8556 = vpop.f32.mrf.mxu0
      %v8557 = vpop.f32.mrf.mxu0
      %v8558 = vadd.f32 %v7796, %v8557
      %v8559 = vpop.f32.mrf.mxu0
      %8560 = vmatprep.mubr.bf16.mxu0 0
      %8561 = vmatmul.mubr.bf16.gmra.mxu0 %v8067
      %v8562 = vpop.f32.mrf.mxu0
      %v8563 = vadd.f32 %v7801, %v8562
      %v8564 = vpop.f32.mrf.mxu0
      %v8565 = vpop.f32.mrf.mxu0
      %v8566 = vadd.f32 %v7804, %v8565
      %v8567 = vpop.f32.mrf.mxu0
      %8568 = vmatprep.mubr.bf16.mxu0 0
      %8569 = vmatmul.mubr.bf16.gmra.mxu0 %v8070
      %v8570 = vpop.f32.mrf.mxu0
      %v8571 = vadd.f32 %v7809, %v8570
      %v8572 = vpop.f32.mrf.mxu0
      %v8573 = vpop.f32.mrf.mxu0
      %v8574 = vadd.f32 %v7812, %v8573
      %v8575 = vpop.f32.mrf.mxu0
      %8576 = vmatprep.mubr.bf16.mxu0 0
      %8577 = vmatmul.mubr.bf16.gmra.mxu0 %v8073
      %v8578 = vpop.f32.mrf.mxu0
      %v8579 = vadd.f32 %v7817, %v8578
      %v8580 = vpop.f32.mrf.mxu0
      %v8581 = vpop.f32.mrf.mxu0
      %v8582 = vadd.f32 %v7820, %v8581
      %v8583 = vpop.f32.mrf.mxu0
      %8584 = vmatprep.mubr.bf16.mxu0 0
      %8585 = vmatmul.mubr.bf16.gmra.mxu0 %v8076
      %v8586 = vpop.f32.mrf.mxu0
      %v8587 = vadd.f32 %v7825, %v8586
      %v8588 = vpop.f32.mrf.mxu0
      %v8589 = vpop.f32.mrf.mxu0
      %v8590 = vadd.f32 %v7828, %v8589
      %v8591 = vpop.f32.mrf.mxu0
      %8592 = vmatprep.mubr.bf16.mxu0 0
      %8593 = vmatmul.mubr.bf16.gmra.mxu0 %v8079
      %v8594 = vpop.f32.mrf.mxu0
      %v8595 = vadd.f32 %v7833, %v8594
      %v8596 = vpop.f32.mrf.mxu0
      %v8597 = vpop.f32.mrf.mxu0
      %v8598 = vadd.f32 %v7836, %v8597
      %v8599 = vpop.f32.mrf.mxu0
      %8600 = vmatprep.mubr.bf16.mxu0 0
      %8601 = vmatmul.mubr.bf16.gmra.mxu0 %v8082
      %v8602 = vpop.f32.mrf.mxu0
      %v8603 = vadd.f32 %v7841, %v8602
      %v8604 = vpop.f32.mrf.mxu0
      %v8605 = vpop.f32.mrf.mxu0
      %v8606 = vadd.f32 %v7844, %v8605
      %v8607 = vpop.f32.mrf.mxu0
      %8608 = vmatprep.mubr.bf16.mxu0 0
      %8609 = vmatmul.mubr.bf16.gmra.mxu0 %v8085
      %v8610 = vpop.f32.mrf.mxu0
      %v8611 = vadd.f32 %v7849, %v8610
      %v8612 = vpop.f32.mrf.mxu0
      %v8613 = vpop.f32.mrf.mxu0
      %v8614 = vadd.f32 %v7852, %v8613
      %v8615 = vpop.f32.mrf.mxu0
      %8616 = vmatprep.mubr.bf16.mxu0 0
      %8617 = vmatmul.mubr.bf16.gmra.mxu0 %v8088
      %v8618 = vpop.f32.mrf.mxu0
      %v8619 = vadd.f32 %v7857, %v8618
      %v8620 = vpop.f32.mrf.mxu0
      %v8621 = vpop.f32.mrf.mxu0
      %v8622 = vadd.f32 %v7860, %v8621
      %v8623 = vpop.f32.mrf.mxu0
      %8624 = vmatprep.mubr.bf16.mxu0 0
      %8625 = vmatmul.mubr.bf16.gmra.mxu0 %v8091
      %v8626 = vpop.f32.mrf.mxu0
      %v8627 = vadd.f32 %v7865, %v8626
      %v8628 = vpop.f32.mrf.mxu0
      %v8629 = vpop.f32.mrf.mxu0
      %v8630 = vadd.f32 %v7868, %v8629
      %v8631 = vpop.f32.mrf.mxu0
      %8632 = vmatprep.mubr.bf16.mxu0 0
      %8633 = vmatmul.mubr.bf16.gmra.mxu0 %v8094
      %v8634 = vpop.f32.mrf.mxu0
      %v8635 = vadd.f32 %v7873, %v8634
      %v8636 = vpop.f32.mrf.mxu0
      %v8637 = vpop.f32.mrf.mxu0
      %v8638 = vadd.f32 %v7876, %v8637
      %v8639 = vpop.f32.mrf.mxu0
      %8640 = vdwg.mxu0
      %v8641 = vld [vmem:[%s17] sm:$0x1]
      %v8643 = vlaneseq
      %v8644 = vshrl.u32 %v8643, 7
      %v8645 = vsub.s32 0, %v8644
      %v8646 = vrot.slane %v8641, %v8645
      %v8648 = vadd.f32 %v8131, %v8646
      %v8649 = vadd.f32 %v8134, %v8646
      %v8650 = vadd.f32 %v8139, %v8646
      %v8651 = vadd.f32 %v8142, %v8646
      %v8652 = vadd.f32 %v8147, %v8646
      %v8653 = vadd.f32 %v8150, %v8646
      %v8654 = vadd.f32 %v8155, %v8646
      %v8655 = vadd.f32 %v8158, %v8646
      %v8656 = vadd.f32 %v8163, %v8646
      %v8657 = vadd.f32 %v8166, %v8646
      %v8658 = vadd.f32 %v8171, %v8646
      %v8659 = vadd.f32 %v8174, %v8646
      %v8660 = vadd.f32 %v8179, %v8646
      %v8661 = vadd.f32 %v8182, %v8646
      %v8662 = vadd.f32 %v8187, %v8646
      %v8663 = vadd.f32 %v8190, %v8646
      %v8664 = vadd.f32 %v8195, %v8646
      %v8665 = vadd.f32 %v8198, %v8646
      %v8666 = vadd.f32 %v8203, %v8646
      %v8667 = vadd.f32 %v8206, %v8646
      %v8668 = vadd.f32 %v8211, %v8646
      %v8669 = vadd.f32 %v8214, %v8646
      %v8670 = vadd.f32 %v8219, %v8646
      %v8671 = vadd.f32 %v8222, %v8646
      %v8672 = vadd.f32 %v8227, %v8646
      %v8673 = vadd.f32 %v8230, %v8646
      %v8674 = vadd.f32 %v8235, %v8646
      %v8675 = vadd.f32 %v8238, %v8646
      %v8676 = vadd.f32 %v8243, %v8646
      %v8677 = vadd.f32 %v8246, %v8646
      %v8678 = vadd.f32 %v8251, %v8646
      %v8679 = vadd.f32 %v8254, %v8646
      %v8680 = vadd.f32 %v8259, %v8646
      %v8681 = vadd.f32 %v8262, %v8646
      %v8682 = vadd.f32 %v8267, %v8646
      %v8683 = vadd.f32 %v8270, %v8646
      %v8684 = vadd.f32 %v8275, %v8646
      %v8685 = vadd.f32 %v8278, %v8646
      %v8686 = vadd.f32 %v8283, %v8646
      %v8687 = vadd.f32 %v8286, %v8646
      %v8688 = vadd.f32 %v8291, %v8646
      %v8689 = vadd.f32 %v8294, %v8646
      %v8690 = vadd.f32 %v8299, %v8646
      %v8691 = vadd.f32 %v8302, %v8646
      %v8692 = vadd.f32 %v8307, %v8646
      %v8693 = vadd.f32 %v8310, %v8646
      %v8694 = vadd.f32 %v8315, %v8646
      %v8695 = vadd.f32 %v8318, %v8646
      %v8696 = vadd.f32 %v8323, %v8646
      %v8697 = vadd.f32 %v8326, %v8646
      %v8698 = vadd.f32 %v8331, %v8646
      %v8699 = vadd.f32 %v8334, %v8646
      %v8700 = vadd.f32 %v8339, %v8646
      %v8701 = vadd.f32 %v8342, %v8646
      %v8702 = vadd.f32 %v8347, %v8646
      %v8703 = vadd.f32 %v8350, %v8646
      %v8704 = vadd.f32 %v8355, %v8646
      %v8705 = vadd.f32 %v8358, %v8646
      %v8706 = vadd.f32 %v8363, %v8646
      %v8707 = vadd.f32 %v8366, %v8646
      %v8708 = vadd.f32 %v8371, %v8646
      %v8709 = vadd.f32 %v8374, %v8646
      %v8710 = vadd.f32 %v8379, %v8646
      %v8711 = vadd.f32 %v8382, %v8646
      %v8712 = vadd.f32 %v8387, %v8646
      %v8713 = vadd.f32 %v8390, %v8646
      %v8714 = vadd.f32 %v8395, %v8646
      %v8715 = vadd.f32 %v8398, %v8646
      %v8716 = vadd.f32 %v8403, %v8646
      %v8717 = vadd.f32 %v8406, %v8646
      %v8718 = vadd.f32 %v8411, %v8646
      %v8719 = vadd.f32 %v8414, %v8646
      %v8720 = vadd.f32 %v8419, %v8646
      %v8721 = vadd.f32 %v8422, %v8646
      %v8722 = vadd.f32 %v8427, %v8646
      %v8723 = vadd.f32 %v8430, %v8646
      %v8724 = vadd.f32 %v8435, %v8646
      %v8725 = vadd.f32 %v8438, %v8646
      %v8726 = vadd.f32 %v8443, %v8646
      %v8727 = vadd.f32 %v8446, %v8646
      %v8728 = vadd.f32 %v8451, %v8646
      %v8729 = vadd.f32 %v8454, %v8646
      %v8730 = vadd.f32 %v8459, %v8646
      %v8731 = vadd.f32 %v8462, %v8646
      %v8732 = vadd.f32 %v8467, %v8646
      %v8733 = vadd.f32 %v8470, %v8646
      %v8734 = vadd.f32 %v8475, %v8646
      %v8735 = vadd.f32 %v8478, %v8646
      %v8736 = vadd.f32 %v8483, %v8646
      %v8737 = vadd.f32 %v8486, %v8646
      %v8738 = vadd.f32 %v8491, %v8646
      %v8739 = vadd.f32 %v8494, %v8646
      %v8740 = vadd.f32 %v8499, %v8646
      %v8741 = vadd.f32 %v8502, %v8646
      %v8742 = vadd.f32 %v8507, %v8646
      %v8743 = vadd.f32 %v8510, %v8646
      %v8744 = vadd.f32 %v8515, %v8646
      %v8745 = vadd.f32 %v8518, %v8646
      %v8746 = vadd.f32 %v8523, %v8646
      %v8747 = vadd.f32 %v8526, %v8646
      %v8748 = vadd.f32 %v8531, %v8646
      %v8749 = vadd.f32 %v8534, %v8646
      %v8750 = vadd.f32 %v8539, %v8646
      %v8751 = vadd.f32 %v8542, %v8646
      %v8752 = vadd.f32 %v8547, %v8646
      %v8753 = vadd.f32 %v8550, %v8646
      %v8754 = vadd.f32 %v8555, %v8646
      %v8755 = vadd.f32 %v8558, %v8646
      %v8756 = vadd.f32 %v8563, %v8646
      %v8757 = vadd.f32 %v8566, %v8646
      %v8758 = vadd.f32 %v8571, %v8646
      %v8759 = vadd.f32 %v8574, %v8646
      %v8760 = vadd.f32 %v8579, %v8646
      %v8761 = vadd.f32 %v8582, %v8646
      %v8762 = vadd.f32 %v8587, %v8646
      %v8763 = vadd.f32 %v8590, %v8646
      %v8764 = vadd.f32 %v8595, %v8646
      %v8765 = vadd.f32 %v8598, %v8646
      %v8766 = vadd.f32 %v8603, %v8646
      %v8767 = vadd.f32 %v8606, %v8646
      %v8768 = vadd.f32 %v8611, %v8646
      %v8769 = vadd.f32 %v8614, %v8646
      %v8770 = vadd.f32 %v8619, %v8646
      %v8771 = vadd.f32 %v8622, %v8646
      %v8772 = vadd.f32 %v8627, %v8646
      %v8773 = vadd.f32 %v8630, %v8646
      %v8774 = vadd.f32 %v8635, %v8646
      %v8775 = vadd.f32 %v8638, %v8646
      %vm8776 = vcmask 31744
      %8777 = vst.msk [vmem:[%s599] sm:$0xff] %vm8776, %v8648
      %8778 = vst.msk [vmem:[%s599 + $0x8] sm:$0xff] %vm8776, %v8649
      %8779 = vst.msk [vmem:[%s599 + $0x10] sm:$0xff] %vm8776, %v8650
      %8780 = vst.msk [vmem:[%s599 + $0x18] sm:$0xff] %vm8776, %v8651
      %8781 = vst.msk [vmem:[%s599 + $0x20] sm:$0xff] %vm8776, %v8652
      %8782 = vst.msk [vmem:[%s599 + $0x28] sm:$0xff] %vm8776, %v8653
      %8783 = vst.msk [vmem:[%s599 + $0x30] sm:$0xff] %vm8776, %v8654
      %8784 = vst.msk [vmem:[%s599 + $0x38] sm:$0xff] %vm8776, %v8655
      %8785 = vst.msk [vmem:[%s599 + $0x40] sm:$0xff] %vm8776, %v8656
      %8786 = vst.msk [vmem:[%s599 + $0x48] sm:$0xff] %vm8776, %v8657
      %8787 = vst.msk [vmem:[%s599 + $0x50] sm:$0xff] %vm8776, %v8658
      %8788 = vst.msk [vmem:[%s599 + $0x58] sm:$0xff] %vm8776, %v8659
      %8789 = vst.msk [vmem:[%s599 + $0x60] sm:$0xff] %vm8776, %v8660
      %8790 = vst.msk [vmem:[%s599 + $0x68] sm:$0xff] %vm8776, %v8661
      %8791 = vst.msk [vmem:[%s599 + $0x70] sm:$0xff] %vm8776, %v8662
      %8792 = vst.msk [vmem:[%s599 + $0x78] sm:$0xff] %vm8776, %v8663
      %8793 = vst.msk [vmem:[%s599 + $0x80] sm:$0xff] %vm8776, %v8664
      %8794 = vst.msk [vmem:[%s599 + $0x88] sm:$0xff] %vm8776, %v8665
      %8795 = vst.msk [vmem:[%s599 + $0x90] sm:$0xff] %vm8776, %v8666
      %8796 = vst.msk [vmem:[%s599 + $0x98] sm:$0xff] %vm8776, %v8667
      %8797 = vst.msk [vmem:[%s599 + $0xa0] sm:$0xff] %vm8776, %v8668
      %8798 = vst.msk [vmem:[%s599 + $0xa8] sm:$0xff] %vm8776, %v8669
      %8799 = vst.msk [vmem:[%s599 + $0xb0] sm:$0xff] %vm8776, %v8670
      %8800 = vst.msk [vmem:[%s599 + $0xb8] sm:$0xff] %vm8776, %v8671
      %8801 = vst.msk [vmem:[%s599 + $0xc0] sm:$0xff] %vm8776, %v8672
      %8802 = vst.msk [vmem:[%s599 + $0xc8] sm:$0xff] %vm8776, %v8673
      %8803 = vst.msk [vmem:[%s599 + $0xd0] sm:$0xff] %vm8776, %v8674
      %8804 = vst.msk [vmem:[%s599 + $0xd8] sm:$0xff] %vm8776, %v8675
      %8805 = vst.msk [vmem:[%s599 + $0xe0] sm:$0xff] %vm8776, %v8676
      %8806 = vst.msk [vmem:[%s599 + $0xe8] sm:$0xff] %vm8776, %v8677
      %8807 = vst.msk [vmem:[%s599 + $0xf0] sm:$0xff] %vm8776, %v8678
      %8808 = vst.msk [vmem:[%s599 + $0xf8] sm:$0xff] %vm8776, %v8679
      %8809 = vst.msk [vmem:[%s599 + $0x100] sm:$0xff] %vm8776, %v8680
      %8810 = vst.msk [vmem:[%s599 + $0x108] sm:$0xff] %vm8776, %v8681
      %8811 = vst.msk [vmem:[%s599 + $0x110] sm:$0xff] %vm8776, %v8682
      %8812 = vst.msk [vmem:[%s599 + $0x118] sm:$0xff] %vm8776, %v8683
      %8813 = vst.msk [vmem:[%s599 + $0x120] sm:$0xff] %vm8776, %v8684
      %8814 = vst.msk [vmem:[%s599 + $0x128] sm:$0xff] %vm8776, %v8685
      %8815 = vst.msk [vmem:[%s599 + $0x130] sm:$0xff] %vm8776, %v8686
      %8816 = vst.msk [vmem:[%s599 + $0x138] sm:$0xff] %vm8776, %v8687
      %8817 = vst.msk [vmem:[%s599 + $0x140] sm:$0xff] %vm8776, %v8688
      %8818 = vst.msk [vmem:[%s599 + $0x148] sm:$0xff] %vm8776, %v8689
      %8819 = vst.msk [vmem:[%s599 + $0x150] sm:$0xff] %vm8776, %v8690
      %8820 = vst.msk [vmem:[%s599 + $0x158] sm:$0xff] %vm8776, %v8691
      %8821 = vst.msk [vmem:[%s599 + $0x160] sm:$0xff] %vm8776, %v8692
      %8822 = vst.msk [vmem:[%s599 + $0x168] sm:$0xff] %vm8776, %v8693
      %8823 = vst.msk [vmem:[%s599 + $0x170] sm:$0xff] %vm8776, %v8694
      %8824 = vst.msk [vmem:[%s599 + $0x178] sm:$0xff] %vm8776, %v8695
      %8825 = vst.msk [vmem:[%s599 + $0x180] sm:$0xff] %vm8776, %v8696
      %8826 = vst.msk [vmem:[%s599 + $0x188] sm:$0xff] %vm8776, %v8697
      %8827 = vst.msk [vmem:[%s599 + $0x190] sm:$0xff] %vm8776, %v8698
      %8828 = vst.msk [vmem:[%s599 + $0x198] sm:$0xff] %vm8776, %v8699
      %8829 = vst.msk [vmem:[%s599 + $0x1a0] sm:$0xff] %vm8776, %v8700
      %8830 = vst.msk [vmem:[%s599 + $0x1a8] sm:$0xff] %vm8776, %v8701
      %8831 = vst.msk [vmem:[%s599 + $0x1b0] sm:$0xff] %vm8776, %v8702
      %8832 = vst.msk [vmem:[%s599 + $0x1b8] sm:$0xff] %vm8776, %v8703
      %8833 = vst.msk [vmem:[%s599 + $0x1c0] sm:$0xff] %vm8776, %v8704
      %8834 = vst.msk [vmem:[%s599 + $0x1c8] sm:$0xff] %vm8776, %v8705
      %8835 = vst.msk [vmem:[%s599 + $0x1d0] sm:$0xff] %vm8776, %v8706
      %8836 = vst.msk [vmem:[%s599 + $0x1d8] sm:$0xff] %vm8776, %v8707
      %8837 = vst.msk [vmem:[%s599 + $0x1e0] sm:$0xff] %vm8776, %v8708
      %8838 = vst.msk [vmem:[%s599 + $0x1e8] sm:$0xff] %vm8776, %v8709
      %8839 = vst.msk [vmem:[%s599 + $0x1f0] sm:$0xff] %vm8776, %v8710
      %8840 = vst.msk [vmem:[%s599 + $0x1f8] sm:$0xff] %vm8776, %v8711
      %8841 = vst.msk [vmem:[%s599 + $0x200] sm:$0xff] %vm8776, %v8712
      %8842 = vst.msk [vmem:[%s599 + $0x208] sm:$0xff] %vm8776, %v8713
      %8843 = vst.msk [vmem:[%s599 + $0x210] sm:$0xff] %vm8776, %v8714
      %8844 = vst.msk [vmem:[%s599 + $0x218] sm:$0xff] %vm8776, %v8715
      %8845 = vst.msk [vmem:[%s599 + $0x220] sm:$0xff] %vm8776, %v8716
      %8846 = vst.msk [vmem:[%s599 + $0x228] sm:$0xff] %vm8776, %v8717
      %8847 = vst.msk [vmem:[%s599 + $0x230] sm:$0xff] %vm8776, %v8718
      %8848 = vst.msk [vmem:[%s599 + $0x238] sm:$0xff] %vm8776, %v8719
      %8849 = vst.msk [vmem:[%s599 + $0x240] sm:$0xff] %vm8776, %v8720
      %8850 = vst.msk [vmem:[%s599 + $0x248] sm:$0xff] %vm8776, %v8721
      %8851 = vst.msk [vmem:[%s599 + $0x250] sm:$0xff] %vm8776, %v8722
      %8852 = vst.msk [vmem:[%s599 + $0x258] sm:$0xff] %vm8776, %v8723
      %8853 = vst.msk [vmem:[%s599 + $0x260] sm:$0xff] %vm8776, %v8724
      %8854 = vst.msk [vmem:[%s599 + $0x268] sm:$0xff] %vm8776, %v8725
      %8855 = vst.msk [vmem:[%s599 + $0x270] sm:$0xff] %vm8776, %v8726
      %8856 = vst.msk [vmem:[%s599 + $0x278] sm:$0xff] %vm8776, %v8727
      %8857 = vst.msk [vmem:[%s599 + $0x280] sm:$0xff] %vm8776, %v8728
      %8858 = vst.msk [vmem:[%s599 + $0x288] sm:$0xff] %vm8776, %v8729
      %8859 = vst.msk [vmem:[%s599 + $0x290] sm:$0xff] %vm8776, %v8730
      %8860 = vst.msk [vmem:[%s599 + $0x298] sm:$0xff] %vm8776, %v8731
      %8861 = vst.msk [vmem:[%s599 + $0x2a0] sm:$0xff] %vm8776, %v8732
      %8862 = vst.msk [vmem:[%s599 + $0x2a8] sm:$0xff] %vm8776, %v8733
      %8863 = vst.msk [vmem:[%s599 + $0x2b0] sm:$0xff] %vm8776, %v8734
      %8864 = vst.msk [vmem:[%s599 + $0x2b8] sm:$0xff] %vm8776, %v8735
      %8865 = vst.msk [vmem:[%s599 + $0x2c0] sm:$0xff] %vm8776, %v8736
      %8866 = vst.msk [vmem:[%s599 + $0x2c8] sm:$0xff] %vm8776, %v8737
      %8867 = vst.msk [vmem:[%s599 + $0x2d0] sm:$0xff] %vm8776, %v8738
      %8868 = vst.msk [vmem:[%s599 + $0x2d8] sm:$0xff] %vm8776, %v8739
      %8869 = vst.msk [vmem:[%s599 + $0x2e0] sm:$0xff] %vm8776, %v8740
      %8870 = vst.msk [vmem:[%s599 + $0x2e8] sm:$0xff] %vm8776, %v8741
      %8871 = vst.msk [vmem:[%s599 + $0x2f0] sm:$0xff] %vm8776, %v8742
      %8872 = vst.msk [vmem:[%s599 + $0x2f8] sm:$0xff] %vm8776, %v8743
      %8873 = vst.msk [vmem:[%s599 + $0x300] sm:$0xff] %vm8776, %v8744
      %8874 = vst.msk [vmem:[%s599 + $0x308] sm:$0xff] %vm8776, %v8745
      %8875 = vst.msk [vmem:[%s599 + $0x310] sm:$0xff] %vm8776, %v8746
      %8876 = vst.msk [vmem:[%s599 + $0x318] sm:$0xff] %vm8776, %v8747
      %8877 = vst.msk [vmem:[%s599 + $0x320] sm:$0xff] %vm8776, %v8748
      %8878 = vst.msk [vmem:[%s599 + $0x328] sm:$0xff] %vm8776, %v8749
      %8879 = vst.msk [vmem:[%s599 + $0x330] sm:$0xff] %vm8776, %v8750
      %8880 = vst.msk [vmem:[%s599 + $0x338] sm:$0xff] %vm8776, %v8751
      %8881 = vst.msk [vmem:[%s599 + $0x340] sm:$0xff] %vm8776, %v8752
      %8882 = vst.msk [vmem:[%s599 + $0x348] sm:$0xff] %vm8776, %v8753
      %8883 = vst.msk [vmem:[%s599 + $0x350] sm:$0xff] %vm8776, %v8754
      %8884 = vst.msk [vmem:[%s599 + $0x358] sm:$0xff] %vm8776, %v8755
      %8885 = vst.msk [vmem:[%s599 + $0x360] sm:$0xff] %vm8776, %v8756
      %8886 = vst.msk [vmem:[%s599 + $0x368] sm:$0xff] %vm8776, %v8757
      %8887 = vst.msk [vmem:[%s599 + $0x370] sm:$0xff] %vm8776, %v8758
      %8888 = vst.msk [vmem:[%s599 + $0x378] sm:$0xff] %vm8776, %v8759
      %8889 = vst.msk [vmem:[%s599 + $0x380] sm:$0xff] %vm8776, %v8760
      %8890 = vst.msk [vmem:[%s599 + $0x388] sm:$0xff] %vm8776, %v8761
      %8891 = vst.msk [vmem:[%s599 + $0x390] sm:$0xff] %vm8776, %v8762
      %8892 = vst.msk [vmem:[%s599 + $0x398] sm:$0xff] %vm8776, %v8763
      %8893 = vst.msk [vmem:[%s599 + $0x3a0] sm:$0xff] %vm8776, %v8764
      %8894 = vst.msk [vmem:[%s599 + $0x3a8] sm:$0xff] %vm8776, %v8765
      %8895 = vst.msk [vmem:[%s599 + $0x3b0] sm:$0xff] %vm8776, %v8766
      %8896 = vst.msk [vmem:[%s599 + $0x3b8] sm:$0xff] %vm8776, %v8767
      %8897 = vst.msk [vmem:[%s599 + $0x3c0] sm:$0xff] %vm8776, %v8768
      %8898 = vst.msk [vmem:[%s599 + $0x3c8] sm:$0xff] %vm8776, %v8769
      %8899 = vst.msk [vmem:[%s599 + $0x3d0] sm:$0xff] %vm8776, %v8770
      %8900 = vst.msk [vmem:[%s599 + $0x3d8] sm:$0xff] %vm8776, %v8771
      %8901 = vst.msk [vmem:[%s599 + $0x3e0] sm:$0xff] %vm8776, %v8772
      %8902 = vst.msk [vmem:[%s599 + $0x3e8] sm:$0xff] %vm8776, %v8773
      %8903 = vst.msk [vmem:[%s599 + $0x3f0] sm:$0xff] %vm8776, %v8774
      %8904 = vst.msk [vmem:[%s599 + $0x3f8] sm:$0xff] %vm8776, %v8775
      %s8905 = smul.u32 128, %s29
      %p8906 = scmp.lt.s32.totalorder %s8905, 255
      %s8907 = scalar_select %p8906, %s8905, 255
      %s8908 = smul.addr %s8907, 8
      %s8909 = scalar_lea.vmem %s18, %s8908
      // Predicated region
      $region93: #{nerf_forward.1} parent=91 // pred_check
        %p8910 = pneg %p435
      $region94: #{nerf_forward.1} parent=91 // pred_check_branch
        %8912 = sbr.rel (%p8910) target = $region96
      $region95: #{nerf_forward.1} parent=91 // pred_region
        %s8913 = smul.u32 128, %s29
      $region96: #{nerf_forward.1} parent=91 // pred_fallthru
        _
    $region92: #{nerf_forward.1} parent=5 // pred_fallthru
      _
    %p8914 = scmp.le.s32.totalorder 2, %s24
    // Predicated region
    $region97: #{nerf_forward.1} parent=5 // pred_check
      %p8915 = pneg %p8914
    $region98: #{nerf_forward.1} parent=5 // pred_check_branch
      %8917 = sbr.rel (%p8915) target = $region100
    $region99: #{nerf_forward.1} parent=5 // pred_region
      %s8918 = ssub.s32 %s24, 2
      // Predicated region
      $region101: #{nerf_forward.1} parent=99 // pred_check
        %p8919 = pneg %p441
      $region102: #{nerf_forward.1} parent=99 // pred_check_branch
        %8921 = sbr.rel (%p8919) target = $region104
      $region103: #{nerf_forward.1} parent=99 // pred_region
        %s8922 = smul.u32 128, %s30
        %p8923 = scmp.lt.s32.totalorder %s8922, 255
        %s8924 = scalar_select %p8923, %s8922, 255
        %s8925 = smul.addr %s8924, 8
        %s8926 = scalar_lea.vmem %s18, %s8925
      $region104: #{nerf_forward.1} parent=99 // pred_fallthru
        _
    $region100: #{nerf_forward.1} parent=5 // pred_fallthru
      _
  $region6: #{nerf_forward.1} parent=0 // loop_footer
    %s28 = sadd.s32 1, %s24
  $region7: #{nerf_forward.1} parent=0 // loop_footer_branch
    %23 = sbr.rel target = $region3
  $region8: #{nerf_forward.1} parent=0 // loop_exit
    _

</llo_original>
